<compile_context>
chip_gen: v7x
topology: tpu7x:2x2x1
jax: 0.10.0
libtpu: 0.0.40
codegen_flags: <defaults>
</compile_context>

<pallas_src>
import functools

import jax
import jax.numpy as jnp
from jax.experimental import pallas as pl
from jax.experimental.pallas import tpu as pltpu

BN_EPS = 1e-5


def _round_up(x, m):
    return (x + m - 1) // m * m


def _pick_tm(m):
    """Row-tile size: big tiles (few grid steps), but keep >= 2 M blocks for
    the main layers so the 'parallel' axis can shard across v7x's 2 TCs."""
    if m >= 2048:
        return 512
    if m >= 512:
        return 256
    return max(8, _round_up(m, 8))  # tiny M: single full block


# ---------------------------------------------------------------------------
# Kernel 1: matmul + optional ReLU + BatchNorm affine epilogue.
#     out = scale * relu_opt(X @ W) + bias
# Full-K / full-N blocks, grid only over M. bf16 operands, f32 accumulate.
# ---------------------------------------------------------------------------
def _conv_matmul_kernel(x_ref, w_ref, scale_ref, bias_ref, o_ref, *, relu):
    y = jnp.dot(x_ref[...], w_ref[...], preferred_element_type=jnp.float32)
    if relu:
        y = jnp.maximum(y, 0.0)
    o_ref[...] = (y * scale_ref[...] + bias_ref[...]).astype(o_ref.dtype)


def fused_matmul(x, w, scale=None, bias=None, relu=False):
    """x: (M, K), w: (K, N) -> (M, N) f32 = scale*relu_opt(x@w)+bias."""
    M, K = x.shape
    K2, N = w.shape
    assert K == K2
    if scale is None:
        scale = jnp.ones((N,), jnp.float32)
    if bias is None:
        bias = jnp.zeros((N,), jnp.float32)

    TM = _pick_tm(M)
    Mp = _round_up(M, TM)
    Kp = _round_up(K, 16)  # keep bf16 sublane tiles aligned; zero-pad is exact
    xp = jnp.pad(x.astype(jnp.bfloat16), ((0, Mp - M), (0, Kp - K)))
    wp = jnp.pad(w.astype(jnp.bfloat16), ((0, Kp - K), (0, 0)))
    sp = scale.astype(jnp.float32).reshape(1, N)
    bp = bias.astype(jnp.float32).reshape(1, N)

    out = pl.pallas_call(
        functools.partial(_conv_matmul_kernel, relu=relu),
        out_shape=jax.ShapeDtypeStruct((Mp, N), jnp.float32),
        grid=(Mp // TM,),
        in_specs=[
            pl.BlockSpec((TM, Kp), lambda i: (i, 0)),
            pl.BlockSpec((Kp, N), lambda i: (0, 0)),
            pl.BlockSpec((1, N), lambda i: (0, 0)),
            pl.BlockSpec((1, N), lambda i: (0, 0)),
        ],
        out_specs=pl.BlockSpec((TM, N), lambda i: (i, 0)),
        compiler_params=pltpu.CompilerParams(
            dimension_semantics=("parallel",)),
    )(xp, wp, sp, bp)
    return out[:M]


# ---------------------------------------------------------------------------
# Kernel 2: DSConv pointwise (x@W1 -> ReLU -> BN) chained with the transition
# 1x1 conv (@W2) in one kernel; the 128-wide intermediate never leaves VMEM.
# ---------------------------------------------------------------------------
def _pw_transition_kernel(x_ref, w1_ref, s1_ref, b1_ref, w2_ref, o_ref):
    h = jnp.dot(x_ref[...], w1_ref[...], preferred_element_type=jnp.float32)
    h = jnp.maximum(h, 0.0)
    h = h * s1_ref[...] + b1_ref[...]
    o_ref[...] = jnp.dot(h.astype(jnp.bfloat16), w2_ref[...],
                         preferred_element_type=jnp.float32).astype(o_ref.dtype)


def fused_pw_transition(x, w1, scale1, bias1, w2):
    M, K1 = x.shape
    _, N1 = w1.shape
    _, N2 = w2.shape
    TM = _pick_tm(M)
    Mp = _round_up(M, TM)
    xp = jnp.pad(x.astype(jnp.bfloat16), ((0, Mp - M), (0, 0)))

    out = pl.pallas_call(
        _pw_transition_kernel,
        out_shape=jax.ShapeDtypeStruct((Mp, N2), jnp.float32),
        grid=(Mp // TM,),
        in_specs=[
            pl.BlockSpec((TM, K1), lambda i: (i, 0)),
            pl.BlockSpec((K1, N1), lambda i: (0, 0)),
            pl.BlockSpec((1, N1), lambda i: (0, 0)),
            pl.BlockSpec((1, N1), lambda i: (0, 0)),
            pl.BlockSpec((N1, N2), lambda i: (0, 0)),
        ],
        out_specs=pl.BlockSpec((TM, N2), lambda i: (i, 0)),
        compiler_params=pltpu.CompilerParams(
            dimension_semantics=("parallel",)),
    )(xp, w1.astype(jnp.bfloat16),
      scale1.astype(jnp.float32).reshape(1, N1),
      bias1.astype(jnp.float32).reshape(1, N1),
      w2.astype(jnp.bfloat16))
    return out[:M]


# ---------------------------------------------------------------------------
# Kernel 3: shared-filter depthwise 3x3 as a 9-tap VPU stencil.
# One shared (3,3) filter applied independently to every channel (NHWC;
# channels stay in the lane dim, taps are scalar*tensor FMAs).
# ---------------------------------------------------------------------------
def _depthwise3x3_kernel(w_ref, x_ref, o_ref):
    # w_ref: (3,3) f32 in SMEM; x_ref: (N, H+2, W+2, C); o_ref: (N, H, W, C)
    n, h, w, c = o_ref.shape
    x = x_ref[...]
    acc = jnp.zeros((n, h, w, c), jnp.float32)
    for i in range(3):
        for j in range(3):
            acc = acc + w_ref[i, j] * x[:, i:i + h, j:j + w, :]
    o_ref[...] = acc


def depthwise3x3_shared(x_nhwc, w33):
    N, H, W, C = x_nhwc.shape
    xp = jnp.pad(x_nhwc.astype(jnp.float32),
                 ((0, 0), (1, 1), (1, 1), (0, 0)))
    return pl.pallas_call(
        _depthwise3x3_kernel,
        out_shape=jax.ShapeDtypeStruct((N, H, W, C), jnp.float32),
        in_specs=[
            pl.BlockSpec(memory_space=pltpu.MemorySpace.SMEM),
            pl.BlockSpec(memory_space=pltpu.MemorySpace.VMEM),
        ],
        out_specs=pl.BlockSpec(memory_space=pltpu.MemorySpace.VMEM),
    )(w33.astype(jnp.float32), xp)


# ---------------------------------------------------------------------------
# Plain-JAX glue (NHWC, lane-dense, no transposes)
# ---------------------------------------------------------------------------
def im2col_nhwc(x, kh, kw, stride, padding, dilation):
    N, H, W, C = x.shape
    Ho = (H + 2 * padding - dilation * (kh - 1) - 1) // stride + 1
    Wo = (W + 2 * padding - dilation * (kw - 1) - 1) // stride + 1
    xp = jnp.pad(x, ((0, 0), (padding, padding), (padding, padding), (0, 0)))
    taps = []
    for i in range(kh):
        for j in range(kw):
            hs, ws = i * dilation, j * dilation
            taps.append(xp[:, hs:hs + stride * (Ho - 1) + 1:stride,
                           ws:ws + stride * (Wo - 1) + 1:stride, :])
    cols = jnp.stack(taps, axis=3)                    # (N, Ho, Wo, kh*kw, C)
    return cols.reshape(N * Ho * Wo, kh * kw * C), Ho, Wo
    # TODO(synk): build the im2col tile-by-tile inside the matmul kernel to
    # avoid the 9x HBM expansion entirely (review item 5); feature maps here
    # are small enough that this is a minor cost.


def _bn_affine(bn):
    gamma, beta, mean, var = bn
    scale = gamma / jnp.sqrt(var + BN_EPS)
    bias = beta - mean * scale
    return scale, bias


def conv3x3_relu_bn(x, w, bn, stride=1, padding=1, dilation=1):
    """Conv2d(3x3, bias=False) -> ReLU -> BatchNorm (eval) -> Dropout (id)."""
    N = x.shape[0]
    cout = w.shape[0]
    cols, Ho, Wo = im2col_nhwc(x.astype(jnp.bfloat16), 3, 3,
                               stride, padding, dilation)
    wm = jnp.transpose(w, (2, 3, 1, 0)).reshape(-1, cout)  # (kh*kw*cin, cout)
    scale, bias = _bn_affine(bn)
    y = fused_matmul(cols, wm, scale, bias, relu=True)     # (N*Ho*Wo, cout)
    return y.reshape(N, Ho, Wo, cout)


def _scramble(dwy):
    # torch.stack(outputs, dim=-1).view(N, C, H, W): reinterpret the NHWC
    # buffer as NCHW; return it back in NHWC form for the pointwise matmul.
    N, H, W, C = dwy.shape
    return jnp.transpose(dwy.reshape(N, C, H, W), (0, 2, 3, 1))


def ds_conv_transition(x, dw_w, pw_w, pw_bn, t_w):
    """DepthwiseSeparableConv (shared 3x3 stencil + scramble + 1x1/ReLU/BN)
    fused with the following transition 1x1 conv (one pallas_call)."""
    N, H, W, C = x.shape
    dwy = depthwise3x3_shared(x, dw_w[0, 0])
    s = _scramble(dwy).reshape(N * H * W, C)
    w1 = pw_w.reshape(pw_w.shape[0], C).T                  # (C, 128)
    scale, bias = _bn_affine(pw_bn)
    w2 = t_w.reshape(t_w.shape[0], t_w.shape[1]).T         # (128, 16)
    y = fused_pw_transition(s, w1, scale, bias, w2)        # (M, 16)
    return y.reshape(N, H, W, w2.shape[1])


def ds_conv(x, dw_w, pw_w, pw_bn):
    """DepthwiseSeparableConv without a following transition (block 4)."""
    N, H, W, C = x.shape
    dwy = depthwise3x3_shared(x, dw_w[0, 0])
    s = _scramble(dwy).reshape(N * H * W, C)
    w1 = pw_w.reshape(pw_w.shape[0], C).T
    scale, bias = _bn_affine(pw_bn)
    y = fused_matmul(s, w1, scale, bias, relu=True)
    return y.reshape(N, H, W, pw_w.shape[0])


# ---------------------------------------------------------------------------
# Parameter initialization (deterministic, synthetic)
# ---------------------------------------------------------------------------
def _init_params(key):
    keys = iter(jax.random.split(key, 128))

    def w(shape):
        return 0.1 * jax.random.normal(next(keys), shape, jnp.float32)

    def bn(c):
        gamma = jax.random.uniform(next(keys), (c,), jnp.float32, 0.5, 1.5)
        beta = 0.1 * jax.random.normal(next(keys), (c,), jnp.float32)
        mean = 0.1 * jax.random.normal(next(keys), (c,), jnp.float32)
        var = jax.random.uniform(next(keys), (c,), jnp.float32, 0.5, 1.5)
        return (gamma, beta, mean, var)

    def ds(cin, cout):
        return dict(dw=w((1, 1, 3, 3)), pw=w((cout, cin, 1, 1)),
                    pw_bn=bn(cout))

    params = dict(
        b1=dict(w1=w((16, 3, 3, 3)), bn1=bn(16),
                w2=w((32, 16, 3, 3)), bn2=bn(32),
                w3=w((64, 32, 3, 3)), bn3=bn(64),
                **ds(64, 128)),
        t1=w((16, 128, 1, 1)),
        b2=dict(w1=w((32, 16, 3, 3)), bn1=bn(32),
                w2=w((64, 32, 3, 3)), bn2=bn(64),
                **ds(64, 128)),
        t2=w((16, 128, 1, 1)),
        b3=dict(w1=w((32, 16, 3, 3)), bn1=bn(32),
                w2=w((64, 32, 3, 3)), bn2=bn(64),
                **ds(64, 128)),
        t3=w((16, 128, 1, 1)),
        b4=dict(w1=w((32, 16, 3, 3)), bn1=bn(32),
                w2=w((64, 32, 3, 3)), bn2=bn(64),
                **ds(64, 128)),
        fc_w=w((10, 128)),
        fc_b=0.1 * jax.random.normal(next(keys), (10,), jnp.float32),
    )
    return params


# ---------------------------------------------------------------------------
# Full forward pass (activations NHWC throughout)
# ---------------------------------------------------------------------------
def net_forward(params, x_nchw):
    x = jnp.transpose(x_nchw, (0, 2, 3, 1))          # one-time NCHW -> NHWC

    b = params["b1"]                                  # 32x32
    h = conv3x3_relu_bn(x, b["w1"], b["bn1"])
    h = conv3x3_relu_bn(h, b["w2"], b["bn2"])
    h = conv3x3_relu_bn(h, b["w3"], b["bn3"], stride=2)      # -> 16x16
    h = ds_conv_transition(h, b["dw"], b["pw"], b["pw_bn"], params["t1"])

    b = params["b2"]                                  # 16x16
    h = conv3x3_relu_bn(h, b["w1"], b["bn1"])
    h = conv3x3_relu_bn(h, b["w2"], b["bn2"])
    h = ds_conv_transition(h, b["dw"], b["pw"], b["pw_bn"], params["t2"])

    b = params["b3"]                                  # 16x16
    h = conv3x3_relu_bn(h, b["w1"], b["bn1"])
    h = conv3x3_relu_bn(h, b["w2"], b["bn2"])
    h = ds_conv_transition(h, b["dw"], b["pw"], b["pw_bn"], params["t3"])

    b = params["b4"]                                  # 16x16 -> 14x14
    h = conv3x3_relu_bn(h, b["w1"], b["bn1"])
    h = conv3x3_relu_bn(h, b["w2"], b["bn2"], dilation=2)
    h = ds_conv(h, b["dw"], b["pw"], b["pw_bn"])      # (N, 14, 14, 128)

    # GAP (AvgPool2d(14)) + flatten, and the tiny 2x128x10 FC: plain JAX
    # (Pallas here would be pure pad/launch overhead — perf review item 10).
    h = jnp.mean(h, axis=(1, 2))                      # (N, 128)
    logits = h @ params["fc_w"].T + params["fc_b"]    # (N, 10)
    return logits


if __name__ == "__main__":
    key = jax.random.PRNGKey(0)
    pkey, xkey = jax.random.split(key)
    params = _init_params(pkey)

    # AvgPool2d(14) after three 2x-reductions-worth of geometry forces a
    # 32x32 input (CIFAR-style), batch=2, 3 channels, NCHW like the module.
    x = jax.random.normal(xkey, (2, 3, 32, 32), jnp.float32)

    out = jax.jit(net_forward)(params, x)
    out = jax.block_until_ready(out)
    assert out.shape == (2, 10), out.shape
    assert jnp.all(jnp.isfinite(out))
    print("KERNEL_OK")
</pallas_src>

<mosaic_0001>
module attributes {stable_mosaic.version = 11 : i64} {
  func.func @_conv_matmul_kernel(%arg0: i32, %arg1: memref<512x32xbf16, #tpu.memory_space<vmem>>, %arg2: memref<32x16xbf16, #tpu.memory_space<vmem>>, %arg3: memref<1x16xf32, #tpu.memory_space<vmem>>, %arg4: memref<1x16xf32, #tpu.memory_space<vmem>>, %arg5: memref<512x16xf32, #tpu.memory_space<vmem>>) attributes {dimension_semantics = [#tpu.dimension_semantics<parallel>], iteration_bounds = array<i64: 4>, scalar_prefetch = 0 : i64, scratch_operands = 0 : i64, tpu.core_type = #tpu.core_type<tc>, window_params = [{transform_indices = @transform_0, window_bounds = array<i64: 512, 32>}, {pipeline_mode = #tpu.pipeline_mode<synchronous>, transform_indices = @transform_1, window_bounds = array<i64: 32, 16>}, {pipeline_mode = #tpu.pipeline_mode<synchronous>, transform_indices = @transform_2, window_bounds = array<i64: 1, 16>}, {pipeline_mode = #tpu.pipeline_mode<synchronous>, transform_indices = @transform_3, window_bounds = array<i64: 1, 16>}, {transform_indices = @transform_4, window_bounds = array<i64: 512, 16>}]} {
    %c0 = arith.constant 0 : index
    %c0_0 = arith.constant 0 : index
    %0 = vector.load %arg1[%c0, %c0_0] : memref<512x32xbf16, #tpu.memory_space<vmem>>, vector<512x32xbf16>
    %c0_1 = arith.constant 0 : index
    %c0_2 = arith.constant 0 : index
    %1 = vector.load %arg2[%c0_1, %c0_2] : memref<32x16xbf16, #tpu.memory_space<vmem>>, vector<32x16xbf16>
    %cst = arith.constant dense<0.000000e+00> : vector<512x16xf32>
    %2 = tpu.matmul %0, %1, %cst {dimension_numbers = #tpu.dot_dimension_numbers<[1], [0], [0], [1], [0, 0, 1, 1], [], []>} : vector<512x32xbf16>, vector<32x16xbf16>, vector<512x16xf32> -> vector<512x16xf32>
    %cst_3 = arith.constant 0.000000e+00 : f32
    %3 = vector.broadcast %cst_3 : f32 to vector<512x16xf32>
    %4 = arith.maximumf %2, %3 : vector<512x16xf32>
    %c0_4 = arith.constant 0 : index
    %c0_5 = arith.constant 0 : index
    %5 = vector.load %arg3[%c0_4, %c0_5] : memref<1x16xf32, #tpu.memory_space<vmem>>, vector<1x16xf32>
    %6 = vector.broadcast %5 : vector<1x16xf32> to vector<512x16xf32>
    %7 = arith.mulf %4, %6 : vector<512x16xf32>
    %c0_6 = arith.constant 0 : index
    %c0_7 = arith.constant 0 : index
    %8 = vector.load %arg4[%c0_6, %c0_7] : memref<1x16xf32, #tpu.memory_space<vmem>>, vector<1x16xf32>
    %9 = vector.broadcast %8 : vector<1x16xf32> to vector<512x16xf32>
    %10 = arith.addf %7, %9 : vector<512x16xf32>
    %c0_8 = arith.constant 0 : index
    %c0_9 = arith.constant 0 : index
    %11 = vector.load %arg5[%c0_8, %c0_9] : memref<512x16xf32, #tpu.memory_space<vmem>>, vector<512x16xf32>
    tpu.vector_store %arg5[%c0_8, %c0_9], %10 {strides = array<i32>} : memref<512x16xf32, #tpu.memory_space<vmem>>, vector<512x16xf32>,
    return
  }
  func.func @transform_0(%arg0: i32) -> (i32, i32) {
    %c0_i32 = arith.constant 0 : i32
    %c0_i32_0 = arith.constant 0 : i32
    return %arg0, %c0_i32 : i32, i32
  }
  func.func @transform_1(%arg0: i32) -> (i32, i32) {
    %c0_i32 = arith.constant 0 : i32
    %c0_i32_0 = arith.constant 0 : i32
    %c0_i32_1 = arith.constant 0 : i32
    return %c0_i32, %c0_i32_0 : i32, i32
  }
  func.func @transform_2(%arg0: i32) -> (i32, i32) {
    %c0_i32 = arith.constant 0 : i32
    %c0_i32_0 = arith.constant 0 : i32
    %c0_i32_1 = arith.constant 0 : i32
    return %c0_i32, %c0_i32_0 : i32, i32
  }
  func.func @transform_3(%arg0: i32) -> (i32, i32) {
    %c0_i32 = arith.constant 0 : i32
    %c0_i32_0 = arith.constant 0 : i32
    %c0_i32_1 = arith.constant 0 : i32
    return %c0_i32, %c0_i32_0 : i32, i32
  }
  func.func @transform_4(%arg0: i32) -> (i32, i32) {
    %c0_i32 = arith.constant 0 : i32
    %c0_i32_0 = arith.constant 0 : i32
    return %arg0, %c0_i32 : i32, i32
  }
}

module attributes {stable_mosaic.version = 11 : i64} {
  func.func @_conv_matmul_kernel(%arg0: i32, %arg1: memref<512x144xbf16, #tpu.memory_space<vmem>>, %arg2: memref<144x32xbf16, #tpu.memory_space<vmem>>, %arg3: memref<1x32xf32, #tpu.memory_space<vmem>>, %arg4: memref<1x32xf32, #tpu.memory_space<vmem>>, %arg5: memref<512x32xf32, #tpu.memory_space<vmem>>) attributes {dimension_semantics = [#tpu.dimension_semantics<parallel>], iteration_bounds = array<i64: 4>, scalar_prefetch = 0 : i64, scratch_operands = 0 : i64, tpu.core_type = #tpu.core_type<tc>, window_params = [{transform_indices = @transform_0, window_bounds = array<i64: 512, 144>}, {pipeline_mode = #tpu.pipeline_mode<synchronous>, transform_indices = @transform_1, window_bounds = array<i64: 144, 32>}, {pipeline_mode = #tpu.pipeline_mode<synchronous>, transform_indices = @transform_2, window_bounds = array<i64: 1, 32>}, {pipeline_mode = #tpu.pipeline_mode<synchronous>, transform_indices = @transform_3, window_bounds = array<i64: 1, 32>}, {transform_indices = @transform_4, window_bounds = array<i64: 512, 32>}]} {
    %c0 = arith.constant 0 : index
    %c0_0 = arith.constant 0 : index
    %0 = vector.load %arg1[%c0, %c0_0] : memref<512x144xbf16, #tpu.memory_space<vmem>>, vector<512x144xbf16>
    %c0_1 = arith.constant 0 : index
    %c0_2 = arith.constant 0 : index
    %1 = vector.load %arg2[%c0_1, %c0_2] : memref<144x32xbf16, #tpu.memory_space<vmem>>, vector<144x32xbf16>
    %cst = arith.constant dense<0.000000e+00> : vector<512x32xf32>
    %2 = tpu.matmul %0, %1, %cst {dimension_numbers = #tpu.dot_dimension_numbers<[1], [0], [0], [1], [0, 0, 1, 1], [], []>} : vector<512x144xbf16>, vector<144x32xbf16>, vector<512x32xf32> -> vector<512x32xf32>
    %cst_3 = arith.constant 0.000000e+00 : f32
    %3 = vector.broadcast %cst_3 : f32 to vector<512x32xf32>
    %4 = arith.maximumf %2, %3 : vector<512x32xf32>
    %c0_4 = arith.constant 0 : index
    %c0_5 = arith.constant 0 : index
    %5 = vector.load %arg3[%c0_4, %c0_5] : memref<1x32xf32, #tpu.memory_space<vmem>>, vector<1x32xf32>
    %6 = vector.broadcast %5 : vector<1x32xf32> to vector<512x32xf32>
    %7 = arith.mulf %4, %6 : vector<512x32xf32>
    %c0_6 = arith.constant 0 : index
    %c0_7 = arith.constant 0 : index
    %8 = vector.load %arg4[%c0_6, %c0_7] : memref<1x32xf32, #tpu.memory_space<vmem>>, vector<1x32xf32>
    %9 = vector.broadcast %8 : vector<1x32xf32> to vector<512x32xf32>
    %10 = arith.addf %7, %9 : vector<512x32xf32>
    %c0_8 = arith.constant 0 : index
    %c0_9 = arith.constant 0 : index
    %11 = vector.load %arg5[%c0_8, %c0_9] : memref<512x32xf32, #tpu.memory_space<vmem>>, vector<512x32xf32>
    tpu.vector_store %arg5[%c0_8, %c0_9], %10 {strides = array<i32>} : memref<512x32xf32, #tpu.memory_space<vmem>>, vector<512x32xf32>,
    return
  }
  func.func @transform_0(%arg0: i32) -> (i32, i32) {
    %c0_i32 = arith.constant 0 : i32
    %c0_i32_0 = arith.constant 0 : i32
    return %arg0, %c0_i32 : i32, i32
  }
  func.func @transform_1(%arg0: i32) -> (i32, i32) {
    %c0_i32 = arith.constant 0 : i32
    %c0_i32_0 = arith.constant 0 : i32
    %c0_i32_1 = arith.constant 0 : i32
    return %c0_i32, %c0_i32_0 : i32, i32
  }
  func.func @transform_2(%arg0: i32) -> (i32, i32) {
    %c0_i32 = arith.constant 0 : i32
    %c0_i32_0 = arith.constant 0 : i32
    %c0_i32_1 = arith.constant 0 : i32
    return %c0_i32, %c0_i32_0 : i32, i32
  }
  func.func @transform_3(%arg0: i32) -> (i32, i32) {
    %c0_i32 = arith.constant 0 : i32
    %c0_i32_0 = arith.constant 0 : i32
    %c0_i32_1 = arith.constant 0 : i32
    return %c0_i32, %c0_i32_0 : i32, i32
  }
  func.func @transform_4(%arg0: i32) -> (i32, i32) {
    %c0_i32 = arith.constant 0 : i32
    %c0_i32_0 = arith.constant 0 : i32
    return %arg0, %c0_i32 : i32, i32
  }
}

module attributes {stable_mosaic.version = 11 : i64} {
  func.func @_conv_matmul_kernel(%arg0: i32, %arg1: memref<256x288xbf16, #tpu.memory_space<vmem>>, %arg2: memref<288x64xbf16, #tpu.memory_space<vmem>>, %arg3: memref<1x64xf32, #tpu.memory_space<vmem>>, %arg4: memref<1x64xf32, #tpu.memory_space<vmem>>, %arg5: memref<256x64xf32, #tpu.memory_space<vmem>>) attributes {dimension_semantics = [#tpu.dimension_semantics<parallel>], iteration_bounds = array<i64: 2>, scalar_prefetch = 0 : i64, scratch_operands = 0 : i64, tpu.core_type = #tpu.core_type<tc>, window_params = [{transform_indices = @transform_0, window_bounds = array<i64: 256, 288>}, {pipeline_mode = #tpu.pipeline_mode<synchronous>, transform_indices = @transform_1, window_bounds = array<i64: 288, 64>}, {pipeline_mode = #tpu.pipeline_mode<synchronous>, transform_indices = @transform_2, window_bounds = array<i64: 1, 64>}, {pipeline_mode = #tpu.pipeline_mode<synchronous>, transform_indices = @transform_3, window_bounds = array<i64: 1, 64>}, {transform_indices = @transform_4, window_bounds = array<i64: 256, 64>}]} {
    %c0 = arith.constant 0 : index
    %c0_0 = arith.constant 0 : index
    %0 = vector.load %arg1[%c0, %c0_0] : memref<256x288xbf16, #tpu.memory_space<vmem>>, vector<256x288xbf16>
    %c0_1 = arith.constant 0 : index
    %c0_2 = arith.constant 0 : index
    %1 = vector.load %arg2[%c0_1, %c0_2] : memref<288x64xbf16, #tpu.memory_space<vmem>>, vector<288x64xbf16>
    %cst = arith.constant dense<0.000000e+00> : vector<256x64xf32>
    %2 = tpu.matmul %0, %1, %cst {dimension_numbers = #tpu.dot_dimension_numbers<[1], [0], [0], [1], [0, 0, 1, 1], [], []>} : vector<256x288xbf16>, vector<288x64xbf16>, vector<256x64xf32> -> vector<256x64xf32>
    %cst_3 = arith.constant 0.000000e+00 : f32
    %3 = vector.broadcast %cst_3 : f32 to vector<256x64xf32>
    %4 = arith.maximumf %2, %3 : vector<256x64xf32>
    %c0_4 = arith.constant 0 : index
    %c0_5 = arith.constant 0 : index
    %5 = vector.load %arg3[%c0_4, %c0_5] : memref<1x64xf32, #tpu.memory_space<vmem>>, vector<1x64xf32>
    %6 = vector.broadcast %5 : vector<1x64xf32> to vector<256x64xf32>
    %7 = arith.mulf %4, %6 : vector<256x64xf32>
    %c0_6 = arith.constant 0 : index
    %c0_7 = arith.constant 0 : index
    %8 = vector.load %arg4[%c0_6, %c0_7] : memref<1x64xf32, #tpu.memory_space<vmem>>, vector<1x64xf32>
    %9 = vector.broadcast %8 : vector<1x64xf32> to vector<256x64xf32>
    %10 = arith.addf %7, %9 : vector<256x64xf32>
    %c0_8 = arith.constant 0 : index
    %c0_9 = arith.constant 0 : index
    %11 = vector.load %arg5[%c0_8, %c0_9] : memref<256x64xf32, #tpu.memory_space<vmem>>, vector<256x64xf32>
    tpu.vector_store %arg5[%c0_8, %c0_9], %10 {strides = array<i32>} : memref<256x64xf32, #tpu.memory_space<vmem>>, vector<256x64xf32>,
    return
  }
  func.func @transform_0(%arg0: i32) -> (i32, i32) {
    %c0_i32 = arith.constant 0 : i32
    %c0_i32_0 = arith.constant 0 : i32
    return %arg0, %c0_i32 : i32, i32
  }
  func.func @transform_1(%arg0: i32) -> (i32, i32) {
    %c0_i32 = arith.constant 0 : i32
    %c0_i32_0 = arith.constant 0 : i32
    %c0_i32_1 = arith.constant 0 : i32
    return %c0_i32, %c0_i32_0 : i32, i32
  }
  func.func @transform_2(%arg0: i32) -> (i32, i32) {
    %c0_i32 = arith.constant 0 : i32
    %c0_i32_0 = arith.constant 0 : i32
    %c0_i32_1 = arith.constant 0 : i32
    return %c0_i32, %c0_i32_0 : i32, i32
  }
  func.func @transform_3(%arg0: i32) -> (i32, i32) {
    %c0_i32 = arith.constant 0 : i32
    %c0_i32_0 = arith.constant 0 : i32
    %c0_i32_1 = arith.constant 0 : i32
    return %c0_i32, %c0_i32_0 : i32, i32
  }
  func.func @transform_4(%arg0: i32) -> (i32, i32) {
    %c0_i32 = arith.constant 0 : i32
    %c0_i32_0 = arith.constant 0 : i32
    return %arg0, %c0_i32 : i32, i32
  }
}

module attributes {stable_mosaic.version = 11 : i64} {
  func.func @_depthwise3x3_kernel(%arg0: memref<3x3xf32, #tpu.memory_space<smem>>, %arg1: memref<2x18x18x64xf32, #tpu.memory_space<vmem>>, %arg2: memref<2x16x16x64xf32, #tpu.memory_space<vmem>>) attributes {dimension_semantics = [], scalar_prefetch = 0 : i64, scratch_operands = 0 : i64, tpu.core_type = #tpu.core_type<tc>} {
    %c0 = arith.constant 0 : index
    %c0_0 = arith.constant 0 : index
    %c0_1 = arith.constant 0 : index
    %c0_2 = arith.constant 0 : index
    %0 = vector.load %arg1[%c0, %c0_0, %c0_1, %c0_2] : memref<2x18x18x64xf32, #tpu.memory_space<vmem>>, vector<2x18x18x64xf32>
    %cst = arith.constant 0.000000e+00 : f32
    %1 = vector.broadcast %cst : f32 to vector<2x16x16x64xf32>
    %c0_3 = arith.constant 0 : index
    %c0_4 = arith.constant 0 : index
    %2 = memref.load %arg0[%c0_3, %c0_4] : memref<3x3xf32, #tpu.memory_space<smem>>
    %3 = vector.extract_strided_slice %0 {offsets = [0, 0, 0, 0], sizes = [2, 16, 16, 64], strides = [1, 1, 1, 1]} : vector<2x18x18x64xf32> to vector<2x16x16x64xf32>
    %4 = vector.broadcast %2 : f32 to vector<2x16x16x64xf32>
    %5 = arith.mulf %4, %3 : vector<2x16x16x64xf32>
    %6 = arith.addf %1, %5 : vector<2x16x16x64xf32>
    %c0_5 = arith.constant 0 : index
    %c1 = arith.constant 1 : index
    %7 = memref.load %arg0[%c0_5, %c1] : memref<3x3xf32, #tpu.memory_space<smem>>
    %8 = vector.extract_strided_slice %0 {offsets = [0, 0, 1, 0], sizes = [2, 16, 16, 64], strides = [1, 1, 1, 1]} : vector<2x18x18x64xf32> to vector<2x16x16x64xf32>
    %9 = vector.broadcast %7 : f32 to vector<2x16x16x64xf32>
    %10 = arith.mulf %9, %8 : vector<2x16x16x64xf32>
    %11 = arith.addf %6, %10 : vector<2x16x16x64xf32>
    %c0_6 = arith.constant 0 : index
    %c2 = arith.constant 2 : index
    %12 = memref.load %arg0[%c0_6, %c2] : memref<3x3xf32, #tpu.memory_space<smem>>
    %13 = vector.extract_strided_slice %0 {offsets = [0, 0, 2, 0], sizes = [2, 16, 16, 64], strides = [1, 1, 1, 1]} : vector<2x18x18x64xf32> to vector<2x16x16x64xf32>
    %14 = vector.broadcast %12 : f32 to vector<2x16x16x64xf32>
    %15 = arith.mulf %14, %13 : vector<2x16x16x64xf32>
    %16 = arith.addf %11, %15 : vector<2x16x16x64xf32>
    %c1_7 = arith.constant 1 : index
    %c0_8 = arith.constant 0 : index
    %17 = memref.load %arg0[%c1_7, %c0_8] : memref<3x3xf32, #tpu.memory_space<smem>>
    %18 = vector.extract_strided_slice %0 {offsets = [0, 1, 0, 0], sizes = [2, 16, 16, 64], strides = [1, 1, 1, 1]} : vector<2x18x18x64xf32> to vector<2x16x16x64xf32>
    %19 = vector.broadcast %17 : f32 to vector<2x16x16x64xf32>
    %20 = arith.mulf %19, %18 : vector<2x16x16x64xf32>
    %21 = arith.addf %16, %20 : vector<2x16x16x64xf32>
    %c1_9 = arith.constant 1 : index
    %c1_10 = arith.constant 1 : index
    %22 = memref.load %arg0[%c1_9, %c1_10] : memref<3x3xf32, #tpu.memory_space<smem>>
    %23 = vector.extract_strided_slice %0 {offsets = [0, 1, 1, 0], sizes = [2, 16, 16, 64], strides = [1, 1, 1, 1]} : vector<2x18x18x64xf32> to vector<2x16x16x64xf32>
    %24 = vector.broadcast %22 : f32 to vector<2x16x16x64xf32>
    %25 = arith.mulf %24, %23 : vector<2x16x16x64xf32>
    %26 = arith.addf %21, %25 : vector<2x16x16x64xf32>
    %c1_11 = arith.constant 1 : index
    %c2_12 = arith.constant 2 : index
    %27 = memref.load %arg0[%c1_11, %c2_12] : memref<3x3xf32, #tpu.memory_space<smem>>
    %28 = vector.extract_strided_slice %0 {offsets = [0, 1, 2, 0], sizes = [2, 16, 16, 64], strides = [1, 1, 1, 1]} : vector<2x18x18x64xf32> to vector<2x16x16x64xf32>
    %29 = vector.broadcast %27 : f32 to vector<2x16x16x64xf32>
    %30 = arith.mulf %29, %28 : vector<2x16x16x64xf32>
    %31 = arith.addf %26, %30 : vector<2x16x16x64xf32>
    %c2_13 = arith.constant 2 : index
    %c0_14 = arith.constant 0 : index
    %32 = memref.load %arg0[%c2_13, %c0_14] : memref<3x3xf32, #tpu.memory_space<smem>>
    %33 = vector.extract_strided_slice %0 {offsets = [0, 2, 0, 0], sizes = [2, 16, 16, 64], strides = [1, 1, 1, 1]} : vector<2x18x18x64xf32> to vector<2x16x16x64xf32>
    %34 = vector.broadcast %32 : f32 to vector<2x16x16x64xf32>
    %35 = arith.mulf %34, %33 : vector<2x16x16x64xf32>
    %36 = arith.addf %31, %35 : vector<2x16x16x64xf32>
    %c2_15 = arith.constant 2 : index
    %c1_16 = arith.constant 1 : index
    %37 = memref.load %arg0[%c2_15, %c1_16] : memref<3x3xf32, #tpu.memory_space<smem>>
    %38 = vector.extract_strided_slice %0 {offsets = [0, 2, 1, 0], sizes = [2, 16, 16, 64], strides = [1, 1, 1, 1]} : vector<2x18x18x64xf32> to vector<2x16x16x64xf32>
    %39 = vector.broadcast %37 : f32 to vector<2x16x16x64xf32>
    %40 = arith.mulf %39, %38 : vector<2x16x16x64xf32>
    %41 = arith.addf %36, %40 : vector<2x16x16x64xf32>
    %c2_17 = arith.constant 2 : index
    %c2_18 = arith.constant 2 : index
    %42 = memref.load %arg0[%c2_17, %c2_18] : memref<3x3xf32, #tpu.memory_space<smem>>
    %43 = vector.extract_strided_slice %0 {offsets = [0, 2, 2, 0], sizes = [2, 16, 16, 64], strides = [1, 1, 1, 1]} : vector<2x18x18x64xf32> to vector<2x16x16x64xf32>
    %44 = vector.broadcast %42 : f32 to vector<2x16x16x64xf32>
    %45 = arith.mulf %44, %43 : vector<2x16x16x64xf32>
    %46 = arith.addf %41, %45 : vector<2x16x16x64xf32>
    %c0_19 = arith.constant 0 : index
    %c0_20 = arith.constant 0 : index
    %c0_21 = arith.constant 0 : index
    %c0_22 = arith.constant 0 : index
    %47 = vector.load %arg2[%c0_19, %c0_20, %c0_21, %c0_22] : memref<2x16x16x64xf32, #tpu.memory_space<vmem>>, vector<2x16x16x64xf32>
    tpu.vector_store %arg2[%c0_19, %c0_20, %c0_21, %c0_22], %46 {strides = array<i32>} : memref<2x16x16x64xf32, #tpu.memory_space<vmem>>, vector<2x16x16x64xf32>,
    return
  }
}

module attributes {stable_mosaic.version = 11 : i64} {
  func.func @_pw_transition_kernel(%arg0: i32, %arg1: memref<256x64xbf16, #tpu.memory_space<vmem>>, %arg2: memref<64x128xbf16, #tpu.memory_space<vmem>>, %arg3: memref<1x128xf32, #tpu.memory_space<vmem>>, %arg4: memref<1x128xf32, #tpu.memory_space<vmem>>, %arg5: memref<128x16xbf16, #tpu.memory_space<vmem>>, %arg6: memref<256x16xf32, #tpu.memory_space<vmem>>) attributes {dimension_semantics = [#tpu.dimension_semantics<parallel>], iteration_bounds = array<i64: 2>, scalar_prefetch = 0 : i64, scratch_operands = 0 : i64, tpu.core_type = #tpu.core_type<tc>, window_params = [{transform_indices = @transform_0, window_bounds = array<i64: 256, 64>}, {pipeline_mode = #tpu.pipeline_mode<synchronous>, transform_indices = @transform_1, window_bounds = array<i64: 64, 128>}, {pipeline_mode = #tpu.pipeline_mode<synchronous>, transform_indices = @transform_2, window_bounds = array<i64: 1, 128>}, {pipeline_mode = #tpu.pipeline_mode<synchronous>, transform_indices = @transform_3, window_bounds = array<i64: 1, 128>}, {pipeline_mode = #tpu.pipeline_mode<synchronous>, transform_indices = @transform_4, window_bounds = array<i64: 128, 16>}, {transform_indices = @transform_5, window_bounds = array<i64: 256, 16>}]} {
    %c0 = arith.constant 0 : index
    %c0_0 = arith.constant 0 : index
    %0 = vector.load %arg1[%c0, %c0_0] : memref<256x64xbf16, #tpu.memory_space<vmem>>, vector<256x64xbf16>
    %c0_1 = arith.constant 0 : index
    %c0_2 = arith.constant 0 : index
    %1 = vector.load %arg2[%c0_1, %c0_2] : memref<64x128xbf16, #tpu.memory_space<vmem>>, vector<64x128xbf16>
    %cst = arith.constant dense<0.000000e+00> : vector<256x128xf32>
    %2 = tpu.matmul %0, %1, %cst {dimension_numbers = #tpu.dot_dimension_numbers<[1], [0], [0], [1], [0, 0, 1, 1], [], []>} : vector<256x64xbf16>, vector<64x128xbf16>, vector<256x128xf32> -> vector<256x128xf32>
    %cst_3 = arith.constant 0.000000e+00 : f32
    %3 = vector.broadcast %cst_3 : f32 to vector<256x128xf32>
    %4 = arith.maximumf %2, %3 : vector<256x128xf32>
    %c0_4 = arith.constant 0 : index
    %c0_5 = arith.constant 0 : index
    %5 = vector.load %arg3[%c0_4, %c0_5] : memref<1x128xf32, #tpu.memory_space<vmem>>, vector<1x128xf32>
    %6 = vector.broadcast %5 : vector<1x128xf32> to vector<256x128xf32>
    %7 = arith.mulf %4, %6 : vector<256x128xf32>
    %c0_6 = arith.constant 0 : index
    %c0_7 = arith.constant 0 : index
    %8 = vector.load %arg4[%c0_6, %c0_7] : memref<1x128xf32, #tpu.memory_space<vmem>>, vector<1x128xf32>
    %9 = vector.broadcast %8 : vector<1x128xf32> to vector<256x128xf32>
    %10 = arith.addf %7, %9 : vector<256x128xf32>
    %11 = arith.truncf %10 : vector<256x128xf32> to vector<256x128xbf16>
    %c0_8 = arith.constant 0 : index
    %c0_9 = arith.constant 0 : index
    %12 = vector.load %arg5[%c0_8, %c0_9] : memref<128x16xbf16, #tpu.memory_space<vmem>>, vector<128x16xbf16>
    %cst_10 = arith.constant dense<0.000000e+00> : vector<256x16xf32>
    %13 = tpu.matmul %11, %12, %cst_10 {dimension_numbers = #tpu.dot_dimension_numbers<[1], [0], [0], [1], [0, 0, 1, 1], [], []>} : vector<256x128xbf16>, vector<128x16xbf16>, vector<256x16xf32> -> vector<256x16xf32>
    %c0_11 = arith.constant 0 : index
    %c0_12 = arith.constant 0 : index
    %14 = vector.load %arg6[%c0_11, %c0_12] : memref<256x16xf32, #tpu.memory_space<vmem>>, vector<256x16xf32>
    tpu.vector_store %arg6[%c0_11, %c0_12], %13 {strides = array<i32>} : memref<256x16xf32, #tpu.memory_space<vmem>>, vector<256x16xf32>,
    return
  }
  func.func @transform_0(%arg0: i32) -> (i32, i32) {
    %c0_i32 = arith.constant 0 : i32
    %c0_i32_0 = arith.constant 0 : i32
    return %arg0, %c0_i32 : i32, i32
  }
  func.func @transform_1(%arg0: i32) -> (i32, i32) {
    %c0_i32 = arith.constant 0 : i32
    %c0_i32_0 = arith.constant 0 : i32
    %c0_i32_1 = arith.constant 0 : i32
    return %c0_i32, %c0_i32_0 : i32, i32
  }
  func.func @transform_2(%arg0: i32) -> (i32, i32) {
    %c0_i32 = arith.constant 0 : i32
    %c0_i32_0 = arith.constant 0 : i32
    %c0_i32_1 = arith.constant 0 : i32
    return %c0_i32, %c0_i32_0 : i32, i32
  }
  func.func @transform_3(%arg0: i32) -> (i32, i32) {
    %c0_i32 = arith.constant 0 : i32
    %c0_i32_0 = arith.constant 0 : i32
    %c0_i32_1 = arith.constant 0 : i32
    return %c0_i32, %c0_i32_0 : i32, i32
  }
  func.func @transform_4(%arg0: i32) -> (i32, i32) {
    %c0_i32 = arith.constant 0 : i32
    %c0_i32_0 = arith.constant 0 : i32
    %c0_i32_1 = arith.constant 0 : i32
    return %c0_i32, %c0_i32_0 : i32, i32
  }
  func.func @transform_5(%arg0: i32) -> (i32, i32) {
    %c0_i32 = arith.constant 0 : i32
    %c0_i32_0 = arith.constant 0 : i32
    return %arg0, %c0_i32 : i32, i32
  }
}

module attributes {stable_mosaic.version = 11 : i64} {
  func.func @_conv_matmul_kernel(%arg0: i32, %arg1: memref<256x144xbf16, #tpu.memory_space<vmem>>, %arg2: memref<144x32xbf16, #tpu.memory_space<vmem>>, %arg3: memref<1x32xf32, #tpu.memory_space<vmem>>, %arg4: memref<1x32xf32, #tpu.memory_space<vmem>>, %arg5: memref<256x32xf32, #tpu.memory_space<vmem>>) attributes {dimension_semantics = [#tpu.dimension_semantics<parallel>], iteration_bounds = array<i64: 2>, scalar_prefetch = 0 : i64, scratch_operands = 0 : i64, tpu.core_type = #tpu.core_type<tc>, window_params = [{transform_indices = @transform_0, window_bounds = array<i64: 256, 144>}, {pipeline_mode = #tpu.pipeline_mode<synchronous>, transform_indices = @transform_1, window_bounds = array<i64: 144, 32>}, {pipeline_mode = #tpu.pipeline_mode<synchronous>, transform_indices = @transform_2, window_bounds = array<i64: 1, 32>}, {pipeline_mode = #tpu.pipeline_mode<synchronous>, transform_indices = @transform_3, window_bounds = array<i64: 1, 32>}, {transform_indices = @transform_4, window_bounds = array<i64: 256, 32>}]} {
    %c0 = arith.constant 0 : index
    %c0_0 = arith.constant 0 : index
    %0 = vector.load %arg1[%c0, %c0_0] : memref<256x144xbf16, #tpu.memory_space<vmem>>, vector<256x144xbf16>
    %c0_1 = arith.constant 0 : index
    %c0_2 = arith.constant 0 : index
    %1 = vector.load %arg2[%c0_1, %c0_2] : memref<144x32xbf16, #tpu.memory_space<vmem>>, vector<144x32xbf16>
    %cst = arith.constant dense<0.000000e+00> : vector<256x32xf32>
    %2 = tpu.matmul %0, %1, %cst {dimension_numbers = #tpu.dot_dimension_numbers<[1], [0], [0], [1], [0, 0, 1, 1], [], []>} : vector<256x144xbf16>, vector<144x32xbf16>, vector<256x32xf32> -> vector<256x32xf32>
    %cst_3 = arith.constant 0.000000e+00 : f32
    %3 = vector.broadcast %cst_3 : f32 to vector<256x32xf32>
    %4 = arith.maximumf %2, %3 : vector<256x32xf32>
    %c0_4 = arith.constant 0 : index
    %c0_5 = arith.constant 0 : index
    %5 = vector.load %arg3[%c0_4, %c0_5] : memref<1x32xf32, #tpu.memory_space<vmem>>, vector<1x32xf32>
    %6 = vector.broadcast %5 : vector<1x32xf32> to vector<256x32xf32>
    %7 = arith.mulf %4, %6 : vector<256x32xf32>
    %c0_6 = arith.constant 0 : index
    %c0_7 = arith.constant 0 : index
    %8 = vector.load %arg4[%c0_6, %c0_7] : memref<1x32xf32, #tpu.memory_space<vmem>>, vector<1x32xf32>
    %9 = vector.broadcast %8 : vector<1x32xf32> to vector<256x32xf32>
    %10 = arith.addf %7, %9 : vector<256x32xf32>
    %c0_8 = arith.constant 0 : index
    %c0_9 = arith.constant 0 : index
    %11 = vector.load %arg5[%c0_8, %c0_9] : memref<256x32xf32, #tpu.memory_space<vmem>>, vector<256x32xf32>
    tpu.vector_store %arg5[%c0_8, %c0_9], %10 {strides = array<i32>} : memref<256x32xf32, #tpu.memory_space<vmem>>, vector<256x32xf32>,
    return
  }
  func.func @transform_0(%arg0: i32) -> (i32, i32) {
    %c0_i32 = arith.constant 0 : i32
    %c0_i32_0 = arith.constant 0 : i32
    return %arg0, %c0_i32 : i32, i32
  }
  func.func @transform_1(%arg0: i32) -> (i32, i32) {
    %c0_i32 = arith.constant 0 : i32
    %c0_i32_0 = arith.constant 0 : i32
    %c0_i32_1 = arith.constant 0 : i32
    return %c0_i32, %c0_i32_0 : i32, i32
  }
  func.func @transform_2(%arg0: i32) -> (i32, i32) {
    %c0_i32 = arith.constant 0 : i32
    %c0_i32_0 = arith.constant 0 : i32
    %c0_i32_1 = arith.constant 0 : i32
    return %c0_i32, %c0_i32_0 : i32, i32
  }
  func.func @transform_3(%arg0: i32) -> (i32, i32) {
    %c0_i32 = arith.constant 0 : i32
    %c0_i32_0 = arith.constant 0 : i32
    %c0_i32_1 = arith.constant 0 : i32
    return %c0_i32, %c0_i32_0 : i32, i32
  }
  func.func @transform_4(%arg0: i32) -> (i32, i32) {
    %c0_i32 = arith.constant 0 : i32
    %c0_i32_0 = arith.constant 0 : i32
    return %arg0, %c0_i32 : i32, i32
  }
}

module attributes {stable_mosaic.version = 11 : i64} {
  func.func @_conv_matmul_kernel(%arg0: i32, %arg1: memref<392x288xbf16, #tpu.memory_space<vmem>>, %arg2: memref<288x64xbf16, #tpu.memory_space<vmem>>, %arg3: memref<1x64xf32, #tpu.memory_space<vmem>>, %arg4: memref<1x64xf32, #tpu.memory_space<vmem>>, %arg5: memref<392x64xf32, #tpu.memory_space<vmem>>) attributes {dimension_semantics = [#tpu.dimension_semantics<parallel>], iteration_bounds = array<i64: 1>, scalar_prefetch = 0 : i64, scratch_operands = 0 : i64, tpu.core_type = #tpu.core_type<tc>, window_params = [{transform_indices = @transform_0, window_bounds = array<i64: 392, 288>}, {pipeline_mode = #tpu.pipeline_mode<synchronous>, transform_indices = @transform_1, window_bounds = array<i64: 288, 64>}, {pipeline_mode = #tpu.pipeline_mode<synchronous>, transform_indices = @transform_2, window_bounds = array<i64: 1, 64>}, {pipeline_mode = #tpu.pipeline_mode<synchronous>, transform_indices = @transform_3, window_bounds = array<i64: 1, 64>}, {transform_indices = @transform_4, window_bounds = array<i64: 392, 64>}]} {
    %c0 = arith.constant 0 : index
    %c0_0 = arith.constant 0 : index
    %0 = vector.load %arg1[%c0, %c0_0] : memref<392x288xbf16, #tpu.memory_space<vmem>>, vector<392x288xbf16>
    %c0_1 = arith.constant 0 : index
    %c0_2 = arith.constant 0 : index
    %1 = vector.load %arg2[%c0_1, %c0_2] : memref<288x64xbf16, #tpu.memory_space<vmem>>, vector<288x64xbf16>
    %cst = arith.constant dense<0.000000e+00> : vector<392x64xf32>
    %2 = tpu.matmul %0, %1, %cst {dimension_numbers = #tpu.dot_dimension_numbers<[1], [0], [0], [1], [0, 0, 1, 1], [], []>} : vector<392x288xbf16>, vector<288x64xbf16>, vector<392x64xf32> -> vector<392x64xf32>
    %cst_3 = arith.constant 0.000000e+00 : f32
    %3 = vector.broadcast %cst_3 : f32 to vector<392x64xf32>
    %4 = arith.maximumf %2, %3 : vector<392x64xf32>
    %c0_4 = arith.constant 0 : index
    %c0_5 = arith.constant 0 : index
    %5 = vector.load %arg3[%c0_4, %c0_5] : memref<1x64xf32, #tpu.memory_space<vmem>>, vector<1x64xf32>
    %6 = vector.broadcast %5 : vector<1x64xf32> to vector<392x64xf32>
    %7 = arith.mulf %4, %6 : vector<392x64xf32>
    %c0_6 = arith.constant 0 : index
    %c0_7 = arith.constant 0 : index
    %8 = vector.load %arg4[%c0_6, %c0_7] : memref<1x64xf32, #tpu.memory_space<vmem>>, vector<1x64xf32>
    %9 = vector.broadcast %8 : vector<1x64xf32> to vector<392x64xf32>
    %10 = arith.addf %7, %9 : vector<392x64xf32>
    %c0_8 = arith.constant 0 : index
    %c0_9 = arith.constant 0 : index
    %11 = vector.load %arg5[%c0_8, %c0_9] : memref<392x64xf32, #tpu.memory_space<vmem>>, vector<392x64xf32>
    tpu.vector_store %arg5[%c0_8, %c0_9], %10 {strides = array<i32>} : memref<392x64xf32, #tpu.memory_space<vmem>>, vector<392x64xf32>,
    return
  }
  func.func @transform_0(%arg0: i32) -> (i32, i32) {
    %c0_i32 = arith.constant 0 : i32
    %c0_i32_0 = arith.constant 0 : i32
    return %arg0, %c0_i32 : i32, i32
  }
  func.func @transform_1(%arg0: i32) -> (i32, i32) {
    %c0_i32 = arith.constant 0 : i32
    %c0_i32_0 = arith.constant 0 : i32
    %c0_i32_1 = arith.constant 0 : i32
    return %c0_i32, %c0_i32_0 : i32, i32
  }
  func.func @transform_2(%arg0: i32) -> (i32, i32) {
    %c0_i32 = arith.constant 0 : i32
    %c0_i32_0 = arith.constant 0 : i32
    %c0_i32_1 = arith.constant 0 : i32
    return %c0_i32, %c0_i32_0 : i32, i32
  }
  func.func @transform_3(%arg0: i32) -> (i32, i32) {
    %c0_i32 = arith.constant 0 : i32
    %c0_i32_0 = arith.constant 0 : i32
    %c0_i32_1 = arith.constant 0 : i32
    return %c0_i32, %c0_i32_0 : i32, i32
  }
  func.func @transform_4(%arg0: i32) -> (i32, i32) {
    %c0_i32 = arith.constant 0 : i32
    %c0_i32_0 = arith.constant 0 : i32
    return %arg0, %c0_i32 : i32, i32
  }
}

module attributes {stable_mosaic.version = 11 : i64} {
  func.func @_depthwise3x3_kernel(%arg0: memref<3x3xf32, #tpu.memory_space<smem>>, %arg1: memref<2x16x16x64xf32, #tpu.memory_space<vmem>>, %arg2: memref<2x14x14x64xf32, #tpu.memory_space<vmem>>) attributes {dimension_semantics = [], scalar_prefetch = 0 : i64, scratch_operands = 0 : i64, tpu.core_type = #tpu.core_type<tc>} {
    %c0 = arith.constant 0 : index
    %c0_0 = arith.constant 0 : index
    %c0_1 = arith.constant 0 : index
    %c0_2 = arith.constant 0 : index
    %0 = vector.load %arg1[%c0, %c0_0, %c0_1, %c0_2] : memref<2x16x16x64xf32, #tpu.memory_space<vmem>>, vector<2x16x16x64xf32>
    %cst = arith.constant 0.000000e+00 : f32
    %1 = vector.broadcast %cst : f32 to vector<2x14x14x64xf32>
    %c0_3 = arith.constant 0 : index
    %c0_4 = arith.constant 0 : index
    %2 = memref.load %arg0[%c0_3, %c0_4] : memref<3x3xf32, #tpu.memory_space<smem>>
    %3 = vector.extract_strided_slice %0 {offsets = [0, 0, 0, 0], sizes = [2, 14, 14, 64], strides = [1, 1, 1, 1]} : vector<2x16x16x64xf32> to vector<2x14x14x64xf32>
    %4 = vector.broadcast %2 : f32 to vector<2x14x14x64xf32>
    %5 = arith.mulf %4, %3 : vector<2x14x14x64xf32>
    %6 = arith.addf %1, %5 : vector<2x14x14x64xf32>
    %c0_5 = arith.constant 0 : index
    %c1 = arith.constant 1 : index
    %7 = memref.load %arg0[%c0_5, %c1] : memref<3x3xf32, #tpu.memory_space<smem>>
    %8 = vector.extract_strided_slice %0 {offsets = [0, 0, 1, 0], sizes = [2, 14, 14, 64], strides = [1, 1, 1, 1]} : vector<2x16x16x64xf32> to vector<2x14x14x64xf32>
    %9 = vector.broadcast %7 : f32 to vector<2x14x14x64xf32>
    %10 = arith.mulf %9, %8 : vector<2x14x14x64xf32>
    %11 = arith.addf %6, %10 : vector<2x14x14x64xf32>
    %c0_6 = arith.constant 0 : index
    %c2 = arith.constant 2 : index
    %12 = memref.load %arg0[%c0_6, %c2] : memref<3x3xf32, #tpu.memory_space<smem>>
    %13 = vector.extract_strided_slice %0 {offsets = [0, 0, 2, 0], sizes = [2, 14, 14, 64], strides = [1, 1, 1, 1]} : vector<2x16x16x64xf32> to vector<2x14x14x64xf32>
    %14 = vector.broadcast %12 : f32 to vector<2x14x14x64xf32>
    %15 = arith.mulf %14, %13 : vector<2x14x14x64xf32>
    %16 = arith.addf %11, %15 : vector<2x14x14x64xf32>
    %c1_7 = arith.constant 1 : index
    %c0_8 = arith.constant 0 : index
    %17 = memref.load %arg0[%c1_7, %c0_8] : memref<3x3xf32, #tpu.memory_space<smem>>
    %18 = vector.extract_strided_slice %0 {offsets = [0, 1, 0, 0], sizes = [2, 14, 14, 64], strides = [1, 1, 1, 1]} : vector<2x16x16x64xf32> to vector<2x14x14x64xf32>
    %19 = vector.broadcast %17 : f32 to vector<2x14x14x64xf32>
    %20 = arith.mulf %19, %18 : vector<2x14x14x64xf32>
    %21 = arith.addf %16, %20 : vector<2x14x14x64xf32>
    %c1_9 = arith.constant 1 : index
    %c1_10 = arith.constant 1 : index
    %22 = memref.load %arg0[%c1_9, %c1_10] : memref<3x3xf32, #tpu.memory_space<smem>>
    %23 = vector.extract_strided_slice %0 {offsets = [0, 1, 1, 0], sizes = [2, 14, 14, 64], strides = [1, 1, 1, 1]} : vector<2x16x16x64xf32> to vector<2x14x14x64xf32>
    %24 = vector.broadcast %22 : f32 to vector<2x14x14x64xf32>
    %25 = arith.mulf %24, %23 : vector<2x14x14x64xf32>
    %26 = arith.addf %21, %25 : vector<2x14x14x64xf32>
    %c1_11 = arith.constant 1 : index
    %c2_12 = arith.constant 2 : index
    %27 = memref.load %arg0[%c1_11, %c2_12] : memref<3x3xf32, #tpu.memory_space<smem>>
    %28 = vector.extract_strided_slice %0 {offsets = [0, 1, 2, 0], sizes = [2, 14, 14, 64], strides = [1, 1, 1, 1]} : vector<2x16x16x64xf32> to vector<2x14x14x64xf32>
    %29 = vector.broadcast %27 : f32 to vector<2x14x14x64xf32>
    %30 = arith.mulf %29, %28 : vector<2x14x14x64xf32>
    %31 = arith.addf %26, %30 : vector<2x14x14x64xf32>
    %c2_13 = arith.constant 2 : index
    %c0_14 = arith.constant 0 : index
    %32 = memref.load %arg0[%c2_13, %c0_14] : memref<3x3xf32, #tpu.memory_space<smem>>
    %33 = vector.extract_strided_slice %0 {offsets = [0, 2, 0, 0], sizes = [2, 14, 14, 64], strides = [1, 1, 1, 1]} : vector<2x16x16x64xf32> to vector<2x14x14x64xf32>
    %34 = vector.broadcast %32 : f32 to vector<2x14x14x64xf32>
    %35 = arith.mulf %34, %33 : vector<2x14x14x64xf32>
    %36 = arith.addf %31, %35 : vector<2x14x14x64xf32>
    %c2_15 = arith.constant 2 : index
    %c1_16 = arith.constant 1 : index
    %37 = memref.load %arg0[%c2_15, %c1_16] : memref<3x3xf32, #tpu.memory_space<smem>>
    %38 = vector.extract_strided_slice %0 {offsets = [0, 2, 1, 0], sizes = [2, 14, 14, 64], strides = [1, 1, 1, 1]} : vector<2x16x16x64xf32> to vector<2x14x14x64xf32>
    %39 = vector.broadcast %37 : f32 to vector<2x14x14x64xf32>
    %40 = arith.mulf %39, %38 : vector<2x14x14x64xf32>
    %41 = arith.addf %36, %40 : vector<2x14x14x64xf32>
    %c2_17 = arith.constant 2 : index
    %c2_18 = arith.constant 2 : index
    %42 = memref.load %arg0[%c2_17, %c2_18] : memref<3x3xf32, #tpu.memory_space<smem>>
    %43 = vector.extract_strided_slice %0 {offsets = [0, 2, 2, 0], sizes = [2, 14, 14, 64], strides = [1, 1, 1, 1]} : vector<2x16x16x64xf32> to vector<2x14x14x64xf32>
    %44 = vector.broadcast %42 : f32 to vector<2x14x14x64xf32>
    %45 = arith.mulf %44, %43 : vector<2x14x14x64xf32>
    %46 = arith.addf %41, %45 : vector<2x14x14x64xf32>
    %c0_19 = arith.constant 0 : index
    %c0_20 = arith.constant 0 : index
    %c0_21 = arith.constant 0 : index
    %c0_22 = arith.constant 0 : index
    %47 = vector.load %arg2[%c0_19, %c0_20, %c0_21, %c0_22] : memref<2x14x14x64xf32, #tpu.memory_space<vmem>>, vector<2x14x14x64xf32>
    tpu.vector_store %arg2[%c0_19, %c0_20, %c0_21, %c0_22], %46 {strides = array<i32>} : memref<2x14x14x64xf32, #tpu.memory_space<vmem>>, vector<2x14x14x64xf32>,
    return
  }
}

module attributes {stable_mosaic.version = 11 : i64} {
  func.func @_conv_matmul_kernel(%arg0: i32, %arg1: memref<392x64xbf16, #tpu.memory_space<vmem>>, %arg2: memref<64x128xbf16, #tpu.memory_space<vmem>>, %arg3: memref<1x128xf32, #tpu.memory_space<vmem>>, %arg4: memref<1x128xf32, #tpu.memory_space<vmem>>, %arg5: memref<392x128xf32, #tpu.memory_space<vmem>>) attributes {dimension_semantics = [#tpu.dimension_semantics<parallel>], iteration_bounds = array<i64: 1>, scalar_prefetch = 0 : i64, scratch_operands = 0 : i64, tpu.core_type = #tpu.core_type<tc>, window_params = [{transform_indices = @transform_0, window_bounds = array<i64: 392, 64>}, {pipeline_mode = #tpu.pipeline_mode<synchronous>, transform_indices = @transform_1, window_bounds = array<i64: 64, 128>}, {pipeline_mode = #tpu.pipeline_mode<synchronous>, transform_indices = @transform_2, window_bounds = array<i64: 1, 128>}, {pipeline_mode = #tpu.pipeline_mode<synchronous>, transform_indices = @transform_3, window_bounds = array<i64: 1, 128>}, {transform_indices = @transform_4, window_bounds = array<i64: 392, 128>}]} {
    %c0 = arith.constant 0 : index
    %c0_0 = arith.constant 0 : index
    %0 = vector.load %arg1[%c0, %c0_0] : memref<392x64xbf16, #tpu.memory_space<vmem>>, vector<392x64xbf16>
    %c0_1 = arith.constant 0 : index
    %c0_2 = arith.constant 0 : index
    %1 = vector.load %arg2[%c0_1, %c0_2] : memref<64x128xbf16, #tpu.memory_space<vmem>>, vector<64x128xbf16>
    %cst = arith.constant dense<0.000000e+00> : vector<392x128xf32>
    %2 = tpu.matmul %0, %1, %cst {dimension_numbers = #tpu.dot_dimension_numbers<[1], [0], [0], [1], [0, 0, 1, 1], [], []>} : vector<392x64xbf16>, vector<64x128xbf16>, vector<392x128xf32> -> vector<392x128xf32>
    %cst_3 = arith.constant 0.000000e+00 : f32
    %3 = vector.broadcast %cst_3 : f32 to vector<392x128xf32>
    %4 = arith.maximumf %2, %3 : vector<392x128xf32>
    %c0_4 = arith.constant 0 : index
    %c0_5 = arith.constant 0 : index
    %5 = vector.load %arg3[%c0_4, %c0_5] : memref<1x128xf32, #tpu.memory_space<vmem>>, vector<1x128xf32>
    %6 = vector.broadcast %5 : vector<1x128xf32> to vector<392x128xf32>
    %7 = arith.mulf %4, %6 : vector<392x128xf32>
    %c0_6 = arith.constant 0 : index
    %c0_7 = arith.constant 0 : index
    %8 = vector.load %arg4[%c0_6, %c0_7] : memref<1x128xf32, #tpu.memory_space<vmem>>, vector<1x128xf32>
    %9 = vector.broadcast %8 : vector<1x128xf32> to vector<392x128xf32>
    %10 = arith.addf %7, %9 : vector<392x128xf32>
    %c0_8 = arith.constant 0 : index
    %c0_9 = arith.constant 0 : index
    %11 = vector.load %arg5[%c0_8, %c0_9] : memref<392x128xf32, #tpu.memory_space<vmem>>, vector<392x128xf32>
    tpu.vector_store %arg5[%c0_8, %c0_9], %10 {strides = array<i32>} : memref<392x128xf32, #tpu.memory_space<vmem>>, vector<392x128xf32>,
    return
  }
  func.func @transform_0(%arg0: i32) -> (i32, i32) {
    %c0_i32 = arith.constant 0 : i32
    %c0_i32_0 = arith.constant 0 : i32
    return %arg0, %c0_i32 : i32, i32
  }
  func.func @transform_1(%arg0: i32) -> (i32, i32) {
    %c0_i32 = arith.constant 0 : i32
    %c0_i32_0 = arith.constant 0 : i32
    %c0_i32_1 = arith.constant 0 : i32
    return %c0_i32, %c0_i32_0 : i32, i32
  }
  func.func @transform_2(%arg0: i32) -> (i32, i32) {
    %c0_i32 = arith.constant 0 : i32
    %c0_i32_0 = arith.constant 0 : i32
    %c0_i32_1 = arith.constant 0 : i32
    return %c0_i32, %c0_i32_0 : i32, i32
  }
  func.func @transform_3(%arg0: i32) -> (i32, i32) {
    %c0_i32 = arith.constant 0 : i32
    %c0_i32_0 = arith.constant 0 : i32
    %c0_i32_1 = arith.constant 0 : i32
    return %c0_i32, %c0_i32_0 : i32, i32
  }
  func.func @transform_4(%arg0: i32) -> (i32, i32) {
    %c0_i32 = arith.constant 0 : i32
    %c0_i32_0 = arith.constant 0 : i32
    return %arg0, %c0_i32 : i32, i32
  }
}

</mosaic_0001>

<llo_original>
// kernel: net_forward.17
$region0: #{net_forward.17}
  #allocation0 [shape = 'u32[]', space=smem, size = 0x4, offset = 0x4, fixed_abs, tag = 'smem constant byte address 0x4 - core index']
  #allocation1 [shape = 'u32[144,128]{1,0:T(1,128)}', space=vmem, size = 0x12000, scoped, tag = 'internal scratch']
  %s0 = inlined_call_operand.vmem [shape: bf16[2048,32], index: 0, kind: input, shape index: {}]
  %s1 = inlined_call_operand.vmem [shape: bf16[32,16], index: 1, kind: input, shape index: {}]
  %s2 = inlined_call_operand.vmem [shape: f32[1,16], index: 2, kind: input, shape index: {}]
  %s3 = inlined_call_operand.vmem [shape: f32[1,16], index: 3, kind: input, shape index: {}]
  %s4 = inlined_call_operand.vmem [shape: f32[2048,16], index: 4, kind: output, shape index: {}]
  %s5 = sld [smem:[#allocation0]]
  $region49: #{net_forward.17} parent=0
    _
  %s7 = ssub.s32 1, %s5
  %s8 = scalar_select 0, %s7, %s5
  loop: start=0, step=1, limit=6
  $region2: #{net_forward.17} parent=0 // loop_pre_header
    _
  $region3: #{net_forward.17} parent=0 // loop_header
    %s10 = sphi 0, %s14
    %p11 = scmp.ge.s32.totalorder %s10, 6
    %s20 = sphi 0, %s22
    %s23 = sphi 0, %s20
    %s24 = sphi 0, %s23
    %s40 = sphi 0, %s24
    %s44 = sphi 0, %s44
    %s46 = sphi 0, %s44
    %s47 = sphi 0, %s46
    %s61 = sphi 0, %s47
    %s65 = sphi 0, %s65
    %s67 = sphi 0, %s65
    %s68 = sphi 0, %s67
    %s82 = sphi 0, %s68
    %s86 = sphi 0, %s86
    %s88 = sphi 0, %s86
    %s89 = sphi 0, %s88
    %s103 = sphi 0, %s89
    %s109 = sphi 0, %s111
    %s112 = sphi 0, %s109
    %s113 = sphi 0, %s112
    %s129 = sphi 0, %s113
  $region4: #{net_forward.17} parent=0 // loop_header_branch
    %13 = sbr.rel (%p11) target = $region8
  $region5: #{net_forward.17} parent=0 // loop_body
    %s15 = ssub.s32 %s10, 1
    %s16 = ssub.s32 %s10, 2
    %s17 = sadd.s32 %s10, 1
    %s18 = ssub.s32 %s10, %s17
    %p19 = scmp.eq.s32.totalorder %s18, 0
    %s21 = sadd.s32 %s20, 1
    %s22 = scalar_select %p19, %s20, %s21
    %p25 = pneg %p19
    %p26 = scmp.eq.s32.totalorder %s10, 3
    %p27 = por %p25, %p26
    %p28 = scmp.ne.s32.totalorder %s20, %s23
    %p29 = scmp.eq.s32.totalorder %s10, 0
    %p30 = por %p28, %p29
    %p31 = scmp.ne.s32.totalorder %s20, %s23
    %p32 = scmp.eq.s32.totalorder %s15, 3
    %p33 = por %p31, %p32
    %p34 = scmp.ne.s32.totalorder %s23, %s24
    %p35 = scmp.eq.s32.totalorder %s15, 0
    %p36 = por %p34, %p35
    %p37 = scmp.ne.s32.totalorder %s23, %s24
    %p38 = scmp.eq.s32.totalorder %s16, 3
    %p39 = por %p37, %p38
    %p41 = scmp.ne.s32.totalorder %s24, %s40
    %p42 = scmp.eq.s32.totalorder %s16, 0
    %p43 = por %p41, %p42
    %s45 = sadd.s32 %s44, 1
    %p48 = scmp.eq.s32.totalorder %s10, 3
    %p49 = scmp.ne.s32.totalorder %s44, %s46
    %p50 = scmp.eq.s32.totalorder %s10, 0
    %p51 = por %p49, %p50
    %p52 = scmp.ne.s32.totalorder %s44, %s46
    %p53 = scmp.eq.s32.totalorder %s15, 3
    %p54 = por %p52, %p53
    %p55 = scmp.ne.s32.totalorder %s46, %s47
    %p56 = scmp.eq.s32.totalorder %s15, 0
    %p57 = por %p55, %p56
    %p58 = scmp.ne.s32.totalorder %s46, %s47
    %p59 = scmp.eq.s32.totalorder %s16, 3
    %p60 = por %p58, %p59
    %p62 = scmp.ne.s32.totalorder %s47, %s61
    %p63 = scmp.eq.s32.totalorder %s16, 0
    %p64 = por %p62, %p63
    %s66 = sadd.s32 %s65, 1
    %p69 = scmp.eq.s32.totalorder %s10, 3
    %p70 = scmp.ne.s32.totalorder %s65, %s67
    %p71 = scmp.eq.s32.totalorder %s10, 0
    %p72 = por %p70, %p71
    %p73 = scmp.ne.s32.totalorder %s65, %s67
    %p74 = scmp.eq.s32.totalorder %s15, 3
    %p75 = por %p73, %p74
    %p76 = scmp.ne.s32.totalorder %s67, %s68
    %p77 = scmp.eq.s32.totalorder %s15, 0
    %p78 = por %p76, %p77
    %p79 = scmp.ne.s32.totalorder %s67, %s68
    %p80 = scmp.eq.s32.totalorder %s16, 3
    %p81 = por %p79, %p80
    %p83 = scmp.ne.s32.totalorder %s68, %s82
    %p84 = scmp.eq.s32.totalorder %s16, 0
    %p85 = por %p83, %p84
    %s87 = sadd.s32 %s86, 1
    %p90 = scmp.eq.s32.totalorder %s10, 3
    %p91 = scmp.ne.s32.totalorder %s86, %s88
    %p92 = scmp.eq.s32.totalorder %s10, 0
    %p93 = por %p91, %p92
    %p94 = scmp.ne.s32.totalorder %s86, %s88
    %p95 = scmp.eq.s32.totalorder %s15, 3
    %p96 = por %p94, %p95
    %p97 = scmp.ne.s32.totalorder %s88, %s89
    %p98 = scmp.eq.s32.totalorder %s15, 0
    %p99 = por %p97, %p98
    %p100 = scmp.ne.s32.totalorder %s88, %s89
    %p101 = scmp.eq.s32.totalorder %s16, 3
    %p102 = por %p100, %p101
    %p104 = scmp.ne.s32.totalorder %s89, %s103
    %p105 = scmp.eq.s32.totalorder %s16, 0
    %p106 = por %p104, %p105
    %s107 = ssub.s32 %s10, %s17
    %p108 = scmp.eq.s32.totalorder %s107, 0
    %s110 = sadd.s32 %s109, 1
    %s111 = scalar_select %p108, %s109, %s110
    %p114 = pneg %p108
    %p115 = scmp.eq.s32.totalorder %s10, 3
    %p116 = por %p114, %p115
    %p117 = scmp.ne.s32.totalorder %s109, %s112
    %p118 = scmp.eq.s32.totalorder %s10, 0
    %p119 = por %p117, %p118
    %p120 = scmp.ne.s32.totalorder %s109, %s112
    %p121 = scmp.eq.s32.totalorder %s15, 3
    %p122 = por %p120, %p121
    %p123 = scmp.ne.s32.totalorder %s112, %s113
    %p124 = scmp.eq.s32.totalorder %s15, 0
    %p125 = por %p123, %p124
    %p126 = scmp.ne.s32.totalorder %s112, %s113
    %p127 = scmp.eq.s32.totalorder %s16, 3
    %p128 = por %p126, %p127
    %p130 = scmp.ne.s32.totalorder %s113, %s129
    %p131 = scmp.eq.s32.totalorder %s16, 0
    %p132 = por %p130, %p131
    %p133 = scmp.le.s32.totalorder 1, %s10
    %p134 = scmp.lt.s32.totalorder %s10, 5
    %p135 = pnand %p133, %p134
    %p136 = pneg %p135
    // Predicated region
    $region9: #{net_forward.17} parent=5 // pred_check
      _
    $region10: #{net_forward.17} parent=5 // pred_check_branch
      %138 = sbr.rel (%p135) target = $region12
    $region11: #{net_forward.17} parent=5 // pred_region
      %s139 = ssub.s32 %s10, 1
      // Predicated region
      $region13: #{net_forward.17} parent=11 // pred_check
        %p140 = pneg %p57
      $region14: #{net_forward.17} parent=11 // pred_check_branch
        %142 = sbr.rel (%p140) target = $region16
      $region15: #{net_forward.17} parent=11 // pred_region
        _
      $region16: #{net_forward.17} parent=11 // pred_fallthru
        _
      // Predicated region
      $region17: #{net_forward.17} parent=11 // pred_check
        %p143 = pneg %p78
      $region18: #{net_forward.17} parent=11 // pred_check_branch
        %145 = sbr.rel (%p143) target = $region20
      $region19: #{net_forward.17} parent=11 // pred_region
        _
      $region20: #{net_forward.17} parent=11 // pred_fallthru
        _
      // Predicated region
      $region21: #{net_forward.17} parent=11 // pred_check
        %p146 = pneg %p99
      $region22: #{net_forward.17} parent=11 // pred_check_branch
        %148 = sbr.rel (%p146) target = $region24
      $region23: #{net_forward.17} parent=11 // pred_region
        _
      $region24: #{net_forward.17} parent=11 // pred_fallthru
        _
    $region12: #{net_forward.17} parent=5 // pred_fallthru
      _
    %p149 = scmp.lt.s32.totalorder %s10, 4
    // Predicated region
    $region25: #{net_forward.17} parent=5 // pred_check
      %p150 = pneg %p149
    $region26: #{net_forward.17} parent=5 // pred_check_branch
      %152 = sbr.rel (%p150) target = $region28
    $region27: #{net_forward.17} parent=5 // pred_region
      // Predicated region
      $region29: #{net_forward.17} parent=27 // pred_check
        %p153 = pneg %p30
      $region30: #{net_forward.17} parent=27 // pred_check_branch
        %155 = sbr.rel (%p153) target = $region32
      $region31: #{net_forward.17} parent=27 // pred_region
        %s156 = smul.u32 64, %s10
        %p157 = scmp.lt.s32.totalorder %s156, 255
        %s158 = scalar_select %p157, %s156, 255
        %s159 = smul.addr %s158, 4
        %s160 = scalar_lea.vmem %s0, %s159
        %s161 = smul.u32 64, %s10
      $region32: #{net_forward.17} parent=27 // pred_fallthru
        _
    $region28: #{net_forward.17} parent=5 // pred_fallthru
      _
    %p162 = scmp.le.s32.totalorder 1, %s10
    %p163 = scmp.lt.s32.totalorder %s10, 5
    %p164 = pnand %p162, %p163
    %p165 = pneg %p164
    // Predicated region
    $region33: #{net_forward.17} parent=5 // pred_check
      _
    $region34: #{net_forward.17} parent=5 // pred_check_branch
      %167 = sbr.rel (%p164) target = $region36
    $region35: #{net_forward.17} parent=5 // pred_region
      %s168 = ssub.s32 %s10, 1
      %s169 = smul.u32 64, %s15
      %p170 = scmp.lt.s32.totalorder %s169, 255
      %s171 = scalar_select %p170, %s169, 255
      %s172 = smul.addr %s171, 4
      %s173 = scalar_lea.vmem %s0, %s172
      %p174 = pneg %p36
      %p175 = pneg %p33
      %p176 = pneg %p57
      %p177 = pneg %p54
      %p178 = pneg %p78
      %p179 = pneg %p75
      %p180 = pneg %p99
      %p181 = pneg %p96
      %p182 = pneg %p125
      %p183 = pneg %p122
      %s184 = smul.u32 64, %s15
      %p185 = scmp.lt.s32.totalorder %s184, 255
      %s186 = scalar_select %p185, %s184, 255
      %s187 = smul.addr %s186, 8
      %s188 = scalar_lea.vmem %s4, %s187
      %s189 = smul.u32 64, %s15
      %p190 = scmp.lt.s32.totalorder %s189, 255
      %s191 = scalar_select %p190, %s189, 255
      %s192 = smul.addr %s191, 4
      %s193 = scalar_lea.vmem %s0, %s192
      %s194 = smul.u32 64, %s15
      %s195 = smul.u32 64, %s15
      %p196 = scmp.lt.s32.totalorder %s195, 255
      %s197 = scalar_select %p196, %s195, 255
      %s198 = smul.addr %s197, 8
      %s199 = scalar_lea.vmem %s4, %s198
      %s200 = smul.u32 64, %s15
      %v202 = vld [vmem:[%s193] sm:$0xf]
      %v203 = vld [vmem:[%s193 + $0x4] sm:$0xf]
      %v204 = vld [vmem:[%s193 + $0x8] sm:$0xf]
      %v205 = vld [vmem:[%s193 + $0xc] sm:$0xf]
      %v206 = vld [vmem:[%s193 + $0x10] sm:$0xf]
      %v207 = vld [vmem:[%s193 + $0x14] sm:$0xf]
      %v208 = vld [vmem:[%s193 + $0x18] sm:$0xf]
      %v209 = vld [vmem:[%s193 + $0x1c] sm:$0xf]
      %v210 = vld [vmem:[%s193 + $0x20] sm:$0xf]
      %v211 = vld [vmem:[%s193 + $0x24] sm:$0xf]
      %v212 = vld [vmem:[%s193 + $0x28] sm:$0xf]
      %v213 = vld [vmem:[%s193 + $0x2c] sm:$0xf]
      %v214 = vld [vmem:[%s193 + $0x30] sm:$0xf]
      %v215 = vld [vmem:[%s193 + $0x34] sm:$0xf]
      %v216 = vld [vmem:[%s193 + $0x38] sm:$0xf]
      %v217 = vld [vmem:[%s193 + $0x3c] sm:$0xf]
      %v218 = vld [vmem:[%s193 + $0x40] sm:$0xf]
      %v219 = vld [vmem:[%s193 + $0x44] sm:$0xf]
      %v220 = vld [vmem:[%s193 + $0x48] sm:$0xf]
      %v221 = vld [vmem:[%s193 + $0x4c] sm:$0xf]
      %v222 = vld [vmem:[%s193 + $0x50] sm:$0xf]
      %v223 = vld [vmem:[%s193 + $0x54] sm:$0xf]
      %v224 = vld [vmem:[%s193 + $0x58] sm:$0xf]
      %v225 = vld [vmem:[%s193 + $0x5c] sm:$0xf]
      %v226 = vld [vmem:[%s193 + $0x60] sm:$0xf]
      %v227 = vld [vmem:[%s193 + $0x64] sm:$0xf]
      %v228 = vld [vmem:[%s193 + $0x68] sm:$0xf]
      %v229 = vld [vmem:[%s193 + $0x6c] sm:$0xf]
      %v230 = vld [vmem:[%s193 + $0x70] sm:$0xf]
      %v231 = vld [vmem:[%s193 + $0x74] sm:$0xf]
      %v232 = vld [vmem:[%s193 + $0x78] sm:$0xf]
      %v233 = vld [vmem:[%s193 + $0x7c] sm:$0xf]
      %v234 = vld [vmem:[%s193 + $0x80] sm:$0xf]
      %v235 = vld [vmem:[%s193 + $0x84] sm:$0xf]
      %v236 = vld [vmem:[%s193 + $0x88] sm:$0xf]
      %v237 = vld [vmem:[%s193 + $0x8c] sm:$0xf]
      %v238 = vld [vmem:[%s193 + $0x90] sm:$0xf]
      %v239 = vld [vmem:[%s193 + $0x94] sm:$0xf]
      %v240 = vld [vmem:[%s193 + $0x98] sm:$0xf]
      %v241 = vld [vmem:[%s193 + $0x9c] sm:$0xf]
      %v242 = vld [vmem:[%s193 + $0xa0] sm:$0xf]
      %v243 = vld [vmem:[%s193 + $0xa4] sm:$0xf]
      %v244 = vld [vmem:[%s193 + $0xa8] sm:$0xf]
      %v245 = vld [vmem:[%s193 + $0xac] sm:$0xf]
      %v246 = vld [vmem:[%s193 + $0xb0] sm:$0xf]
      %v247 = vld [vmem:[%s193 + $0xb4] sm:$0xf]
      %v248 = vld [vmem:[%s193 + $0xb8] sm:$0xf]
      %v249 = vld [vmem:[%s193 + $0xbc] sm:$0xf]
      %v250 = vld [vmem:[%s193 + $0xc0] sm:$0xf]
      %v251 = vld [vmem:[%s193 + $0xc4] sm:$0xf]
      %v252 = vld [vmem:[%s193 + $0xc8] sm:$0xf]
      %v253 = vld [vmem:[%s193 + $0xcc] sm:$0xf]
      %v254 = vld [vmem:[%s193 + $0xd0] sm:$0xf]
      %v255 = vld [vmem:[%s193 + $0xd4] sm:$0xf]
      %v256 = vld [vmem:[%s193 + $0xd8] sm:$0xf]
      %v257 = vld [vmem:[%s193 + $0xdc] sm:$0xf]
      %v258 = vld [vmem:[%s193 + $0xe0] sm:$0xf]
      %v259 = vld [vmem:[%s193 + $0xe4] sm:$0xf]
      %v260 = vld [vmem:[%s193 + $0xe8] sm:$0xf]
      %v261 = vld [vmem:[%s193 + $0xec] sm:$0xf]
      %v262 = vld [vmem:[%s193 + $0xf0] sm:$0xf]
      %v263 = vld [vmem:[%s193 + $0xf4] sm:$0xf]
      %v264 = vld [vmem:[%s193 + $0xf8] sm:$0xf]
      %v265 = vld [vmem:[%s193 + $0xfc] sm:$0xf]
      %v266 = vld [vmem:[%s1] sm:$0xf]
      %v267 = vld [vmem:[%s1 + $0x4] sm:$0xf]
      %v268 = vld [vmem:[%s1 + $0x8] sm:$0xf]
      %v269 = vld [vmem:[%s1 + $0xc] sm:$0xf]
      %v334 = vunpack.c.l.b16 %v202
      %v335 = vunpack.c.l.b16 %v203
      %v336 = vunpack.c.l.b16 %v204
      %v337 = vunpack.c.l.b16 %v205
      %v338 = vunpack.c.l.b16 %v206
      %v339 = vunpack.c.l.b16 %v207
      %v340 = vunpack.c.l.b16 %v208
      %v341 = vunpack.c.l.b16 %v209
      %v342 = vunpack.c.l.b16 %v210
      %v343 = vunpack.c.l.b16 %v211
      %v344 = vunpack.c.l.b16 %v212
      %v345 = vunpack.c.l.b16 %v213
      %v346 = vunpack.c.l.b16 %v214
      %v347 = vunpack.c.l.b16 %v215
      %v348 = vunpack.c.l.b16 %v216
      %v349 = vunpack.c.l.b16 %v217
      %v350 = vunpack.c.l.b16 %v218
      %v351 = vunpack.c.l.b16 %v219
      %v352 = vunpack.c.l.b16 %v220
      %v353 = vunpack.c.l.b16 %v221
      %v354 = vunpack.c.l.b16 %v222
      %v355 = vunpack.c.l.b16 %v223
      %v356 = vunpack.c.l.b16 %v224
      %v357 = vunpack.c.l.b16 %v225
      %v358 = vunpack.c.l.b16 %v226
      %v359 = vunpack.c.l.b16 %v227
      %v360 = vunpack.c.l.b16 %v228
      %v361 = vunpack.c.l.b16 %v229
      %v362 = vunpack.c.l.b16 %v230
      %v363 = vunpack.c.l.b16 %v231
      %v364 = vunpack.c.l.b16 %v232
      %v365 = vunpack.c.l.b16 %v233
      %v366 = vunpack.c.l.b16 %v234
      %v367 = vunpack.c.l.b16 %v235
      %v368 = vunpack.c.l.b16 %v236
      %v369 = vunpack.c.l.b16 %v237
      %v370 = vunpack.c.l.b16 %v238
      %v371 = vunpack.c.l.b16 %v239
      %v372 = vunpack.c.l.b16 %v240
      %v373 = vunpack.c.l.b16 %v241
      %v374 = vunpack.c.l.b16 %v242
      %v375 = vunpack.c.l.b16 %v243
      %v376 = vunpack.c.l.b16 %v244
      %v377 = vunpack.c.l.b16 %v245
      %v378 = vunpack.c.l.b16 %v246
      %v379 = vunpack.c.l.b16 %v247
      %v380 = vunpack.c.l.b16 %v248
      %v381 = vunpack.c.l.b16 %v249
      %v382 = vunpack.c.l.b16 %v250
      %v383 = vunpack.c.l.b16 %v251
      %v384 = vunpack.c.l.b16 %v252
      %v385 = vunpack.c.l.b16 %v253
      %v386 = vunpack.c.l.b16 %v254
      %v387 = vunpack.c.l.b16 %v255
      %v388 = vunpack.c.l.b16 %v256
      %v389 = vunpack.c.l.b16 %v257
      %v390 = vunpack.c.l.b16 %v258
      %v391 = vunpack.c.l.b16 %v259
      %v392 = vunpack.c.l.b16 %v260
      %v393 = vunpack.c.l.b16 %v261
      %v394 = vunpack.c.l.b16 %v262
      %v395 = vunpack.c.l.b16 %v263
      %v396 = vunpack.c.l.b16 %v264
      %v397 = vunpack.c.l.b16 %v265
      %v398 = vpack.c.b16 %v335, %v334
      %v399 = vpack.c.b16 %v337, %v336
      %v400 = vpack.c.b16 %v339, %v338
      %v401 = vpack.c.b16 %v341, %v340
      %v402 = vpack.c.b16 %v343, %v342
      %v403 = vpack.c.b16 %v345, %v344
      %v404 = vpack.c.b16 %v347, %v346
      %v405 = vpack.c.b16 %v349, %v348
      %v406 = vpack.c.b16 %v351, %v350
      %v407 = vpack.c.b16 %v353, %v352
      %v408 = vpack.c.b16 %v355, %v354
      %v409 = vpack.c.b16 %v357, %v356
      %v410 = vpack.c.b16 %v359, %v358
      %v411 = vpack.c.b16 %v361, %v360
      %v412 = vpack.c.b16 %v363, %v362
      %v413 = vpack.c.b16 %v365, %v364
      %v414 = vpack.c.b16 %v367, %v366
      %v415 = vpack.c.b16 %v369, %v368
      %v416 = vpack.c.b16 %v371, %v370
      %v417 = vpack.c.b16 %v373, %v372
      %v418 = vpack.c.b16 %v375, %v374
      %v419 = vpack.c.b16 %v377, %v376
      %v420 = vpack.c.b16 %v379, %v378
      %v421 = vpack.c.b16 %v381, %v380
      %v422 = vpack.c.b16 %v383, %v382
      %v423 = vpack.c.b16 %v385, %v384
      %v424 = vpack.c.b16 %v387, %v386
      %v425 = vpack.c.b16 %v389, %v388
      %v426 = vpack.c.b16 %v391, %v390
      %v427 = vpack.c.b16 %v393, %v392
      %v428 = vpack.c.b16 %v395, %v394
      %v429 = vpack.c.b16 %v397, %v396
      %v434 = vunpack.c.l.b16 %v266
      %v435 = vunpack.c.l.b16 %v267
      %v436 = vunpack.c.l.b16 %v268
      %v437 = vunpack.c.l.b16 %v269
      %v438 = vpack.c.b16 %v435, %v434
      %v439 = vpack.c.b16 %v437, %v436
      %vm442 = vcmask 261120
      %v444 = vsel %vm442, %v398, 0
      %v447 = vsel %vm442, %v399, 0
      %v450 = vsel %vm442, %v400, 0
      %v453 = vsel %vm442, %v401, 0
      %v456 = vsel %vm442, %v402, 0
      %v459 = vsel %vm442, %v403, 0
      %v462 = vsel %vm442, %v404, 0
      %v465 = vsel %vm442, %v405, 0
      %v468 = vsel %vm442, %v406, 0
      %v471 = vsel %vm442, %v407, 0
      %v474 = vsel %vm442, %v408, 0
      %v477 = vsel %vm442, %v409, 0
      %v480 = vsel %vm442, %v410, 0
      %v483 = vsel %vm442, %v411, 0
      %v486 = vsel %vm442, %v412, 0
      %v489 = vsel %vm442, %v413, 0
      %v492 = vsel %vm442, %v414, 0
      %v495 = vsel %vm442, %v415, 0
      %v498 = vsel %vm442, %v416, 0
      %v501 = vsel %vm442, %v417, 0
      %v504 = vsel %vm442, %v418, 0
      %v507 = vsel %vm442, %v419, 0
      %v510 = vsel %vm442, %v420, 0
      %v513 = vsel %vm442, %v421, 0
      %v516 = vsel %vm442, %v422, 0
      %v519 = vsel %vm442, %v423, 0
      %v522 = vsel %vm442, %v424, 0
      %v525 = vsel %vm442, %v425, 0
      %v528 = vsel %vm442, %v426, 0
      %v531 = vsel %vm442, %v427, 0
      %v534 = vsel %vm442, %v428, 0
      %v537 = vsel %vm442, %v429, 0
      %539 = vmatprep.subr.bf16.mxu0 0
      %540 = vmatpush1.bf16.msra.mxu0 %v438
      %541 = vmatprep.subr.bf16.mxu0 0
      %542 = vmatpush1.bf16.msra.mxu0 %v439
      %543 = vmatprep.subr.bf16.mxu0 0
      %544 = vmatpush1.bf16.msra.mxu0 0
      %545 = vmatprep.subr.bf16.mxu0 0
      %546 = vmatpush1.bf16.msra.mxu0 0
      %547 = vmatprep.subr.bf16.mxu0 0
      %548 = vmatpush1.bf16.msra.mxu0 0
      %549 = vmatprep.subr.bf16.mxu0 0
      %550 = vmatpush1.bf16.msra.mxu0 0
      %551 = vmatprep.subr.bf16.mxu0 0
      %552 = vmatpush1.bf16.msra.mxu0 0
      %553 = vmatprep.subr.bf16.mxu0 0
      %554 = vmatpush1.bf16.msra.mxu0 0
      %555 = vmatprep.subr.bf16.mxu0 0
      %556 = vmatpush1.bf16.msra.mxu0 0
      %557 = vmatprep.subr.bf16.mxu0 0
      %558 = vmatpush1.bf16.msra.mxu0 0
      %559 = vmatprep.subr.bf16.mxu0 0
      %560 = vmatpush1.bf16.msra.mxu0 0
      %561 = vmatprep.subr.bf16.mxu0 0
      %562 = vmatpush1.bf16.msra.mxu0 0
      %563 = vmatprep.subr.bf16.mxu0 0
      %564 = vmatpush1.bf16.msra.mxu0 0
      %565 = vmatprep.subr.bf16.mxu0 0
      %566 = vmatpush1.bf16.msra.mxu0 0
      %567 = vmatprep.subr.bf16.mxu0 0
      %568 = vmatpush1.bf16.msra.mxu0 0
      %569 = vmatprep.subr.bf16.mxu0 0
      %570 = vmatpush1.bf16.msra.mxu0 0
      %571 = vmatprep.mubr.bf16.mxu0 0
      %572 = vmatmul.mubr.bf16.gmra.mrb[0].mxu0 %v444
      %v573 = vpop.f32.mrb[0].mxu0
      %v574 = vadd.f32 0.0, %v573
      %v575 = vpop.f32.mrb[0].mxu0
      %v576 = vpop.f32.mrb[0].mxu0
      %v577 = vadd.f32 0.0, %v576
      %v578 = vpop.f32.mrb[0].mxu0
      %579 = vmatprep.mubr.bf16.mxu0 0
      %580 = vmatmul.mubr.bf16.gmra.mrb[0].mxu0 %v447
      %v581 = vpop.f32.mrb[0].mxu0
      %v582 = vadd.f32 0.0, %v581
      %v583 = vpop.f32.mrb[0].mxu0
      %v584 = vpop.f32.mrb[0].mxu0
      %v585 = vadd.f32 0.0, %v584
      %v586 = vpop.f32.mrb[0].mxu0
      %587 = vmatprep.mubr.bf16.mxu0 0
      %588 = vmatmul.mubr.bf16.gmra.mrb[0].mxu0 %v450
      %v589 = vpop.f32.mrb[0].mxu0
      %v590 = vadd.f32 0.0, %v589
      %v591 = vpop.f32.mrb[0].mxu0
      %v592 = vpop.f32.mrb[0].mxu0
      %v593 = vadd.f32 0.0, %v592
      %v594 = vpop.f32.mrb[0].mxu0
      %595 = vmatprep.mubr.bf16.mxu0 0
      %596 = vmatmul.mubr.bf16.gmra.mrb[0].mxu0 %v453
      %v597 = vpop.f32.mrb[0].mxu0
      %v598 = vadd.f32 0.0, %v597
      %v599 = vpop.f32.mrb[0].mxu0
      %v600 = vpop.f32.mrb[0].mxu0
      %v601 = vadd.f32 0.0, %v600
      %v602 = vpop.f32.mrb[0].mxu0
      %603 = vmatprep.mubr.bf16.mxu0 0
      %604 = vmatmul.mubr.bf16.gmra.mrb[0].mxu0 %v456
      %v605 = vpop.f32.mrb[0].mxu0
      %v606 = vadd.f32 0.0, %v605
      %v607 = vpop.f32.mrb[0].mxu0
      %v608 = vpop.f32.mrb[0].mxu0
      %v609 = vadd.f32 0.0, %v608
      %v610 = vpop.f32.mrb[0].mxu0
      %611 = vmatprep.mubr.bf16.mxu0 0
      %612 = vmatmul.mubr.bf16.gmra.mrb[0].mxu0 %v459
      %v613 = vpop.f32.mrb[0].mxu0
      %v614 = vadd.f32 0.0, %v613
      %v615 = vpop.f32.mrb[0].mxu0
      %v616 = vpop.f32.mrb[0].mxu0
      %v617 = vadd.f32 0.0, %v616
      %v618 = vpop.f32.mrb[0].mxu0
      %619 = vmatprep.mubr.bf16.mxu0 0
      %620 = vmatmul.mubr.bf16.gmra.mrb[0].mxu0 %v462
      %v621 = vpop.f32.mrb[0].mxu0
      %v622 = vadd.f32 0.0, %v621
      %v623 = vpop.f32.mrb[0].mxu0
      %v624 = vpop.f32.mrb[0].mxu0
      %v625 = vadd.f32 0.0, %v624
      %v626 = vpop.f32.mrb[0].mxu0
      %627 = vmatprep.mubr.bf16.mxu0 0
      %628 = vmatmul.mubr.bf16.gmra.mrb[0].mxu0 %v465
      %v629 = vpop.f32.mrb[0].mxu0
      %v630 = vadd.f32 0.0, %v629
      %v631 = vpop.f32.mrb[0].mxu0
      %v632 = vpop.f32.mrb[0].mxu0
      %v633 = vadd.f32 0.0, %v632
      %v634 = vpop.f32.mrb[0].mxu0
      %635 = vmatprep.mubr.bf16.mxu0 0
      %636 = vmatmul.mubr.bf16.gmra.mrb[0].mxu0 %v468
      %v637 = vpop.f32.mrb[0].mxu0
      %v638 = vadd.f32 0.0, %v637
      %v639 = vpop.f32.mrb[0].mxu0
      %v640 = vpop.f32.mrb[0].mxu0
      %v641 = vadd.f32 0.0, %v640
      %v642 = vpop.f32.mrb[0].mxu0
      %643 = vmatprep.mubr.bf16.mxu0 0
      %644 = vmatmul.mubr.bf16.gmra.mrb[0].mxu0 %v471
      %v645 = vpop.f32.mrb[0].mxu0
      %v646 = vadd.f32 0.0, %v645
      %v647 = vpop.f32.mrb[0].mxu0
      %v648 = vpop.f32.mrb[0].mxu0
      %v649 = vadd.f32 0.0, %v648
      %v650 = vpop.f32.mrb[0].mxu0
      %651 = vmatprep.mubr.bf16.mxu0 0
      %652 = vmatmul.mubr.bf16.gmra.mrb[0].mxu0 %v474
      %v653 = vpop.f32.mrb[0].mxu0
      %v654 = vadd.f32 0.0, %v653
      %v655 = vpop.f32.mrb[0].mxu0
      %v656 = vpop.f32.mrb[0].mxu0
      %v657 = vadd.f32 0.0, %v656
      %v658 = vpop.f32.mrb[0].mxu0
      %659 = vmatprep.mubr.bf16.mxu0 0
      %660 = vmatmul.mubr.bf16.gmra.mrb[0].mxu0 %v477
      %v661 = vpop.f32.mrb[0].mxu0
      %v662 = vadd.f32 0.0, %v661
      %v663 = vpop.f32.mrb[0].mxu0
      %v664 = vpop.f32.mrb[0].mxu0
      %v665 = vadd.f32 0.0, %v664
      %v666 = vpop.f32.mrb[0].mxu0
      %667 = vmatprep.mubr.bf16.mxu0 0
      %668 = vmatmul.mubr.bf16.gmra.mrb[0].mxu0 %v480
      %v669 = vpop.f32.mrb[0].mxu0
      %v670 = vadd.f32 0.0, %v669
      %v671 = vpop.f32.mrb[0].mxu0
      %v672 = vpop.f32.mrb[0].mxu0
      %v673 = vadd.f32 0.0, %v672
      %v674 = vpop.f32.mrb[0].mxu0
      %675 = vmatprep.mubr.bf16.mxu0 0
      %676 = vmatmul.mubr.bf16.gmra.mrb[0].mxu0 %v483
      %v677 = vpop.f32.mrb[0].mxu0
      %v678 = vadd.f32 0.0, %v677
      %v679 = vpop.f32.mrb[0].mxu0
      %v680 = vpop.f32.mrb[0].mxu0
      %v681 = vadd.f32 0.0, %v680
      %v682 = vpop.f32.mrb[0].mxu0
      %683 = vmatprep.mubr.bf16.mxu0 0
      %684 = vmatmul.mubr.bf16.gmra.mrb[0].mxu0 %v486
      %v685 = vpop.f32.mrb[0].mxu0
      %v686 = vadd.f32 0.0, %v685
      %v687 = vpop.f32.mrb[0].mxu0
      %v688 = vpop.f32.mrb[0].mxu0
      %v689 = vadd.f32 0.0, %v688
      %v690 = vpop.f32.mrb[0].mxu0
      %691 = vmatprep.mubr.bf16.mxu0 0
      %692 = vmatmul.mubr.bf16.gmra.mrb[0].mxu0 %v489
      %v693 = vpop.f32.mrb[0].mxu0
      %v694 = vadd.f32 0.0, %v693
      %v695 = vpop.f32.mrb[0].mxu0
      %v696 = vpop.f32.mrb[0].mxu0
      %v697 = vadd.f32 0.0, %v696
      %v698 = vpop.f32.mrb[0].mxu0
      %699 = vmatprep.mubr.bf16.mxu0 0
      %700 = vmatmul.mubr.bf16.gmra.mrb[0].mxu0 %v492
      %v701 = vpop.f32.mrb[0].mxu0
      %v702 = vadd.f32 0.0, %v701
      %v703 = vpop.f32.mrb[0].mxu0
      %v704 = vpop.f32.mrb[0].mxu0
      %v705 = vadd.f32 0.0, %v704
      %v706 = vpop.f32.mrb[0].mxu0
      %707 = vmatprep.mubr.bf16.mxu0 0
      %708 = vmatmul.mubr.bf16.gmra.mrb[0].mxu0 %v495
      %v709 = vpop.f32.mrb[0].mxu0
      %v710 = vadd.f32 0.0, %v709
      %v711 = vpop.f32.mrb[0].mxu0
      %v712 = vpop.f32.mrb[0].mxu0
      %v713 = vadd.f32 0.0, %v712
      %v714 = vpop.f32.mrb[0].mxu0
      %715 = vmatprep.mubr.bf16.mxu0 0
      %716 = vmatmul.mubr.bf16.gmra.mrb[0].mxu0 %v498
      %v717 = vpop.f32.mrb[0].mxu0
      %v718 = vadd.f32 0.0, %v717
      %v719 = vpop.f32.mrb[0].mxu0
      %v720 = vpop.f32.mrb[0].mxu0
      %v721 = vadd.f32 0.0, %v720
      %v722 = vpop.f32.mrb[0].mxu0
      %723 = vmatprep.mubr.bf16.mxu0 0
      %724 = vmatmul.mubr.bf16.gmra.mrb[0].mxu0 %v501
      %v725 = vpop.f32.mrb[0].mxu0
      %v726 = vadd.f32 0.0, %v725
      %v727 = vpop.f32.mrb[0].mxu0
      %v728 = vpop.f32.mrb[0].mxu0
      %v729 = vadd.f32 0.0, %v728
      %v730 = vpop.f32.mrb[0].mxu0
      %731 = vmatprep.mubr.bf16.mxu0 0
      %732 = vmatmul.mubr.bf16.gmra.mrb[0].mxu0 %v504
      %v733 = vpop.f32.mrb[0].mxu0
      %v734 = vadd.f32 0.0, %v733
      %v735 = vpop.f32.mrb[0].mxu0
      %v736 = vpop.f32.mrb[0].mxu0
      %v737 = vadd.f32 0.0, %v736
      %v738 = vpop.f32.mrb[0].mxu0
      %739 = vmatprep.mubr.bf16.mxu0 0
      %740 = vmatmul.mubr.bf16.gmra.mrb[0].mxu0 %v507
      %v741 = vpop.f32.mrb[0].mxu0
      %v742 = vadd.f32 0.0, %v741
      %v743 = vpop.f32.mrb[0].mxu0
      %v744 = vpop.f32.mrb[0].mxu0
      %v745 = vadd.f32 0.0, %v744
      %v746 = vpop.f32.mrb[0].mxu0
      %747 = vmatprep.mubr.bf16.mxu0 0
      %748 = vmatmul.mubr.bf16.gmra.mrb[0].mxu0 %v510
      %v749 = vpop.f32.mrb[0].mxu0
      %v750 = vadd.f32 0.0, %v749
      %v751 = vpop.f32.mrb[0].mxu0
      %v752 = vpop.f32.mrb[0].mxu0
      %v753 = vadd.f32 0.0, %v752
      %v754 = vpop.f32.mrb[0].mxu0
      %755 = vmatprep.mubr.bf16.mxu0 0
      %756 = vmatmul.mubr.bf16.gmra.mrb[0].mxu0 %v513
      %v757 = vpop.f32.mrb[0].mxu0
      %v758 = vadd.f32 0.0, %v757
      %v759 = vpop.f32.mrb[0].mxu0
      %v760 = vpop.f32.mrb[0].mxu0
      %v761 = vadd.f32 0.0, %v760
      %v762 = vpop.f32.mrb[0].mxu0
      %763 = vmatprep.mubr.bf16.mxu0 0
      %764 = vmatmul.mubr.bf16.gmra.mrb[0].mxu0 %v516
      %v765 = vpop.f32.mrb[0].mxu0
      %v766 = vadd.f32 0.0, %v765
      %v767 = vpop.f32.mrb[0].mxu0
      %v768 = vpop.f32.mrb[0].mxu0
      %v769 = vadd.f32 0.0, %v768
      %v770 = vpop.f32.mrb[0].mxu0
      %771 = vmatprep.mubr.bf16.mxu0 0
      %772 = vmatmul.mubr.bf16.gmra.mrb[0].mxu0 %v519
      %v773 = vpop.f32.mrb[0].mxu0
      %v774 = vadd.f32 0.0, %v773
      %v775 = vpop.f32.mrb[0].mxu0
      %v776 = vpop.f32.mrb[0].mxu0
      %v777 = vadd.f32 0.0, %v776
      %v778 = vpop.f32.mrb[0].mxu0
      %779 = vmatprep.mubr.bf16.mxu0 0
      %780 = vmatmul.mubr.bf16.gmra.mrb[0].mxu0 %v522
      %v781 = vpop.f32.mrb[0].mxu0
      %v782 = vadd.f32 0.0, %v781
      %v783 = vpop.f32.mrb[0].mxu0
      %v784 = vpop.f32.mrb[0].mxu0
      %v785 = vadd.f32 0.0, %v784
      %v786 = vpop.f32.mrb[0].mxu0
      %787 = vmatprep.mubr.bf16.mxu0 0
      %788 = vmatmul.mubr.bf16.gmra.mrb[0].mxu0 %v525
      %v789 = vpop.f32.mrb[0].mxu0
      %v790 = vadd.f32 0.0, %v789
      %v791 = vpop.f32.mrb[0].mxu0
      %v792 = vpop.f32.mrb[0].mxu0
      %v793 = vadd.f32 0.0, %v792
      %v794 = vpop.f32.mrb[0].mxu0
      %795 = vmatprep.mubr.bf16.mxu0 0
      %796 = vmatmul.mubr.bf16.gmra.mrb[0].mxu0 %v528
      %v797 = vpop.f32.mrb[0].mxu0
      %v798 = vadd.f32 0.0, %v797
      %v799 = vpop.f32.mrb[0].mxu0
      %v800 = vpop.f32.mrb[0].mxu0
      %v801 = vadd.f32 0.0, %v800
      %v802 = vpop.f32.mrb[0].mxu0
      %803 = vmatprep.mubr.bf16.mxu0 0
      %804 = vmatmul.mubr.bf16.gmra.mrb[0].mxu0 %v531
      %v805 = vpop.f32.mrb[0].mxu0
      %v806 = vadd.f32 0.0, %v805
      %v807 = vpop.f32.mrb[0].mxu0
      %v808 = vpop.f32.mrb[0].mxu0
      %v809 = vadd.f32 0.0, %v808
      %v810 = vpop.f32.mrb[0].mxu0
      %811 = vmatprep.mubr.bf16.mxu0 0
      %812 = vmatmul.mubr.bf16.gmra.mrb[0].mxu0 %v534
      %v813 = vpop.f32.mrb[0].mxu0
      %v814 = vadd.f32 0.0, %v813
      %v815 = vpop.f32.mrb[0].mxu0
      %v816 = vpop.f32.mrb[0].mxu0
      %v817 = vadd.f32 0.0, %v816
      %v818 = vpop.f32.mrb[0].mxu0
      %819 = vmatprep.mubr.bf16.mxu0 0
      %820 = vmatmul.mubr.bf16.gmra.mrb[0].mxu0 %v537
      %v821 = vpop.f32.mrb[0].mxu0
      %v822 = vadd.f32 0.0, %v821
      %v823 = vpop.f32.mrb[0].mxu0
      %v824 = vpop.f32.mrb[0].mxu0
      %v825 = vadd.f32 0.0, %v824
      %v826 = vpop.f32.mrb[0].mxu0
      %827 = vdwg.mxu0
      %v828 = vmax.f32 %v574, 0.0
      %v829 = vmax.f32 %v577, 0.0
      %v830 = vmax.f32 %v582, 0.0
      %v831 = vmax.f32 %v585, 0.0
      %v832 = vmax.f32 %v590, 0.0
      %v833 = vmax.f32 %v593, 0.0
      %v834 = vmax.f32 %v598, 0.0
      %v835 = vmax.f32 %v601, 0.0
      %v836 = vmax.f32 %v606, 0.0
      %v837 = vmax.f32 %v609, 0.0
      %v838 = vmax.f32 %v614, 0.0
      %v839 = vmax.f32 %v617, 0.0
      %v840 = vmax.f32 %v622, 0.0
      %v841 = vmax.f32 %v625, 0.0
      %v842 = vmax.f32 %v630, 0.0
      %v843 = vmax.f32 %v633, 0.0
      %v844 = vmax.f32 %v638, 0.0
      %v845 = vmax.f32 %v641, 0.0
      %v846 = vmax.f32 %v646, 0.0
      %v847 = vmax.f32 %v649, 0.0
      %v848 = vmax.f32 %v654, 0.0
      %v849 = vmax.f32 %v657, 0.0
      %v850 = vmax.f32 %v662, 0.0
      %v851 = vmax.f32 %v665, 0.0
      %v852 = vmax.f32 %v670, 0.0
      %v853 = vmax.f32 %v673, 0.0
      %v854 = vmax.f32 %v678, 0.0
      %v855 = vmax.f32 %v681, 0.0
      %v856 = vmax.f32 %v686, 0.0
      %v857 = vmax.f32 %v689, 0.0
      %v858 = vmax.f32 %v694, 0.0
      %v859 = vmax.f32 %v697, 0.0
      %v860 = vmax.f32 %v702, 0.0
      %v861 = vmax.f32 %v705, 0.0
      %v862 = vmax.f32 %v710, 0.0
      %v863 = vmax.f32 %v713, 0.0
      %v864 = vmax.f32 %v718, 0.0
      %v865 = vmax.f32 %v721, 0.0
      %v866 = vmax.f32 %v726, 0.0
      %v867 = vmax.f32 %v729, 0.0
      %v868 = vmax.f32 %v734, 0.0
      %v869 = vmax.f32 %v737, 0.0
      %v870 = vmax.f32 %v742, 0.0
      %v871 = vmax.f32 %v745, 0.0
      %v872 = vmax.f32 %v750, 0.0
      %v873 = vmax.f32 %v753, 0.0
      %v874 = vmax.f32 %v758, 0.0
      %v875 = vmax.f32 %v761, 0.0
      %v876 = vmax.f32 %v766, 0.0
      %v877 = vmax.f32 %v769, 0.0
      %v878 = vmax.f32 %v774, 0.0
      %v879 = vmax.f32 %v777, 0.0
      %v880 = vmax.f32 %v782, 0.0
      %v881 = vmax.f32 %v785, 0.0
      %v882 = vmax.f32 %v790, 0.0
      %v883 = vmax.f32 %v793, 0.0
      %v884 = vmax.f32 %v798, 0.0
      %v885 = vmax.f32 %v801, 0.0
      %v886 = vmax.f32 %v806, 0.0
      %v887 = vmax.f32 %v809, 0.0
      %v888 = vmax.f32 %v814, 0.0
      %v889 = vmax.f32 %v817, 0.0
      %v890 = vmax.f32 %v822, 0.0
      %v891 = vmax.f32 %v825, 0.0
      %v892 = vld [vmem:[%s2] sm:$0x1]
      %v894 = vlaneseq
      %v895 = vshrl.u32 %v894, 7
      %v896 = vsub.s32 0, %v895
      %v897 = vrot.slane %v892, %v896
      %v899 = vmul.f32 %v828, %v897
      %v900 = vmul.f32 %v829, %v897
      %v901 = vmul.f32 %v830, %v897
      %v902 = vmul.f32 %v831, %v897
      %v903 = vmul.f32 %v832, %v897
      %v904 = vmul.f32 %v833, %v897
      %v905 = vmul.f32 %v834, %v897
      %v906 = vmul.f32 %v835, %v897
      %v907 = vmul.f32 %v836, %v897
      %v908 = vmul.f32 %v837, %v897
      %v909 = vmul.f32 %v838, %v897
      %v910 = vmul.f32 %v839, %v897
      %v911 = vmul.f32 %v840, %v897
      %v912 = vmul.f32 %v841, %v897
      %v913 = vmul.f32 %v842, %v897
      %v914 = vmul.f32 %v843, %v897
      %v915 = vmul.f32 %v844, %v897
      %v916 = vmul.f32 %v845, %v897
      %v917 = vmul.f32 %v846, %v897
      %v918 = vmul.f32 %v847, %v897
      %v919 = vmul.f32 %v848, %v897
      %v920 = vmul.f32 %v849, %v897
      %v921 = vmul.f32 %v850, %v897
      %v922 = vmul.f32 %v851, %v897
      %v923 = vmul.f32 %v852, %v897
      %v924 = vmul.f32 %v853, %v897
      %v925 = vmul.f32 %v854, %v897
      %v926 = vmul.f32 %v855, %v897
      %v927 = vmul.f32 %v856, %v897
      %v928 = vmul.f32 %v857, %v897
      %v929 = vmul.f32 %v858, %v897
      %v930 = vmul.f32 %v859, %v897
      %v931 = vmul.f32 %v860, %v897
      %v932 = vmul.f32 %v861, %v897
      %v933 = vmul.f32 %v862, %v897
      %v934 = vmul.f32 %v863, %v897
      %v935 = vmul.f32 %v864, %v897
      %v936 = vmul.f32 %v865, %v897
      %v937 = vmul.f32 %v866, %v897
      %v938 = vmul.f32 %v867, %v897
      %v939 = vmul.f32 %v868, %v897
      %v940 = vmul.f32 %v869, %v897
      %v941 = vmul.f32 %v870, %v897
      %v942 = vmul.f32 %v871, %v897
      %v943 = vmul.f32 %v872, %v897
      %v944 = vmul.f32 %v873, %v897
      %v945 = vmul.f32 %v874, %v897
      %v946 = vmul.f32 %v875, %v897
      %v947 = vmul.f32 %v876, %v897
      %v948 = vmul.f32 %v877, %v897
      %v949 = vmul.f32 %v878, %v897
      %v950 = vmul.f32 %v879, %v897
      %v951 = vmul.f32 %v880, %v897
      %v952 = vmul.f32 %v881, %v897
      %v953 = vmul.f32 %v882, %v897
      %v954 = vmul.f32 %v883, %v897
      %v955 = vmul.f32 %v884, %v897
      %v956 = vmul.f32 %v885, %v897
      %v957 = vmul.f32 %v886, %v897
      %v958 = vmul.f32 %v887, %v897
      %v959 = vmul.f32 %v888, %v897
      %v960 = vmul.f32 %v889, %v897
      %v961 = vmul.f32 %v890, %v897
      %v962 = vmul.f32 %v891, %v897
      %v963 = vld [vmem:[%s3] sm:$0x1]
      %v965 = vlaneseq
      %v966 = vshrl.u32 %v965, 7
      %v967 = vsub.s32 0, %v966
      %v968 = vrot.slane %v963, %v967
      %v970 = vadd.f32 %v899, %v968
      %v971 = vadd.f32 %v900, %v968
      %v972 = vadd.f32 %v901, %v968
      %v973 = vadd.f32 %v902, %v968
      %v974 = vadd.f32 %v903, %v968
      %v975 = vadd.f32 %v904, %v968
      %v976 = vadd.f32 %v905, %v968
      %v977 = vadd.f32 %v906, %v968
      %v978 = vadd.f32 %v907, %v968
      %v979 = vadd.f32 %v908, %v968
      %v980 = vadd.f32 %v909, %v968
      %v981 = vadd.f32 %v910, %v968
      %v982 = vadd.f32 %v911, %v968
      %v983 = vadd.f32 %v912, %v968
      %v984 = vadd.f32 %v913, %v968
      %v985 = vadd.f32 %v914, %v968
      %v986 = vadd.f32 %v915, %v968
      %v987 = vadd.f32 %v916, %v968
      %v988 = vadd.f32 %v917, %v968
      %v989 = vadd.f32 %v918, %v968
      %v990 = vadd.f32 %v919, %v968
      %v991 = vadd.f32 %v920, %v968
      %v992 = vadd.f32 %v921, %v968
      %v993 = vadd.f32 %v922, %v968
      %v994 = vadd.f32 %v923, %v968
      %v995 = vadd.f32 %v924, %v968
      %v996 = vadd.f32 %v925, %v968
      %v997 = vadd.f32 %v926, %v968
      %v998 = vadd.f32 %v927, %v968
      %v999 = vadd.f32 %v928, %v968
      %v1000 = vadd.f32 %v929, %v968
      %v1001 = vadd.f32 %v930, %v968
      %v1002 = vadd.f32 %v931, %v968
      %v1003 = vadd.f32 %v932, %v968
      %v1004 = vadd.f32 %v933, %v968
      %v1005 = vadd.f32 %v934, %v968
      %v1006 = vadd.f32 %v935, %v968
      %v1007 = vadd.f32 %v936, %v968
      %v1008 = vadd.f32 %v937, %v968
      %v1009 = vadd.f32 %v938, %v968
      %v1010 = vadd.f32 %v939, %v968
      %v1011 = vadd.f32 %v940, %v968
      %v1012 = vadd.f32 %v941, %v968
      %v1013 = vadd.f32 %v942, %v968
      %v1014 = vadd.f32 %v943, %v968
      %v1015 = vadd.f32 %v944, %v968
      %v1016 = vadd.f32 %v945, %v968
      %v1017 = vadd.f32 %v946, %v968
      %v1018 = vadd.f32 %v947, %v968
      %v1019 = vadd.f32 %v948, %v968
      %v1020 = vadd.f32 %v949, %v968
      %v1021 = vadd.f32 %v950, %v968
      %v1022 = vadd.f32 %v951, %v968
      %v1023 = vadd.f32 %v952, %v968
      %v1024 = vadd.f32 %v953, %v968
      %v1025 = vadd.f32 %v954, %v968
      %v1026 = vadd.f32 %v955, %v968
      %v1027 = vadd.f32 %v956, %v968
      %v1028 = vadd.f32 %v957, %v968
      %v1029 = vadd.f32 %v958, %v968
      %v1030 = vadd.f32 %v959, %v968
      %v1031 = vadd.f32 %v960, %v968
      %v1032 = vadd.f32 %v961, %v968
      %v1033 = vadd.f32 %v962, %v968
      %vm1034 = vcmask 130048
      %1035 = vst.msk [vmem:[%s199] sm:$0xff] %vm1034, %v970
      %1036 = vst.msk [vmem:[%s199 + $0x8] sm:$0xff] %vm1034, %v971
      %1037 = vst.msk [vmem:[%s199 + $0x10] sm:$0xff] %vm1034, %v972
      %1038 = vst.msk [vmem:[%s199 + $0x18] sm:$0xff] %vm1034, %v973
      %1039 = vst.msk [vmem:[%s199 + $0x20] sm:$0xff] %vm1034, %v974
      %1040 = vst.msk [vmem:[%s199 + $0x28] sm:$0xff] %vm1034, %v975
      %1041 = vst.msk [vmem:[%s199 + $0x30] sm:$0xff] %vm1034, %v976
      %1042 = vst.msk [vmem:[%s199 + $0x38] sm:$0xff] %vm1034, %v977
      %1043 = vst.msk [vmem:[%s199 + $0x40] sm:$0xff] %vm1034, %v978
      %1044 = vst.msk [vmem:[%s199 + $0x48] sm:$0xff] %vm1034, %v979
      %1045 = vst.msk [vmem:[%s199 + $0x50] sm:$0xff] %vm1034, %v980
      %1046 = vst.msk [vmem:[%s199 + $0x58] sm:$0xff] %vm1034, %v981
      %1047 = vst.msk [vmem:[%s199 + $0x60] sm:$0xff] %vm1034, %v982
      %1048 = vst.msk [vmem:[%s199 + $0x68] sm:$0xff] %vm1034, %v983
      %1049 = vst.msk [vmem:[%s199 + $0x70] sm:$0xff] %vm1034, %v984
      %1050 = vst.msk [vmem:[%s199 + $0x78] sm:$0xff] %vm1034, %v985
      %1051 = vst.msk [vmem:[%s199 + $0x80] sm:$0xff] %vm1034, %v986
      %1052 = vst.msk [vmem:[%s199 + $0x88] sm:$0xff] %vm1034, %v987
      %1053 = vst.msk [vmem:[%s199 + $0x90] sm:$0xff] %vm1034, %v988
      %1054 = vst.msk [vmem:[%s199 + $0x98] sm:$0xff] %vm1034, %v989
      %1055 = vst.msk [vmem:[%s199 + $0xa0] sm:$0xff] %vm1034, %v990
      %1056 = vst.msk [vmem:[%s199 + $0xa8] sm:$0xff] %vm1034, %v991
      %1057 = vst.msk [vmem:[%s199 + $0xb0] sm:$0xff] %vm1034, %v992
      %1058 = vst.msk [vmem:[%s199 + $0xb8] sm:$0xff] %vm1034, %v993
      %1059 = vst.msk [vmem:[%s199 + $0xc0] sm:$0xff] %vm1034, %v994
      %1060 = vst.msk [vmem:[%s199 + $0xc8] sm:$0xff] %vm1034, %v995
      %1061 = vst.msk [vmem:[%s199 + $0xd0] sm:$0xff] %vm1034, %v996
      %1062 = vst.msk [vmem:[%s199 + $0xd8] sm:$0xff] %vm1034, %v997
      %1063 = vst.msk [vmem:[%s199 + $0xe0] sm:$0xff] %vm1034, %v998
      %1064 = vst.msk [vmem:[%s199 + $0xe8] sm:$0xff] %vm1034, %v999
      %1065 = vst.msk [vmem:[%s199 + $0xf0] sm:$0xff] %vm1034, %v1000
      %1066 = vst.msk [vmem:[%s199 + $0xf8] sm:$0xff] %vm1034, %v1001
      %1067 = vst.msk [vmem:[%s199 + $0x100] sm:$0xff] %vm1034, %v1002
      %1068 = vst.msk [vmem:[%s199 + $0x108] sm:$0xff] %vm1034, %v1003
      %1069 = vst.msk [vmem:[%s199 + $0x110] sm:$0xff] %vm1034, %v1004
      %1070 = vst.msk [vmem:[%s199 + $0x118] sm:$0xff] %vm1034, %v1005
      %1071 = vst.msk [vmem:[%s199 + $0x120] sm:$0xff] %vm1034, %v1006
      %1072 = vst.msk [vmem:[%s199 + $0x128] sm:$0xff] %vm1034, %v1007
      %1073 = vst.msk [vmem:[%s199 + $0x130] sm:$0xff] %vm1034, %v1008
      %1074 = vst.msk [vmem:[%s199 + $0x138] sm:$0xff] %vm1034, %v1009
      %1075 = vst.msk [vmem:[%s199 + $0x140] sm:$0xff] %vm1034, %v1010
      %1076 = vst.msk [vmem:[%s199 + $0x148] sm:$0xff] %vm1034, %v1011
      %1077 = vst.msk [vmem:[%s199 + $0x150] sm:$0xff] %vm1034, %v1012
      %1078 = vst.msk [vmem:[%s199 + $0x158] sm:$0xff] %vm1034, %v1013
      %1079 = vst.msk [vmem:[%s199 + $0x160] sm:$0xff] %vm1034, %v1014
      %1080 = vst.msk [vmem:[%s199 + $0x168] sm:$0xff] %vm1034, %v1015
      %1081 = vst.msk [vmem:[%s199 + $0x170] sm:$0xff] %vm1034, %v1016
      %1082 = vst.msk [vmem:[%s199 + $0x178] sm:$0xff] %vm1034, %v1017
      %1083 = vst.msk [vmem:[%s199 + $0x180] sm:$0xff] %vm1034, %v1018
      %1084 = vst.msk [vmem:[%s199 + $0x188] sm:$0xff] %vm1034, %v1019
      %1085 = vst.msk [vmem:[%s199 + $0x190] sm:$0xff] %vm1034, %v1020
      %1086 = vst.msk [vmem:[%s199 + $0x198] sm:$0xff] %vm1034, %v1021
      %1087 = vst.msk [vmem:[%s199 + $0x1a0] sm:$0xff] %vm1034, %v1022
      %1088 = vst.msk [vmem:[%s199 + $0x1a8] sm:$0xff] %vm1034, %v1023
      %1089 = vst.msk [vmem:[%s199 + $0x1b0] sm:$0xff] %vm1034, %v1024
      %1090 = vst.msk [vmem:[%s199 + $0x1b8] sm:$0xff] %vm1034, %v1025
      %1091 = vst.msk [vmem:[%s199 + $0x1c0] sm:$0xff] %vm1034, %v1026
      %1092 = vst.msk [vmem:[%s199 + $0x1c8] sm:$0xff] %vm1034, %v1027
      %1093 = vst.msk [vmem:[%s199 + $0x1d0] sm:$0xff] %vm1034, %v1028
      %1094 = vst.msk [vmem:[%s199 + $0x1d8] sm:$0xff] %vm1034, %v1029
      %1095 = vst.msk [vmem:[%s199 + $0x1e0] sm:$0xff] %vm1034, %v1030
      %1096 = vst.msk [vmem:[%s199 + $0x1e8] sm:$0xff] %vm1034, %v1031
      %1097 = vst.msk [vmem:[%s199 + $0x1f0] sm:$0xff] %vm1034, %v1032
      %1098 = vst.msk [vmem:[%s199 + $0x1f8] sm:$0xff] %vm1034, %v1033
      %s1099 = smul.u32 64, %s15
      %p1100 = scmp.lt.s32.totalorder %s1099, 255
      %s1101 = scalar_select %p1100, %s1099, 255
      %s1102 = smul.addr %s1101, 8
      %s1103 = scalar_lea.vmem %s4, %s1102
      // Predicated region
      $region37: #{net_forward.17} parent=35 // pred_check
        %p1104 = pneg %p122
      $region38: #{net_forward.17} parent=35 // pred_check_branch
        %1106 = sbr.rel (%p1104) target = $region40
      $region39: #{net_forward.17} parent=35 // pred_region
        %s1107 = smul.u32 64, %s15
      $region40: #{net_forward.17} parent=35 // pred_fallthru
        _
    $region36: #{net_forward.17} parent=5 // pred_fallthru
      _
    %p1108 = scmp.le.s32.totalorder 2, %s10
    // Predicated region
    $region41: #{net_forward.17} parent=5 // pred_check
      %p1109 = pneg %p1108
    $region42: #{net_forward.17} parent=5 // pred_check_branch
      %1111 = sbr.rel (%p1109) target = $region44
    $region43: #{net_forward.17} parent=5 // pred_region
      %s1112 = ssub.s32 %s10, 2
      // Predicated region
      $region45: #{net_forward.17} parent=43 // pred_check
        %p1113 = pneg %p128
      $region46: #{net_forward.17} parent=43 // pred_check_branch
        %1115 = sbr.rel (%p1113) target = $region48
      $region47: #{net_forward.17} parent=43 // pred_region
        %s1116 = smul.u32 64, %s16
        %p1117 = scmp.lt.s32.totalorder %s1116, 255
        %s1118 = scalar_select %p1117, %s1116, 255
        %s1119 = smul.addr %s1118, 8
        %s1120 = scalar_lea.vmem %s4, %s1119
      $region48: #{net_forward.17} parent=43 // pred_fallthru
        _
    $region44: #{net_forward.17} parent=5 // pred_fallthru
      _
  $region6: #{net_forward.17} parent=0 // loop_footer
    %s14 = sadd.s32 1, %s10
  $region7: #{net_forward.17} parent=0 // loop_footer_branch
    %9 = sbr.rel target = $region3
  $region8: #{net_forward.17} parent=0 // loop_exit
    _

// kernel: net_forward.18
$region0: #{net_forward.18}
  #allocation0 [shape = 'u32[]', space=smem, size = 0x4, offset = 0x4, fixed_abs, tag = 'smem constant byte address 0x4 - core index']
  #allocation1 [shape = 'u32[144,128]{1,0:T(1,128)}', space=vmem, size = 0x12000, scoped, tag = 'internal scratch']
  %s0 = inlined_call_operand.vmem [shape: bf16[2048,144], index: 0, kind: input, shape index: {}]
  %s1 = inlined_call_operand.vmem [shape: bf16[144,32], index: 1, kind: input, shape index: {}]
  %s2 = inlined_call_operand.vmem [shape: f32[1,32], index: 2, kind: input, shape index: {}]
  %s3 = inlined_call_operand.vmem [shape: f32[1,32], index: 3, kind: input, shape index: {}]
  %s4 = inlined_call_operand.vmem [shape: f32[2048,32], index: 4, kind: output, shape index: {}]
  %s5 = sld [smem:[#allocation0]]
  $region49: #{net_forward.18} parent=0
    _
  %s7 = ssub.s32 1, %s5
  %s8 = scalar_select 0, %s7, %s5
  loop: start=0, step=1, limit=6
  $region2: #{net_forward.18} parent=0 // loop_pre_header
    _
  $region3: #{net_forward.18} parent=0 // loop_header
    %s10 = sphi 0, %s14
    %p11 = scmp.ge.s32.totalorder %s10, 6
    %s20 = sphi 0, %s22
    %s23 = sphi 0, %s20
    %s24 = sphi 0, %s23
    %s40 = sphi 0, %s24
    %s44 = sphi 0, %s44
    %s46 = sphi 0, %s44
    %s47 = sphi 0, %s46
    %s61 = sphi 0, %s47
    %s65 = sphi 0, %s65
    %s67 = sphi 0, %s65
    %s68 = sphi 0, %s67
    %s82 = sphi 0, %s68
    %s86 = sphi 0, %s86
    %s88 = sphi 0, %s86
    %s89 = sphi 0, %s88
    %s103 = sphi 0, %s89
    %s109 = sphi 0, %s111
    %s112 = sphi 0, %s109
    %s113 = sphi 0, %s112
    %s129 = sphi 0, %s113
  $region4: #{net_forward.18} parent=0 // loop_header_branch
    %13 = sbr.rel (%p11) target = $region8
  $region5: #{net_forward.18} parent=0 // loop_body
    %s15 = ssub.s32 %s10, 1
    %s16 = ssub.s32 %s10, 2
    %s17 = sadd.s32 %s10, 1
    %s18 = ssub.s32 %s10, %s17
    %p19 = scmp.eq.s32.totalorder %s18, 0
    %s21 = sadd.s32 %s20, 1
    %s22 = scalar_select %p19, %s20, %s21
    %p25 = pneg %p19
    %p26 = scmp.eq.s32.totalorder %s10, 3
    %p27 = por %p25, %p26
    %p28 = scmp.ne.s32.totalorder %s20, %s23
    %p29 = scmp.eq.s32.totalorder %s10, 0
    %p30 = por %p28, %p29
    %p31 = scmp.ne.s32.totalorder %s20, %s23
    %p32 = scmp.eq.s32.totalorder %s15, 3
    %p33 = por %p31, %p32
    %p34 = scmp.ne.s32.totalorder %s23, %s24
    %p35 = scmp.eq.s32.totalorder %s15, 0
    %p36 = por %p34, %p35
    %p37 = scmp.ne.s32.totalorder %s23, %s24
    %p38 = scmp.eq.s32.totalorder %s16, 3
    %p39 = por %p37, %p38
    %p41 = scmp.ne.s32.totalorder %s24, %s40
    %p42 = scmp.eq.s32.totalorder %s16, 0
    %p43 = por %p41, %p42
    %s45 = sadd.s32 %s44, 1
    %p48 = scmp.eq.s32.totalorder %s10, 3
    %p49 = scmp.ne.s32.totalorder %s44, %s46
    %p50 = scmp.eq.s32.totalorder %s10, 0
    %p51 = por %p49, %p50
    %p52 = scmp.ne.s32.totalorder %s44, %s46
    %p53 = scmp.eq.s32.totalorder %s15, 3
    %p54 = por %p52, %p53
    %p55 = scmp.ne.s32.totalorder %s46, %s47
    %p56 = scmp.eq.s32.totalorder %s15, 0
    %p57 = por %p55, %p56
    %p58 = scmp.ne.s32.totalorder %s46, %s47
    %p59 = scmp.eq.s32.totalorder %s16, 3
    %p60 = por %p58, %p59
    %p62 = scmp.ne.s32.totalorder %s47, %s61
    %p63 = scmp.eq.s32.totalorder %s16, 0
    %p64 = por %p62, %p63
    %s66 = sadd.s32 %s65, 1
    %p69 = scmp.eq.s32.totalorder %s10, 3
    %p70 = scmp.ne.s32.totalorder %s65, %s67
    %p71 = scmp.eq.s32.totalorder %s10, 0
    %p72 = por %p70, %p71
    %p73 = scmp.ne.s32.totalorder %s65, %s67
    %p74 = scmp.eq.s32.totalorder %s15, 3
    %p75 = por %p73, %p74
    %p76 = scmp.ne.s32.totalorder %s67, %s68
    %p77 = scmp.eq.s32.totalorder %s15, 0
    %p78 = por %p76, %p77
    %p79 = scmp.ne.s32.totalorder %s67, %s68
    %p80 = scmp.eq.s32.totalorder %s16, 3
    %p81 = por %p79, %p80
    %p83 = scmp.ne.s32.totalorder %s68, %s82
    %p84 = scmp.eq.s32.totalorder %s16, 0
    %p85 = por %p83, %p84
    %s87 = sadd.s32 %s86, 1
    %p90 = scmp.eq.s32.totalorder %s10, 3
    %p91 = scmp.ne.s32.totalorder %s86, %s88
    %p92 = scmp.eq.s32.totalorder %s10, 0
    %p93 = por %p91, %p92
    %p94 = scmp.ne.s32.totalorder %s86, %s88
    %p95 = scmp.eq.s32.totalorder %s15, 3
    %p96 = por %p94, %p95
    %p97 = scmp.ne.s32.totalorder %s88, %s89
    %p98 = scmp.eq.s32.totalorder %s15, 0
    %p99 = por %p97, %p98
    %p100 = scmp.ne.s32.totalorder %s88, %s89
    %p101 = scmp.eq.s32.totalorder %s16, 3
    %p102 = por %p100, %p101
    %p104 = scmp.ne.s32.totalorder %s89, %s103
    %p105 = scmp.eq.s32.totalorder %s16, 0
    %p106 = por %p104, %p105
    %s107 = ssub.s32 %s10, %s17
    %p108 = scmp.eq.s32.totalorder %s107, 0
    %s110 = sadd.s32 %s109, 1
    %s111 = scalar_select %p108, %s109, %s110
    %p114 = pneg %p108
    %p115 = scmp.eq.s32.totalorder %s10, 3
    %p116 = por %p114, %p115
    %p117 = scmp.ne.s32.totalorder %s109, %s112
    %p118 = scmp.eq.s32.totalorder %s10, 0
    %p119 = por %p117, %p118
    %p120 = scmp.ne.s32.totalorder %s109, %s112
    %p121 = scmp.eq.s32.totalorder %s15, 3
    %p122 = por %p120, %p121
    %p123 = scmp.ne.s32.totalorder %s112, %s113
    %p124 = scmp.eq.s32.totalorder %s15, 0
    %p125 = por %p123, %p124
    %p126 = scmp.ne.s32.totalorder %s112, %s113
    %p127 = scmp.eq.s32.totalorder %s16, 3
    %p128 = por %p126, %p127
    %p130 = scmp.ne.s32.totalorder %s113, %s129
    %p131 = scmp.eq.s32.totalorder %s16, 0
    %p132 = por %p130, %p131
    %p133 = scmp.le.s32.totalorder 1, %s10
    %p134 = scmp.lt.s32.totalorder %s10, 5
    %p135 = pnand %p133, %p134
    %p136 = pneg %p135
    // Predicated region
    $region9: #{net_forward.18} parent=5 // pred_check
      _
    $region10: #{net_forward.18} parent=5 // pred_check_branch
      %138 = sbr.rel (%p135) target = $region12
    $region11: #{net_forward.18} parent=5 // pred_region
      %s139 = ssub.s32 %s10, 1
      // Predicated region
      $region13: #{net_forward.18} parent=11 // pred_check
        %p140 = pneg %p57
      $region14: #{net_forward.18} parent=11 // pred_check_branch
        %142 = sbr.rel (%p140) target = $region16
      $region15: #{net_forward.18} parent=11 // pred_region
        _
      $region16: #{net_forward.18} parent=11 // pred_fallthru
        _
      // Predicated region
      $region17: #{net_forward.18} parent=11 // pred_check
        %p143 = pneg %p78
      $region18: #{net_forward.18} parent=11 // pred_check_branch
        %145 = sbr.rel (%p143) target = $region20
      $region19: #{net_forward.18} parent=11 // pred_region
        _
      $region20: #{net_forward.18} parent=11 // pred_fallthru
        _
      // Predicated region
      $region21: #{net_forward.18} parent=11 // pred_check
        %p146 = pneg %p99
      $region22: #{net_forward.18} parent=11 // pred_check_branch
        %148 = sbr.rel (%p146) target = $region24
      $region23: #{net_forward.18} parent=11 // pred_region
        _
      $region24: #{net_forward.18} parent=11 // pred_fallthru
        _
    $region12: #{net_forward.18} parent=5 // pred_fallthru
      _
    %p149 = scmp.lt.s32.totalorder %s10, 4
    // Predicated region
    $region25: #{net_forward.18} parent=5 // pred_check
      %p150 = pneg %p149
    $region26: #{net_forward.18} parent=5 // pred_check_branch
      %152 = sbr.rel (%p150) target = $region28
    $region27: #{net_forward.18} parent=5 // pred_region
      // Predicated region
      $region29: #{net_forward.18} parent=27 // pred_check
        %p153 = pneg %p30
      $region30: #{net_forward.18} parent=27 // pred_check_branch
        %155 = sbr.rel (%p153) target = $region32
      $region31: #{net_forward.18} parent=27 // pred_region
        %s156 = smul.u32 64, %s10
        %p157 = scmp.lt.s32.totalorder %s156, 255
        %s158 = scalar_select %p157, %s156, 255
        %s159 = smul.addr %s158, 2
        %s160 = smul.addr %s159, 4
        %s161 = scalar_lea.vmem %s0, %s160
        %s162 = smul.u32 64, %s10
      $region32: #{net_forward.18} parent=27 // pred_fallthru
        _
    $region28: #{net_forward.18} parent=5 // pred_fallthru
      _
    %p163 = scmp.le.s32.totalorder 1, %s10
    %p164 = scmp.lt.s32.totalorder %s10, 5
    %p165 = pnand %p163, %p164
    %p166 = pneg %p165
    // Predicated region
    $region33: #{net_forward.18} parent=5 // pred_check
      _
    $region34: #{net_forward.18} parent=5 // pred_check_branch
      %168 = sbr.rel (%p165) target = $region36
    $region35: #{net_forward.18} parent=5 // pred_region
      %s169 = ssub.s32 %s10, 1
      %s170 = smul.u32 64, %s15
      %p171 = scmp.lt.s32.totalorder %s170, 255
      %s172 = scalar_select %p171, %s170, 255
      %s173 = smul.addr %s172, 2
      %s174 = smul.addr %s173, 4
      %s175 = scalar_lea.vmem %s0, %s174
      %p176 = pneg %p36
      %p177 = pneg %p33
      %p178 = pneg %p57
      %p179 = pneg %p54
      %p180 = pneg %p78
      %p181 = pneg %p75
      %p182 = pneg %p99
      %p183 = pneg %p96
      %p184 = pneg %p125
      %p185 = pneg %p122
      %s186 = smul.u32 64, %s15
      %p187 = scmp.lt.s32.totalorder %s186, 255
      %s188 = scalar_select %p187, %s186, 255
      %s189 = smul.addr %s188, 8
      %s190 = scalar_lea.vmem %s4, %s189
      %s191 = smul.u32 64, %s15
      %p192 = scmp.lt.s32.totalorder %s191, 255
      %s193 = scalar_select %p192, %s191, 255
      %s194 = smul.addr %s193, 2
      %s195 = smul.addr %s194, 4
      %s196 = scalar_lea.vmem %s0, %s195
      %s197 = smul.u32 64, %s15
      %s198 = smul.u32 64, %s15
      %p199 = scmp.lt.s32.totalorder %s198, 255
      %s200 = scalar_select %p199, %s198, 255
      %s201 = smul.addr %s200, 8
      %s202 = scalar_lea.vmem %s4, %s201
      %s203 = smul.u32 64, %s15
      %v205 = vld [vmem:[%s196] sm:$0xff]
      %v206 = vld [vmem:[%s196 + $0x8] sm:$0xff]
      %v207 = vld [vmem:[%s196 + $0x10] sm:$0xff]
      %v208 = vld [vmem:[%s196 + $0x18] sm:$0xff]
      %v209 = vld [vmem:[%s196 + $0x20] sm:$0xff]
      %v210 = vld [vmem:[%s196 + $0x28] sm:$0xff]
      %v211 = vld [vmem:[%s196 + $0x30] sm:$0xff]
      %v212 = vld [vmem:[%s196 + $0x38] sm:$0xff]
      %v213 = vld [vmem:[%s196 + $0x40] sm:$0xff]
      %v214 = vld [vmem:[%s196 + $0x48] sm:$0xff]
      %v215 = vld [vmem:[%s196 + $0x50] sm:$0xff]
      %v216 = vld [vmem:[%s196 + $0x58] sm:$0xff]
      %v217 = vld [vmem:[%s196 + $0x60] sm:$0xff]
      %v218 = vld [vmem:[%s196 + $0x68] sm:$0xff]
      %v219 = vld [vmem:[%s196 + $0x70] sm:$0xff]
      %v220 = vld [vmem:[%s196 + $0x78] sm:$0xff]
      %v221 = vld [vmem:[%s196 + $0x80] sm:$0xff]
      %v222 = vld [vmem:[%s196 + $0x88] sm:$0xff]
      %v223 = vld [vmem:[%s196 + $0x90] sm:$0xff]
      %v224 = vld [vmem:[%s196 + $0x98] sm:$0xff]
      %v225 = vld [vmem:[%s196 + $0xa0] sm:$0xff]
      %v226 = vld [vmem:[%s196 + $0xa8] sm:$0xff]
      %v227 = vld [vmem:[%s196 + $0xb0] sm:$0xff]
      %v228 = vld [vmem:[%s196 + $0xb8] sm:$0xff]
      %v229 = vld [vmem:[%s196 + $0xc0] sm:$0xff]
      %v230 = vld [vmem:[%s196 + $0xc8] sm:$0xff]
      %v231 = vld [vmem:[%s196 + $0xd0] sm:$0xff]
      %v232 = vld [vmem:[%s196 + $0xd8] sm:$0xff]
      %v233 = vld [vmem:[%s196 + $0xe0] sm:$0xff]
      %v234 = vld [vmem:[%s196 + $0xe8] sm:$0xff]
      %v235 = vld [vmem:[%s196 + $0xf0] sm:$0xff]
      %v236 = vld [vmem:[%s196 + $0xf8] sm:$0xff]
      %v237 = vld [vmem:[%s196 + $0x100] sm:$0xff]
      %v238 = vld [vmem:[%s196 + $0x108] sm:$0xff]
      %v239 = vld [vmem:[%s196 + $0x110] sm:$0xff]
      %v240 = vld [vmem:[%s196 + $0x118] sm:$0xff]
      %v241 = vld [vmem:[%s196 + $0x120] sm:$0xff]
      %v242 = vld [vmem:[%s196 + $0x128] sm:$0xff]
      %v243 = vld [vmem:[%s196 + $0x130] sm:$0xff]
      %v244 = vld [vmem:[%s196 + $0x138] sm:$0xff]
      %v245 = vld [vmem:[%s196 + $0x140] sm:$0xff]
      %v246 = vld [vmem:[%s196 + $0x148] sm:$0xff]
      %v247 = vld [vmem:[%s196 + $0x150] sm:$0xff]
      %v248 = vld [vmem:[%s196 + $0x158] sm:$0xff]
      %v249 = vld [vmem:[%s196 + $0x160] sm:$0xff]
      %v250 = vld [vmem:[%s196 + $0x168] sm:$0xff]
      %v251 = vld [vmem:[%s196 + $0x170] sm:$0xff]
      %v252 = vld [vmem:[%s196 + $0x178] sm:$0xff]
      %v253 = vld [vmem:[%s196 + $0x180] sm:$0xff]
      %v254 = vld [vmem:[%s196 + $0x188] sm:$0xff]
      %v255 = vld [vmem:[%s196 + $0x190] sm:$0xff]
      %v256 = vld [vmem:[%s196 + $0x198] sm:$0xff]
      %v257 = vld [vmem:[%s196 + $0x1a0] sm:$0xff]
      %v258 = vld [vmem:[%s196 + $0x1a8] sm:$0xff]
      %v259 = vld [vmem:[%s196 + $0x1b0] sm:$0xff]
      %v260 = vld [vmem:[%s196 + $0x1b8] sm:$0xff]
      %v261 = vld [vmem:[%s196 + $0x1c0] sm:$0xff]
      %v262 = vld [vmem:[%s196 + $0x1c8] sm:$0xff]
      %v263 = vld [vmem:[%s196 + $0x1d0] sm:$0xff]
      %v264 = vld [vmem:[%s196 + $0x1d8] sm:$0xff]
      %v265 = vld [vmem:[%s196 + $0x1e0] sm:$0xff]
      %v266 = vld [vmem:[%s196 + $0x1e8] sm:$0xff]
      %v267 = vld [vmem:[%s196 + $0x1f0] sm:$0xff]
      %v268 = vld [vmem:[%s196 + $0x1f8] sm:$0xff]
      %v269 = vld [vmem:[%s1] sm:$0xf]
      %v270 = vld [vmem:[%s1 + $0x4] sm:$0xf]
      %v271 = vld [vmem:[%s1 + $0x8] sm:$0xf]
      %v272 = vld [vmem:[%s1 + $0xc] sm:$0xf]
      %v273 = vld [vmem:[%s1 + $0x10] sm:$0xf]
      %v274 = vld [vmem:[%s1 + $0x14] sm:$0xf]
      %v275 = vld [vmem:[%s1 + $0x18] sm:$0xf]
      %v276 = vld [vmem:[%s1 + $0x1c] sm:$0xf]
      %v277 = vld [vmem:[%s1 + $0x20] sm:$0xf]
      %v278 = vld [vmem:[%s1 + $0x24] sm:$0xf]
      %v279 = vld [vmem:[%s1 + $0x28] sm:$0xf]
      %v280 = vld [vmem:[%s1 + $0x2c] sm:$0xf]
      %v281 = vld [vmem:[%s1 + $0x30] sm:$0xf]
      %v282 = vld [vmem:[%s1 + $0x34] sm:$0xf]
      %v283 = vld [vmem:[%s1 + $0x38] sm:$0xf]
      %v284 = vld [vmem:[%s1 + $0x3c] sm:$0xf]
      %v285 = vld [vmem:[%s1 + $0x40] sm:$0xf]
      %v286 = vld [vmem:[%s1 + $0x44] sm:$0xf]
      %v351 = vunpack.c.l.b16 %v205
      %v352 = vunpack.c.h.b16 %v205
      %v353 = vunpack.c.l.b16 %v206
      %v354 = vunpack.c.h.b16 %v206
      %v355 = vunpack.c.l.b16 %v207
      %v356 = vunpack.c.h.b16 %v207
      %v357 = vunpack.c.l.b16 %v208
      %v358 = vunpack.c.h.b16 %v208
      %v359 = vunpack.c.l.b16 %v209
      %v360 = vunpack.c.h.b16 %v209
      %v361 = vunpack.c.l.b16 %v210
      %v362 = vunpack.c.h.b16 %v210
      %v363 = vunpack.c.l.b16 %v211
      %v364 = vunpack.c.h.b16 %v211
      %v365 = vunpack.c.l.b16 %v212
      %v366 = vunpack.c.h.b16 %v212
      %v367 = vunpack.c.l.b16 %v213
      %v368 = vunpack.c.h.b16 %v213
      %v369 = vunpack.c.l.b16 %v214
      %v370 = vunpack.c.h.b16 %v214
      %v371 = vunpack.c.l.b16 %v215
      %v372 = vunpack.c.h.b16 %v215
      %v373 = vunpack.c.l.b16 %v216
      %v374 = vunpack.c.h.b16 %v216
      %v375 = vunpack.c.l.b16 %v217
      %v376 = vunpack.c.h.b16 %v217
      %v377 = vunpack.c.l.b16 %v218
      %v378 = vunpack.c.h.b16 %v218
      %v379 = vunpack.c.l.b16 %v219
      %v380 = vunpack.c.h.b16 %v219
      %v381 = vunpack.c.l.b16 %v220
      %v382 = vunpack.c.h.b16 %v220
      %v383 = vunpack.c.l.b16 %v221
      %v384 = vunpack.c.h.b16 %v221
      %v385 = vunpack.c.l.b16 %v222
      %v386 = vunpack.c.h.b16 %v222
      %v387 = vunpack.c.l.b16 %v223
      %v388 = vunpack.c.h.b16 %v223
      %v389 = vunpack.c.l.b16 %v224
      %v390 = vunpack.c.h.b16 %v224
      %v391 = vunpack.c.l.b16 %v225
      %v392 = vunpack.c.h.b16 %v225
      %v393 = vunpack.c.l.b16 %v226
      %v394 = vunpack.c.h.b16 %v226
      %v395 = vunpack.c.l.b16 %v227
      %v396 = vunpack.c.h.b16 %v227
      %v397 = vunpack.c.l.b16 %v228
      %v398 = vunpack.c.h.b16 %v228
      %v399 = vunpack.c.l.b16 %v229
      %v400 = vunpack.c.h.b16 %v229
      %v401 = vunpack.c.l.b16 %v230
      %v402 = vunpack.c.h.b16 %v230
      %v403 = vunpack.c.l.b16 %v231
      %v404 = vunpack.c.h.b16 %v231
      %v405 = vunpack.c.l.b16 %v232
      %v406 = vunpack.c.h.b16 %v232
      %v407 = vunpack.c.l.b16 %v233
      %v408 = vunpack.c.h.b16 %v233
      %v409 = vunpack.c.l.b16 %v234
      %v410 = vunpack.c.h.b16 %v234
      %v411 = vunpack.c.l.b16 %v235
      %v412 = vunpack.c.h.b16 %v235
      %v413 = vunpack.c.l.b16 %v236
      %v414 = vunpack.c.h.b16 %v236
      %v415 = vunpack.c.l.b16 %v237
      %v416 = vunpack.c.h.b16 %v237
      %v417 = vunpack.c.l.b16 %v238
      %v418 = vunpack.c.h.b16 %v238
      %v419 = vunpack.c.l.b16 %v239
      %v420 = vunpack.c.h.b16 %v239
      %v421 = vunpack.c.l.b16 %v240
      %v422 = vunpack.c.h.b16 %v240
      %v423 = vunpack.c.l.b16 %v241
      %v424 = vunpack.c.h.b16 %v241
      %v425 = vunpack.c.l.b16 %v242
      %v426 = vunpack.c.h.b16 %v242
      %v427 = vunpack.c.l.b16 %v243
      %v428 = vunpack.c.h.b16 %v243
      %v429 = vunpack.c.l.b16 %v244
      %v430 = vunpack.c.h.b16 %v244
      %v431 = vunpack.c.l.b16 %v245
      %v432 = vunpack.c.h.b16 %v245
      %v433 = vunpack.c.l.b16 %v246
      %v434 = vunpack.c.h.b16 %v246
      %v435 = vunpack.c.l.b16 %v247
      %v436 = vunpack.c.h.b16 %v247
      %v437 = vunpack.c.l.b16 %v248
      %v438 = vunpack.c.h.b16 %v248
      %v439 = vunpack.c.l.b16 %v249
      %v440 = vunpack.c.h.b16 %v249
      %v441 = vunpack.c.l.b16 %v250
      %v442 = vunpack.c.h.b16 %v250
      %v443 = vunpack.c.l.b16 %v251
      %v444 = vunpack.c.h.b16 %v251
      %v445 = vunpack.c.l.b16 %v252
      %v446 = vunpack.c.h.b16 %v252
      %v447 = vunpack.c.l.b16 %v253
      %v448 = vunpack.c.h.b16 %v253
      %v449 = vunpack.c.l.b16 %v254
      %v450 = vunpack.c.h.b16 %v254
      %v451 = vunpack.c.l.b16 %v255
      %v452 = vunpack.c.h.b16 %v255
      %v453 = vunpack.c.l.b16 %v256
      %v454 = vunpack.c.h.b16 %v256
      %v455 = vunpack.c.l.b16 %v257
      %v456 = vunpack.c.h.b16 %v257
      %v457 = vunpack.c.l.b16 %v258
      %v458 = vunpack.c.h.b16 %v258
      %v459 = vunpack.c.l.b16 %v259
      %v460 = vunpack.c.h.b16 %v259
      %v461 = vunpack.c.l.b16 %v260
      %v462 = vunpack.c.h.b16 %v260
      %v463 = vunpack.c.l.b16 %v261
      %v464 = vunpack.c.h.b16 %v261
      %v465 = vunpack.c.l.b16 %v262
      %v466 = vunpack.c.h.b16 %v262
      %v467 = vunpack.c.l.b16 %v263
      %v468 = vunpack.c.h.b16 %v263
      %v469 = vunpack.c.l.b16 %v264
      %v470 = vunpack.c.h.b16 %v264
      %v471 = vunpack.c.l.b16 %v265
      %v472 = vunpack.c.h.b16 %v265
      %v473 = vunpack.c.l.b16 %v266
      %v474 = vunpack.c.h.b16 %v266
      %v475 = vunpack.c.l.b16 %v267
      %v476 = vunpack.c.h.b16 %v267
      %v477 = vunpack.c.l.b16 %v268
      %v478 = vunpack.c.h.b16 %v268
      %v479 = vpack.c.b16 %v353, %v351
      %v480 = vpack.c.b16 %v354, %v352
      %v481 = vpack.c.b16 %v357, %v355
      %v482 = vpack.c.b16 %v358, %v356
      %v483 = vpack.c.b16 %v361, %v359
      %v484 = vpack.c.b16 %v362, %v360
      %v485 = vpack.c.b16 %v365, %v363
      %v486 = vpack.c.b16 %v366, %v364
      %v487 = vpack.c.b16 %v369, %v367
      %v488 = vpack.c.b16 %v370, %v368
      %v489 = vpack.c.b16 %v373, %v371
      %v490 = vpack.c.b16 %v374, %v372
      %v491 = vpack.c.b16 %v377, %v375
      %v492 = vpack.c.b16 %v378, %v376
      %v493 = vpack.c.b16 %v381, %v379
      %v494 = vpack.c.b16 %v382, %v380
      %v495 = vpack.c.b16 %v385, %v383
      %v496 = vpack.c.b16 %v386, %v384
      %v497 = vpack.c.b16 %v389, %v387
      %v498 = vpack.c.b16 %v390, %v388
      %v499 = vpack.c.b16 %v393, %v391
      %v500 = vpack.c.b16 %v394, %v392
      %v501 = vpack.c.b16 %v397, %v395
      %v502 = vpack.c.b16 %v398, %v396
      %v503 = vpack.c.b16 %v401, %v399
      %v504 = vpack.c.b16 %v402, %v400
      %v505 = vpack.c.b16 %v405, %v403
      %v506 = vpack.c.b16 %v406, %v404
      %v507 = vpack.c.b16 %v409, %v407
      %v508 = vpack.c.b16 %v410, %v408
      %v509 = vpack.c.b16 %v413, %v411
      %v510 = vpack.c.b16 %v414, %v412
      %v511 = vpack.c.b16 %v417, %v415
      %v512 = vpack.c.b16 %v418, %v416
      %v513 = vpack.c.b16 %v421, %v419
      %v514 = vpack.c.b16 %v422, %v420
      %v515 = vpack.c.b16 %v425, %v423
      %v516 = vpack.c.b16 %v426, %v424
      %v517 = vpack.c.b16 %v429, %v427
      %v518 = vpack.c.b16 %v430, %v428
      %v519 = vpack.c.b16 %v433, %v431
      %v520 = vpack.c.b16 %v434, %v432
      %v521 = vpack.c.b16 %v437, %v435
      %v522 = vpack.c.b16 %v438, %v436
      %v523 = vpack.c.b16 %v441, %v439
      %v524 = vpack.c.b16 %v442, %v440
      %v525 = vpack.c.b16 %v445, %v443
      %v526 = vpack.c.b16 %v446, %v444
      %v527 = vpack.c.b16 %v449, %v447
      %v528 = vpack.c.b16 %v450, %v448
      %v529 = vpack.c.b16 %v453, %v451
      %v530 = vpack.c.b16 %v454, %v452
      %v531 = vpack.c.b16 %v457, %v455
      %v532 = vpack.c.b16 %v458, %v456
      %v533 = vpack.c.b16 %v461, %v459
      %v534 = vpack.c.b16 %v462, %v460
      %v535 = vpack.c.b16 %v465, %v463
      %v536 = vpack.c.b16 %v466, %v464
      %v537 = vpack.c.b16 %v469, %v467
      %v538 = vpack.c.b16 %v470, %v468
      %v539 = vpack.c.b16 %v473, %v471
      %v540 = vpack.c.b16 %v474, %v472
      %v541 = vpack.c.b16 %v477, %v475
      %v542 = vpack.c.b16 %v478, %v476
      %v593 = vunpack.c.l.b16 %v269
      %v594 = vunpack.c.l.b16 %v270
      %v595 = vunpack.c.l.b16 %v271
      %v596 = vunpack.c.l.b16 %v272
      %v597 = vunpack.c.l.b16 %v273
      %v598 = vunpack.c.l.b16 %v274
      %v599 = vunpack.c.l.b16 %v275
      %v600 = vunpack.c.l.b16 %v276
      %v601 = vunpack.c.l.b16 %v277
      %v602 = vunpack.c.l.b16 %v278
      %v603 = vunpack.c.l.b16 %v279
      %v604 = vunpack.c.l.b16 %v280
      %v605 = vunpack.c.l.b16 %v281
      %v606 = vunpack.c.l.b16 %v282
      %v607 = vunpack.c.l.b16 %v283
      %v608 = vunpack.c.l.b16 %v284
      %v609 = vunpack.c.l.b16 %v285
      %v610 = vunpack.c.l.b16 %v286
      %v611 = vpack.c.b16 %v594, %v593
      %v612 = vpack.c.b16 %v596, %v595
      %v613 = vpack.c.b16 %v598, %v597
      %v614 = vpack.c.b16 %v600, %v599
      %v615 = vpack.c.b16 %v602, %v601
      %v616 = vpack.c.b16 %v604, %v603
      %v617 = vpack.c.b16 %v606, %v605
      %v618 = vpack.c.b16 %v608, %v607
      %v619 = vpack.c.b16 %v610, %v609
      %vm629 = vcmask 130048
      %v631 = vsel %vm629, %v480, 0
      %v634 = vsel %vm629, %v482, 0
      %v637 = vsel %vm629, %v484, 0
      %v640 = vsel %vm629, %v486, 0
      %v643 = vsel %vm629, %v488, 0
      %v646 = vsel %vm629, %v490, 0
      %v649 = vsel %vm629, %v492, 0
      %v652 = vsel %vm629, %v494, 0
      %v655 = vsel %vm629, %v496, 0
      %v658 = vsel %vm629, %v498, 0
      %v661 = vsel %vm629, %v500, 0
      %v664 = vsel %vm629, %v502, 0
      %v667 = vsel %vm629, %v504, 0
      %v670 = vsel %vm629, %v506, 0
      %v673 = vsel %vm629, %v508, 0
      %v676 = vsel %vm629, %v510, 0
      %v679 = vsel %vm629, %v512, 0
      %v682 = vsel %vm629, %v514, 0
      %v685 = vsel %vm629, %v516, 0
      %v688 = vsel %vm629, %v518, 0
      %v691 = vsel %vm629, %v520, 0
      %v694 = vsel %vm629, %v522, 0
      %v697 = vsel %vm629, %v524, 0
      %v700 = vsel %vm629, %v526, 0
      %v703 = vsel %vm629, %v528, 0
      %v706 = vsel %vm629, %v530, 0
      %v709 = vsel %vm629, %v532, 0
      %v712 = vsel %vm629, %v534, 0
      %v715 = vsel %vm629, %v536, 0
      %v718 = vsel %vm629, %v538, 0
      %v721 = vsel %vm629, %v540, 0
      %v724 = vsel %vm629, %v542, 0
      %726 = vmatprep.subr.bf16.mxu0 0
      %727 = vmatpush1.bf16.msra.mxu0 %v611
      %728 = vmatprep.subr.bf16.mxu0 0
      %729 = vmatpush1.bf16.msra.mxu0 %v612
      %730 = vmatprep.subr.bf16.mxu0 0
      %731 = vmatpush1.bf16.msra.mxu0 %v613
      %732 = vmatprep.subr.bf16.mxu0 0
      %733 = vmatpush1.bf16.msra.mxu0 %v614
      %734 = vmatprep.subr.bf16.mxu0 0
      %735 = vmatpush1.bf16.msra.mxu0 %v615
      %736 = vmatprep.subr.bf16.mxu0 0
      %737 = vmatpush1.bf16.msra.mxu0 %v616
      %738 = vmatprep.subr.bf16.mxu0 0
      %739 = vmatpush1.bf16.msra.mxu0 %v617
      %740 = vmatprep.subr.bf16.mxu0 0
      %741 = vmatpush1.bf16.msra.mxu0 %v618
      %742 = vmatprep.subr.bf16.mxu0 0
      %743 = vmatpush1.bf16.msra.mxu0 %v619
      %744 = vmatprep.subr.bf16.mxu0 0
      %745 = vmatpush1.bf16.msra.mxu0 0
      %746 = vmatprep.subr.bf16.mxu0 0
      %747 = vmatpush1.bf16.msra.mxu0 0
      %748 = vmatprep.subr.bf16.mxu0 0
      %749 = vmatpush1.bf16.msra.mxu0 0
      %750 = vmatprep.subr.bf16.mxu0 0
      %751 = vmatpush1.bf16.msra.mxu0 0
      %752 = vmatprep.subr.bf16.mxu0 0
      %753 = vmatpush1.bf16.msra.mxu0 0
      %754 = vmatprep.subr.bf16.mxu0 0
      %755 = vmatpush1.bf16.msra.mxu0 0
      %756 = vmatprep.subr.bf16.mxu0 0
      %757 = vmatpush1.bf16.msra.mxu0 0
      %758 = vmatprep.mubr.bf16.mxu0 %v631
      %759 = vmatmul.mubr.bf16.gmra.mrb[0].mxu0 %v479
      %v760 = vpop.f32.mrb[0].mxu0
      %v761 = vadd.f32 0.0, %v760
      %v762 = vpop.f32.mrb[0].mxu0
      %v763 = vpop.f32.mrb[0].mxu0
      %v764 = vadd.f32 0.0, %v763
      %v765 = vpop.f32.mrb[0].mxu0
      %766 = vmatprep.mubr.bf16.mxu0 %v634
      %767 = vmatmul.mubr.bf16.gmra.mrb[0].mxu0 %v481
      %v768 = vpop.f32.mrb[0].mxu0
      %v769 = vadd.f32 0.0, %v768
      %v770 = vpop.f32.mrb[0].mxu0
      %v771 = vpop.f32.mrb[0].mxu0
      %v772 = vadd.f32 0.0, %v771
      %v773 = vpop.f32.mrb[0].mxu0
      %774 = vmatprep.mubr.bf16.mxu0 %v637
      %775 = vmatmul.mubr.bf16.gmra.mrb[0].mxu0 %v483
      %v776 = vpop.f32.mrb[0].mxu0
      %v777 = vadd.f32 0.0, %v776
      %v778 = vpop.f32.mrb[0].mxu0
      %v779 = vpop.f32.mrb[0].mxu0
      %v780 = vadd.f32 0.0, %v779
      %v781 = vpop.f32.mrb[0].mxu0
      %782 = vmatprep.mubr.bf16.mxu0 %v640
      %783 = vmatmul.mubr.bf16.gmra.mrb[0].mxu0 %v485
      %v784 = vpop.f32.mrb[0].mxu0
      %v785 = vadd.f32 0.0, %v784
      %v786 = vpop.f32.mrb[0].mxu0
      %v787 = vpop.f32.mrb[0].mxu0
      %v788 = vadd.f32 0.0, %v787
      %v789 = vpop.f32.mrb[0].mxu0
      %790 = vmatprep.mubr.bf16.mxu0 %v643
      %791 = vmatmul.mubr.bf16.gmra.mrb[0].mxu0 %v487
      %v792 = vpop.f32.mrb[0].mxu0
      %v793 = vadd.f32 0.0, %v792
      %v794 = vpop.f32.mrb[0].mxu0
      %v795 = vpop.f32.mrb[0].mxu0
      %v796 = vadd.f32 0.0, %v795
      %v797 = vpop.f32.mrb[0].mxu0
      %798 = vmatprep.mubr.bf16.mxu0 %v646
      %799 = vmatmul.mubr.bf16.gmra.mrb[0].mxu0 %v489
      %v800 = vpop.f32.mrb[0].mxu0
      %v801 = vadd.f32 0.0, %v800
      %v802 = vpop.f32.mrb[0].mxu0
      %v803 = vpop.f32.mrb[0].mxu0
      %v804 = vadd.f32 0.0, %v803
      %v805 = vpop.f32.mrb[0].mxu0
      %806 = vmatprep.mubr.bf16.mxu0 %v649
      %807 = vmatmul.mubr.bf16.gmra.mrb[0].mxu0 %v491
      %v808 = vpop.f32.mrb[0].mxu0
      %v809 = vadd.f32 0.0, %v808
      %v810 = vpop.f32.mrb[0].mxu0
      %v811 = vpop.f32.mrb[0].mxu0
      %v812 = vadd.f32 0.0, %v811
      %v813 = vpop.f32.mrb[0].mxu0
      %814 = vmatprep.mubr.bf16.mxu0 %v652
      %815 = vmatmul.mubr.bf16.gmra.mrb[0].mxu0 %v493
      %v816 = vpop.f32.mrb[0].mxu0
      %v817 = vadd.f32 0.0, %v816
      %v818 = vpop.f32.mrb[0].mxu0
      %v819 = vpop.f32.mrb[0].mxu0
      %v820 = vadd.f32 0.0, %v819
      %v821 = vpop.f32.mrb[0].mxu0
      %822 = vmatprep.mubr.bf16.mxu0 %v655
      %823 = vmatmul.mubr.bf16.gmra.mrb[0].mxu0 %v495
      %v824 = vpop.f32.mrb[0].mxu0
      %v825 = vadd.f32 0.0, %v824
      %v826 = vpop.f32.mrb[0].mxu0
      %v827 = vpop.f32.mrb[0].mxu0
      %v828 = vadd.f32 0.0, %v827
      %v829 = vpop.f32.mrb[0].mxu0
      %830 = vmatprep.mubr.bf16.mxu0 %v658
      %831 = vmatmul.mubr.bf16.gmra.mrb[0].mxu0 %v497
      %v832 = vpop.f32.mrb[0].mxu0
      %v833 = vadd.f32 0.0, %v832
      %v834 = vpop.f32.mrb[0].mxu0
      %v835 = vpop.f32.mrb[0].mxu0
      %v836 = vadd.f32 0.0, %v835
      %v837 = vpop.f32.mrb[0].mxu0
      %838 = vmatprep.mubr.bf16.mxu0 %v661
      %839 = vmatmul.mubr.bf16.gmra.mrb[0].mxu0 %v499
      %v840 = vpop.f32.mrb[0].mxu0
      %v841 = vadd.f32 0.0, %v840
      %v842 = vpop.f32.mrb[0].mxu0
      %v843 = vpop.f32.mrb[0].mxu0
      %v844 = vadd.f32 0.0, %v843
      %v845 = vpop.f32.mrb[0].mxu0
      %846 = vmatprep.mubr.bf16.mxu0 %v664
      %847 = vmatmul.mubr.bf16.gmra.mrb[0].mxu0 %v501
      %v848 = vpop.f32.mrb[0].mxu0
      %v849 = vadd.f32 0.0, %v848
      %v850 = vpop.f32.mrb[0].mxu0
      %v851 = vpop.f32.mrb[0].mxu0
      %v852 = vadd.f32 0.0, %v851
      %v853 = vpop.f32.mrb[0].mxu0
      %854 = vmatprep.mubr.bf16.mxu0 %v667
      %855 = vmatmul.mubr.bf16.gmra.mrb[0].mxu0 %v503
      %v856 = vpop.f32.mrb[0].mxu0
      %v857 = vadd.f32 0.0, %v856
      %v858 = vpop.f32.mrb[0].mxu0
      %v859 = vpop.f32.mrb[0].mxu0
      %v860 = vadd.f32 0.0, %v859
      %v861 = vpop.f32.mrb[0].mxu0
      %862 = vmatprep.mubr.bf16.mxu0 %v670
      %863 = vmatmul.mubr.bf16.gmra.mrb[0].mxu0 %v505
      %v864 = vpop.f32.mrb[0].mxu0
      %v865 = vadd.f32 0.0, %v864
      %v866 = vpop.f32.mrb[0].mxu0
      %v867 = vpop.f32.mrb[0].mxu0
      %v868 = vadd.f32 0.0, %v867
      %v869 = vpop.f32.mrb[0].mxu0
      %870 = vmatprep.mubr.bf16.mxu0 %v673
      %871 = vmatmul.mubr.bf16.gmra.mrb[0].mxu0 %v507
      %v872 = vpop.f32.mrb[0].mxu0
      %v873 = vadd.f32 0.0, %v872
      %v874 = vpop.f32.mrb[0].mxu0
      %v875 = vpop.f32.mrb[0].mxu0
      %v876 = vadd.f32 0.0, %v875
      %v877 = vpop.f32.mrb[0].mxu0
      %878 = vmatprep.mubr.bf16.mxu0 %v676
      %879 = vmatmul.mubr.bf16.gmra.mrb[0].mxu0 %v509
      %v880 = vpop.f32.mrb[0].mxu0
      %v881 = vadd.f32 0.0, %v880
      %v882 = vpop.f32.mrb[0].mxu0
      %v883 = vpop.f32.mrb[0].mxu0
      %v884 = vadd.f32 0.0, %v883
      %v885 = vpop.f32.mrb[0].mxu0
      %886 = vmatprep.mubr.bf16.mxu0 %v679
      %887 = vmatmul.mubr.bf16.gmra.mrb[0].mxu0 %v511
      %v888 = vpop.f32.mrb[0].mxu0
      %v889 = vadd.f32 0.0, %v888
      %v890 = vpop.f32.mrb[0].mxu0
      %v891 = vpop.f32.mrb[0].mxu0
      %v892 = vadd.f32 0.0, %v891
      %v893 = vpop.f32.mrb[0].mxu0
      %894 = vmatprep.mubr.bf16.mxu0 %v682
      %895 = vmatmul.mubr.bf16.gmra.mrb[0].mxu0 %v513
      %v896 = vpop.f32.mrb[0].mxu0
      %v897 = vadd.f32 0.0, %v896
      %v898 = vpop.f32.mrb[0].mxu0
      %v899 = vpop.f32.mrb[0].mxu0
      %v900 = vadd.f32 0.0, %v899
      %v901 = vpop.f32.mrb[0].mxu0
      %902 = vmatprep.mubr.bf16.mxu0 %v685
      %903 = vmatmul.mubr.bf16.gmra.mrb[0].mxu0 %v515
      %v904 = vpop.f32.mrb[0].mxu0
      %v905 = vadd.f32 0.0, %v904
      %v906 = vpop.f32.mrb[0].mxu0
      %v907 = vpop.f32.mrb[0].mxu0
      %v908 = vadd.f32 0.0, %v907
      %v909 = vpop.f32.mrb[0].mxu0
      %910 = vmatprep.mubr.bf16.mxu0 %v688
      %911 = vmatmul.mubr.bf16.gmra.mrb[0].mxu0 %v517
      %v912 = vpop.f32.mrb[0].mxu0
      %v913 = vadd.f32 0.0, %v912
      %v914 = vpop.f32.mrb[0].mxu0
      %v915 = vpop.f32.mrb[0].mxu0
      %v916 = vadd.f32 0.0, %v915
      %v917 = vpop.f32.mrb[0].mxu0
      %918 = vmatprep.mubr.bf16.mxu0 %v691
      %919 = vmatmul.mubr.bf16.gmra.mrb[0].mxu0 %v519
      %v920 = vpop.f32.mrb[0].mxu0
      %v921 = vadd.f32 0.0, %v920
      %v922 = vpop.f32.mrb[0].mxu0
      %v923 = vpop.f32.mrb[0].mxu0
      %v924 = vadd.f32 0.0, %v923
      %v925 = vpop.f32.mrb[0].mxu0
      %926 = vmatprep.mubr.bf16.mxu0 %v694
      %927 = vmatmul.mubr.bf16.gmra.mrb[0].mxu0 %v521
      %v928 = vpop.f32.mrb[0].mxu0
      %v929 = vadd.f32 0.0, %v928
      %v930 = vpop.f32.mrb[0].mxu0
      %v931 = vpop.f32.mrb[0].mxu0
      %v932 = vadd.f32 0.0, %v931
      %v933 = vpop.f32.mrb[0].mxu0
      %934 = vmatprep.mubr.bf16.mxu0 %v697
      %935 = vmatmul.mubr.bf16.gmra.mrb[0].mxu0 %v523
      %v936 = vpop.f32.mrb[0].mxu0
      %v937 = vadd.f32 0.0, %v936
      %v938 = vpop.f32.mrb[0].mxu0
      %v939 = vpop.f32.mrb[0].mxu0
      %v940 = vadd.f32 0.0, %v939
      %v941 = vpop.f32.mrb[0].mxu0
      %942 = vmatprep.mubr.bf16.mxu0 %v700
      %943 = vmatmul.mubr.bf16.gmra.mrb[0].mxu0 %v525
      %v944 = vpop.f32.mrb[0].mxu0
      %v945 = vadd.f32 0.0, %v944
      %v946 = vpop.f32.mrb[0].mxu0
      %v947 = vpop.f32.mrb[0].mxu0
      %v948 = vadd.f32 0.0, %v947
      %v949 = vpop.f32.mrb[0].mxu0
      %950 = vmatprep.mubr.bf16.mxu0 %v703
      %951 = vmatmul.mubr.bf16.gmra.mrb[0].mxu0 %v527
      %v952 = vpop.f32.mrb[0].mxu0
      %v953 = vadd.f32 0.0, %v952
      %v954 = vpop.f32.mrb[0].mxu0
      %v955 = vpop.f32.mrb[0].mxu0
      %v956 = vadd.f32 0.0, %v955
      %v957 = vpop.f32.mrb[0].mxu0
      %958 = vmatprep.mubr.bf16.mxu0 %v706
      %959 = vmatmul.mubr.bf16.gmra.mrb[0].mxu0 %v529
      %v960 = vpop.f32.mrb[0].mxu0
      %v961 = vadd.f32 0.0, %v960
      %v962 = vpop.f32.mrb[0].mxu0
      %v963 = vpop.f32.mrb[0].mxu0
      %v964 = vadd.f32 0.0, %v963
      %v965 = vpop.f32.mrb[0].mxu0
      %966 = vmatprep.mubr.bf16.mxu0 %v709
      %967 = vmatmul.mubr.bf16.gmra.mrb[0].mxu0 %v531
      %v968 = vpop.f32.mrb[0].mxu0
      %v969 = vadd.f32 0.0, %v968
      %v970 = vpop.f32.mrb[0].mxu0
      %v971 = vpop.f32.mrb[0].mxu0
      %v972 = vadd.f32 0.0, %v971
      %v973 = vpop.f32.mrb[0].mxu0
      %974 = vmatprep.mubr.bf16.mxu0 %v712
      %975 = vmatmul.mubr.bf16.gmra.mrb[0].mxu0 %v533
      %v976 = vpop.f32.mrb[0].mxu0
      %v977 = vadd.f32 0.0, %v976
      %v978 = vpop.f32.mrb[0].mxu0
      %v979 = vpop.f32.mrb[0].mxu0
      %v980 = vadd.f32 0.0, %v979
      %v981 = vpop.f32.mrb[0].mxu0
      %982 = vmatprep.mubr.bf16.mxu0 %v715
      %983 = vmatmul.mubr.bf16.gmra.mrb[0].mxu0 %v535
      %v984 = vpop.f32.mrb[0].mxu0
      %v985 = vadd.f32 0.0, %v984
      %v986 = vpop.f32.mrb[0].mxu0
      %v987 = vpop.f32.mrb[0].mxu0
      %v988 = vadd.f32 0.0, %v987
      %v989 = vpop.f32.mrb[0].mxu0
      %990 = vmatprep.mubr.bf16.mxu0 %v718
      %991 = vmatmul.mubr.bf16.gmra.mrb[0].mxu0 %v537
      %v992 = vpop.f32.mrb[0].mxu0
      %v993 = vadd.f32 0.0, %v992
      %v994 = vpop.f32.mrb[0].mxu0
      %v995 = vpop.f32.mrb[0].mxu0
      %v996 = vadd.f32 0.0, %v995
      %v997 = vpop.f32.mrb[0].mxu0
      %998 = vmatprep.mubr.bf16.mxu0 %v721
      %999 = vmatmul.mubr.bf16.gmra.mrb[0].mxu0 %v539
      %v1000 = vpop.f32.mrb[0].mxu0
      %v1001 = vadd.f32 0.0, %v1000
      %v1002 = vpop.f32.mrb[0].mxu0
      %v1003 = vpop.f32.mrb[0].mxu0
      %v1004 = vadd.f32 0.0, %v1003
      %v1005 = vpop.f32.mrb[0].mxu0
      %1006 = vmatprep.mubr.bf16.mxu0 %v724
      %1007 = vmatmul.mubr.bf16.gmra.mrb[0].mxu0 %v541
      %v1008 = vpop.f32.mrb[0].mxu0
      %v1009 = vadd.f32 0.0, %v1008
      %v1010 = vpop.f32.mrb[0].mxu0
      %v1011 = vpop.f32.mrb[0].mxu0
      %v1012 = vadd.f32 0.0, %v1011
      %v1013 = vpop.f32.mrb[0].mxu0
      %1014 = vdwg.mxu0
      %v1015 = vmax.f32 %v761, 0.0
      %v1016 = vmax.f32 %v764, 0.0
      %v1017 = vmax.f32 %v769, 0.0
      %v1018 = vmax.f32 %v772, 0.0
      %v1019 = vmax.f32 %v777, 0.0
      %v1020 = vmax.f32 %v780, 0.0
      %v1021 = vmax.f32 %v785, 0.0
      %v1022 = vmax.f32 %v788, 0.0
      %v1023 = vmax.f32 %v793, 0.0
      %v1024 = vmax.f32 %v796, 0.0
      %v1025 = vmax.f32 %v801, 0.0
      %v1026 = vmax.f32 %v804, 0.0
      %v1027 = vmax.f32 %v809, 0.0
      %v1028 = vmax.f32 %v812, 0.0
      %v1029 = vmax.f32 %v817, 0.0
      %v1030 = vmax.f32 %v820, 0.0
      %v1031 = vmax.f32 %v825, 0.0
      %v1032 = vmax.f32 %v828, 0.0
      %v1033 = vmax.f32 %v833, 0.0
      %v1034 = vmax.f32 %v836, 0.0
      %v1035 = vmax.f32 %v841, 0.0
      %v1036 = vmax.f32 %v844, 0.0
      %v1037 = vmax.f32 %v849, 0.0
      %v1038 = vmax.f32 %v852, 0.0
      %v1039 = vmax.f32 %v857, 0.0
      %v1040 = vmax.f32 %v860, 0.0
      %v1041 = vmax.f32 %v865, 0.0
      %v1042 = vmax.f32 %v868, 0.0
      %v1043 = vmax.f32 %v873, 0.0
      %v1044 = vmax.f32 %v876, 0.0
      %v1045 = vmax.f32 %v881, 0.0
      %v1046 = vmax.f32 %v884, 0.0
      %v1047 = vmax.f32 %v889, 0.0
      %v1048 = vmax.f32 %v892, 0.0
      %v1049 = vmax.f32 %v897, 0.0
      %v1050 = vmax.f32 %v900, 0.0
      %v1051 = vmax.f32 %v905, 0.0
      %v1052 = vmax.f32 %v908, 0.0
      %v1053 = vmax.f32 %v913, 0.0
      %v1054 = vmax.f32 %v916, 0.0
      %v1055 = vmax.f32 %v921, 0.0
      %v1056 = vmax.f32 %v924, 0.0
      %v1057 = vmax.f32 %v929, 0.0
      %v1058 = vmax.f32 %v932, 0.0
      %v1059 = vmax.f32 %v937, 0.0
      %v1060 = vmax.f32 %v940, 0.0
      %v1061 = vmax.f32 %v945, 0.0
      %v1062 = vmax.f32 %v948, 0.0
      %v1063 = vmax.f32 %v953, 0.0
      %v1064 = vmax.f32 %v956, 0.0
      %v1065 = vmax.f32 %v961, 0.0
      %v1066 = vmax.f32 %v964, 0.0
      %v1067 = vmax.f32 %v969, 0.0
      %v1068 = vmax.f32 %v972, 0.0
      %v1069 = vmax.f32 %v977, 0.0
      %v1070 = vmax.f32 %v980, 0.0
      %v1071 = vmax.f32 %v985, 0.0
      %v1072 = vmax.f32 %v988, 0.0
      %v1073 = vmax.f32 %v993, 0.0
      %v1074 = vmax.f32 %v996, 0.0
      %v1075 = vmax.f32 %v1001, 0.0
      %v1076 = vmax.f32 %v1004, 0.0
      %v1077 = vmax.f32 %v1009, 0.0
      %v1078 = vmax.f32 %v1012, 0.0
      %v1079 = vld [vmem:[%s2] sm:$0x1]
      %v1081 = vlaneseq
      %v1082 = vshrl.u32 %v1081, 7
      %v1083 = vsub.s32 0, %v1082
      %v1084 = vrot.slane %v1079, %v1083
      %v1086 = vmul.f32 %v1015, %v1084
      %v1087 = vmul.f32 %v1016, %v1084
      %v1088 = vmul.f32 %v1017, %v1084
      %v1089 = vmul.f32 %v1018, %v1084
      %v1090 = vmul.f32 %v1019, %v1084
      %v1091 = vmul.f32 %v1020, %v1084
      %v1092 = vmul.f32 %v1021, %v1084
      %v1093 = vmul.f32 %v1022, %v1084
      %v1094 = vmul.f32 %v1023, %v1084
      %v1095 = vmul.f32 %v1024, %v1084
      %v1096 = vmul.f32 %v1025, %v1084
      %v1097 = vmul.f32 %v1026, %v1084
      %v1098 = vmul.f32 %v1027, %v1084
      %v1099 = vmul.f32 %v1028, %v1084
      %v1100 = vmul.f32 %v1029, %v1084
      %v1101 = vmul.f32 %v1030, %v1084
      %v1102 = vmul.f32 %v1031, %v1084
      %v1103 = vmul.f32 %v1032, %v1084
      %v1104 = vmul.f32 %v1033, %v1084
      %v1105 = vmul.f32 %v1034, %v1084
      %v1106 = vmul.f32 %v1035, %v1084
      %v1107 = vmul.f32 %v1036, %v1084
      %v1108 = vmul.f32 %v1037, %v1084
      %v1109 = vmul.f32 %v1038, %v1084
      %v1110 = vmul.f32 %v1039, %v1084
      %v1111 = vmul.f32 %v1040, %v1084
      %v1112 = vmul.f32 %v1041, %v1084
      %v1113 = vmul.f32 %v1042, %v1084
      %v1114 = vmul.f32 %v1043, %v1084
      %v1115 = vmul.f32 %v1044, %v1084
      %v1116 = vmul.f32 %v1045, %v1084
      %v1117 = vmul.f32 %v1046, %v1084
      %v1118 = vmul.f32 %v1047, %v1084
      %v1119 = vmul.f32 %v1048, %v1084
      %v1120 = vmul.f32 %v1049, %v1084
      %v1121 = vmul.f32 %v1050, %v1084
      %v1122 = vmul.f32 %v1051, %v1084
      %v1123 = vmul.f32 %v1052, %v1084
      %v1124 = vmul.f32 %v1053, %v1084
      %v1125 = vmul.f32 %v1054, %v1084
      %v1126 = vmul.f32 %v1055, %v1084
      %v1127 = vmul.f32 %v1056, %v1084
      %v1128 = vmul.f32 %v1057, %v1084
      %v1129 = vmul.f32 %v1058, %v1084
      %v1130 = vmul.f32 %v1059, %v1084
      %v1131 = vmul.f32 %v1060, %v1084
      %v1132 = vmul.f32 %v1061, %v1084
      %v1133 = vmul.f32 %v1062, %v1084
      %v1134 = vmul.f32 %v1063, %v1084
      %v1135 = vmul.f32 %v1064, %v1084
      %v1136 = vmul.f32 %v1065, %v1084
      %v1137 = vmul.f32 %v1066, %v1084
      %v1138 = vmul.f32 %v1067, %v1084
      %v1139 = vmul.f32 %v1068, %v1084
      %v1140 = vmul.f32 %v1069, %v1084
      %v1141 = vmul.f32 %v1070, %v1084
      %v1142 = vmul.f32 %v1071, %v1084
      %v1143 = vmul.f32 %v1072, %v1084
      %v1144 = vmul.f32 %v1073, %v1084
      %v1145 = vmul.f32 %v1074, %v1084
      %v1146 = vmul.f32 %v1075, %v1084
      %v1147 = vmul.f32 %v1076, %v1084
      %v1148 = vmul.f32 %v1077, %v1084
      %v1149 = vmul.f32 %v1078, %v1084
      %v1150 = vld [vmem:[%s3] sm:$0x1]
      %v1152 = vlaneseq
      %v1153 = vshrl.u32 %v1152, 7
      %v1154 = vsub.s32 0, %v1153
      %v1155 = vrot.slane %v1150, %v1154
      %v1157 = vadd.f32 %v1086, %v1155
      %v1158 = vadd.f32 %v1087, %v1155
      %v1159 = vadd.f32 %v1088, %v1155
      %v1160 = vadd.f32 %v1089, %v1155
      %v1161 = vadd.f32 %v1090, %v1155
      %v1162 = vadd.f32 %v1091, %v1155
      %v1163 = vadd.f32 %v1092, %v1155
      %v1164 = vadd.f32 %v1093, %v1155
      %v1165 = vadd.f32 %v1094, %v1155
      %v1166 = vadd.f32 %v1095, %v1155
      %v1167 = vadd.f32 %v1096, %v1155
      %v1168 = vadd.f32 %v1097, %v1155
      %v1169 = vadd.f32 %v1098, %v1155
      %v1170 = vadd.f32 %v1099, %v1155
      %v1171 = vadd.f32 %v1100, %v1155
      %v1172 = vadd.f32 %v1101, %v1155
      %v1173 = vadd.f32 %v1102, %v1155
      %v1174 = vadd.f32 %v1103, %v1155
      %v1175 = vadd.f32 %v1104, %v1155
      %v1176 = vadd.f32 %v1105, %v1155
      %v1177 = vadd.f32 %v1106, %v1155
      %v1178 = vadd.f32 %v1107, %v1155
      %v1179 = vadd.f32 %v1108, %v1155
      %v1180 = vadd.f32 %v1109, %v1155
      %v1181 = vadd.f32 %v1110, %v1155
      %v1182 = vadd.f32 %v1111, %v1155
      %v1183 = vadd.f32 %v1112, %v1155
      %v1184 = vadd.f32 %v1113, %v1155
      %v1185 = vadd.f32 %v1114, %v1155
      %v1186 = vadd.f32 %v1115, %v1155
      %v1187 = vadd.f32 %v1116, %v1155
      %v1188 = vadd.f32 %v1117, %v1155
      %v1189 = vadd.f32 %v1118, %v1155
      %v1190 = vadd.f32 %v1119, %v1155
      %v1191 = vadd.f32 %v1120, %v1155
      %v1192 = vadd.f32 %v1121, %v1155
      %v1193 = vadd.f32 %v1122, %v1155
      %v1194 = vadd.f32 %v1123, %v1155
      %v1195 = vadd.f32 %v1124, %v1155
      %v1196 = vadd.f32 %v1125, %v1155
      %v1197 = vadd.f32 %v1126, %v1155
      %v1198 = vadd.f32 %v1127, %v1155
      %v1199 = vadd.f32 %v1128, %v1155
      %v1200 = vadd.f32 %v1129, %v1155
      %v1201 = vadd.f32 %v1130, %v1155
      %v1202 = vadd.f32 %v1131, %v1155
      %v1203 = vadd.f32 %v1132, %v1155
      %v1204 = vadd.f32 %v1133, %v1155
      %v1205 = vadd.f32 %v1134, %v1155
      %v1206 = vadd.f32 %v1135, %v1155
      %v1207 = vadd.f32 %v1136, %v1155
      %v1208 = vadd.f32 %v1137, %v1155
      %v1209 = vadd.f32 %v1138, %v1155
      %v1210 = vadd.f32 %v1139, %v1155
      %v1211 = vadd.f32 %v1140, %v1155
      %v1212 = vadd.f32 %v1141, %v1155
      %v1213 = vadd.f32 %v1142, %v1155
      %v1214 = vadd.f32 %v1143, %v1155
      %v1215 = vadd.f32 %v1144, %v1155
      %v1216 = vadd.f32 %v1145, %v1155
      %v1217 = vadd.f32 %v1146, %v1155
      %v1218 = vadd.f32 %v1147, %v1155
      %v1219 = vadd.f32 %v1148, %v1155
      %v1220 = vadd.f32 %v1149, %v1155
      %vm1221 = vcmask 261120
      %1222 = vst.msk [vmem:[%s202] sm:$0xff] %vm1221, %v1157
      %1223 = vst.msk [vmem:[%s202 + $0x8] sm:$0xff] %vm1221, %v1158
      %1224 = vst.msk [vmem:[%s202 + $0x10] sm:$0xff] %vm1221, %v1159
      %1225 = vst.msk [vmem:[%s202 + $0x18] sm:$0xff] %vm1221, %v1160
      %1226 = vst.msk [vmem:[%s202 + $0x20] sm:$0xff] %vm1221, %v1161
      %1227 = vst.msk [vmem:[%s202 + $0x28] sm:$0xff] %vm1221, %v1162
      %1228 = vst.msk [vmem:[%s202 + $0x30] sm:$0xff] %vm1221, %v1163
      %1229 = vst.msk [vmem:[%s202 + $0x38] sm:$0xff] %vm1221, %v1164
      %1230 = vst.msk [vmem:[%s202 + $0x40] sm:$0xff] %vm1221, %v1165
      %1231 = vst.msk [vmem:[%s202 + $0x48] sm:$0xff] %vm1221, %v1166
      %1232 = vst.msk [vmem:[%s202 + $0x50] sm:$0xff] %vm1221, %v1167
      %1233 = vst.msk [vmem:[%s202 + $0x58] sm:$0xff] %vm1221, %v1168
      %1234 = vst.msk [vmem:[%s202 + $0x60] sm:$0xff] %vm1221, %v1169
      %1235 = vst.msk [vmem:[%s202 + $0x68] sm:$0xff] %vm1221, %v1170
      %1236 = vst.msk [vmem:[%s202 + $0x70] sm:$0xff] %vm1221, %v1171
      %1237 = vst.msk [vmem:[%s202 + $0x78] sm:$0xff] %vm1221, %v1172
      %1238 = vst.msk [vmem:[%s202 + $0x80] sm:$0xff] %vm1221, %v1173
      %1239 = vst.msk [vmem:[%s202 + $0x88] sm:$0xff] %vm1221, %v1174
      %1240 = vst.msk [vmem:[%s202 + $0x90] sm:$0xff] %vm1221, %v1175
      %1241 = vst.msk [vmem:[%s202 + $0x98] sm:$0xff] %vm1221, %v1176
      %1242 = vst.msk [vmem:[%s202 + $0xa0] sm:$0xff] %vm1221, %v1177
      %1243 = vst.msk [vmem:[%s202 + $0xa8] sm:$0xff] %vm1221, %v1178
      %1244 = vst.msk [vmem:[%s202 + $0xb0] sm:$0xff] %vm1221, %v1179
      %1245 = vst.msk [vmem:[%s202 + $0xb8] sm:$0xff] %vm1221, %v1180
      %1246 = vst.msk [vmem:[%s202 + $0xc0] sm:$0xff] %vm1221, %v1181
      %1247 = vst.msk [vmem:[%s202 + $0xc8] sm:$0xff] %vm1221, %v1182
      %1248 = vst.msk [vmem:[%s202 + $0xd0] sm:$0xff] %vm1221, %v1183
      %1249 = vst.msk [vmem:[%s202 + $0xd8] sm:$0xff] %vm1221, %v1184
      %1250 = vst.msk [vmem:[%s202 + $0xe0] sm:$0xff] %vm1221, %v1185
      %1251 = vst.msk [vmem:[%s202 + $0xe8] sm:$0xff] %vm1221, %v1186
      %1252 = vst.msk [vmem:[%s202 + $0xf0] sm:$0xff] %vm1221, %v1187
      %1253 = vst.msk [vmem:[%s202 + $0xf8] sm:$0xff] %vm1221, %v1188
      %1254 = vst.msk [vmem:[%s202 + $0x100] sm:$0xff] %vm1221, %v1189
      %1255 = vst.msk [vmem:[%s202 + $0x108] sm:$0xff] %vm1221, %v1190
      %1256 = vst.msk [vmem:[%s202 + $0x110] sm:$0xff] %vm1221, %v1191
      %1257 = vst.msk [vmem:[%s202 + $0x118] sm:$0xff] %vm1221, %v1192
      %1258 = vst.msk [vmem:[%s202 + $0x120] sm:$0xff] %vm1221, %v1193
      %1259 = vst.msk [vmem:[%s202 + $0x128] sm:$0xff] %vm1221, %v1194
      %1260 = vst.msk [vmem:[%s202 + $0x130] sm:$0xff] %vm1221, %v1195
      %1261 = vst.msk [vmem:[%s202 + $0x138] sm:$0xff] %vm1221, %v1196
      %1262 = vst.msk [vmem:[%s202 + $0x140] sm:$0xff] %vm1221, %v1197
      %1263 = vst.msk [vmem:[%s202 + $0x148] sm:$0xff] %vm1221, %v1198
      %1264 = vst.msk [vmem:[%s202 + $0x150] sm:$0xff] %vm1221, %v1199
      %1265 = vst.msk [vmem:[%s202 + $0x158] sm:$0xff] %vm1221, %v1200
      %1266 = vst.msk [vmem:[%s202 + $0x160] sm:$0xff] %vm1221, %v1201
      %1267 = vst.msk [vmem:[%s202 + $0x168] sm:$0xff] %vm1221, %v1202
      %1268 = vst.msk [vmem:[%s202 + $0x170] sm:$0xff] %vm1221, %v1203
      %1269 = vst.msk [vmem:[%s202 + $0x178] sm:$0xff] %vm1221, %v1204
      %1270 = vst.msk [vmem:[%s202 + $0x180] sm:$0xff] %vm1221, %v1205
      %1271 = vst.msk [vmem:[%s202 + $0x188] sm:$0xff] %vm1221, %v1206
      %1272 = vst.msk [vmem:[%s202 + $0x190] sm:$0xff] %vm1221, %v1207
      %1273 = vst.msk [vmem:[%s202 + $0x198] sm:$0xff] %vm1221, %v1208
      %1274 = vst.msk [vmem:[%s202 + $0x1a0] sm:$0xff] %vm1221, %v1209
      %1275 = vst.msk [vmem:[%s202 + $0x1a8] sm:$0xff] %vm1221, %v1210
      %1276 = vst.msk [vmem:[%s202 + $0x1b0] sm:$0xff] %vm1221, %v1211
      %1277 = vst.msk [vmem:[%s202 + $0x1b8] sm:$0xff] %vm1221, %v1212
      %1278 = vst.msk [vmem:[%s202 + $0x1c0] sm:$0xff] %vm1221, %v1213
      %1279 = vst.msk [vmem:[%s202 + $0x1c8] sm:$0xff] %vm1221, %v1214
      %1280 = vst.msk [vmem:[%s202 + $0x1d0] sm:$0xff] %vm1221, %v1215
      %1281 = vst.msk [vmem:[%s202 + $0x1d8] sm:$0xff] %vm1221, %v1216
      %1282 = vst.msk [vmem:[%s202 + $0x1e0] sm:$0xff] %vm1221, %v1217
      %1283 = vst.msk [vmem:[%s202 + $0x1e8] sm:$0xff] %vm1221, %v1218
      %1284 = vst.msk [vmem:[%s202 + $0x1f0] sm:$0xff] %vm1221, %v1219
      %1285 = vst.msk [vmem:[%s202 + $0x1f8] sm:$0xff] %vm1221, %v1220
      %s1286 = smul.u32 64, %s15
      %p1287 = scmp.lt.s32.totalorder %s1286, 255
      %s1288 = scalar_select %p1287, %s1286, 255
      %s1289 = smul.addr %s1288, 8
      %s1290 = scalar_lea.vmem %s4, %s1289
      // Predicated region
      $region37: #{net_forward.18} parent=35 // pred_check
        %p1291 = pneg %p122
      $region38: #{net_forward.18} parent=35 // pred_check_branch
        %1293 = sbr.rel (%p1291) target = $region40
      $region39: #{net_forward.18} parent=35 // pred_region
        %s1294 = smul.u32 64, %s15
      $region40: #{net_forward.18} parent=35 // pred_fallthru
        _
    $region36: #{net_forward.18} parent=5 // pred_fallthru
      _
    %p1295 = scmp.le.s32.totalorder 2, %s10
    // Predicated region
    $region41: #{net_forward.18} parent=5 // pred_check
      %p1296 = pneg %p1295
    $region42: #{net_forward.18} parent=5 // pred_check_branch
      %1298 = sbr.rel (%p1296) target = $region44
    $region43: #{net_forward.18} parent=5 // pred_region
      %s1299 = ssub.s32 %s10, 2
      // Predicated region
      $region45: #{net_forward.18} parent=43 // pred_check
        %p1300 = pneg %p128
      $region46: #{net_forward.18} parent=43 // pred_check_branch
        %1302 = sbr.rel (%p1300) target = $region48
      $region47: #{net_forward.18} parent=43 // pred_region
        %s1303 = smul.u32 64, %s16
        %p1304 = scmp.lt.s32.totalorder %s1303, 255
        %s1305 = scalar_select %p1304, %s1303, 255
        %s1306 = smul.addr %s1305, 8
        %s1307 = scalar_lea.vmem %s4, %s1306
      $region48: #{net_forward.18} parent=43 // pred_fallthru
        _
    $region44: #{net_forward.18} parent=5 // pred_fallthru
      _
  $region6: #{net_forward.18} parent=0 // loop_footer
    %s14 = sadd.s32 1, %s10
  $region7: #{net_forward.18} parent=0 // loop_footer_branch
    %9 = sbr.rel target = $region3
  $region8: #{net_forward.18} parent=0 // loop_exit
    _

// kernel: net_forward.19
$region0: #{net_forward.19}
  #allocation0 [shape = 'u32[]', space=smem, size = 0x4, offset = 0x4, fixed_abs, tag = 'smem constant byte address 0x4 - core index']
  #allocation1 [shape = 'u32[144,128]{1,0:T(1,128)}', space=vmem, size = 0x12000, scoped, tag = 'internal scratch']
  %s0 = inlined_call_operand.vmem [shape: bf16[512,288], index: 0, kind: input, shape index: {}]
  %s1 = inlined_call_operand.vmem [shape: bf16[288,64], index: 1, kind: input, shape index: {}]
  %s2 = inlined_call_operand.vmem [shape: f32[1,64], index: 2, kind: input, shape index: {}]
  %s3 = inlined_call_operand.vmem [shape: f32[1,64], index: 3, kind: input, shape index: {}]
  %s4 = inlined_call_operand.vmem [shape: f32[512,64], index: 4, kind: output, shape index: {}]
  %s5 = sld [smem:[#allocation0]]
  $region49: #{net_forward.19} parent=0
    _
  %s7 = ssub.s32 1, %s5
  %s8 = scalar_select 0, %s7, %s5
  loop: start=0, step=1, limit=4
  $region2: #{net_forward.19} parent=0 // loop_pre_header
    _
  $region3: #{net_forward.19} parent=0 // loop_header
    %s10 = sphi 0, %s14
    %p11 = scmp.ge.s32.totalorder %s10, 4
    %s20 = sphi 0, %s22
    %s23 = sphi 0, %s20
    %s24 = sphi 0, %s23
    %s40 = sphi 0, %s24
    %s44 = sphi 0, %s44
    %s46 = sphi 0, %s44
    %s47 = sphi 0, %s46
    %s61 = sphi 0, %s47
    %s65 = sphi 0, %s65
    %s67 = sphi 0, %s65
    %s68 = sphi 0, %s67
    %s82 = sphi 0, %s68
    %s86 = sphi 0, %s86
    %s88 = sphi 0, %s86
    %s89 = sphi 0, %s88
    %s103 = sphi 0, %s89
    %s109 = sphi 0, %s111
    %s112 = sphi 0, %s109
    %s113 = sphi 0, %s112
    %s129 = sphi 0, %s113
  $region4: #{net_forward.19} parent=0 // loop_header_branch
    %13 = sbr.rel (%p11) target = $region8
  $region5: #{net_forward.19} parent=0 // loop_body
    %s15 = ssub.s32 %s10, 1
    %s16 = ssub.s32 %s10, 2
    %s17 = sadd.s32 %s10, 1
    %s18 = ssub.s32 %s10, %s17
    %p19 = scmp.eq.s32.totalorder %s18, 0
    %s21 = sadd.s32 %s20, 1
    %s22 = scalar_select %p19, %s20, %s21
    %p25 = pneg %p19
    %p26 = scmp.eq.s32.totalorder %s10, 1
    %p27 = por %p25, %p26
    %p28 = scmp.ne.s32.totalorder %s20, %s23
    %p29 = scmp.eq.s32.totalorder %s10, 0
    %p30 = por %p28, %p29
    %p31 = scmp.ne.s32.totalorder %s20, %s23
    %p32 = scmp.eq.s32.totalorder %s15, 1
    %p33 = por %p31, %p32
    %p34 = scmp.ne.s32.totalorder %s23, %s24
    %p35 = scmp.eq.s32.totalorder %s15, 0
    %p36 = por %p34, %p35
    %p37 = scmp.ne.s32.totalorder %s23, %s24
    %p38 = scmp.eq.s32.totalorder %s16, 1
    %p39 = por %p37, %p38
    %p41 = scmp.ne.s32.totalorder %s24, %s40
    %p42 = scmp.eq.s32.totalorder %s16, 0
    %p43 = por %p41, %p42
    %s45 = sadd.s32 %s44, 1
    %p48 = scmp.eq.s32.totalorder %s10, 1
    %p49 = scmp.ne.s32.totalorder %s44, %s46
    %p50 = scmp.eq.s32.totalorder %s10, 0
    %p51 = por %p49, %p50
    %p52 = scmp.ne.s32.totalorder %s44, %s46
    %p53 = scmp.eq.s32.totalorder %s15, 1
    %p54 = por %p52, %p53
    %p55 = scmp.ne.s32.totalorder %s46, %s47
    %p56 = scmp.eq.s32.totalorder %s15, 0
    %p57 = por %p55, %p56
    %p58 = scmp.ne.s32.totalorder %s46, %s47
    %p59 = scmp.eq.s32.totalorder %s16, 1
    %p60 = por %p58, %p59
    %p62 = scmp.ne.s32.totalorder %s47, %s61
    %p63 = scmp.eq.s32.totalorder %s16, 0
    %p64 = por %p62, %p63
    %s66 = sadd.s32 %s65, 1
    %p69 = scmp.eq.s32.totalorder %s10, 1
    %p70 = scmp.ne.s32.totalorder %s65, %s67
    %p71 = scmp.eq.s32.totalorder %s10, 0
    %p72 = por %p70, %p71
    %p73 = scmp.ne.s32.totalorder %s65, %s67
    %p74 = scmp.eq.s32.totalorder %s15, 1
    %p75 = por %p73, %p74
    %p76 = scmp.ne.s32.totalorder %s67, %s68
    %p77 = scmp.eq.s32.totalorder %s15, 0
    %p78 = por %p76, %p77
    %p79 = scmp.ne.s32.totalorder %s67, %s68
    %p80 = scmp.eq.s32.totalorder %s16, 1
    %p81 = por %p79, %p80
    %p83 = scmp.ne.s32.totalorder %s68, %s82
    %p84 = scmp.eq.s32.totalorder %s16, 0
    %p85 = por %p83, %p84
    %s87 = sadd.s32 %s86, 1
    %p90 = scmp.eq.s32.totalorder %s10, 1
    %p91 = scmp.ne.s32.totalorder %s86, %s88
    %p92 = scmp.eq.s32.totalorder %s10, 0
    %p93 = por %p91, %p92
    %p94 = scmp.ne.s32.totalorder %s86, %s88
    %p95 = scmp.eq.s32.totalorder %s15, 1
    %p96 = por %p94, %p95
    %p97 = scmp.ne.s32.totalorder %s88, %s89
    %p98 = scmp.eq.s32.totalorder %s15, 0
    %p99 = por %p97, %p98
    %p100 = scmp.ne.s32.totalorder %s88, %s89
    %p101 = scmp.eq.s32.totalorder %s16, 1
    %p102 = por %p100, %p101
    %p104 = scmp.ne.s32.totalorder %s89, %s103
    %p105 = scmp.eq.s32.totalorder %s16, 0
    %p106 = por %p104, %p105
    %s107 = ssub.s32 %s10, %s17
    %p108 = scmp.eq.s32.totalorder %s107, 0
    %s110 = sadd.s32 %s109, 1
    %s111 = scalar_select %p108, %s109, %s110
    %p114 = pneg %p108
    %p115 = scmp.eq.s32.totalorder %s10, 1
    %p116 = por %p114, %p115
    %p117 = scmp.ne.s32.totalorder %s109, %s112
    %p118 = scmp.eq.s32.totalorder %s10, 0
    %p119 = por %p117, %p118
    %p120 = scmp.ne.s32.totalorder %s109, %s112
    %p121 = scmp.eq.s32.totalorder %s15, 1
    %p122 = por %p120, %p121
    %p123 = scmp.ne.s32.totalorder %s112, %s113
    %p124 = scmp.eq.s32.totalorder %s15, 0
    %p125 = por %p123, %p124
    %p126 = scmp.ne.s32.totalorder %s112, %s113
    %p127 = scmp.eq.s32.totalorder %s16, 1
    %p128 = por %p126, %p127
    %p130 = scmp.ne.s32.totalorder %s113, %s129
    %p131 = scmp.eq.s32.totalorder %s16, 0
    %p132 = por %p130, %p131
    %p133 = scmp.le.s32.totalorder 1, %s10
    %p134 = scmp.lt.s32.totalorder %s10, 3
    %p135 = pnand %p133, %p134
    %p136 = pneg %p135
    // Predicated region
    $region9: #{net_forward.19} parent=5 // pred_check
      _
    $region10: #{net_forward.19} parent=5 // pred_check_branch
      %138 = sbr.rel (%p135) target = $region12
    $region11: #{net_forward.19} parent=5 // pred_region
      %s139 = ssub.s32 %s10, 1
      // Predicated region
      $region13: #{net_forward.19} parent=11 // pred_check
        %p140 = pneg %p57
      $region14: #{net_forward.19} parent=11 // pred_check_branch
        %142 = sbr.rel (%p140) target = $region16
      $region15: #{net_forward.19} parent=11 // pred_region
        _
      $region16: #{net_forward.19} parent=11 // pred_fallthru
        _
      // Predicated region
      $region17: #{net_forward.19} parent=11 // pred_check
        %p143 = pneg %p78
      $region18: #{net_forward.19} parent=11 // pred_check_branch
        %145 = sbr.rel (%p143) target = $region20
      $region19: #{net_forward.19} parent=11 // pred_region
        _
      $region20: #{net_forward.19} parent=11 // pred_fallthru
        _
      // Predicated region
      $region21: #{net_forward.19} parent=11 // pred_check
        %p146 = pneg %p99
      $region22: #{net_forward.19} parent=11 // pred_check_branch
        %148 = sbr.rel (%p146) target = $region24
      $region23: #{net_forward.19} parent=11 // pred_region
        _
      $region24: #{net_forward.19} parent=11 // pred_fallthru
        _
    $region12: #{net_forward.19} parent=5 // pred_fallthru
      _
    %p149 = scmp.lt.s32.totalorder %s10, 2
    // Predicated region
    $region25: #{net_forward.19} parent=5 // pred_check
      %p150 = pneg %p149
    $region26: #{net_forward.19} parent=5 // pred_check_branch
      %152 = sbr.rel (%p150) target = $region28
    $region27: #{net_forward.19} parent=5 // pred_region
      // Predicated region
      $region29: #{net_forward.19} parent=27 // pred_check
        %p153 = pneg %p30
      $region30: #{net_forward.19} parent=27 // pred_check_branch
        %155 = sbr.rel (%p153) target = $region32
      $region31: #{net_forward.19} parent=27 // pred_region
        %s156 = smul.u32 32, %s10
        %p157 = scmp.lt.s32.totalorder %s156, 63
        %s158 = scalar_select %p157, %s156, 63
        %s159 = smul.addr %s158, 3
        %s160 = smul.addr %s159, 4
        %s161 = scalar_lea.vmem %s0, %s160
        %s162 = smul.u32 32, %s10
      $region32: #{net_forward.19} parent=27 // pred_fallthru
        _
    $region28: #{net_forward.19} parent=5 // pred_fallthru
      _
    %p163 = scmp.le.s32.totalorder 1, %s10
    %p164 = scmp.lt.s32.totalorder %s10, 3
    %p165 = pnand %p163, %p164
    %p166 = pneg %p165
    // Predicated region
    $region33: #{net_forward.19} parent=5 // pred_check
      _
    $region34: #{net_forward.19} parent=5 // pred_check_branch
      %168 = sbr.rel (%p165) target = $region36
    $region35: #{net_forward.19} parent=5 // pred_region
      %s169 = ssub.s32 %s10, 1
      %s170 = smul.u32 32, %s15
      %p171 = scmp.lt.s32.totalorder %s170, 63
      %s172 = scalar_select %p171, %s170, 63
      %s173 = smul.addr %s172, 3
      %s174 = smul.addr %s173, 4
      %s175 = scalar_lea.vmem %s0, %s174
      %p176 = pneg %p36
      %p177 = pneg %p33
      %p178 = pneg %p57
      %p179 = pneg %p54
      %p180 = pneg %p78
      %p181 = pneg %p75
      %p182 = pneg %p99
      %p183 = pneg %p96
      %p184 = pneg %p125
      %p185 = pneg %p122
      %s186 = smul.u32 32, %s15
      %p187 = scmp.lt.s32.totalorder %s186, 63
      %s188 = scalar_select %p187, %s186, 63
      %s189 = smul.addr %s188, 8
      %s190 = scalar_lea.vmem %s4, %s189
      %s191 = smul.u32 32, %s15
      %p192 = scmp.lt.s32.totalorder %s191, 63
      %s193 = scalar_select %p192, %s191, 63
      %s194 = smul.addr %s193, 3
      %s195 = smul.addr %s194, 4
      %s196 = scalar_lea.vmem %s0, %s195
      %s197 = smul.u32 32, %s15
      %s198 = smul.u32 32, %s15
      %p199 = scmp.lt.s32.totalorder %s198, 63
      %s200 = scalar_select %p199, %s198, 63
      %s201 = smul.addr %s200, 8
      %s202 = scalar_lea.vmem %s4, %s201
      %s203 = smul.u32 32, %s15
      %v205 = vld [vmem:[%s196] sm:$0xff]
      %v206 = vld [vmem:[%s196 + $0x8] sm:$0xf]
      %v207 = vld [vmem:[%s196 + $0xc] sm:$0xff]
      %v208 = vld [vmem:[%s196 + $0x14] sm:$0xf]
      %v209 = vld [vmem:[%s196 + $0x18] sm:$0xff]
      %v210 = vld [vmem:[%s196 + $0x20] sm:$0xf]
      %v211 = vld [vmem:[%s196 + $0x24] sm:$0xff]
      %v212 = vld [vmem:[%s196 + $0x2c] sm:$0xf]
      %v213 = vld [vmem:[%s196 + $0x30] sm:$0xff]
      %v214 = vld [vmem:[%s196 + $0x38] sm:$0xf]
      %v215 = vld [vmem:[%s196 + $0x3c] sm:$0xff]
      %v216 = vld [vmem:[%s196 + $0x44] sm:$0xf]
      %v217 = vld [vmem:[%s196 + $0x48] sm:$0xff]
      %v218 = vld [vmem:[%s196 + $0x50] sm:$0xf]
      %v219 = vld [vmem:[%s196 + $0x54] sm:$0xff]
      %v220 = vld [vmem:[%s196 + $0x5c] sm:$0xf]
      %v221 = vld [vmem:[%s196 + $0x60] sm:$0xff]
      %v222 = vld [vmem:[%s196 + $0x68] sm:$0xf]
      %v223 = vld [vmem:[%s196 + $0x6c] sm:$0xff]
      %v224 = vld [vmem:[%s196 + $0x74] sm:$0xf]
      %v225 = vld [vmem:[%s196 + $0x78] sm:$0xff]
      %v226 = vld [vmem:[%s196 + $0x80] sm:$0xf]
      %v227 = vld [vmem:[%s196 + $0x84] sm:$0xff]
      %v228 = vld [vmem:[%s196 + $0x8c] sm:$0xf]
      %v229 = vld [vmem:[%s196 + $0x90] sm:$0xff]
      %v230 = vld [vmem:[%s196 + $0x98] sm:$0xf]
      %v231 = vld [vmem:[%s196 + $0x9c] sm:$0xff]
      %v232 = vld [vmem:[%s196 + $0xa4] sm:$0xf]
      %v233 = vld [vmem:[%s196 + $0xa8] sm:$0xff]
      %v234 = vld [vmem:[%s196 + $0xb0] sm:$0xf]
      %v235 = vld [vmem:[%s196 + $0xb4] sm:$0xff]
      %v236 = vld [vmem:[%s196 + $0xbc] sm:$0xf]
      %v237 = vld [vmem:[%s196 + $0xc0] sm:$0xff]
      %v238 = vld [vmem:[%s196 + $0xc8] sm:$0xf]
      %v239 = vld [vmem:[%s196 + $0xcc] sm:$0xff]
      %v240 = vld [vmem:[%s196 + $0xd4] sm:$0xf]
      %v241 = vld [vmem:[%s196 + $0xd8] sm:$0xff]
      %v242 = vld [vmem:[%s196 + $0xe0] sm:$0xf]
      %v243 = vld [vmem:[%s196 + $0xe4] sm:$0xff]
      %v244 = vld [vmem:[%s196 + $0xec] sm:$0xf]
      %v245 = vld [vmem:[%s196 + $0xf0] sm:$0xff]
      %v246 = vld [vmem:[%s196 + $0xf8] sm:$0xf]
      %v247 = vld [vmem:[%s196 + $0xfc] sm:$0xff]
      %v248 = vld [vmem:[%s196 + $0x104] sm:$0xf]
      %v249 = vld [vmem:[%s196 + $0x108] sm:$0xff]
      %v250 = vld [vmem:[%s196 + $0x110] sm:$0xf]
      %v251 = vld [vmem:[%s196 + $0x114] sm:$0xff]
      %v252 = vld [vmem:[%s196 + $0x11c] sm:$0xf]
      %v253 = vld [vmem:[%s196 + $0x120] sm:$0xff]
      %v254 = vld [vmem:[%s196 + $0x128] sm:$0xf]
      %v255 = vld [vmem:[%s196 + $0x12c] sm:$0xff]
      %v256 = vld [vmem:[%s196 + $0x134] sm:$0xf]
      %v257 = vld [vmem:[%s196 + $0x138] sm:$0xff]
      %v258 = vld [vmem:[%s196 + $0x140] sm:$0xf]
      %v259 = vld [vmem:[%s196 + $0x144] sm:$0xff]
      %v260 = vld [vmem:[%s196 + $0x14c] sm:$0xf]
      %v261 = vld [vmem:[%s196 + $0x150] sm:$0xff]
      %v262 = vld [vmem:[%s196 + $0x158] sm:$0xf]
      %v263 = vld [vmem:[%s196 + $0x15c] sm:$0xff]
      %v264 = vld [vmem:[%s196 + $0x164] sm:$0xf]
      %v265 = vld [vmem:[%s196 + $0x168] sm:$0xff]
      %v266 = vld [vmem:[%s196 + $0x170] sm:$0xf]
      %v267 = vld [vmem:[%s196 + $0x174] sm:$0xff]
      %v268 = vld [vmem:[%s196 + $0x17c] sm:$0xf]
      %v269 = vld [vmem:[%s1] sm:$0xf]
      %v270 = vld [vmem:[%s1 + $0x4] sm:$0xf]
      %v271 = vld [vmem:[%s1 + $0x8] sm:$0xf]
      %v272 = vld [vmem:[%s1 + $0xc] sm:$0xf]
      %v273 = vld [vmem:[%s1 + $0x10] sm:$0xf]
      %v274 = vld [vmem:[%s1 + $0x14] sm:$0xf]
      %v275 = vld [vmem:[%s1 + $0x18] sm:$0xf]
      %v276 = vld [vmem:[%s1 + $0x1c] sm:$0xf]
      %v277 = vld [vmem:[%s1 + $0x20] sm:$0xf]
      %v278 = vld [vmem:[%s1 + $0x24] sm:$0xf]
      %v279 = vld [vmem:[%s1 + $0x28] sm:$0xf]
      %v280 = vld [vmem:[%s1 + $0x2c] sm:$0xf]
      %v281 = vld [vmem:[%s1 + $0x30] sm:$0xf]
      %v282 = vld [vmem:[%s1 + $0x34] sm:$0xf]
      %v283 = vld [vmem:[%s1 + $0x38] sm:$0xf]
      %v284 = vld [vmem:[%s1 + $0x3c] sm:$0xf]
      %v285 = vld [vmem:[%s1 + $0x40] sm:$0xf]
      %v286 = vld [vmem:[%s1 + $0x44] sm:$0xf]
      %v287 = vld [vmem:[%s1 + $0x48] sm:$0xf]
      %v288 = vld [vmem:[%s1 + $0x4c] sm:$0xf]
      %v289 = vld [vmem:[%s1 + $0x50] sm:$0xf]
      %v290 = vld [vmem:[%s1 + $0x54] sm:$0xf]
      %v291 = vld [vmem:[%s1 + $0x58] sm:$0xf]
      %v292 = vld [vmem:[%s1 + $0x5c] sm:$0xf]
      %v293 = vld [vmem:[%s1 + $0x60] sm:$0xf]
      %v294 = vld [vmem:[%s1 + $0x64] sm:$0xf]
      %v295 = vld [vmem:[%s1 + $0x68] sm:$0xf]
      %v296 = vld [vmem:[%s1 + $0x6c] sm:$0xf]
      %v297 = vld [vmem:[%s1 + $0x70] sm:$0xf]
      %v298 = vld [vmem:[%s1 + $0x74] sm:$0xf]
      %v299 = vld [vmem:[%s1 + $0x78] sm:$0xf]
      %v300 = vld [vmem:[%s1 + $0x7c] sm:$0xf]
      %v301 = vld [vmem:[%s1 + $0x80] sm:$0xf]
      %v302 = vld [vmem:[%s1 + $0x84] sm:$0xf]
      %v303 = vld [vmem:[%s1 + $0x88] sm:$0xf]
      %v304 = vld [vmem:[%s1 + $0x8c] sm:$0xf]
      %v369 = vunpack.c.l.b16 %v205
      %v370 = vunpack.c.h.b16 %v205
      %v371 = vunpack.c.l.b16 %v206
      %v372 = vunpack.c.l.b16 %v207
      %v373 = vunpack.c.h.b16 %v207
      %v374 = vunpack.c.l.b16 %v208
      %v375 = vunpack.c.l.b16 %v209
      %v376 = vunpack.c.h.b16 %v209
      %v377 = vunpack.c.l.b16 %v210
      %v378 = vunpack.c.l.b16 %v211
      %v379 = vunpack.c.h.b16 %v211
      %v380 = vunpack.c.l.b16 %v212
      %v381 = vunpack.c.l.b16 %v213
      %v382 = vunpack.c.h.b16 %v213
      %v383 = vunpack.c.l.b16 %v214
      %v384 = vunpack.c.l.b16 %v215
      %v385 = vunpack.c.h.b16 %v215
      %v386 = vunpack.c.l.b16 %v216
      %v387 = vunpack.c.l.b16 %v217
      %v388 = vunpack.c.h.b16 %v217
      %v389 = vunpack.c.l.b16 %v218
      %v390 = vunpack.c.l.b16 %v219
      %v391 = vunpack.c.h.b16 %v219
      %v392 = vunpack.c.l.b16 %v220
      %v393 = vunpack.c.l.b16 %v221
      %v394 = vunpack.c.h.b16 %v221
      %v395 = vunpack.c.l.b16 %v222
      %v396 = vunpack.c.l.b16 %v223
      %v397 = vunpack.c.h.b16 %v223
      %v398 = vunpack.c.l.b16 %v224
      %v399 = vunpack.c.l.b16 %v225
      %v400 = vunpack.c.h.b16 %v225
      %v401 = vunpack.c.l.b16 %v226
      %v402 = vunpack.c.l.b16 %v227
      %v403 = vunpack.c.h.b16 %v227
      %v404 = vunpack.c.l.b16 %v228
      %v405 = vunpack.c.l.b16 %v229
      %v406 = vunpack.c.h.b16 %v229
      %v407 = vunpack.c.l.b16 %v230
      %v408 = vunpack.c.l.b16 %v231
      %v409 = vunpack.c.h.b16 %v231
      %v410 = vunpack.c.l.b16 %v232
      %v411 = vunpack.c.l.b16 %v233
      %v412 = vunpack.c.h.b16 %v233
      %v413 = vunpack.c.l.b16 %v234
      %v414 = vunpack.c.l.b16 %v235
      %v415 = vunpack.c.h.b16 %v235
      %v416 = vunpack.c.l.b16 %v236
      %v417 = vunpack.c.l.b16 %v237
      %v418 = vunpack.c.h.b16 %v237
      %v419 = vunpack.c.l.b16 %v238
      %v420 = vunpack.c.l.b16 %v239
      %v421 = vunpack.c.h.b16 %v239
      %v422 = vunpack.c.l.b16 %v240
      %v423 = vunpack.c.l.b16 %v241
      %v424 = vunpack.c.h.b16 %v241
      %v425 = vunpack.c.l.b16 %v242
      %v426 = vunpack.c.l.b16 %v243
      %v427 = vunpack.c.h.b16 %v243
      %v428 = vunpack.c.l.b16 %v244
      %v429 = vunpack.c.l.b16 %v245
      %v430 = vunpack.c.h.b16 %v245
      %v431 = vunpack.c.l.b16 %v246
      %v432 = vunpack.c.l.b16 %v247
      %v433 = vunpack.c.h.b16 %v247
      %v434 = vunpack.c.l.b16 %v248
      %v435 = vunpack.c.l.b16 %v249
      %v436 = vunpack.c.h.b16 %v249
      %v437 = vunpack.c.l.b16 %v250
      %v438 = vunpack.c.l.b16 %v251
      %v439 = vunpack.c.h.b16 %v251
      %v440 = vunpack.c.l.b16 %v252
      %v441 = vunpack.c.l.b16 %v253
      %v442 = vunpack.c.h.b16 %v253
      %v443 = vunpack.c.l.b16 %v254
      %v444 = vunpack.c.l.b16 %v255
      %v445 = vunpack.c.h.b16 %v255
      %v446 = vunpack.c.l.b16 %v256
      %v447 = vunpack.c.l.b16 %v257
      %v448 = vunpack.c.h.b16 %v257
      %v449 = vunpack.c.l.b16 %v258
      %v450 = vunpack.c.l.b16 %v259
      %v451 = vunpack.c.h.b16 %v259
      %v452 = vunpack.c.l.b16 %v260
      %v453 = vunpack.c.l.b16 %v261
      %v454 = vunpack.c.h.b16 %v261
      %v455 = vunpack.c.l.b16 %v262
      %v456 = vunpack.c.l.b16 %v263
      %v457 = vunpack.c.h.b16 %v263
      %v458 = vunpack.c.l.b16 %v264
      %v459 = vunpack.c.l.b16 %v265
      %v460 = vunpack.c.h.b16 %v265
      %v461 = vunpack.c.l.b16 %v266
      %v462 = vunpack.c.l.b16 %v267
      %v463 = vunpack.c.h.b16 %v267
      %v464 = vunpack.c.l.b16 %v268
      %v465 = vpack.c.b16 %v372, %v369
      %v466 = vpack.c.b16 %v373, %v370
      %v467 = vpack.c.b16 %v374, %v371
      %v468 = vpack.c.b16 %v378, %v375
      %v469 = vpack.c.b16 %v379, %v376
      %v470 = vpack.c.b16 %v380, %v377
      %v471 = vpack.c.b16 %v384, %v381
      %v472 = vpack.c.b16 %v385, %v382
      %v473 = vpack.c.b16 %v386, %v383
      %v474 = vpack.c.b16 %v390, %v387
      %v475 = vpack.c.b16 %v391, %v388
      %v476 = vpack.c.b16 %v392, %v389
      %v477 = vpack.c.b16 %v396, %v393
      %v478 = vpack.c.b16 %v397, %v394
      %v479 = vpack.c.b16 %v398, %v395
      %v480 = vpack.c.b16 %v402, %v399
      %v481 = vpack.c.b16 %v403, %v400
      %v482 = vpack.c.b16 %v404, %v401
      %v483 = vpack.c.b16 %v408, %v405
      %v484 = vpack.c.b16 %v409, %v406
      %v485 = vpack.c.b16 %v410, %v407
      %v486 = vpack.c.b16 %v414, %v411
      %v487 = vpack.c.b16 %v415, %v412
      %v488 = vpack.c.b16 %v416, %v413
      %v489 = vpack.c.b16 %v420, %v417
      %v490 = vpack.c.b16 %v421, %v418
      %v491 = vpack.c.b16 %v422, %v419
      %v492 = vpack.c.b16 %v426, %v423
      %v493 = vpack.c.b16 %v427, %v424
      %v494 = vpack.c.b16 %v428, %v425
      %v495 = vpack.c.b16 %v432, %v429
      %v496 = vpack.c.b16 %v433, %v430
      %v497 = vpack.c.b16 %v434, %v431
      %v498 = vpack.c.b16 %v438, %v435
      %v499 = vpack.c.b16 %v439, %v436
      %v500 = vpack.c.b16 %v440, %v437
      %v501 = vpack.c.b16 %v444, %v441
      %v502 = vpack.c.b16 %v445, %v442
      %v503 = vpack.c.b16 %v446, %v443
      %v504 = vpack.c.b16 %v450, %v447
      %v505 = vpack.c.b16 %v451, %v448
      %v506 = vpack.c.b16 %v452, %v449
      %v507 = vpack.c.b16 %v456, %v453
      %v508 = vpack.c.b16 %v457, %v454
      %v509 = vpack.c.b16 %v458, %v455
      %v510 = vpack.c.b16 %v462, %v459
      %v511 = vpack.c.b16 %v463, %v460
      %v512 = vpack.c.b16 %v464, %v461
      %v581 = vunpack.c.l.b16 %v269
      %v582 = vunpack.c.l.b16 %v270
      %v583 = vunpack.c.l.b16 %v271
      %v584 = vunpack.c.l.b16 %v272
      %v585 = vunpack.c.l.b16 %v273
      %v586 = vunpack.c.l.b16 %v274
      %v587 = vunpack.c.l.b16 %v275
      %v588 = vunpack.c.l.b16 %v276
      %v589 = vunpack.c.l.b16 %v277
      %v590 = vunpack.c.l.b16 %v278
      %v591 = vunpack.c.l.b16 %v279
      %v592 = vunpack.c.l.b16 %v280
      %v593 = vunpack.c.l.b16 %v281
      %v594 = vunpack.c.l.b16 %v282
      %v595 = vunpack.c.l.b16 %v283
      %v596 = vunpack.c.l.b16 %v284
      %v597 = vunpack.c.l.b16 %v285
      %v598 = vunpack.c.l.b16 %v286
      %v599 = vunpack.c.l.b16 %v287
      %v600 = vunpack.c.l.b16 %v288
      %v601 = vunpack.c.l.b16 %v289
      %v602 = vunpack.c.l.b16 %v290
      %v603 = vunpack.c.l.b16 %v291
      %v604 = vunpack.c.l.b16 %v292
      %v605 = vunpack.c.l.b16 %v293
      %v606 = vunpack.c.l.b16 %v294
      %v607 = vunpack.c.l.b16 %v295
      %v608 = vunpack.c.l.b16 %v296
      %v609 = vunpack.c.l.b16 %v297
      %v610 = vunpack.c.l.b16 %v298
      %v611 = vunpack.c.l.b16 %v299
      %v612 = vunpack.c.l.b16 %v300
      %v613 = vunpack.c.l.b16 %v301
      %v614 = vunpack.c.l.b16 %v302
      %v615 = vunpack.c.l.b16 %v303
      %v616 = vunpack.c.l.b16 %v304
      %v617 = vpack.c.b16 %v582, %v581
      %v618 = vpack.c.b16 %v584, %v583
      %v619 = vpack.c.b16 %v586, %v585
      %v620 = vpack.c.b16 %v588, %v587
      %v621 = vpack.c.b16 %v590, %v589
      %v622 = vpack.c.b16 %v592, %v591
      %v623 = vpack.c.b16 %v594, %v593
      %v624 = vpack.c.b16 %v596, %v595
      %v625 = vpack.c.b16 %v598, %v597
      %v626 = vpack.c.b16 %v600, %v599
      %v627 = vpack.c.b16 %v602, %v601
      %v628 = vpack.c.b16 %v604, %v603
      %v629 = vpack.c.b16 %v606, %v605
      %v630 = vpack.c.b16 %v608, %v607
      %v631 = vpack.c.b16 %v610, %v609
      %v632 = vpack.c.b16 %v612, %v611
      %v633 = vpack.c.b16 %v614, %v613
      %v634 = vpack.c.b16 %v616, %v615
      %vm653 = vcmask 261120
      %v655 = vsel %vm653, %v467, 0
      %v658 = vsel %vm653, %v470, 0
      %v661 = vsel %vm653, %v473, 0
      %v664 = vsel %vm653, %v476, 0
      %v667 = vsel %vm653, %v479, 0
      %v670 = vsel %vm653, %v482, 0
      %v673 = vsel %vm653, %v485, 0
      %v676 = vsel %vm653, %v488, 0
      %v679 = vsel %vm653, %v491, 0
      %v682 = vsel %vm653, %v494, 0
      %v685 = vsel %vm653, %v497, 0
      %v688 = vsel %vm653, %v500, 0
      %v691 = vsel %vm653, %v503, 0
      %v694 = vsel %vm653, %v506, 0
      %v697 = vsel %vm653, %v509, 0
      %v700 = vsel %vm653, %v512, 0
      %702 = vmatprep.subr.bf16.mxu0 0
      %703 = vmatpush1.bf16.msra.mxu0 %v617
      %704 = vmatprep.subr.bf16.mxu0 0
      %705 = vmatpush1.bf16.msra.mxu0 %v618
      %706 = vmatprep.subr.bf16.mxu0 0
      %707 = vmatpush1.bf16.msra.mxu0 %v619
      %708 = vmatprep.subr.bf16.mxu0 0
      %709 = vmatpush1.bf16.msra.mxu0 %v620
      %710 = vmatprep.subr.bf16.mxu0 0
      %711 = vmatpush1.bf16.msra.mxu0 %v621
      %712 = vmatprep.subr.bf16.mxu0 0
      %713 = vmatpush1.bf16.msra.mxu0 %v622
      %714 = vmatprep.subr.bf16.mxu0 0
      %715 = vmatpush1.bf16.msra.mxu0 %v623
      %716 = vmatprep.subr.bf16.mxu0 0
      %717 = vmatpush1.bf16.msra.mxu0 %v624
      %718 = vmatprep.subr.bf16.mxu0 0
      %719 = vmatpush1.bf16.msra.mxu0 %v625
      %720 = vmatprep.subr.bf16.mxu0 0
      %721 = vmatpush1.bf16.msra.mxu0 %v626
      %722 = vmatprep.subr.bf16.mxu0 0
      %723 = vmatpush1.bf16.msra.mxu0 %v627
      %724 = vmatprep.subr.bf16.mxu0 0
      %725 = vmatpush1.bf16.msra.mxu0 %v628
      %726 = vmatprep.subr.bf16.mxu0 0
      %727 = vmatpush1.bf16.msra.mxu0 %v629
      %728 = vmatprep.subr.bf16.mxu0 0
      %729 = vmatpush1.bf16.msra.mxu0 %v630
      %730 = vmatprep.subr.bf16.mxu0 0
      %731 = vmatpush1.bf16.msra.mxu0 %v631
      %732 = vmatprep.subr.bf16.mxu0 0
      %733 = vmatpush1.bf16.msra.mxu0 %v632
      %734 = vmatprep.mubr.bf16.mxu0 %v466
      %735 = vmatmul.mubr.bf16.gmra.mrb[0].mxu0 %v465
      %v736 = vpop.f32.mrb[0].mxu0
      %v737 = vadd.f32 0.0, %v736
      %v738 = vpop.f32.mrb[0].mxu0
      %v739 = vpop.f32.mrb[0].mxu0
      %v740 = vadd.f32 0.0, %v739
      %v741 = vpop.f32.mrb[0].mxu0
      %742 = vmatprep.mubr.bf16.mxu0 %v469
      %743 = vmatmul.mubr.bf16.gmra.mrb[0].mxu0 %v468
      %v744 = vpop.f32.mrb[0].mxu0
      %v745 = vadd.f32 0.0, %v744
      %v746 = vpop.f32.mrb[0].mxu0
      %v747 = vpop.f32.mrb[0].mxu0
      %v748 = vadd.f32 0.0, %v747
      %v749 = vpop.f32.mrb[0].mxu0
      %750 = vmatprep.mubr.bf16.mxu0 %v472
      %751 = vmatmul.mubr.bf16.gmra.mrb[0].mxu0 %v471
      %v752 = vpop.f32.mrb[0].mxu0
      %v753 = vadd.f32 0.0, %v752
      %v754 = vpop.f32.mrb[0].mxu0
      %v755 = vpop.f32.mrb[0].mxu0
      %v756 = vadd.f32 0.0, %v755
      %v757 = vpop.f32.mrb[0].mxu0
      %758 = vmatprep.mubr.bf16.mxu0 %v475
      %759 = vmatmul.mubr.bf16.gmra.mrb[0].mxu0 %v474
      %v760 = vpop.f32.mrb[0].mxu0
      %v761 = vadd.f32 0.0, %v760
      %v762 = vpop.f32.mrb[0].mxu0
      %v763 = vpop.f32.mrb[0].mxu0
      %v764 = vadd.f32 0.0, %v763
      %v765 = vpop.f32.mrb[0].mxu0
      %766 = vmatprep.mubr.bf16.mxu0 %v478
      %767 = vmatmul.mubr.bf16.gmra.mrb[0].mxu0 %v477
      %v768 = vpop.f32.mrb[0].mxu0
      %v769 = vadd.f32 0.0, %v768
      %v770 = vpop.f32.mrb[0].mxu0
      %v771 = vpop.f32.mrb[0].mxu0
      %v772 = vadd.f32 0.0, %v771
      %v773 = vpop.f32.mrb[0].mxu0
      %774 = vmatprep.mubr.bf16.mxu0 %v481
      %775 = vmatmul.mubr.bf16.gmra.mrb[0].mxu0 %v480
      %v776 = vpop.f32.mrb[0].mxu0
      %v777 = vadd.f32 0.0, %v776
      %v778 = vpop.f32.mrb[0].mxu0
      %v779 = vpop.f32.mrb[0].mxu0
      %v780 = vadd.f32 0.0, %v779
      %v781 = vpop.f32.mrb[0].mxu0
      %782 = vmatprep.mubr.bf16.mxu0 %v484
      %783 = vmatmul.mubr.bf16.gmra.mrb[0].mxu0 %v483
      %v784 = vpop.f32.mrb[0].mxu0
      %v785 = vadd.f32 0.0, %v784
      %v786 = vpop.f32.mrb[0].mxu0
      %v787 = vpop.f32.mrb[0].mxu0
      %v788 = vadd.f32 0.0, %v787
      %v789 = vpop.f32.mrb[0].mxu0
      %790 = vmatprep.mubr.bf16.mxu0 %v487
      %791 = vmatmul.mubr.bf16.gmra.mrb[0].mxu0 %v486
      %v792 = vpop.f32.mrb[0].mxu0
      %v793 = vadd.f32 0.0, %v792
      %v794 = vpop.f32.mrb[0].mxu0
      %v795 = vpop.f32.mrb[0].mxu0
      %v796 = vadd.f32 0.0, %v795
      %v797 = vpop.f32.mrb[0].mxu0
      %798 = vmatprep.mubr.bf16.mxu0 %v490
      %799 = vmatmul.mubr.bf16.gmra.mrb[0].mxu0 %v489
      %v800 = vpop.f32.mrb[0].mxu0
      %v801 = vadd.f32 0.0, %v800
      %v802 = vpop.f32.mrb[0].mxu0
      %v803 = vpop.f32.mrb[0].mxu0
      %v804 = vadd.f32 0.0, %v803
      %v805 = vpop.f32.mrb[0].mxu0
      %806 = vmatprep.mubr.bf16.mxu0 %v493
      %807 = vmatmul.mubr.bf16.gmra.mrb[0].mxu0 %v492
      %v808 = vpop.f32.mrb[0].mxu0
      %v809 = vadd.f32 0.0, %v808
      %v810 = vpop.f32.mrb[0].mxu0
      %v811 = vpop.f32.mrb[0].mxu0
      %v812 = vadd.f32 0.0, %v811
      %v813 = vpop.f32.mrb[0].mxu0
      %814 = vmatprep.mubr.bf16.mxu0 %v496
      %815 = vmatmul.mubr.bf16.gmra.mrb[0].mxu0 %v495
      %v816 = vpop.f32.mrb[0].mxu0
      %v817 = vadd.f32 0.0, %v816
      %v818 = vpop.f32.mrb[0].mxu0
      %v819 = vpop.f32.mrb[0].mxu0
      %v820 = vadd.f32 0.0, %v819
      %v821 = vpop.f32.mrb[0].mxu0
      %822 = vmatprep.mubr.bf16.mxu0 %v499
      %823 = vmatmul.mubr.bf16.gmra.mrb[0].mxu0 %v498
      %v824 = vpop.f32.mrb[0].mxu0
      %v825 = vadd.f32 0.0, %v824
      %v826 = vpop.f32.mrb[0].mxu0
      %v827 = vpop.f32.mrb[0].mxu0
      %v828 = vadd.f32 0.0, %v827
      %v829 = vpop.f32.mrb[0].mxu0
      %830 = vmatprep.mubr.bf16.mxu0 %v502
      %831 = vmatmul.mubr.bf16.gmra.mrb[0].mxu0 %v501
      %v832 = vpop.f32.mrb[0].mxu0
      %v833 = vadd.f32 0.0, %v832
      %v834 = vpop.f32.mrb[0].mxu0
      %v835 = vpop.f32.mrb[0].mxu0
      %v836 = vadd.f32 0.0, %v835
      %v837 = vpop.f32.mrb[0].mxu0
      %838 = vmatprep.mubr.bf16.mxu0 %v505
      %839 = vmatmul.mubr.bf16.gmra.mrb[0].mxu0 %v504
      %v840 = vpop.f32.mrb[0].mxu0
      %v841 = vadd.f32 0.0, %v840
      %v842 = vpop.f32.mrb[0].mxu0
      %v843 = vpop.f32.mrb[0].mxu0
      %v844 = vadd.f32 0.0, %v843
      %v845 = vpop.f32.mrb[0].mxu0
      %846 = vmatprep.mubr.bf16.mxu0 %v508
      %847 = vmatmul.mubr.bf16.gmra.mrb[0].mxu0 %v507
      %v848 = vpop.f32.mrb[0].mxu0
      %v849 = vadd.f32 0.0, %v848
      %v850 = vpop.f32.mrb[0].mxu0
      %v851 = vpop.f32.mrb[0].mxu0
      %v852 = vadd.f32 0.0, %v851
      %v853 = vpop.f32.mrb[0].mxu0
      %854 = vmatprep.mubr.bf16.mxu0 %v511
      %855 = vmatmul.mubr.bf16.gmra.mrb[0].mxu0 %v510
      %v856 = vpop.f32.mrb[0].mxu0
      %v857 = vadd.f32 0.0, %v856
      %v858 = vpop.f32.mrb[0].mxu0
      %v859 = vpop.f32.mrb[0].mxu0
      %v860 = vadd.f32 0.0, %v859
      %v861 = vpop.f32.mrb[0].mxu0
      %862 = vdwg.mxu0
      %863 = vmatprep.subr.bf16.mxu0 0
      %864 = vmatpush1.bf16.msra.mxu0 %v633
      %865 = vmatprep.subr.bf16.mxu0 0
      %866 = vmatpush1.bf16.msra.mxu0 %v634
      %867 = vmatprep.subr.bf16.mxu0 0
      %868 = vmatpush1.bf16.msra.mxu0 0
      %869 = vmatprep.subr.bf16.mxu0 0
      %870 = vmatpush1.bf16.msra.mxu0 0
      %871 = vmatprep.subr.bf16.mxu0 0
      %872 = vmatpush1.bf16.msra.mxu0 0
      %873 = vmatprep.subr.bf16.mxu0 0
      %874 = vmatpush1.bf16.msra.mxu0 0
      %875 = vmatprep.subr.bf16.mxu0 0
      %876 = vmatpush1.bf16.msra.mxu0 0
      %877 = vmatprep.subr.bf16.mxu0 0
      %878 = vmatpush1.bf16.msra.mxu0 0
      %879 = vmatprep.subr.bf16.mxu0 0
      %880 = vmatpush1.bf16.msra.mxu0 0
      %881 = vmatprep.subr.bf16.mxu0 0
      %882 = vmatpush1.bf16.msra.mxu0 0
      %883 = vmatprep.subr.bf16.mxu0 0
      %884 = vmatpush1.bf16.msra.mxu0 0
      %885 = vmatprep.subr.bf16.mxu0 0
      %886 = vmatpush1.bf16.msra.mxu0 0
      %887 = vmatprep.subr.bf16.mxu0 0
      %888 = vmatpush1.bf16.msra.mxu0 0
      %889 = vmatprep.subr.bf16.mxu0 0
      %890 = vmatpush1.bf16.msra.mxu0 0
      %891 = vmatprep.subr.bf16.mxu0 0
      %892 = vmatpush1.bf16.msra.mxu0 0
      %893 = vmatprep.subr.bf16.mxu0 0
      %894 = vmatpush1.bf16.msra.mxu0 0
      %895 = vmatprep.mubr.bf16.mxu0 0
      %896 = vmatmul.mubr.bf16.gmra.mrb[0].mxu0 %v655
      %v897 = vpop.f32.mrb[0].mxu0
      %v898 = vadd.f32 %v737, %v897
      %v899 = vpop.f32.mrb[0].mxu0
      %v900 = vpop.f32.mrb[0].mxu0
      %v901 = vadd.f32 %v740, %v900
      %v902 = vpop.f32.mrb[0].mxu0
      %903 = vmatprep.mubr.bf16.mxu0 0
      %904 = vmatmul.mubr.bf16.gmra.mrb[0].mxu0 %v658
      %v905 = vpop.f32.mrb[0].mxu0
      %v906 = vadd.f32 %v745, %v905
      %v907 = vpop.f32.mrb[0].mxu0
      %v908 = vpop.f32.mrb[0].mxu0
      %v909 = vadd.f32 %v748, %v908
      %v910 = vpop.f32.mrb[0].mxu0
      %911 = vmatprep.mubr.bf16.mxu0 0
      %912 = vmatmul.mubr.bf16.gmra.mrb[0].mxu0 %v661
      %v913 = vpop.f32.mrb[0].mxu0
      %v914 = vadd.f32 %v753, %v913
      %v915 = vpop.f32.mrb[0].mxu0
      %v916 = vpop.f32.mrb[0].mxu0
      %v917 = vadd.f32 %v756, %v916
      %v918 = vpop.f32.mrb[0].mxu0
      %919 = vmatprep.mubr.bf16.mxu0 0
      %920 = vmatmul.mubr.bf16.gmra.mrb[0].mxu0 %v664
      %v921 = vpop.f32.mrb[0].mxu0
      %v922 = vadd.f32 %v761, %v921
      %v923 = vpop.f32.mrb[0].mxu0
      %v924 = vpop.f32.mrb[0].mxu0
      %v925 = vadd.f32 %v764, %v924
      %v926 = vpop.f32.mrb[0].mxu0
      %927 = vmatprep.mubr.bf16.mxu0 0
      %928 = vmatmul.mubr.bf16.gmra.mrb[0].mxu0 %v667
      %v929 = vpop.f32.mrb[0].mxu0
      %v930 = vadd.f32 %v769, %v929
      %v931 = vpop.f32.mrb[0].mxu0
      %v932 = vpop.f32.mrb[0].mxu0
      %v933 = vadd.f32 %v772, %v932
      %v934 = vpop.f32.mrb[0].mxu0
      %935 = vmatprep.mubr.bf16.mxu0 0
      %936 = vmatmul.mubr.bf16.gmra.mrb[0].mxu0 %v670
      %v937 = vpop.f32.mrb[0].mxu0
      %v938 = vadd.f32 %v777, %v937
      %v939 = vpop.f32.mrb[0].mxu0
      %v940 = vpop.f32.mrb[0].mxu0
      %v941 = vadd.f32 %v780, %v940
      %v942 = vpop.f32.mrb[0].mxu0
      %943 = vmatprep.mubr.bf16.mxu0 0
      %944 = vmatmul.mubr.bf16.gmra.mrb[0].mxu0 %v673
      %v945 = vpop.f32.mrb[0].mxu0
      %v946 = vadd.f32 %v785, %v945
      %v947 = vpop.f32.mrb[0].mxu0
      %v948 = vpop.f32.mrb[0].mxu0
      %v949 = vadd.f32 %v788, %v948
      %v950 = vpop.f32.mrb[0].mxu0
      %951 = vmatprep.mubr.bf16.mxu0 0
      %952 = vmatmul.mubr.bf16.gmra.mrb[0].mxu0 %v676
      %v953 = vpop.f32.mrb[0].mxu0
      %v954 = vadd.f32 %v793, %v953
      %v955 = vpop.f32.mrb[0].mxu0
      %v956 = vpop.f32.mrb[0].mxu0
      %v957 = vadd.f32 %v796, %v956
      %v958 = vpop.f32.mrb[0].mxu0
      %959 = vmatprep.mubr.bf16.mxu0 0
      %960 = vmatmul.mubr.bf16.gmra.mrb[0].mxu0 %v679
      %v961 = vpop.f32.mrb[0].mxu0
      %v962 = vadd.f32 %v801, %v961
      %v963 = vpop.f32.mrb[0].mxu0
      %v964 = vpop.f32.mrb[0].mxu0
      %v965 = vadd.f32 %v804, %v964
      %v966 = vpop.f32.mrb[0].mxu0
      %967 = vmatprep.mubr.bf16.mxu0 0
      %968 = vmatmul.mubr.bf16.gmra.mrb[0].mxu0 %v682
      %v969 = vpop.f32.mrb[0].mxu0
      %v970 = vadd.f32 %v809, %v969
      %v971 = vpop.f32.mrb[0].mxu0
      %v972 = vpop.f32.mrb[0].mxu0
      %v973 = vadd.f32 %v812, %v972
      %v974 = vpop.f32.mrb[0].mxu0
      %975 = vmatprep.mubr.bf16.mxu0 0
      %976 = vmatmul.mubr.bf16.gmra.mrb[0].mxu0 %v685
      %v977 = vpop.f32.mrb[0].mxu0
      %v978 = vadd.f32 %v817, %v977
      %v979 = vpop.f32.mrb[0].mxu0
      %v980 = vpop.f32.mrb[0].mxu0
      %v981 = vadd.f32 %v820, %v980
      %v982 = vpop.f32.mrb[0].mxu0
      %983 = vmatprep.mubr.bf16.mxu0 0
      %984 = vmatmul.mubr.bf16.gmra.mrb[0].mxu0 %v688
      %v985 = vpop.f32.mrb[0].mxu0
      %v986 = vadd.f32 %v825, %v985
      %v987 = vpop.f32.mrb[0].mxu0
      %v988 = vpop.f32.mrb[0].mxu0
      %v989 = vadd.f32 %v828, %v988
      %v990 = vpop.f32.mrb[0].mxu0
      %991 = vmatprep.mubr.bf16.mxu0 0
      %992 = vmatmul.mubr.bf16.gmra.mrb[0].mxu0 %v691
      %v993 = vpop.f32.mrb[0].mxu0
      %v994 = vadd.f32 %v833, %v993
      %v995 = vpop.f32.mrb[0].mxu0
      %v996 = vpop.f32.mrb[0].mxu0
      %v997 = vadd.f32 %v836, %v996
      %v998 = vpop.f32.mrb[0].mxu0
      %999 = vmatprep.mubr.bf16.mxu0 0
      %1000 = vmatmul.mubr.bf16.gmra.mrb[0].mxu0 %v694
      %v1001 = vpop.f32.mrb[0].mxu0
      %v1002 = vadd.f32 %v841, %v1001
      %v1003 = vpop.f32.mrb[0].mxu0
      %v1004 = vpop.f32.mrb[0].mxu0
      %v1005 = vadd.f32 %v844, %v1004
      %v1006 = vpop.f32.mrb[0].mxu0
      %1007 = vmatprep.mubr.bf16.mxu0 0
      %1008 = vmatmul.mubr.bf16.gmra.mrb[0].mxu0 %v697
      %v1009 = vpop.f32.mrb[0].mxu0
      %v1010 = vadd.f32 %v849, %v1009
      %v1011 = vpop.f32.mrb[0].mxu0
      %v1012 = vpop.f32.mrb[0].mxu0
      %v1013 = vadd.f32 %v852, %v1012
      %v1014 = vpop.f32.mrb[0].mxu0
      %1015 = vmatprep.mubr.bf16.mxu0 0
      %1016 = vmatmul.mubr.bf16.gmra.mrb[0].mxu0 %v700
      %v1017 = vpop.f32.mrb[0].mxu0
      %v1018 = vadd.f32 %v857, %v1017
      %v1019 = vpop.f32.mrb[0].mxu0
      %v1020 = vpop.f32.mrb[0].mxu0
      %v1021 = vadd.f32 %v860, %v1020
      %v1022 = vpop.f32.mrb[0].mxu0
      %1023 = vdwg.mxu0
      %v1024 = vmax.f32 %v898, 0.0
      %v1025 = vmax.f32 %v901, 0.0
      %v1026 = vmax.f32 %v906, 0.0
      %v1027 = vmax.f32 %v909, 0.0
      %v1028 = vmax.f32 %v914, 0.0
      %v1029 = vmax.f32 %v917, 0.0
      %v1030 = vmax.f32 %v922, 0.0
      %v1031 = vmax.f32 %v925, 0.0
      %v1032 = vmax.f32 %v930, 0.0
      %v1033 = vmax.f32 %v933, 0.0
      %v1034 = vmax.f32 %v938, 0.0
      %v1035 = vmax.f32 %v941, 0.0
      %v1036 = vmax.f32 %v946, 0.0
      %v1037 = vmax.f32 %v949, 0.0
      %v1038 = vmax.f32 %v954, 0.0
      %v1039 = vmax.f32 %v957, 0.0
      %v1040 = vmax.f32 %v962, 0.0
      %v1041 = vmax.f32 %v965, 0.0
      %v1042 = vmax.f32 %v970, 0.0
      %v1043 = vmax.f32 %v973, 0.0
      %v1044 = vmax.f32 %v978, 0.0
      %v1045 = vmax.f32 %v981, 0.0
      %v1046 = vmax.f32 %v986, 0.0
      %v1047 = vmax.f32 %v989, 0.0
      %v1048 = vmax.f32 %v994, 0.0
      %v1049 = vmax.f32 %v997, 0.0
      %v1050 = vmax.f32 %v1002, 0.0
      %v1051 = vmax.f32 %v1005, 0.0
      %v1052 = vmax.f32 %v1010, 0.0
      %v1053 = vmax.f32 %v1013, 0.0
      %v1054 = vmax.f32 %v1018, 0.0
      %v1055 = vmax.f32 %v1021, 0.0
      %v1056 = vld [vmem:[%s2] sm:$0x1]
      %v1058 = vlaneseq
      %v1059 = vshrl.u32 %v1058, 7
      %v1060 = vsub.s32 0, %v1059
      %v1061 = vrot.slane %v1056, %v1060
      %v1063 = vmul.f32 %v1024, %v1061
      %v1064 = vmul.f32 %v1025, %v1061
      %v1065 = vmul.f32 %v1026, %v1061
      %v1066 = vmul.f32 %v1027, %v1061
      %v1067 = vmul.f32 %v1028, %v1061
      %v1068 = vmul.f32 %v1029, %v1061
      %v1069 = vmul.f32 %v1030, %v1061
      %v1070 = vmul.f32 %v1031, %v1061
      %v1071 = vmul.f32 %v1032, %v1061
      %v1072 = vmul.f32 %v1033, %v1061
      %v1073 = vmul.f32 %v1034, %v1061
      %v1074 = vmul.f32 %v1035, %v1061
      %v1075 = vmul.f32 %v1036, %v1061
      %v1076 = vmul.f32 %v1037, %v1061
      %v1077 = vmul.f32 %v1038, %v1061
      %v1078 = vmul.f32 %v1039, %v1061
      %v1079 = vmul.f32 %v1040, %v1061
      %v1080 = vmul.f32 %v1041, %v1061
      %v1081 = vmul.f32 %v1042, %v1061
      %v1082 = vmul.f32 %v1043, %v1061
      %v1083 = vmul.f32 %v1044, %v1061
      %v1084 = vmul.f32 %v1045, %v1061
      %v1085 = vmul.f32 %v1046, %v1061
      %v1086 = vmul.f32 %v1047, %v1061
      %v1087 = vmul.f32 %v1048, %v1061
      %v1088 = vmul.f32 %v1049, %v1061
      %v1089 = vmul.f32 %v1050, %v1061
      %v1090 = vmul.f32 %v1051, %v1061
      %v1091 = vmul.f32 %v1052, %v1061
      %v1092 = vmul.f32 %v1053, %v1061
      %v1093 = vmul.f32 %v1054, %v1061
      %v1094 = vmul.f32 %v1055, %v1061
      %v1095 = vld [vmem:[%s3] sm:$0x1]
      %v1097 = vlaneseq
      %v1098 = vshrl.u32 %v1097, 7
      %v1099 = vsub.s32 0, %v1098
      %v1100 = vrot.slane %v1095, %v1099
      %v1102 = vadd.f32 %v1063, %v1100
      %v1103 = vadd.f32 %v1064, %v1100
      %v1104 = vadd.f32 %v1065, %v1100
      %v1105 = vadd.f32 %v1066, %v1100
      %v1106 = vadd.f32 %v1067, %v1100
      %v1107 = vadd.f32 %v1068, %v1100
      %v1108 = vadd.f32 %v1069, %v1100
      %v1109 = vadd.f32 %v1070, %v1100
      %v1110 = vadd.f32 %v1071, %v1100
      %v1111 = vadd.f32 %v1072, %v1100
      %v1112 = vadd.f32 %v1073, %v1100
      %v1113 = vadd.f32 %v1074, %v1100
      %v1114 = vadd.f32 %v1075, %v1100
      %v1115 = vadd.f32 %v1076, %v1100
      %v1116 = vadd.f32 %v1077, %v1100
      %v1117 = vadd.f32 %v1078, %v1100
      %v1118 = vadd.f32 %v1079, %v1100
      %v1119 = vadd.f32 %v1080, %v1100
      %v1120 = vadd.f32 %v1081, %v1100
      %v1121 = vadd.f32 %v1082, %v1100
      %v1122 = vadd.f32 %v1083, %v1100
      %v1123 = vadd.f32 %v1084, %v1100
      %v1124 = vadd.f32 %v1085, %v1100
      %v1125 = vadd.f32 %v1086, %v1100
      %v1126 = vadd.f32 %v1087, %v1100
      %v1127 = vadd.f32 %v1088, %v1100
      %v1128 = vadd.f32 %v1089, %v1100
      %v1129 = vadd.f32 %v1090, %v1100
      %v1130 = vadd.f32 %v1091, %v1100
      %v1131 = vadd.f32 %v1092, %v1100
      %v1132 = vadd.f32 %v1093, %v1100
      %v1133 = vadd.f32 %v1094, %v1100
      %vm1134 = vcmask 523264
      %1135 = vst.msk [vmem:[%s202] sm:$0xff] %vm1134, %v1102
      %1136 = vst.msk [vmem:[%s202 + $0x8] sm:$0xff] %vm1134, %v1103
      %1137 = vst.msk [vmem:[%s202 + $0x10] sm:$0xff] %vm1134, %v1104
      %1138 = vst.msk [vmem:[%s202 + $0x18] sm:$0xff] %vm1134, %v1105
      %1139 = vst.msk [vmem:[%s202 + $0x20] sm:$0xff] %vm1134, %v1106
      %1140 = vst.msk [vmem:[%s202 + $0x28] sm:$0xff] %vm1134, %v1107
      %1141 = vst.msk [vmem:[%s202 + $0x30] sm:$0xff] %vm1134, %v1108
      %1142 = vst.msk [vmem:[%s202 + $0x38] sm:$0xff] %vm1134, %v1109
      %1143 = vst.msk [vmem:[%s202 + $0x40] sm:$0xff] %vm1134, %v1110
      %1144 = vst.msk [vmem:[%s202 + $0x48] sm:$0xff] %vm1134, %v1111
      %1145 = vst.msk [vmem:[%s202 + $0x50] sm:$0xff] %vm1134, %v1112
      %1146 = vst.msk [vmem:[%s202 + $0x58] sm:$0xff] %vm1134, %v1113
      %1147 = vst.msk [vmem:[%s202 + $0x60] sm:$0xff] %vm1134, %v1114
      %1148 = vst.msk [vmem:[%s202 + $0x68] sm:$0xff] %vm1134, %v1115
      %1149 = vst.msk [vmem:[%s202 + $0x70] sm:$0xff] %vm1134, %v1116
      %1150 = vst.msk [vmem:[%s202 + $0x78] sm:$0xff] %vm1134, %v1117
      %1151 = vst.msk [vmem:[%s202 + $0x80] sm:$0xff] %vm1134, %v1118
      %1152 = vst.msk [vmem:[%s202 + $0x88] sm:$0xff] %vm1134, %v1119
      %1153 = vst.msk [vmem:[%s202 + $0x90] sm:$0xff] %vm1134, %v1120
      %1154 = vst.msk [vmem:[%s202 + $0x98] sm:$0xff] %vm1134, %v1121
      %1155 = vst.msk [vmem:[%s202 + $0xa0] sm:$0xff] %vm1134, %v1122
      %1156 = vst.msk [vmem:[%s202 + $0xa8] sm:$0xff] %vm1134, %v1123
      %1157 = vst.msk [vmem:[%s202 + $0xb0] sm:$0xff] %vm1134, %v1124
      %1158 = vst.msk [vmem:[%s202 + $0xb8] sm:$0xff] %vm1134, %v1125
      %1159 = vst.msk [vmem:[%s202 + $0xc0] sm:$0xff] %vm1134, %v1126
      %1160 = vst.msk [vmem:[%s202 + $0xc8] sm:$0xff] %vm1134, %v1127
      %1161 = vst.msk [vmem:[%s202 + $0xd0] sm:$0xff] %vm1134, %v1128
      %1162 = vst.msk [vmem:[%s202 + $0xd8] sm:$0xff] %vm1134, %v1129
      %1163 = vst.msk [vmem:[%s202 + $0xe0] sm:$0xff] %vm1134, %v1130
      %1164 = vst.msk [vmem:[%s202 + $0xe8] sm:$0xff] %vm1134, %v1131
      %1165 = vst.msk [vmem:[%s202 + $0xf0] sm:$0xff] %vm1134, %v1132
      %1166 = vst.msk [vmem:[%s202 + $0xf8] sm:$0xff] %vm1134, %v1133
      %s1167 = smul.u32 32, %s15
      %p1168 = scmp.lt.s32.totalorder %s1167, 63
      %s1169 = scalar_select %p1168, %s1167, 63
      %s1170 = smul.addr %s1169, 8
      %s1171 = scalar_lea.vmem %s4, %s1170
      // Predicated region
      $region37: #{net_forward.19} parent=35 // pred_check
        %p1172 = pneg %p122
      $region38: #{net_forward.19} parent=35 // pred_check_branch
        %1174 = sbr.rel (%p1172) target = $region40
      $region39: #{net_forward.19} parent=35 // pred_region
        %s1175 = smul.u32 32, %s15
      $region40: #{net_forward.19} parent=35 // pred_fallthru
        _
    $region36: #{net_forward.19} parent=5 // pred_fallthru
      _
    %p1176 = scmp.le.s32.totalorder 2, %s10
    // Predicated region
    $region41: #{net_forward.19} parent=5 // pred_check
      %p1177 = pneg %p1176
    $region42: #{net_forward.19} parent=5 // pred_check_branch
      %1179 = sbr.rel (%p1177) target = $region44
    $region43: #{net_forward.19} parent=5 // pred_region
      %s1180 = ssub.s32 %s10, 2
      // Predicated region
      $region45: #{net_forward.19} parent=43 // pred_check
        %p1181 = pneg %p128
      $region46: #{net_forward.19} parent=43 // pred_check_branch
        %1183 = sbr.rel (%p1181) target = $region48
      $region47: #{net_forward.19} parent=43 // pred_region
        %s1184 = smul.u32 32, %s16
        %p1185 = scmp.lt.s32.totalorder %s1184, 63
        %s1186 = scalar_select %p1185, %s1184, 63
        %s1187 = smul.addr %s1186, 8
        %s1188 = scalar_lea.vmem %s4, %s1187
      $region48: #{net_forward.19} parent=43 // pred_fallthru
        _
    $region44: #{net_forward.19} parent=5 // pred_fallthru
      _
  $region6: #{net_forward.19} parent=0 // loop_footer
    %s14 = sadd.s32 1, %s10
  $region7: #{net_forward.19} parent=0 // loop_footer_branch
    %9 = sbr.rel target = $region3
  $region8: #{net_forward.19} parent=0 // loop_exit
    _

// kernel: net_forward.20
$region0: #{net_forward.20}
  #allocation0 [shape = 'u32[]', space=smem, size = 0x4, offset = 0x4, fixed_abs, tag = 'smem constant byte address 0x4 - core index']
  #allocation1 [shape = 'u32[144,128]{1,0:T(1,128)}', space=vmem, size = 0x12000, scoped, tag = 'internal scratch']
  %s0 = inlined_call_operand.vmem [shape: f32[3,3], index: 0, kind: input, shape index: {}]
  %s1 = inlined_call_operand.vmem [shape: f32[2,18,18,64], index: 1, kind: input, shape index: {}]
  %s2 = inlined_call_operand.vmem [shape: f32[2,16,16,64], index: 2, kind: output, shape index: {}]
  %s3 = sld [smem:[#allocation0]]
  $region22: #{net_forward.20} parent=0
    _
  %s5 = ssub.s32 1, %s3
  %s6 = scalar_select 0, %s5, %s3
  $region1: #{net_forward.20} parent=0
    #allocation2 [shape = 'u8[2048]{0}', space=smem, size = 0x800, scoped, tag = 'input window, operand 0, single buffered']
    #allocation3 [shape = 's32[1]{0}', space=sflag, size = 0x4, scoped, tag = 'scoped memory for net_forward.20']
    %7 = vsyncpa [#allocation3], 0
    // Predicated region
    $region2: #{net_forward.20} parent=1 // pred_check
      _
    $region3: #{net_forward.20} parent=1 // pred_check_branch
      %9 = sbr.rel (0) target = $region5
    $region4: #{net_forward.20} parent=1 // pred_region
      %s11 = ssub.s32 64, 64
      %12 = vsyncadd [#allocation3], %s11
      %s14 = sshll.u32 %s0, 4
      %s15 = int_to_ptr.vmem [resolvable:$true] %s14
      %17 = dma.vmem_to_smem %s15, 64, [#allocation2], [#allocation3]
    $region5: #{net_forward.20} parent=1 // pred_fallthru
      _
    // Predicated region
    $region6: #{net_forward.20} parent=1 // pred_check
      _
    $region7: #{net_forward.20} parent=1 // pred_check_branch
      %19 = sbr.rel (0) target = $region9
    $region8: #{net_forward.20} parent=1 // pred_region
      _
    $region9: #{net_forward.20} parent=1 // pred_fallthru
      _
    // Predicated region
    $region10: #{net_forward.20} parent=1 // pred_check
      _
    $region11: #{net_forward.20} parent=1 // pred_check_branch
      %21 = sbr.rel (0) target = $region13
    $region12: #{net_forward.20} parent=1 // pred_region
      %22 = dma.done [#allocation3], 64
    $region13: #{net_forward.20} parent=1 // pred_fallthru
      _
    %23 = sfence
    %v24 = vld [vmem:[%s1] sm:$0xff]
    %v25 = vld [vmem:[%s1 + $0x8] sm:$0xff]
    %v26 = vld [vmem:[%s1 + $0x10] sm:$0x3]
    %v27 = vld [vmem:[%s1 + $0x18] sm:$0xff]
    %v28 = vld [vmem:[%s1 + $0x20] sm:$0xff]
    %v29 = vld [vmem:[%s1 + $0x28] sm:$0x3]
    %v30 = vld [vmem:[%s1 + $0x30] sm:$0xff]
    %v31 = vld [vmem:[%s1 + $0x38] sm:$0xff]
    %v32 = vld [vmem:[%s1 + $0x40] sm:$0x3]
    %v33 = vld [vmem:[%s1 + $0x48] sm:$0xff]
    %v34 = vld [vmem:[%s1 + $0x50] sm:$0xff]
    %v35 = vld [vmem:[%s1 + $0x58] sm:$0x3]
    %v36 = vld [vmem:[%s1 + $0x60] sm:$0xff]
    %v37 = vld [vmem:[%s1 + $0x68] sm:$0xff]
    %v38 = vld [vmem:[%s1 + $0x70] sm:$0x3]
    %v39 = vld [vmem:[%s1 + $0x78] sm:$0xff]
    %v40 = vld [vmem:[%s1 + $0x80] sm:$0xff]
    %v41 = vld [vmem:[%s1 + $0x88] sm:$0x3]
    %v42 = vld [vmem:[%s1 + $0x90] sm:$0xff]
    %v43 = vld [vmem:[%s1 + $0x98] sm:$0xff]
    %v44 = vld [vmem:[%s1 + $0xa0] sm:$0x3]
    %v45 = vld [vmem:[%s1 + $0xa8] sm:$0xff]
    %v46 = vld [vmem:[%s1 + $0xb0] sm:$0xff]
    %v47 = vld [vmem:[%s1 + $0xb8] sm:$0x3]
    %v48 = vld [vmem:[%s1 + $0xc0] sm:$0xff]
    %v49 = vld [vmem:[%s1 + $0xc8] sm:$0xff]
    %v50 = vld [vmem:[%s1 + $0xd0] sm:$0x3]
    %v51 = vld [vmem:[%s1 + $0xd8] sm:$0xff]
    %v52 = vld [vmem:[%s1 + $0xe0] sm:$0xff]
    %v53 = vld [vmem:[%s1 + $0xe8] sm:$0x3]
    %v54 = vld [vmem:[%s1 + $0xf0] sm:$0xff]
    %v55 = vld [vmem:[%s1 + $0xf8] sm:$0xff]
    %v56 = vld [vmem:[%s1 + $0x100] sm:$0x3]
    %v57 = vld [vmem:[%s1 + $0x108] sm:$0xff]
    %v58 = vld [vmem:[%s1 + $0x110] sm:$0xff]
    %v59 = vld [vmem:[%s1 + $0x118] sm:$0x3]
    %v60 = vld [vmem:[%s1 + $0x120] sm:$0xff]
    %v61 = vld [vmem:[%s1 + $0x128] sm:$0xff]
    %v62 = vld [vmem:[%s1 + $0x130] sm:$0x3]
    %v63 = vld [vmem:[%s1 + $0x138] sm:$0xff]
    %v64 = vld [vmem:[%s1 + $0x140] sm:$0xff]
    %v65 = vld [vmem:[%s1 + $0x148] sm:$0x3]
    %v66 = vld [vmem:[%s1 + $0x150] sm:$0xff]
    %v67 = vld [vmem:[%s1 + $0x158] sm:$0xff]
    %v68 = vld [vmem:[%s1 + $0x160] sm:$0x3]
    %v69 = vld [vmem:[%s1 + $0x168] sm:$0xff]
    %v70 = vld [vmem:[%s1 + $0x170] sm:$0xff]
    %v71 = vld [vmem:[%s1 + $0x178] sm:$0x3]
    %v72 = vld [vmem:[%s1 + $0x180] sm:$0xff]
    %v73 = vld [vmem:[%s1 + $0x188] sm:$0xff]
    %v74 = vld [vmem:[%s1 + $0x190] sm:$0x3]
    %v75 = vld [vmem:[%s1 + $0x198] sm:$0xff]
    %v76 = vld [vmem:[%s1 + $0x1a0] sm:$0xff]
    %v77 = vld [vmem:[%s1 + $0x1a8] sm:$0x3]
    %v78 = vld [vmem:[%s1 + $0x1b0] sm:$0xff]
    %v79 = vld [vmem:[%s1 + $0x1b8] sm:$0xff]
    %v80 = vld [vmem:[%s1 + $0x1c0] sm:$0x3]
    %v81 = vld [vmem:[%s1 + $0x1c8] sm:$0xff]
    %v82 = vld [vmem:[%s1 + $0x1d0] sm:$0xff]
    %v83 = vld [vmem:[%s1 + $0x1d8] sm:$0x3]
    %v84 = vld [vmem:[%s1 + $0x1e0] sm:$0xff]
    %v85 = vld [vmem:[%s1 + $0x1e8] sm:$0xff]
    %v86 = vld [vmem:[%s1 + $0x1f0] sm:$0x3]
    %v87 = vld [vmem:[%s1 + $0x1f8] sm:$0xff]
    %v88 = vld [vmem:[%s1 + $0x200] sm:$0xff]
    %v89 = vld [vmem:[%s1 + $0x208] sm:$0x3]
    %v90 = vld [vmem:[%s1 + $0x210] sm:$0xff]
    %v91 = vld [vmem:[%s1 + $0x218] sm:$0xff]
    %v92 = vld [vmem:[%s1 + $0x220] sm:$0x3]
    %v93 = vld [vmem:[%s1 + $0x228] sm:$0xff]
    %v94 = vld [vmem:[%s1 + $0x230] sm:$0xff]
    %v95 = vld [vmem:[%s1 + $0x238] sm:$0x3]
    %v96 = vld [vmem:[%s1 + $0x240] sm:$0xff]
    %v97 = vld [vmem:[%s1 + $0x248] sm:$0xff]
    %v98 = vld [vmem:[%s1 + $0x250] sm:$0x3]
    %v99 = vld [vmem:[%s1 + $0x258] sm:$0xff]
    %v100 = vld [vmem:[%s1 + $0x260] sm:$0xff]
    %v101 = vld [vmem:[%s1 + $0x268] sm:$0x3]
    %v102 = vld [vmem:[%s1 + $0x270] sm:$0xff]
    %v103 = vld [vmem:[%s1 + $0x278] sm:$0xff]
    %v104 = vld [vmem:[%s1 + $0x280] sm:$0x3]
    %v105 = vld [vmem:[%s1 + $0x288] sm:$0xff]
    %v106 = vld [vmem:[%s1 + $0x290] sm:$0xff]
    %v107 = vld [vmem:[%s1 + $0x298] sm:$0x3]
    %v108 = vld [vmem:[%s1 + $0x2a0] sm:$0xff]
    %v109 = vld [vmem:[%s1 + $0x2a8] sm:$0xff]
    %v110 = vld [vmem:[%s1 + $0x2b0] sm:$0x3]
    %v111 = vld [vmem:[%s1 + $0x2b8] sm:$0xff]
    %v112 = vld [vmem:[%s1 + $0x2c0] sm:$0xff]
    %v113 = vld [vmem:[%s1 + $0x2c8] sm:$0x3]
    %v114 = vld [vmem:[%s1 + $0x2d0] sm:$0xff]
    %v115 = vld [vmem:[%s1 + $0x2d8] sm:$0xff]
    %v116 = vld [vmem:[%s1 + $0x2e0] sm:$0x3]
    %v117 = vld [vmem:[%s1 + $0x2e8] sm:$0xff]
    %v118 = vld [vmem:[%s1 + $0x2f0] sm:$0xff]
    %v119 = vld [vmem:[%s1 + $0x2f8] sm:$0x3]
    %v120 = vld [vmem:[%s1 + $0x300] sm:$0xff]
    %v121 = vld [vmem:[%s1 + $0x308] sm:$0xff]
    %v122 = vld [vmem:[%s1 + $0x310] sm:$0x3]
    %v123 = vld [vmem:[%s1 + $0x318] sm:$0xff]
    %v124 = vld [vmem:[%s1 + $0x320] sm:$0xff]
    %v125 = vld [vmem:[%s1 + $0x328] sm:$0x3]
    %v126 = vld [vmem:[%s1 + $0x330] sm:$0xff]
    %v127 = vld [vmem:[%s1 + $0x338] sm:$0xff]
    %v128 = vld [vmem:[%s1 + $0x340] sm:$0x3]
    %v129 = vld [vmem:[%s1 + $0x348] sm:$0xff]
    %v130 = vld [vmem:[%s1 + $0x350] sm:$0xff]
    %v131 = vld [vmem:[%s1 + $0x358] sm:$0x3]
    %s132 = sld [smem:[#allocation2]]
    %v133 = vstv %s132
    %v134 = vmul.f32 %v133, %v24
    %v135 = vmul.f32 %v133, %v25
    %v136 = vmul.f32 %v133, %v27
    %v137 = vmul.f32 %v133, %v28
    %v138 = vmul.f32 %v133, %v30
    %v139 = vmul.f32 %v133, %v31
    %v140 = vmul.f32 %v133, %v33
    %v141 = vmul.f32 %v133, %v34
    %v142 = vmul.f32 %v133, %v36
    %v143 = vmul.f32 %v133, %v37
    %v144 = vmul.f32 %v133, %v39
    %v145 = vmul.f32 %v133, %v40
    %v146 = vmul.f32 %v133, %v42
    %v147 = vmul.f32 %v133, %v43
    %v148 = vmul.f32 %v133, %v45
    %v149 = vmul.f32 %v133, %v46
    %v150 = vmul.f32 %v133, %v48
    %v151 = vmul.f32 %v133, %v49
    %v152 = vmul.f32 %v133, %v51
    %v153 = vmul.f32 %v133, %v52
    %v154 = vmul.f32 %v133, %v54
    %v155 = vmul.f32 %v133, %v55
    %v156 = vmul.f32 %v133, %v57
    %v157 = vmul.f32 %v133, %v58
    %v158 = vmul.f32 %v133, %v60
    %v159 = vmul.f32 %v133, %v61
    %v160 = vmul.f32 %v133, %v63
    %v161 = vmul.f32 %v133, %v64
    %v162 = vmul.f32 %v133, %v66
    %v163 = vmul.f32 %v133, %v67
    %v164 = vmul.f32 %v133, %v69
    %v165 = vmul.f32 %v133, %v70
    %v166 = vmul.f32 %v133, %v78
    %v167 = vmul.f32 %v133, %v79
    %v168 = vmul.f32 %v133, %v81
    %v169 = vmul.f32 %v133, %v82
    %v170 = vmul.f32 %v133, %v84
    %v171 = vmul.f32 %v133, %v85
    %v172 = vmul.f32 %v133, %v87
    %v173 = vmul.f32 %v133, %v88
    %v174 = vmul.f32 %v133, %v90
    %v175 = vmul.f32 %v133, %v91
    %v176 = vmul.f32 %v133, %v93
    %v177 = vmul.f32 %v133, %v94
    %v178 = vmul.f32 %v133, %v96
    %v179 = vmul.f32 %v133, %v97
    %v180 = vmul.f32 %v133, %v99
    %v181 = vmul.f32 %v133, %v100
    %v182 = vmul.f32 %v133, %v102
    %v183 = vmul.f32 %v133, %v103
    %v184 = vmul.f32 %v133, %v105
    %v185 = vmul.f32 %v133, %v106
    %v186 = vmul.f32 %v133, %v108
    %v187 = vmul.f32 %v133, %v109
    %v188 = vmul.f32 %v133, %v111
    %v189 = vmul.f32 %v133, %v112
    %v190 = vmul.f32 %v133, %v114
    %v191 = vmul.f32 %v133, %v115
    %v192 = vmul.f32 %v133, %v117
    %v193 = vmul.f32 %v133, %v118
    %v194 = vmul.f32 %v133, %v120
    %v195 = vmul.f32 %v133, %v121
    %v196 = vmul.f32 %v133, %v123
    %v197 = vmul.f32 %v133, %v124
    %v198 = vadd.f32 %v134, 0.0
    %v199 = vadd.f32 %v135, 0.0
    %v200 = vadd.f32 %v136, 0.0
    %v201 = vadd.f32 %v137, 0.0
    %v202 = vadd.f32 %v138, 0.0
    %v203 = vadd.f32 %v139, 0.0
    %v204 = vadd.f32 %v140, 0.0
    %v205 = vadd.f32 %v141, 0.0
    %v206 = vadd.f32 %v142, 0.0
    %v207 = vadd.f32 %v143, 0.0
    %v208 = vadd.f32 %v144, 0.0
    %v209 = vadd.f32 %v145, 0.0
    %v210 = vadd.f32 %v146, 0.0
    %v211 = vadd.f32 %v147, 0.0
    %v212 = vadd.f32 %v148, 0.0
    %v213 = vadd.f32 %v149, 0.0
    %v214 = vadd.f32 %v150, 0.0
    %v215 = vadd.f32 %v151, 0.0
    %v216 = vadd.f32 %v152, 0.0
    %v217 = vadd.f32 %v153, 0.0
    %v218 = vadd.f32 %v154, 0.0
    %v219 = vadd.f32 %v155, 0.0
    %v220 = vadd.f32 %v156, 0.0
    %v221 = vadd.f32 %v157, 0.0
    %v222 = vadd.f32 %v158, 0.0
    %v223 = vadd.f32 %v159, 0.0
    %v224 = vadd.f32 %v160, 0.0
    %v225 = vadd.f32 %v161, 0.0
    %v226 = vadd.f32 %v162, 0.0
    %v227 = vadd.f32 %v163, 0.0
    %v228 = vadd.f32 %v164, 0.0
    %v229 = vadd.f32 %v165, 0.0
    %v230 = vadd.f32 %v166, 0.0
    %v231 = vadd.f32 %v167, 0.0
    %v232 = vadd.f32 %v168, 0.0
    %v233 = vadd.f32 %v169, 0.0
    %v234 = vadd.f32 %v170, 0.0
    %v235 = vadd.f32 %v171, 0.0
    %v236 = vadd.f32 %v172, 0.0
    %v237 = vadd.f32 %v173, 0.0
    %v238 = vadd.f32 %v174, 0.0
    %v239 = vadd.f32 %v175, 0.0
    %v240 = vadd.f32 %v176, 0.0
    %v241 = vadd.f32 %v177, 0.0
    %v242 = vadd.f32 %v178, 0.0
    %v243 = vadd.f32 %v179, 0.0
    %v244 = vadd.f32 %v180, 0.0
    %v245 = vadd.f32 %v181, 0.0
    %v246 = vadd.f32 %v182, 0.0
    %v247 = vadd.f32 %v183, 0.0
    %v248 = vadd.f32 %v184, 0.0
    %v249 = vadd.f32 %v185, 0.0
    %v250 = vadd.f32 %v186, 0.0
    %v251 = vadd.f32 %v187, 0.0
    %v252 = vadd.f32 %v188, 0.0
    %v253 = vadd.f32 %v189, 0.0
    %v254 = vadd.f32 %v190, 0.0
    %v255 = vadd.f32 %v191, 0.0
    %v256 = vadd.f32 %v192, 0.0
    %v257 = vadd.f32 %v193, 0.0
    %v258 = vadd.f32 %v194, 0.0
    %v259 = vadd.f32 %v195, 0.0
    %v260 = vadd.f32 %v196, 0.0
    %v261 = vadd.f32 %v197, 0.0
    %s262 = sld [smem:[#allocation2 + $0x1]]
    %v263 = vstv %s262
    %v264 = vmul.f32 %v263, %v24
    %v265 = vmul.f32 %v263, %v25
    %v266 = vmul.f32 %v263, %v26
    %v267 = vmul.f32 %v263, %v27
    %v268 = vmul.f32 %v263, %v28
    %v269 = vmul.f32 %v263, %v29
    %v270 = vmul.f32 %v263, %v30
    %v271 = vmul.f32 %v263, %v31
    %v272 = vmul.f32 %v263, %v32
    %v273 = vmul.f32 %v263, %v33
    %v274 = vmul.f32 %v263, %v34
    %v275 = vmul.f32 %v263, %v35
    %v276 = vmul.f32 %v263, %v36
    %v277 = vmul.f32 %v263, %v37
    %v278 = vmul.f32 %v263, %v38
    %v279 = vmul.f32 %v263, %v39
    %v280 = vmul.f32 %v263, %v40
    %v281 = vmul.f32 %v263, %v41
    %v282 = vmul.f32 %v263, %v42
    %v283 = vmul.f32 %v263, %v43
    %v284 = vmul.f32 %v263, %v44
    %v285 = vmul.f32 %v263, %v45
    %v286 = vmul.f32 %v263, %v46
    %v287 = vmul.f32 %v263, %v47
    %v288 = vmul.f32 %v263, %v48
    %v289 = vmul.f32 %v263, %v49
    %v290 = vmul.f32 %v263, %v50
    %v291 = vmul.f32 %v263, %v51
    %v292 = vmul.f32 %v263, %v52
    %v293 = vmul.f32 %v263, %v53
    %v294 = vmul.f32 %v263, %v54
    %v295 = vmul.f32 %v263, %v55
    %v296 = vmul.f32 %v263, %v56
    %v297 = vmul.f32 %v263, %v57
    %v298 = vmul.f32 %v263, %v58
    %v299 = vmul.f32 %v263, %v59
    %v300 = vmul.f32 %v263, %v60
    %v301 = vmul.f32 %v263, %v61
    %v302 = vmul.f32 %v263, %v62
    %v303 = vmul.f32 %v263, %v63
    %v304 = vmul.f32 %v263, %v64
    %v305 = vmul.f32 %v263, %v65
    %v306 = vmul.f32 %v263, %v66
    %v307 = vmul.f32 %v263, %v67
    %v308 = vmul.f32 %v263, %v68
    %v309 = vmul.f32 %v263, %v69
    %v310 = vmul.f32 %v263, %v70
    %v311 = vmul.f32 %v263, %v71
    %v312 = vmul.f32 %v263, %v78
    %v313 = vmul.f32 %v263, %v79
    %v314 = vmul.f32 %v263, %v80
    %v315 = vmul.f32 %v263, %v81
    %v316 = vmul.f32 %v263, %v82
    %v317 = vmul.f32 %v263, %v83
    %v318 = vmul.f32 %v263, %v84
    %v319 = vmul.f32 %v263, %v85
    %v320 = vmul.f32 %v263, %v86
    %v321 = vmul.f32 %v263, %v87
    %v322 = vmul.f32 %v263, %v88
    %v323 = vmul.f32 %v263, %v89
    %v324 = vmul.f32 %v263, %v90
    %v325 = vmul.f32 %v263, %v91
    %v326 = vmul.f32 %v263, %v92
    %v327 = vmul.f32 %v263, %v93
    %v328 = vmul.f32 %v263, %v94
    %v329 = vmul.f32 %v263, %v95
    %v330 = vmul.f32 %v263, %v96
    %v331 = vmul.f32 %v263, %v97
    %v332 = vmul.f32 %v263, %v98
    %v333 = vmul.f32 %v263, %v99
    %v334 = vmul.f32 %v263, %v100
    %v335 = vmul.f32 %v263, %v101
    %v336 = vmul.f32 %v263, %v102
    %v337 = vmul.f32 %v263, %v103
    %v338 = vmul.f32 %v263, %v104
    %v339 = vmul.f32 %v263, %v105
    %v340 = vmul.f32 %v263, %v106
    %v341 = vmul.f32 %v263, %v107
    %v342 = vmul.f32 %v263, %v108
    %v343 = vmul.f32 %v263, %v109
    %v344 = vmul.f32 %v263, %v110
    %v345 = vmul.f32 %v263, %v111
    %v346 = vmul.f32 %v263, %v112
    %v347 = vmul.f32 %v263, %v113
    %v348 = vmul.f32 %v263, %v114
    %v349 = vmul.f32 %v263, %v115
    %v350 = vmul.f32 %v263, %v116
    %v351 = vmul.f32 %v263, %v117
    %v352 = vmul.f32 %v263, %v118
    %v353 = vmul.f32 %v263, %v119
    %v354 = vmul.f32 %v263, %v120
    %v355 = vmul.f32 %v263, %v121
    %v356 = vmul.f32 %v263, %v122
    %v357 = vmul.f32 %v263, %v123
    %v358 = vmul.f32 %v263, %v124
    %v359 = vmul.f32 %v263, %v125
    %vm456 = vcmask 1046528
    %v457 = vrot.slane %v264, 1
    %v458 = vrot.slane %v265, 1
    %v459 = vsel %vm456, %v457, %v458
    %v460 = vrot.slane %v266, 1
    %v461 = vsel %vm456, %v458, %v460
    %v462 = vrot.slane %v267, 1
    %v463 = vrot.slane %v268, 1
    %v464 = vsel %vm456, %v462, %v463
    %v465 = vrot.slane %v269, 1
    %v466 = vsel %vm456, %v463, %v465
    %v467 = vrot.slane %v270, 1
    %v468 = vrot.slane %v271, 1
    %v469 = vsel %vm456, %v467, %v468
    %v470 = vrot.slane %v272, 1
    %v471 = vsel %vm456, %v468, %v470
    %v472 = vrot.slane %v273, 1
    %v473 = vrot.slane %v274, 1
    %v474 = vsel %vm456, %v472, %v473
    %v475 = vrot.slane %v275, 1
    %v476 = vsel %vm456, %v473, %v475
    %v477 = vrot.slane %v276, 1
    %v478 = vrot.slane %v277, 1
    %v479 = vsel %vm456, %v477, %v478
    %v480 = vrot.slane %v278, 1
    %v481 = vsel %vm456, %v478, %v480
    %v482 = vrot.slane %v279, 1
    %v483 = vrot.slane %v280, 1
    %v484 = vsel %vm456, %v482, %v483
    %v485 = vrot.slane %v281, 1
    %v486 = vsel %vm456, %v483, %v485
    %v487 = vrot.slane %v282, 1
    %v488 = vrot.slane %v283, 1
    %v489 = vsel %vm456, %v487, %v488
    %v490 = vrot.slane %v284, 1
    %v491 = vsel %vm456, %v488, %v490
    %v492 = vrot.slane %v285, 1
    %v493 = vrot.slane %v286, 1
    %v494 = vsel %vm456, %v492, %v493
    %v495 = vrot.slane %v287, 1
    %v496 = vsel %vm456, %v493, %v495
    %v497 = vrot.slane %v288, 1
    %v498 = vrot.slane %v289, 1
    %v499 = vsel %vm456, %v497, %v498
    %v500 = vrot.slane %v290, 1
    %v501 = vsel %vm456, %v498, %v500
    %v502 = vrot.slane %v291, 1
    %v503 = vrot.slane %v292, 1
    %v504 = vsel %vm456, %v502, %v503
    %v505 = vrot.slane %v293, 1
    %v506 = vsel %vm456, %v503, %v505
    %v507 = vrot.slane %v294, 1
    %v508 = vrot.slane %v295, 1
    %v509 = vsel %vm456, %v507, %v508
    %v510 = vrot.slane %v296, 1
    %v511 = vsel %vm456, %v508, %v510
    %v512 = vrot.slane %v297, 1
    %v513 = vrot.slane %v298, 1
    %v514 = vsel %vm456, %v512, %v513
    %v515 = vrot.slane %v299, 1
    %v516 = vsel %vm456, %v513, %v515
    %v517 = vrot.slane %v300, 1
    %v518 = vrot.slane %v301, 1
    %v519 = vsel %vm456, %v517, %v518
    %v520 = vrot.slane %v302, 1
    %v521 = vsel %vm456, %v518, %v520
    %v522 = vrot.slane %v303, 1
    %v523 = vrot.slane %v304, 1
    %v524 = vsel %vm456, %v522, %v523
    %v525 = vrot.slane %v305, 1
    %v526 = vsel %vm456, %v523, %v525
    %v527 = vrot.slane %v306, 1
    %v528 = vrot.slane %v307, 1
    %v529 = vsel %vm456, %v527, %v528
    %v530 = vrot.slane %v308, 1
    %v531 = vsel %vm456, %v528, %v530
    %v532 = vrot.slane %v309, 1
    %v533 = vrot.slane %v310, 1
    %v534 = vsel %vm456, %v532, %v533
    %v535 = vrot.slane %v311, 1
    %v536 = vsel %vm456, %v533, %v535
    %v537 = vrot.slane %v312, 1
    %v538 = vrot.slane %v313, 1
    %v539 = vsel %vm456, %v537, %v538
    %v540 = vrot.slane %v314, 1
    %v541 = vsel %vm456, %v538, %v540
    %v542 = vrot.slane %v315, 1
    %v543 = vrot.slane %v316, 1
    %v544 = vsel %vm456, %v542, %v543
    %v545 = vrot.slane %v317, 1
    %v546 = vsel %vm456, %v543, %v545
    %v547 = vrot.slane %v318, 1
    %v548 = vrot.slane %v319, 1
    %v549 = vsel %vm456, %v547, %v548
    %v550 = vrot.slane %v320, 1
    %v551 = vsel %vm456, %v548, %v550
    %v552 = vrot.slane %v321, 1
    %v553 = vrot.slane %v322, 1
    %v554 = vsel %vm456, %v552, %v553
    %v555 = vrot.slane %v323, 1
    %v556 = vsel %vm456, %v553, %v555
    %v557 = vrot.slane %v324, 1
    %v558 = vrot.slane %v325, 1
    %v559 = vsel %vm456, %v557, %v558
    %v560 = vrot.slane %v326, 1
    %v561 = vsel %vm456, %v558, %v560
    %v562 = vrot.slane %v327, 1
    %v563 = vrot.slane %v328, 1
    %v564 = vsel %vm456, %v562, %v563
    %v565 = vrot.slane %v329, 1
    %v566 = vsel %vm456, %v563, %v565
    %v567 = vrot.slane %v330, 1
    %v568 = vrot.slane %v331, 1
    %v569 = vsel %vm456, %v567, %v568
    %v570 = vrot.slane %v332, 1
    %v571 = vsel %vm456, %v568, %v570
    %v572 = vrot.slane %v333, 1
    %v573 = vrot.slane %v334, 1
    %v574 = vsel %vm456, %v572, %v573
    %v575 = vrot.slane %v335, 1
    %v576 = vsel %vm456, %v573, %v575
    %v577 = vrot.slane %v336, 1
    %v578 = vrot.slane %v337, 1
    %v579 = vsel %vm456, %v577, %v578
    %v580 = vrot.slane %v338, 1
    %v581 = vsel %vm456, %v578, %v580
    %v582 = vrot.slane %v339, 1
    %v583 = vrot.slane %v340, 1
    %v584 = vsel %vm456, %v582, %v583
    %v585 = vrot.slane %v341, 1
    %v586 = vsel %vm456, %v583, %v585
    %v587 = vrot.slane %v342, 1
    %v588 = vrot.slane %v343, 1
    %v589 = vsel %vm456, %v587, %v588
    %v590 = vrot.slane %v344, 1
    %v591 = vsel %vm456, %v588, %v590
    %v592 = vrot.slane %v345, 1
    %v593 = vrot.slane %v346, 1
    %v594 = vsel %vm456, %v592, %v593
    %v595 = vrot.slane %v347, 1
    %v596 = vsel %vm456, %v593, %v595
    %v597 = vrot.slane %v348, 1
    %v598 = vrot.slane %v349, 1
    %v599 = vsel %vm456, %v597, %v598
    %v600 = vrot.slane %v350, 1
    %v601 = vsel %vm456, %v598, %v600
    %v602 = vrot.slane %v351, 1
    %v603 = vrot.slane %v352, 1
    %v604 = vsel %vm456, %v602, %v603
    %v605 = vrot.slane %v353, 1
    %v606 = vsel %vm456, %v603, %v605
    %v607 = vrot.slane %v354, 1
    %v608 = vrot.slane %v355, 1
    %v609 = vsel %vm456, %v607, %v608
    %v610 = vrot.slane %v356, 1
    %v611 = vsel %vm456, %v608, %v610
    %v612 = vrot.slane %v357, 1
    %v613 = vrot.slane %v358, 1
    %v614 = vsel %vm456, %v612, %v613
    %v615 = vrot.slane %v359, 1
    %v616 = vsel %vm456, %v613, %v615
    %v681 = vadd.f32 %v198, %v459
    %v682 = vadd.f32 %v199, %v461
    %v683 = vadd.f32 %v200, %v464
    %v684 = vadd.f32 %v201, %v466
    %v685 = vadd.f32 %v202, %v469
    %v686 = vadd.f32 %v203, %v471
    %v687 = vadd.f32 %v204, %v474
    %v688 = vadd.f32 %v205, %v476
    %v689 = vadd.f32 %v206, %v479
    %v690 = vadd.f32 %v207, %v481
    %v691 = vadd.f32 %v208, %v484
    %v692 = vadd.f32 %v209, %v486
    %v693 = vadd.f32 %v210, %v489
    %v694 = vadd.f32 %v211, %v491
    %v695 = vadd.f32 %v212, %v494
    %v696 = vadd.f32 %v213, %v496
    %v697 = vadd.f32 %v214, %v499
    %v698 = vadd.f32 %v215, %v501
    %v699 = vadd.f32 %v216, %v504
    %v700 = vadd.f32 %v217, %v506
    %v701 = vadd.f32 %v218, %v509
    %v702 = vadd.f32 %v219, %v511
    %v703 = vadd.f32 %v220, %v514
    %v704 = vadd.f32 %v221, %v516
    %v705 = vadd.f32 %v222, %v519
    %v706 = vadd.f32 %v223, %v521
    %v707 = vadd.f32 %v224, %v524
    %v708 = vadd.f32 %v225, %v526
    %v709 = vadd.f32 %v226, %v529
    %v710 = vadd.f32 %v227, %v531
    %v711 = vadd.f32 %v228, %v534
    %v712 = vadd.f32 %v229, %v536
    %v713 = vadd.f32 %v230, %v539
    %v714 = vadd.f32 %v231, %v541
    %v715 = vadd.f32 %v232, %v544
    %v716 = vadd.f32 %v233, %v546
    %v717 = vadd.f32 %v234, %v549
    %v718 = vadd.f32 %v235, %v551
    %v719 = vadd.f32 %v236, %v554
    %v720 = vadd.f32 %v237, %v556
    %v721 = vadd.f32 %v238, %v559
    %v722 = vadd.f32 %v239, %v561
    %v723 = vadd.f32 %v240, %v564
    %v724 = vadd.f32 %v241, %v566
    %v725 = vadd.f32 %v242, %v569
    %v726 = vadd.f32 %v243, %v571
    %v727 = vadd.f32 %v244, %v574
    %v728 = vadd.f32 %v245, %v576
    %v729 = vadd.f32 %v246, %v579
    %v730 = vadd.f32 %v247, %v581
    %v731 = vadd.f32 %v248, %v584
    %v732 = vadd.f32 %v249, %v586
    %v733 = vadd.f32 %v250, %v589
    %v734 = vadd.f32 %v251, %v591
    %v735 = vadd.f32 %v252, %v594
    %v736 = vadd.f32 %v253, %v596
    %v737 = vadd.f32 %v254, %v599
    %v738 = vadd.f32 %v255, %v601
    %v739 = vadd.f32 %v256, %v604
    %v740 = vadd.f32 %v257, %v606
    %v741 = vadd.f32 %v258, %v609
    %v742 = vadd.f32 %v259, %v611
    %v743 = vadd.f32 %v260, %v614
    %v744 = vadd.f32 %v261, %v616
    %s745 = sld [smem:[#allocation2 + $0x2]]
    %v746 = vstv %s745
    %v747 = vmul.f32 %v746, %v24
    %v748 = vmul.f32 %v746, %v25
    %v749 = vmul.f32 %v746, %v26
    %v750 = vmul.f32 %v746, %v27
    %v751 = vmul.f32 %v746, %v28
    %v752 = vmul.f32 %v746, %v29
    %v753 = vmul.f32 %v746, %v30
    %v754 = vmul.f32 %v746, %v31
    %v755 = vmul.f32 %v746, %v32
    %v756 = vmul.f32 %v746, %v33
    %v757 = vmul.f32 %v746, %v34
    %v758 = vmul.f32 %v746, %v35
    %v759 = vmul.f32 %v746, %v36
    %v760 = vmul.f32 %v746, %v37
    %v761 = vmul.f32 %v746, %v38
    %v762 = vmul.f32 %v746, %v39
    %v763 = vmul.f32 %v746, %v40
    %v764 = vmul.f32 %v746, %v41
    %v765 = vmul.f32 %v746, %v42
    %v766 = vmul.f32 %v746, %v43
    %v767 = vmul.f32 %v746, %v44
    %v768 = vmul.f32 %v746, %v45
    %v769 = vmul.f32 %v746, %v46
    %v770 = vmul.f32 %v746, %v47
    %v771 = vmul.f32 %v746, %v48
    %v772 = vmul.f32 %v746, %v49
    %v773 = vmul.f32 %v746, %v50
    %v774 = vmul.f32 %v746, %v51
    %v775 = vmul.f32 %v746, %v52
    %v776 = vmul.f32 %v746, %v53
    %v777 = vmul.f32 %v746, %v54
    %v778 = vmul.f32 %v746, %v55
    %v779 = vmul.f32 %v746, %v56
    %v780 = vmul.f32 %v746, %v57
    %v781 = vmul.f32 %v746, %v58
    %v782 = vmul.f32 %v746, %v59
    %v783 = vmul.f32 %v746, %v60
    %v784 = vmul.f32 %v746, %v61
    %v785 = vmul.f32 %v746, %v62
    %v786 = vmul.f32 %v746, %v63
    %v787 = vmul.f32 %v746, %v64
    %v788 = vmul.f32 %v746, %v65
    %v789 = vmul.f32 %v746, %v66
    %v790 = vmul.f32 %v746, %v67
    %v791 = vmul.f32 %v746, %v68
    %v792 = vmul.f32 %v746, %v69
    %v793 = vmul.f32 %v746, %v70
    %v794 = vmul.f32 %v746, %v71
    %v795 = vmul.f32 %v746, %v78
    %v796 = vmul.f32 %v746, %v79
    %v797 = vmul.f32 %v746, %v80
    %v798 = vmul.f32 %v746, %v81
    %v799 = vmul.f32 %v746, %v82
    %v800 = vmul.f32 %v746, %v83
    %v801 = vmul.f32 %v746, %v84
    %v802 = vmul.f32 %v746, %v85
    %v803 = vmul.f32 %v746, %v86
    %v804 = vmul.f32 %v746, %v87
    %v805 = vmul.f32 %v746, %v88
    %v806 = vmul.f32 %v746, %v89
    %v807 = vmul.f32 %v746, %v90
    %v808 = vmul.f32 %v746, %v91
    %v809 = vmul.f32 %v746, %v92
    %v810 = vmul.f32 %v746, %v93
    %v811 = vmul.f32 %v746, %v94
    %v812 = vmul.f32 %v746, %v95
    %v813 = vmul.f32 %v746, %v96
    %v814 = vmul.f32 %v746, %v97
    %v815 = vmul.f32 %v746, %v98
    %v816 = vmul.f32 %v746, %v99
    %v817 = vmul.f32 %v746, %v100
    %v818 = vmul.f32 %v746, %v101
    %v819 = vmul.f32 %v746, %v102
    %v820 = vmul.f32 %v746, %v103
    %v821 = vmul.f32 %v746, %v104
    %v822 = vmul.f32 %v746, %v105
    %v823 = vmul.f32 %v746, %v106
    %v824 = vmul.f32 %v746, %v107
    %v825 = vmul.f32 %v746, %v108
    %v826 = vmul.f32 %v746, %v109
    %v827 = vmul.f32 %v746, %v110
    %v828 = vmul.f32 %v746, %v111
    %v829 = vmul.f32 %v746, %v112
    %v830 = vmul.f32 %v746, %v113
    %v831 = vmul.f32 %v746, %v114
    %v832 = vmul.f32 %v746, %v115
    %v833 = vmul.f32 %v746, %v116
    %v834 = vmul.f32 %v746, %v117
    %v835 = vmul.f32 %v746, %v118
    %v836 = vmul.f32 %v746, %v119
    %v837 = vmul.f32 %v746, %v120
    %v838 = vmul.f32 %v746, %v121
    %v839 = vmul.f32 %v746, %v122
    %v840 = vmul.f32 %v746, %v123
    %v841 = vmul.f32 %v746, %v124
    %v842 = vmul.f32 %v746, %v125
    %vm939 = vcmask 1045504
    %v940 = vrot.slane %v747, 2
    %v941 = vrot.slane %v748, 2
    %v942 = vsel %vm939, %v940, %v941
    %v943 = vrot.slane %v749, 2
    %v944 = vsel %vm939, %v941, %v943
    %v945 = vrot.slane %v750, 2
    %v946 = vrot.slane %v751, 2
    %v947 = vsel %vm939, %v945, %v946
    %v948 = vrot.slane %v752, 2
    %v949 = vsel %vm939, %v946, %v948
    %v950 = vrot.slane %v753, 2
    %v951 = vrot.slane %v754, 2
    %v952 = vsel %vm939, %v950, %v951
    %v953 = vrot.slane %v755, 2
    %v954 = vsel %vm939, %v951, %v953
    %v955 = vrot.slane %v756, 2
    %v956 = vrot.slane %v757, 2
    %v957 = vsel %vm939, %v955, %v956
    %v958 = vrot.slane %v758, 2
    %v959 = vsel %vm939, %v956, %v958
    %v960 = vrot.slane %v759, 2
    %v961 = vrot.slane %v760, 2
    %v962 = vsel %vm939, %v960, %v961
    %v963 = vrot.slane %v761, 2
    %v964 = vsel %vm939, %v961, %v963
    %v965 = vrot.slane %v762, 2
    %v966 = vrot.slane %v763, 2
    %v967 = vsel %vm939, %v965, %v966
    %v968 = vrot.slane %v764, 2
    %v969 = vsel %vm939, %v966, %v968
    %v970 = vrot.slane %v765, 2
    %v971 = vrot.slane %v766, 2
    %v972 = vsel %vm939, %v970, %v971
    %v973 = vrot.slane %v767, 2
    %v974 = vsel %vm939, %v971, %v973
    %v975 = vrot.slane %v768, 2
    %v976 = vrot.slane %v769, 2
    %v977 = vsel %vm939, %v975, %v976
    %v978 = vrot.slane %v770, 2
    %v979 = vsel %vm939, %v976, %v978
    %v980 = vrot.slane %v771, 2
    %v981 = vrot.slane %v772, 2
    %v982 = vsel %vm939, %v980, %v981
    %v983 = vrot.slane %v773, 2
    %v984 = vsel %vm939, %v981, %v983
    %v985 = vrot.slane %v774, 2
    %v986 = vrot.slane %v775, 2
    %v987 = vsel %vm939, %v985, %v986
    %v988 = vrot.slane %v776, 2
    %v989 = vsel %vm939, %v986, %v988
    %v990 = vrot.slane %v777, 2
    %v991 = vrot.slane %v778, 2
    %v992 = vsel %vm939, %v990, %v991
    %v993 = vrot.slane %v779, 2
    %v994 = vsel %vm939, %v991, %v993
    %v995 = vrot.slane %v780, 2
    %v996 = vrot.slane %v781, 2
    %v997 = vsel %vm939, %v995, %v996
    %v998 = vrot.slane %v782, 2
    %v999 = vsel %vm939, %v996, %v998
    %v1000 = vrot.slane %v783, 2
    %v1001 = vrot.slane %v784, 2
    %v1002 = vsel %vm939, %v1000, %v1001
    %v1003 = vrot.slane %v785, 2
    %v1004 = vsel %vm939, %v1001, %v1003
    %v1005 = vrot.slane %v786, 2
    %v1006 = vrot.slane %v787, 2
    %v1007 = vsel %vm939, %v1005, %v1006
    %v1008 = vrot.slane %v788, 2
    %v1009 = vsel %vm939, %v1006, %v1008
    %v1010 = vrot.slane %v789, 2
    %v1011 = vrot.slane %v790, 2
    %v1012 = vsel %vm939, %v1010, %v1011
    %v1013 = vrot.slane %v791, 2
    %v1014 = vsel %vm939, %v1011, %v1013
    %v1015 = vrot.slane %v792, 2
    %v1016 = vrot.slane %v793, 2
    %v1017 = vsel %vm939, %v1015, %v1016
    %v1018 = vrot.slane %v794, 2
    %v1019 = vsel %vm939, %v1016, %v1018
    %v1020 = vrot.slane %v795, 2
    %v1021 = vrot.slane %v796, 2
    %v1022 = vsel %vm939, %v1020, %v1021
    %v1023 = vrot.slane %v797, 2
    %v1024 = vsel %vm939, %v1021, %v1023
    %v1025 = vrot.slane %v798, 2
    %v1026 = vrot.slane %v799, 2
    %v1027 = vsel %vm939, %v1025, %v1026
    %v1028 = vrot.slane %v800, 2
    %v1029 = vsel %vm939, %v1026, %v1028
    %v1030 = vrot.slane %v801, 2
    %v1031 = vrot.slane %v802, 2
    %v1032 = vsel %vm939, %v1030, %v1031
    %v1033 = vrot.slane %v803, 2
    %v1034 = vsel %vm939, %v1031, %v1033
    %v1035 = vrot.slane %v804, 2
    %v1036 = vrot.slane %v805, 2
    %v1037 = vsel %vm939, %v1035, %v1036
    %v1038 = vrot.slane %v806, 2
    %v1039 = vsel %vm939, %v1036, %v1038
    %v1040 = vrot.slane %v807, 2
    %v1041 = vrot.slane %v808, 2
    %v1042 = vsel %vm939, %v1040, %v1041
    %v1043 = vrot.slane %v809, 2
    %v1044 = vsel %vm939, %v1041, %v1043
    %v1045 = vrot.slane %v810, 2
    %v1046 = vrot.slane %v811, 2
    %v1047 = vsel %vm939, %v1045, %v1046
    %v1048 = vrot.slane %v812, 2
    %v1049 = vsel %vm939, %v1046, %v1048
    %v1050 = vrot.slane %v813, 2
    %v1051 = vrot.slane %v814, 2
    %v1052 = vsel %vm939, %v1050, %v1051
    %v1053 = vrot.slane %v815, 2
    %v1054 = vsel %vm939, %v1051, %v1053
    %v1055 = vrot.slane %v816, 2
    %v1056 = vrot.slane %v817, 2
    %v1057 = vsel %vm939, %v1055, %v1056
    %v1058 = vrot.slane %v818, 2
    %v1059 = vsel %vm939, %v1056, %v1058
    %v1060 = vrot.slane %v819, 2
    %v1061 = vrot.slane %v820, 2
    %v1062 = vsel %vm939, %v1060, %v1061
    %v1063 = vrot.slane %v821, 2
    %v1064 = vsel %vm939, %v1061, %v1063
    %v1065 = vrot.slane %v822, 2
    %v1066 = vrot.slane %v823, 2
    %v1067 = vsel %vm939, %v1065, %v1066
    %v1068 = vrot.slane %v824, 2
    %v1069 = vsel %vm939, %v1066, %v1068
    %v1070 = vrot.slane %v825, 2
    %v1071 = vrot.slane %v826, 2
    %v1072 = vsel %vm939, %v1070, %v1071
    %v1073 = vrot.slane %v827, 2
    %v1074 = vsel %vm939, %v1071, %v1073
    %v1075 = vrot.slane %v828, 2
    %v1076 = vrot.slane %v829, 2
    %v1077 = vsel %vm939, %v1075, %v1076
    %v1078 = vrot.slane %v830, 2
    %v1079 = vsel %vm939, %v1076, %v1078
    %v1080 = vrot.slane %v831, 2
    %v1081 = vrot.slane %v832, 2
    %v1082 = vsel %vm939, %v1080, %v1081
    %v1083 = vrot.slane %v833, 2
    %v1084 = vsel %vm939, %v1081, %v1083
    %v1085 = vrot.slane %v834, 2
    %v1086 = vrot.slane %v835, 2
    %v1087 = vsel %vm939, %v1085, %v1086
    %v1088 = vrot.slane %v836, 2
    %v1089 = vsel %vm939, %v1086, %v1088
    %v1090 = vrot.slane %v837, 2
    %v1091 = vrot.slane %v838, 2
    %v1092 = vsel %vm939, %v1090, %v1091
    %v1093 = vrot.slane %v839, 2
    %v1094 = vsel %vm939, %v1091, %v1093
    %v1095 = vrot.slane %v840, 2
    %v1096 = vrot.slane %v841, 2
    %v1097 = vsel %vm939, %v1095, %v1096
    %v1098 = vrot.slane %v842, 2
    %v1099 = vsel %vm939, %v1096, %v1098
    %v1164 = vadd.f32 %v681, %v942
    %v1165 = vadd.f32 %v682, %v944
    %v1166 = vadd.f32 %v683, %v947
    %v1167 = vadd.f32 %v684, %v949
    %v1168 = vadd.f32 %v685, %v952
    %v1169 = vadd.f32 %v686, %v954
    %v1170 = vadd.f32 %v687, %v957
    %v1171 = vadd.f32 %v688, %v959
    %v1172 = vadd.f32 %v689, %v962
    %v1173 = vadd.f32 %v690, %v964
    %v1174 = vadd.f32 %v691, %v967
    %v1175 = vadd.f32 %v692, %v969
    %v1176 = vadd.f32 %v693, %v972
    %v1177 = vadd.f32 %v694, %v974
    %v1178 = vadd.f32 %v695, %v977
    %v1179 = vadd.f32 %v696, %v979
    %v1180 = vadd.f32 %v697, %v982
    %v1181 = vadd.f32 %v698, %v984
    %v1182 = vadd.f32 %v699, %v987
    %v1183 = vadd.f32 %v700, %v989
    %v1184 = vadd.f32 %v701, %v992
    %v1185 = vadd.f32 %v702, %v994
    %v1186 = vadd.f32 %v703, %v997
    %v1187 = vadd.f32 %v704, %v999
    %v1188 = vadd.f32 %v705, %v1002
    %v1189 = vadd.f32 %v706, %v1004
    %v1190 = vadd.f32 %v707, %v1007
    %v1191 = vadd.f32 %v708, %v1009
    %v1192 = vadd.f32 %v709, %v1012
    %v1193 = vadd.f32 %v710, %v1014
    %v1194 = vadd.f32 %v711, %v1017
    %v1195 = vadd.f32 %v712, %v1019
    %v1196 = vadd.f32 %v713, %v1022
    %v1197 = vadd.f32 %v714, %v1024
    %v1198 = vadd.f32 %v715, %v1027
    %v1199 = vadd.f32 %v716, %v1029
    %v1200 = vadd.f32 %v717, %v1032
    %v1201 = vadd.f32 %v718, %v1034
    %v1202 = vadd.f32 %v719, %v1037
    %v1203 = vadd.f32 %v720, %v1039
    %v1204 = vadd.f32 %v721, %v1042
    %v1205 = vadd.f32 %v722, %v1044
    %v1206 = vadd.f32 %v723, %v1047
    %v1207 = vadd.f32 %v724, %v1049
    %v1208 = vadd.f32 %v725, %v1052
    %v1209 = vadd.f32 %v726, %v1054
    %v1210 = vadd.f32 %v727, %v1057
    %v1211 = vadd.f32 %v728, %v1059
    %v1212 = vadd.f32 %v729, %v1062
    %v1213 = vadd.f32 %v730, %v1064
    %v1214 = vadd.f32 %v731, %v1067
    %v1215 = vadd.f32 %v732, %v1069
    %v1216 = vadd.f32 %v733, %v1072
    %v1217 = vadd.f32 %v734, %v1074
    %v1218 = vadd.f32 %v735, %v1077
    %v1219 = vadd.f32 %v736, %v1079
    %v1220 = vadd.f32 %v737, %v1082
    %v1221 = vadd.f32 %v738, %v1084
    %v1222 = vadd.f32 %v739, %v1087
    %v1223 = vadd.f32 %v740, %v1089
    %v1224 = vadd.f32 %v741, %v1092
    %v1225 = vadd.f32 %v742, %v1094
    %v1226 = vadd.f32 %v743, %v1097
    %v1227 = vadd.f32 %v744, %v1099
    %s1228 = sld [smem:[#allocation2 + $0x80]]
    %v1229 = vstv %s1228
    %v1230 = vmul.f32 %v1229, %v27
    %v1231 = vmul.f32 %v1229, %v28
    %v1232 = vmul.f32 %v1229, %v30
    %v1233 = vmul.f32 %v1229, %v31
    %v1234 = vmul.f32 %v1229, %v33
    %v1235 = vmul.f32 %v1229, %v34
    %v1236 = vmul.f32 %v1229, %v36
    %v1237 = vmul.f32 %v1229, %v37
    %v1238 = vmul.f32 %v1229, %v39
    %v1239 = vmul.f32 %v1229, %v40
    %v1240 = vmul.f32 %v1229, %v42
    %v1241 = vmul.f32 %v1229, %v43
    %v1242 = vmul.f32 %v1229, %v45
    %v1243 = vmul.f32 %v1229, %v46
    %v1244 = vmul.f32 %v1229, %v48
    %v1245 = vmul.f32 %v1229, %v49
    %v1246 = vmul.f32 %v1229, %v51
    %v1247 = vmul.f32 %v1229, %v52
    %v1248 = vmul.f32 %v1229, %v54
    %v1249 = vmul.f32 %v1229, %v55
    %v1250 = vmul.f32 %v1229, %v57
    %v1251 = vmul.f32 %v1229, %v58
    %v1252 = vmul.f32 %v1229, %v60
    %v1253 = vmul.f32 %v1229, %v61
    %v1254 = vmul.f32 %v1229, %v63
    %v1255 = vmul.f32 %v1229, %v64
    %v1256 = vmul.f32 %v1229, %v66
    %v1257 = vmul.f32 %v1229, %v67
    %v1258 = vmul.f32 %v1229, %v69
    %v1259 = vmul.f32 %v1229, %v70
    %v1260 = vmul.f32 %v1229, %v72
    %v1261 = vmul.f32 %v1229, %v73
    %v1262 = vmul.f32 %v1229, %v81
    %v1263 = vmul.f32 %v1229, %v82
    %v1264 = vmul.f32 %v1229, %v84
    %v1265 = vmul.f32 %v1229, %v85
    %v1266 = vmul.f32 %v1229, %v87
    %v1267 = vmul.f32 %v1229, %v88
    %v1268 = vmul.f32 %v1229, %v90
    %v1269 = vmul.f32 %v1229, %v91
    %v1270 = vmul.f32 %v1229, %v93
    %v1271 = vmul.f32 %v1229, %v94
    %v1272 = vmul.f32 %v1229, %v96
    %v1273 = vmul.f32 %v1229, %v97
    %v1274 = vmul.f32 %v1229, %v99
    %v1275 = vmul.f32 %v1229, %v100
    %v1276 = vmul.f32 %v1229, %v102
    %v1277 = vmul.f32 %v1229, %v103
    %v1278 = vmul.f32 %v1229, %v105
    %v1279 = vmul.f32 %v1229, %v106
    %v1280 = vmul.f32 %v1229, %v108
    %v1281 = vmul.f32 %v1229, %v109
    %v1282 = vmul.f32 %v1229, %v111
    %v1283 = vmul.f32 %v1229, %v112
    %v1284 = vmul.f32 %v1229, %v114
    %v1285 = vmul.f32 %v1229, %v115
    %v1286 = vmul.f32 %v1229, %v117
    %v1287 = vmul.f32 %v1229, %v118
    %v1288 = vmul.f32 %v1229, %v120
    %v1289 = vmul.f32 %v1229, %v121
    %v1290 = vmul.f32 %v1229, %v123
    %v1291 = vmul.f32 %v1229, %v124
    %v1292 = vmul.f32 %v1229, %v126
    %v1293 = vmul.f32 %v1229, %v127
    %v1294 = vadd.f32 %v1164, %v1230
    %v1295 = vadd.f32 %v1165, %v1231
    %v1296 = vadd.f32 %v1166, %v1232
    %v1297 = vadd.f32 %v1167, %v1233
    %v1298 = vadd.f32 %v1168, %v1234
    %v1299 = vadd.f32 %v1169, %v1235
    %v1300 = vadd.f32 %v1170, %v1236
    %v1301 = vadd.f32 %v1171, %v1237
    %v1302 = vadd.f32 %v1172, %v1238
    %v1303 = vadd.f32 %v1173, %v1239
    %v1304 = vadd.f32 %v1174, %v1240
    %v1305 = vadd.f32 %v1175, %v1241
    %v1306 = vadd.f32 %v1176, %v1242
    %v1307 = vadd.f32 %v1177, %v1243
    %v1308 = vadd.f32 %v1178, %v1244
    %v1309 = vadd.f32 %v1179, %v1245
    %v1310 = vadd.f32 %v1180, %v1246
    %v1311 = vadd.f32 %v1181, %v1247
    %v1312 = vadd.f32 %v1182, %v1248
    %v1313 = vadd.f32 %v1183, %v1249
    %v1314 = vadd.f32 %v1184, %v1250
    %v1315 = vadd.f32 %v1185, %v1251
    %v1316 = vadd.f32 %v1186, %v1252
    %v1317 = vadd.f32 %v1187, %v1253
    %v1318 = vadd.f32 %v1188, %v1254
    %v1319 = vadd.f32 %v1189, %v1255
    %v1320 = vadd.f32 %v1190, %v1256
    %v1321 = vadd.f32 %v1191, %v1257
    %v1322 = vadd.f32 %v1192, %v1258
    %v1323 = vadd.f32 %v1193, %v1259
    %v1324 = vadd.f32 %v1194, %v1260
    %v1325 = vadd.f32 %v1195, %v1261
    %v1326 = vadd.f32 %v1196, %v1262
    %v1327 = vadd.f32 %v1197, %v1263
    %v1328 = vadd.f32 %v1198, %v1264
    %v1329 = vadd.f32 %v1199, %v1265
    %v1330 = vadd.f32 %v1200, %v1266
    %v1331 = vadd.f32 %v1201, %v1267
    %v1332 = vadd.f32 %v1202, %v1268
    %v1333 = vadd.f32 %v1203, %v1269
    %v1334 = vadd.f32 %v1204, %v1270
    %v1335 = vadd.f32 %v1205, %v1271
    %v1336 = vadd.f32 %v1206, %v1272
    %v1337 = vadd.f32 %v1207, %v1273
    %v1338 = vadd.f32 %v1208, %v1274
    %v1339 = vadd.f32 %v1209, %v1275
    %v1340 = vadd.f32 %v1210, %v1276
    %v1341 = vadd.f32 %v1211, %v1277
    %v1342 = vadd.f32 %v1212, %v1278
    %v1343 = vadd.f32 %v1213, %v1279
    %v1344 = vadd.f32 %v1214, %v1280
    %v1345 = vadd.f32 %v1215, %v1281
    %v1346 = vadd.f32 %v1216, %v1282
    %v1347 = vadd.f32 %v1217, %v1283
    %v1348 = vadd.f32 %v1218, %v1284
    %v1349 = vadd.f32 %v1219, %v1285
    %v1350 = vadd.f32 %v1220, %v1286
    %v1351 = vadd.f32 %v1221, %v1287
    %v1352 = vadd.f32 %v1222, %v1288
    %v1353 = vadd.f32 %v1223, %v1289
    %v1354 = vadd.f32 %v1224, %v1290
    %v1355 = vadd.f32 %v1225, %v1291
    %v1356 = vadd.f32 %v1226, %v1292
    %v1357 = vadd.f32 %v1227, %v1293
    %s1358 = sld [smem:[#allocation2 + $0x81]]
    %v1359 = vstv %s1358
    %v1360 = vmul.f32 %v1359, %v27
    %v1361 = vmul.f32 %v1359, %v28
    %v1362 = vmul.f32 %v1359, %v29
    %v1363 = vmul.f32 %v1359, %v30
    %v1364 = vmul.f32 %v1359, %v31
    %v1365 = vmul.f32 %v1359, %v32
    %v1366 = vmul.f32 %v1359, %v33
    %v1367 = vmul.f32 %v1359, %v34
    %v1368 = vmul.f32 %v1359, %v35
    %v1369 = vmul.f32 %v1359, %v36
    %v1370 = vmul.f32 %v1359, %v37
    %v1371 = vmul.f32 %v1359, %v38
    %v1372 = vmul.f32 %v1359, %v39
    %v1373 = vmul.f32 %v1359, %v40
    %v1374 = vmul.f32 %v1359, %v41
    %v1375 = vmul.f32 %v1359, %v42
    %v1376 = vmul.f32 %v1359, %v43
    %v1377 = vmul.f32 %v1359, %v44
    %v1378 = vmul.f32 %v1359, %v45
    %v1379 = vmul.f32 %v1359, %v46
    %v1380 = vmul.f32 %v1359, %v47
    %v1381 = vmul.f32 %v1359, %v48
    %v1382 = vmul.f32 %v1359, %v49
    %v1383 = vmul.f32 %v1359, %v50
    %v1384 = vmul.f32 %v1359, %v51
    %v1385 = vmul.f32 %v1359, %v52
    %v1386 = vmul.f32 %v1359, %v53
    %v1387 = vmul.f32 %v1359, %v54
    %v1388 = vmul.f32 %v1359, %v55
    %v1389 = vmul.f32 %v1359, %v56
    %v1390 = vmul.f32 %v1359, %v57
    %v1391 = vmul.f32 %v1359, %v58
    %v1392 = vmul.f32 %v1359, %v59
    %v1393 = vmul.f32 %v1359, %v60
    %v1394 = vmul.f32 %v1359, %v61
    %v1395 = vmul.f32 %v1359, %v62
    %v1396 = vmul.f32 %v1359, %v63
    %v1397 = vmul.f32 %v1359, %v64
    %v1398 = vmul.f32 %v1359, %v65
    %v1399 = vmul.f32 %v1359, %v66
    %v1400 = vmul.f32 %v1359, %v67
    %v1401 = vmul.f32 %v1359, %v68
    %v1402 = vmul.f32 %v1359, %v69
    %v1403 = vmul.f32 %v1359, %v70
    %v1404 = vmul.f32 %v1359, %v71
    %v1405 = vmul.f32 %v1359, %v72
    %v1406 = vmul.f32 %v1359, %v73
    %v1407 = vmul.f32 %v1359, %v74
    %v1408 = vmul.f32 %v1359, %v81
    %v1409 = vmul.f32 %v1359, %v82
    %v1410 = vmul.f32 %v1359, %v83
    %v1411 = vmul.f32 %v1359, %v84
    %v1412 = vmul.f32 %v1359, %v85
    %v1413 = vmul.f32 %v1359, %v86
    %v1414 = vmul.f32 %v1359, %v87
    %v1415 = vmul.f32 %v1359, %v88
    %v1416 = vmul.f32 %v1359, %v89
    %v1417 = vmul.f32 %v1359, %v90
    %v1418 = vmul.f32 %v1359, %v91
    %v1419 = vmul.f32 %v1359, %v92
    %v1420 = vmul.f32 %v1359, %v93
    %v1421 = vmul.f32 %v1359, %v94
    %v1422 = vmul.f32 %v1359, %v95
    %v1423 = vmul.f32 %v1359, %v96
    %v1424 = vmul.f32 %v1359, %v97
    %v1425 = vmul.f32 %v1359, %v98
    %v1426 = vmul.f32 %v1359, %v99
    %v1427 = vmul.f32 %v1359, %v100
    %v1428 = vmul.f32 %v1359, %v101
    %v1429 = vmul.f32 %v1359, %v102
    %v1430 = vmul.f32 %v1359, %v103
    %v1431 = vmul.f32 %v1359, %v104
    %v1432 = vmul.f32 %v1359, %v105
    %v1433 = vmul.f32 %v1359, %v106
    %v1434 = vmul.f32 %v1359, %v107
    %v1435 = vmul.f32 %v1359, %v108
    %v1436 = vmul.f32 %v1359, %v109
    %v1437 = vmul.f32 %v1359, %v110
    %v1438 = vmul.f32 %v1359, %v111
    %v1439 = vmul.f32 %v1359, %v112
    %v1440 = vmul.f32 %v1359, %v113
    %v1441 = vmul.f32 %v1359, %v114
    %v1442 = vmul.f32 %v1359, %v115
    %v1443 = vmul.f32 %v1359, %v116
    %v1444 = vmul.f32 %v1359, %v117
    %v1445 = vmul.f32 %v1359, %v118
    %v1446 = vmul.f32 %v1359, %v119
    %v1447 = vmul.f32 %v1359, %v120
    %v1448 = vmul.f32 %v1359, %v121
    %v1449 = vmul.f32 %v1359, %v122
    %v1450 = vmul.f32 %v1359, %v123
    %v1451 = vmul.f32 %v1359, %v124
    %v1452 = vmul.f32 %v1359, %v125
    %v1453 = vmul.f32 %v1359, %v126
    %v1454 = vmul.f32 %v1359, %v127
    %v1455 = vmul.f32 %v1359, %v128
    %v1552 = vrot.slane %v1360, 1
    %v1553 = vrot.slane %v1361, 1
    %v1554 = vsel %vm456, %v1552, %v1553
    %v1555 = vrot.slane %v1362, 1
    %v1556 = vsel %vm456, %v1553, %v1555
    %v1557 = vrot.slane %v1363, 1
    %v1558 = vrot.slane %v1364, 1
    %v1559 = vsel %vm456, %v1557, %v1558
    %v1560 = vrot.slane %v1365, 1
    %v1561 = vsel %vm456, %v1558, %v1560
    %v1562 = vrot.slane %v1366, 1
    %v1563 = vrot.slane %v1367, 1
    %v1564 = vsel %vm456, %v1562, %v1563
    %v1565 = vrot.slane %v1368, 1
    %v1566 = vsel %vm456, %v1563, %v1565
    %v1567 = vrot.slane %v1369, 1
    %v1568 = vrot.slane %v1370, 1
    %v1569 = vsel %vm456, %v1567, %v1568
    %v1570 = vrot.slane %v1371, 1
    %v1571 = vsel %vm456, %v1568, %v1570
    %v1572 = vrot.slane %v1372, 1
    %v1573 = vrot.slane %v1373, 1
    %v1574 = vsel %vm456, %v1572, %v1573
    %v1575 = vrot.slane %v1374, 1
    %v1576 = vsel %vm456, %v1573, %v1575
    %v1577 = vrot.slane %v1375, 1
    %v1578 = vrot.slane %v1376, 1
    %v1579 = vsel %vm456, %v1577, %v1578
    %v1580 = vrot.slane %v1377, 1
    %v1581 = vsel %vm456, %v1578, %v1580
    %v1582 = vrot.slane %v1378, 1
    %v1583 = vrot.slane %v1379, 1
    %v1584 = vsel %vm456, %v1582, %v1583
    %v1585 = vrot.slane %v1380, 1
    %v1586 = vsel %vm456, %v1583, %v1585
    %v1587 = vrot.slane %v1381, 1
    %v1588 = vrot.slane %v1382, 1
    %v1589 = vsel %vm456, %v1587, %v1588
    %v1590 = vrot.slane %v1383, 1
    %v1591 = vsel %vm456, %v1588, %v1590
    %v1592 = vrot.slane %v1384, 1
    %v1593 = vrot.slane %v1385, 1
    %v1594 = vsel %vm456, %v1592, %v1593
    %v1595 = vrot.slane %v1386, 1
    %v1596 = vsel %vm456, %v1593, %v1595
    %v1597 = vrot.slane %v1387, 1
    %v1598 = vrot.slane %v1388, 1
    %v1599 = vsel %vm456, %v1597, %v1598
    %v1600 = vrot.slane %v1389, 1
    %v1601 = vsel %vm456, %v1598, %v1600
    %v1602 = vrot.slane %v1390, 1
    %v1603 = vrot.slane %v1391, 1
    %v1604 = vsel %vm456, %v1602, %v1603
    %v1605 = vrot.slane %v1392, 1
    %v1606 = vsel %vm456, %v1603, %v1605
    %v1607 = vrot.slane %v1393, 1
    %v1608 = vrot.slane %v1394, 1
    %v1609 = vsel %vm456, %v1607, %v1608
    %v1610 = vrot.slane %v1395, 1
    %v1611 = vsel %vm456, %v1608, %v1610
    %v1612 = vrot.slane %v1396, 1
    %v1613 = vrot.slane %v1397, 1
    %v1614 = vsel %vm456, %v1612, %v1613
    %v1615 = vrot.slane %v1398, 1
    %v1616 = vsel %vm456, %v1613, %v1615
    %v1617 = vrot.slane %v1399, 1
    %v1618 = vrot.slane %v1400, 1
    %v1619 = vsel %vm456, %v1617, %v1618
    %v1620 = vrot.slane %v1401, 1
    %v1621 = vsel %vm456, %v1618, %v1620
    %v1622 = vrot.slane %v1402, 1
    %v1623 = vrot.slane %v1403, 1
    %v1624 = vsel %vm456, %v1622, %v1623
    %v1625 = vrot.slane %v1404, 1
    %v1626 = vsel %vm456, %v1623, %v1625
    %v1627 = vrot.slane %v1405, 1
    %v1628 = vrot.slane %v1406, 1
    %v1629 = vsel %vm456, %v1627, %v1628
    %v1630 = vrot.slane %v1407, 1
    %v1631 = vsel %vm456, %v1628, %v1630
    %v1632 = vrot.slane %v1408, 1
    %v1633 = vrot.slane %v1409, 1
    %v1634 = vsel %vm456, %v1632, %v1633
    %v1635 = vrot.slane %v1410, 1
    %v1636 = vsel %vm456, %v1633, %v1635
    %v1637 = vrot.slane %v1411, 1
    %v1638 = vrot.slane %v1412, 1
    %v1639 = vsel %vm456, %v1637, %v1638
    %v1640 = vrot.slane %v1413, 1
    %v1641 = vsel %vm456, %v1638, %v1640
    %v1642 = vrot.slane %v1414, 1
    %v1643 = vrot.slane %v1415, 1
    %v1644 = vsel %vm456, %v1642, %v1643
    %v1645 = vrot.slane %v1416, 1
    %v1646 = vsel %vm456, %v1643, %v1645
    %v1647 = vrot.slane %v1417, 1
    %v1648 = vrot.slane %v1418, 1
    %v1649 = vsel %vm456, %v1647, %v1648
    %v1650 = vrot.slane %v1419, 1
    %v1651 = vsel %vm456, %v1648, %v1650
    %v1652 = vrot.slane %v1420, 1
    %v1653 = vrot.slane %v1421, 1
    %v1654 = vsel %vm456, %v1652, %v1653
    %v1655 = vrot.slane %v1422, 1
    %v1656 = vsel %vm456, %v1653, %v1655
    %v1657 = vrot.slane %v1423, 1
    %v1658 = vrot.slane %v1424, 1
    %v1659 = vsel %vm456, %v1657, %v1658
    %v1660 = vrot.slane %v1425, 1
    %v1661 = vsel %vm456, %v1658, %v1660
    %v1662 = vrot.slane %v1426, 1
    %v1663 = vrot.slane %v1427, 1
    %v1664 = vsel %vm456, %v1662, %v1663
    %v1665 = vrot.slane %v1428, 1
    %v1666 = vsel %vm456, %v1663, %v1665
    %v1667 = vrot.slane %v1429, 1
    %v1668 = vrot.slane %v1430, 1
    %v1669 = vsel %vm456, %v1667, %v1668
    %v1670 = vrot.slane %v1431, 1
    %v1671 = vsel %vm456, %v1668, %v1670
    %v1672 = vrot.slane %v1432, 1
    %v1673 = vrot.slane %v1433, 1
    %v1674 = vsel %vm456, %v1672, %v1673
    %v1675 = vrot.slane %v1434, 1
    %v1676 = vsel %vm456, %v1673, %v1675
    %v1677 = vrot.slane %v1435, 1
    %v1678 = vrot.slane %v1436, 1
    %v1679 = vsel %vm456, %v1677, %v1678
    %v1680 = vrot.slane %v1437, 1
    %v1681 = vsel %vm456, %v1678, %v1680
    %v1682 = vrot.slane %v1438, 1
    %v1683 = vrot.slane %v1439, 1
    %v1684 = vsel %vm456, %v1682, %v1683
    %v1685 = vrot.slane %v1440, 1
    %v1686 = vsel %vm456, %v1683, %v1685
    %v1687 = vrot.slane %v1441, 1
    %v1688 = vrot.slane %v1442, 1
    %v1689 = vsel %vm456, %v1687, %v1688
    %v1690 = vrot.slane %v1443, 1
    %v1691 = vsel %vm456, %v1688, %v1690
    %v1692 = vrot.slane %v1444, 1
    %v1693 = vrot.slane %v1445, 1
    %v1694 = vsel %vm456, %v1692, %v1693
    %v1695 = vrot.slane %v1446, 1
    %v1696 = vsel %vm456, %v1693, %v1695
    %v1697 = vrot.slane %v1447, 1
    %v1698 = vrot.slane %v1448, 1
    %v1699 = vsel %vm456, %v1697, %v1698
    %v1700 = vrot.slane %v1449, 1
    %v1701 = vsel %vm456, %v1698, %v1700
    %v1702 = vrot.slane %v1450, 1
    %v1703 = vrot.slane %v1451, 1
    %v1704 = vsel %vm456, %v1702, %v1703
    %v1705 = vrot.slane %v1452, 1
    %v1706 = vsel %vm456, %v1703, %v1705
    %v1707 = vrot.slane %v1453, 1
    %v1708 = vrot.slane %v1454, 1
    %v1709 = vsel %vm456, %v1707, %v1708
    %v1710 = vrot.slane %v1455, 1
    %v1711 = vsel %vm456, %v1708, %v1710
    %v1776 = vadd.f32 %v1294, %v1554
    %v1777 = vadd.f32 %v1295, %v1556
    %v1778 = vadd.f32 %v1296, %v1559
    %v1779 = vadd.f32 %v1297, %v1561
    %v1780 = vadd.f32 %v1298, %v1564
    %v1781 = vadd.f32 %v1299, %v1566
    %v1782 = vadd.f32 %v1300, %v1569
    %v1783 = vadd.f32 %v1301, %v1571
    %v1784 = vadd.f32 %v1302, %v1574
    %v1785 = vadd.f32 %v1303, %v1576
    %v1786 = vadd.f32 %v1304, %v1579
    %v1787 = vadd.f32 %v1305, %v1581
    %v1788 = vadd.f32 %v1306, %v1584
    %v1789 = vadd.f32 %v1307, %v1586
    %v1790 = vadd.f32 %v1308, %v1589
    %v1791 = vadd.f32 %v1309, %v1591
    %v1792 = vadd.f32 %v1310, %v1594
    %v1793 = vadd.f32 %v1311, %v1596
    %v1794 = vadd.f32 %v1312, %v1599
    %v1795 = vadd.f32 %v1313, %v1601
    %v1796 = vadd.f32 %v1314, %v1604
    %v1797 = vadd.f32 %v1315, %v1606
    %v1798 = vadd.f32 %v1316, %v1609
    %v1799 = vadd.f32 %v1317, %v1611
    %v1800 = vadd.f32 %v1318, %v1614
    %v1801 = vadd.f32 %v1319, %v1616
    %v1802 = vadd.f32 %v1320, %v1619
    %v1803 = vadd.f32 %v1321, %v1621
    %v1804 = vadd.f32 %v1322, %v1624
    %v1805 = vadd.f32 %v1323, %v1626
    %v1806 = vadd.f32 %v1324, %v1629
    %v1807 = vadd.f32 %v1325, %v1631
    %v1808 = vadd.f32 %v1326, %v1634
    %v1809 = vadd.f32 %v1327, %v1636
    %v1810 = vadd.f32 %v1328, %v1639
    %v1811 = vadd.f32 %v1329, %v1641
    %v1812 = vadd.f32 %v1330, %v1644
    %v1813 = vadd.f32 %v1331, %v1646
    %v1814 = vadd.f32 %v1332, %v1649
    %v1815 = vadd.f32 %v1333, %v1651
    %v1816 = vadd.f32 %v1334, %v1654
    %v1817 = vadd.f32 %v1335, %v1656
    %v1818 = vadd.f32 %v1336, %v1659
    %v1819 = vadd.f32 %v1337, %v1661
    %v1820 = vadd.f32 %v1338, %v1664
    %v1821 = vadd.f32 %v1339, %v1666
    %v1822 = vadd.f32 %v1340, %v1669
    %v1823 = vadd.f32 %v1341, %v1671
    %v1824 = vadd.f32 %v1342, %v1674
    %v1825 = vadd.f32 %v1343, %v1676
    %v1826 = vadd.f32 %v1344, %v1679
    %v1827 = vadd.f32 %v1345, %v1681
    %v1828 = vadd.f32 %v1346, %v1684
    %v1829 = vadd.f32 %v1347, %v1686
    %v1830 = vadd.f32 %v1348, %v1689
    %v1831 = vadd.f32 %v1349, %v1691
    %v1832 = vadd.f32 %v1350, %v1694
    %v1833 = vadd.f32 %v1351, %v1696
    %v1834 = vadd.f32 %v1352, %v1699
    %v1835 = vadd.f32 %v1353, %v1701
    %v1836 = vadd.f32 %v1354, %v1704
    %v1837 = vadd.f32 %v1355, %v1706
    %v1838 = vadd.f32 %v1356, %v1709
    %v1839 = vadd.f32 %v1357, %v1711
    %s1840 = sld [smem:[#allocation2 + $0x82]]
    %v1841 = vstv %s1840
    %v1842 = vmul.f32 %v1841, %v27
    %v1843 = vmul.f32 %v1841, %v28
    %v1844 = vmul.f32 %v1841, %v29
    %v1845 = vmul.f32 %v1841, %v30
    %v1846 = vmul.f32 %v1841, %v31
    %v1847 = vmul.f32 %v1841, %v32
    %v1848 = vmul.f32 %v1841, %v33
    %v1849 = vmul.f32 %v1841, %v34
    %v1850 = vmul.f32 %v1841, %v35
    %v1851 = vmul.f32 %v1841, %v36
    %v1852 = vmul.f32 %v1841, %v37
    %v1853 = vmul.f32 %v1841, %v38
    %v1854 = vmul.f32 %v1841, %v39
    %v1855 = vmul.f32 %v1841, %v40
    %v1856 = vmul.f32 %v1841, %v41
    %v1857 = vmul.f32 %v1841, %v42
    %v1858 = vmul.f32 %v1841, %v43
    %v1859 = vmul.f32 %v1841, %v44
    %v1860 = vmul.f32 %v1841, %v45
    %v1861 = vmul.f32 %v1841, %v46
    %v1862 = vmul.f32 %v1841, %v47
    %v1863 = vmul.f32 %v1841, %v48
    %v1864 = vmul.f32 %v1841, %v49
    %v1865 = vmul.f32 %v1841, %v50
    %v1866 = vmul.f32 %v1841, %v51
    %v1867 = vmul.f32 %v1841, %v52
    %v1868 = vmul.f32 %v1841, %v53
    %v1869 = vmul.f32 %v1841, %v54
    %v1870 = vmul.f32 %v1841, %v55
    %v1871 = vmul.f32 %v1841, %v56
    %v1872 = vmul.f32 %v1841, %v57
    %v1873 = vmul.f32 %v1841, %v58
    %v1874 = vmul.f32 %v1841, %v59
    %v1875 = vmul.f32 %v1841, %v60
    %v1876 = vmul.f32 %v1841, %v61
    %v1877 = vmul.f32 %v1841, %v62
    %v1878 = vmul.f32 %v1841, %v63
    %v1879 = vmul.f32 %v1841, %v64
    %v1880 = vmul.f32 %v1841, %v65
    %v1881 = vmul.f32 %v1841, %v66
    %v1882 = vmul.f32 %v1841, %v67
    %v1883 = vmul.f32 %v1841, %v68
    %v1884 = vmul.f32 %v1841, %v69
    %v1885 = vmul.f32 %v1841, %v70
    %v1886 = vmul.f32 %v1841, %v71
    %v1887 = vmul.f32 %v1841, %v72
    %v1888 = vmul.f32 %v1841, %v73
    %v1889 = vmul.f32 %v1841, %v74
    %v1890 = vmul.f32 %v1841, %v81
    %v1891 = vmul.f32 %v1841, %v82
    %v1892 = vmul.f32 %v1841, %v83
    %v1893 = vmul.f32 %v1841, %v84
    %v1894 = vmul.f32 %v1841, %v85
    %v1895 = vmul.f32 %v1841, %v86
    %v1896 = vmul.f32 %v1841, %v87
    %v1897 = vmul.f32 %v1841, %v88
    %v1898 = vmul.f32 %v1841, %v89
    %v1899 = vmul.f32 %v1841, %v90
    %v1900 = vmul.f32 %v1841, %v91
    %v1901 = vmul.f32 %v1841, %v92
    %v1902 = vmul.f32 %v1841, %v93
    %v1903 = vmul.f32 %v1841, %v94
    %v1904 = vmul.f32 %v1841, %v95
    %v1905 = vmul.f32 %v1841, %v96
    %v1906 = vmul.f32 %v1841, %v97
    %v1907 = vmul.f32 %v1841, %v98
    %v1908 = vmul.f32 %v1841, %v99
    %v1909 = vmul.f32 %v1841, %v100
    %v1910 = vmul.f32 %v1841, %v101
    %v1911 = vmul.f32 %v1841, %v102
    %v1912 = vmul.f32 %v1841, %v103
    %v1913 = vmul.f32 %v1841, %v104
    %v1914 = vmul.f32 %v1841, %v105
    %v1915 = vmul.f32 %v1841, %v106
    %v1916 = vmul.f32 %v1841, %v107
    %v1917 = vmul.f32 %v1841, %v108
    %v1918 = vmul.f32 %v1841, %v109
    %v1919 = vmul.f32 %v1841, %v110
    %v1920 = vmul.f32 %v1841, %v111
    %v1921 = vmul.f32 %v1841, %v112
    %v1922 = vmul.f32 %v1841, %v113
    %v1923 = vmul.f32 %v1841, %v114
    %v1924 = vmul.f32 %v1841, %v115
    %v1925 = vmul.f32 %v1841, %v116
    %v1926 = vmul.f32 %v1841, %v117
    %v1927 = vmul.f32 %v1841, %v118
    %v1928 = vmul.f32 %v1841, %v119
    %v1929 = vmul.f32 %v1841, %v120
    %v1930 = vmul.f32 %v1841, %v121
    %v1931 = vmul.f32 %v1841, %v122
    %v1932 = vmul.f32 %v1841, %v123
    %v1933 = vmul.f32 %v1841, %v124
    %v1934 = vmul.f32 %v1841, %v125
    %v1935 = vmul.f32 %v1841, %v126
    %v1936 = vmul.f32 %v1841, %v127
    %v1937 = vmul.f32 %v1841, %v128
    %v2034 = vrot.slane %v1842, 2
    %v2035 = vrot.slane %v1843, 2
    %v2036 = vsel %vm939, %v2034, %v2035
    %v2037 = vrot.slane %v1844, 2
    %v2038 = vsel %vm939, %v2035, %v2037
    %v2039 = vrot.slane %v1845, 2
    %v2040 = vrot.slane %v1846, 2
    %v2041 = vsel %vm939, %v2039, %v2040
    %v2042 = vrot.slane %v1847, 2
    %v2043 = vsel %vm939, %v2040, %v2042
    %v2044 = vrot.slane %v1848, 2
    %v2045 = vrot.slane %v1849, 2
    %v2046 = vsel %vm939, %v2044, %v2045
    %v2047 = vrot.slane %v1850, 2
    %v2048 = vsel %vm939, %v2045, %v2047
    %v2049 = vrot.slane %v1851, 2
    %v2050 = vrot.slane %v1852, 2
    %v2051 = vsel %vm939, %v2049, %v2050
    %v2052 = vrot.slane %v1853, 2
    %v2053 = vsel %vm939, %v2050, %v2052
    %v2054 = vrot.slane %v1854, 2
    %v2055 = vrot.slane %v1855, 2
    %v2056 = vsel %vm939, %v2054, %v2055
    %v2057 = vrot.slane %v1856, 2
    %v2058 = vsel %vm939, %v2055, %v2057
    %v2059 = vrot.slane %v1857, 2
    %v2060 = vrot.slane %v1858, 2
    %v2061 = vsel %vm939, %v2059, %v2060
    %v2062 = vrot.slane %v1859, 2
    %v2063 = vsel %vm939, %v2060, %v2062
    %v2064 = vrot.slane %v1860, 2
    %v2065 = vrot.slane %v1861, 2
    %v2066 = vsel %vm939, %v2064, %v2065
    %v2067 = vrot.slane %v1862, 2
    %v2068 = vsel %vm939, %v2065, %v2067
    %v2069 = vrot.slane %v1863, 2
    %v2070 = vrot.slane %v1864, 2
    %v2071 = vsel %vm939, %v2069, %v2070
    %v2072 = vrot.slane %v1865, 2
    %v2073 = vsel %vm939, %v2070, %v2072
    %v2074 = vrot.slane %v1866, 2
    %v2075 = vrot.slane %v1867, 2
    %v2076 = vsel %vm939, %v2074, %v2075
    %v2077 = vrot.slane %v1868, 2
    %v2078 = vsel %vm939, %v2075, %v2077
    %v2079 = vrot.slane %v1869, 2
    %v2080 = vrot.slane %v1870, 2
    %v2081 = vsel %vm939, %v2079, %v2080
    %v2082 = vrot.slane %v1871, 2
    %v2083 = vsel %vm939, %v2080, %v2082
    %v2084 = vrot.slane %v1872, 2
    %v2085 = vrot.slane %v1873, 2
    %v2086 = vsel %vm939, %v2084, %v2085
    %v2087 = vrot.slane %v1874, 2
    %v2088 = vsel %vm939, %v2085, %v2087
    %v2089 = vrot.slane %v1875, 2
    %v2090 = vrot.slane %v1876, 2
    %v2091 = vsel %vm939, %v2089, %v2090
    %v2092 = vrot.slane %v1877, 2
    %v2093 = vsel %vm939, %v2090, %v2092
    %v2094 = vrot.slane %v1878, 2
    %v2095 = vrot.slane %v1879, 2
    %v2096 = vsel %vm939, %v2094, %v2095
    %v2097 = vrot.slane %v1880, 2
    %v2098 = vsel %vm939, %v2095, %v2097
    %v2099 = vrot.slane %v1881, 2
    %v2100 = vrot.slane %v1882, 2
    %v2101 = vsel %vm939, %v2099, %v2100
    %v2102 = vrot.slane %v1883, 2
    %v2103 = vsel %vm939, %v2100, %v2102
    %v2104 = vrot.slane %v1884, 2
    %v2105 = vrot.slane %v1885, 2
    %v2106 = vsel %vm939, %v2104, %v2105
    %v2107 = vrot.slane %v1886, 2
    %v2108 = vsel %vm939, %v2105, %v2107
    %v2109 = vrot.slane %v1887, 2
    %v2110 = vrot.slane %v1888, 2
    %v2111 = vsel %vm939, %v2109, %v2110
    %v2112 = vrot.slane %v1889, 2
    %v2113 = vsel %vm939, %v2110, %v2112
    %v2114 = vrot.slane %v1890, 2
    %v2115 = vrot.slane %v1891, 2
    %v2116 = vsel %vm939, %v2114, %v2115
    %v2117 = vrot.slane %v1892, 2
    %v2118 = vsel %vm939, %v2115, %v2117
    %v2119 = vrot.slane %v1893, 2
    %v2120 = vrot.slane %v1894, 2
    %v2121 = vsel %vm939, %v2119, %v2120
    %v2122 = vrot.slane %v1895, 2
    %v2123 = vsel %vm939, %v2120, %v2122
    %v2124 = vrot.slane %v1896, 2
    %v2125 = vrot.slane %v1897, 2
    %v2126 = vsel %vm939, %v2124, %v2125
    %v2127 = vrot.slane %v1898, 2
    %v2128 = vsel %vm939, %v2125, %v2127
    %v2129 = vrot.slane %v1899, 2
    %v2130 = vrot.slane %v1900, 2
    %v2131 = vsel %vm939, %v2129, %v2130
    %v2132 = vrot.slane %v1901, 2
    %v2133 = vsel %vm939, %v2130, %v2132
    %v2134 = vrot.slane %v1902, 2
    %v2135 = vrot.slane %v1903, 2
    %v2136 = vsel %vm939, %v2134, %v2135
    %v2137 = vrot.slane %v1904, 2
    %v2138 = vsel %vm939, %v2135, %v2137
    %v2139 = vrot.slane %v1905, 2
    %v2140 = vrot.slane %v1906, 2
    %v2141 = vsel %vm939, %v2139, %v2140
    %v2142 = vrot.slane %v1907, 2
    %v2143 = vsel %vm939, %v2140, %v2142
    %v2144 = vrot.slane %v1908, 2
    %v2145 = vrot.slane %v1909, 2
    %v2146 = vsel %vm939, %v2144, %v2145
    %v2147 = vrot.slane %v1910, 2
    %v2148 = vsel %vm939, %v2145, %v2147
    %v2149 = vrot.slane %v1911, 2
    %v2150 = vrot.slane %v1912, 2
    %v2151 = vsel %vm939, %v2149, %v2150
    %v2152 = vrot.slane %v1913, 2
    %v2153 = vsel %vm939, %v2150, %v2152
    %v2154 = vrot.slane %v1914, 2
    %v2155 = vrot.slane %v1915, 2
    %v2156 = vsel %vm939, %v2154, %v2155
    %v2157 = vrot.slane %v1916, 2
    %v2158 = vsel %vm939, %v2155, %v2157
    %v2159 = vrot.slane %v1917, 2
    %v2160 = vrot.slane %v1918, 2
    %v2161 = vsel %vm939, %v2159, %v2160
    %v2162 = vrot.slane %v1919, 2
    %v2163 = vsel %vm939, %v2160, %v2162
    %v2164 = vrot.slane %v1920, 2
    %v2165 = vrot.slane %v1921, 2
    %v2166 = vsel %vm939, %v2164, %v2165
    %v2167 = vrot.slane %v1922, 2
    %v2168 = vsel %vm939, %v2165, %v2167
    %v2169 = vrot.slane %v1923, 2
    %v2170 = vrot.slane %v1924, 2
    %v2171 = vsel %vm939, %v2169, %v2170
    %v2172 = vrot.slane %v1925, 2
    %v2173 = vsel %vm939, %v2170, %v2172
    %v2174 = vrot.slane %v1926, 2
    %v2175 = vrot.slane %v1927, 2
    %v2176 = vsel %vm939, %v2174, %v2175
    %v2177 = vrot.slane %v1928, 2
    %v2178 = vsel %vm939, %v2175, %v2177
    %v2179 = vrot.slane %v1929, 2
    %v2180 = vrot.slane %v1930, 2
    %v2181 = vsel %vm939, %v2179, %v2180
    %v2182 = vrot.slane %v1931, 2
    %v2183 = vsel %vm939, %v2180, %v2182
    %v2184 = vrot.slane %v1932, 2
    %v2185 = vrot.slane %v1933, 2
    %v2186 = vsel %vm939, %v2184, %v2185
    %v2187 = vrot.slane %v1934, 2
    %v2188 = vsel %vm939, %v2185, %v2187
    %v2189 = vrot.slane %v1935, 2
    %v2190 = vrot.slane %v1936, 2
    %v2191 = vsel %vm939, %v2189, %v2190
    %v2192 = vrot.slane %v1937, 2
    %v2193 = vsel %vm939, %v2190, %v2192
    %v2258 = vadd.f32 %v1776, %v2036
    %v2259 = vadd.f32 %v1777, %v2038
    %v2260 = vadd.f32 %v1778, %v2041
    %v2261 = vadd.f32 %v1779, %v2043
    %v2262 = vadd.f32 %v1780, %v2046
    %v2263 = vadd.f32 %v1781, %v2048
    %v2264 = vadd.f32 %v1782, %v2051
    %v2265 = vadd.f32 %v1783, %v2053
    %v2266 = vadd.f32 %v1784, %v2056
    %v2267 = vadd.f32 %v1785, %v2058
    %v2268 = vadd.f32 %v1786, %v2061
    %v2269 = vadd.f32 %v1787, %v2063
    %v2270 = vadd.f32 %v1788, %v2066
    %v2271 = vadd.f32 %v1789, %v2068
    %v2272 = vadd.f32 %v1790, %v2071
    %v2273 = vadd.f32 %v1791, %v2073
    %v2274 = vadd.f32 %v1792, %v2076
    %v2275 = vadd.f32 %v1793, %v2078
    %v2276 = vadd.f32 %v1794, %v2081
    %v2277 = vadd.f32 %v1795, %v2083
    %v2278 = vadd.f32 %v1796, %v2086
    %v2279 = vadd.f32 %v1797, %v2088
    %v2280 = vadd.f32 %v1798, %v2091
    %v2281 = vadd.f32 %v1799, %v2093
    %v2282 = vadd.f32 %v1800, %v2096
    %v2283 = vadd.f32 %v1801, %v2098
    %v2284 = vadd.f32 %v1802, %v2101
    %v2285 = vadd.f32 %v1803, %v2103
    %v2286 = vadd.f32 %v1804, %v2106
    %v2287 = vadd.f32 %v1805, %v2108
    %v2288 = vadd.f32 %v1806, %v2111
    %v2289 = vadd.f32 %v1807, %v2113
    %v2290 = vadd.f32 %v1808, %v2116
    %v2291 = vadd.f32 %v1809, %v2118
    %v2292 = vadd.f32 %v1810, %v2121
    %v2293 = vadd.f32 %v1811, %v2123
    %v2294 = vadd.f32 %v1812, %v2126
    %v2295 = vadd.f32 %v1813, %v2128
    %v2296 = vadd.f32 %v1814, %v2131
    %v2297 = vadd.f32 %v1815, %v2133
    %v2298 = vadd.f32 %v1816, %v2136
    %v2299 = vadd.f32 %v1817, %v2138
    %v2300 = vadd.f32 %v1818, %v2141
    %v2301 = vadd.f32 %v1819, %v2143
    %v2302 = vadd.f32 %v1820, %v2146
    %v2303 = vadd.f32 %v1821, %v2148
    %v2304 = vadd.f32 %v1822, %v2151
    %v2305 = vadd.f32 %v1823, %v2153
    %v2306 = vadd.f32 %v1824, %v2156
    %v2307 = vadd.f32 %v1825, %v2158
    %v2308 = vadd.f32 %v1826, %v2161
    %v2309 = vadd.f32 %v1827, %v2163
    %v2310 = vadd.f32 %v1828, %v2166
    %v2311 = vadd.f32 %v1829, %v2168
    %v2312 = vadd.f32 %v1830, %v2171
    %v2313 = vadd.f32 %v1831, %v2173
    %v2314 = vadd.f32 %v1832, %v2176
    %v2315 = vadd.f32 %v1833, %v2178
    %v2316 = vadd.f32 %v1834, %v2181
    %v2317 = vadd.f32 %v1835, %v2183
    %v2318 = vadd.f32 %v1836, %v2186
    %v2319 = vadd.f32 %v1837, %v2188
    %v2320 = vadd.f32 %v1838, %v2191
    %v2321 = vadd.f32 %v1839, %v2193
    %s2322 = sld [smem:[#allocation2 + $0x100]]
    %v2323 = vstv %s2322
    %v2324 = vmul.f32 %v2323, %v30
    %v2325 = vmul.f32 %v2323, %v31
    %v2326 = vmul.f32 %v2323, %v33
    %v2327 = vmul.f32 %v2323, %v34
    %v2328 = vmul.f32 %v2323, %v36
    %v2329 = vmul.f32 %v2323, %v37
    %v2330 = vmul.f32 %v2323, %v39
    %v2331 = vmul.f32 %v2323, %v40
    %v2332 = vmul.f32 %v2323, %v42
    %v2333 = vmul.f32 %v2323, %v43
    %v2334 = vmul.f32 %v2323, %v45
    %v2335 = vmul.f32 %v2323, %v46
    %v2336 = vmul.f32 %v2323, %v48
    %v2337 = vmul.f32 %v2323, %v49
    %v2338 = vmul.f32 %v2323, %v51
    %v2339 = vmul.f32 %v2323, %v52
    %v2340 = vmul.f32 %v2323, %v54
    %v2341 = vmul.f32 %v2323, %v55
    %v2342 = vmul.f32 %v2323, %v57
    %v2343 = vmul.f32 %v2323, %v58
    %v2344 = vmul.f32 %v2323, %v60
    %v2345 = vmul.f32 %v2323, %v61
    %v2346 = vmul.f32 %v2323, %v63
    %v2347 = vmul.f32 %v2323, %v64
    %v2348 = vmul.f32 %v2323, %v66
    %v2349 = vmul.f32 %v2323, %v67
    %v2350 = vmul.f32 %v2323, %v69
    %v2351 = vmul.f32 %v2323, %v70
    %v2352 = vmul.f32 %v2323, %v72
    %v2353 = vmul.f32 %v2323, %v73
    %v2354 = vmul.f32 %v2323, %v75
    %v2355 = vmul.f32 %v2323, %v76
    %v2356 = vmul.f32 %v2323, %v84
    %v2357 = vmul.f32 %v2323, %v85
    %v2358 = vmul.f32 %v2323, %v87
    %v2359 = vmul.f32 %v2323, %v88
    %v2360 = vmul.f32 %v2323, %v90
    %v2361 = vmul.f32 %v2323, %v91
    %v2362 = vmul.f32 %v2323, %v93
    %v2363 = vmul.f32 %v2323, %v94
    %v2364 = vmul.f32 %v2323, %v96
    %v2365 = vmul.f32 %v2323, %v97
    %v2366 = vmul.f32 %v2323, %v99
    %v2367 = vmul.f32 %v2323, %v100
    %v2368 = vmul.f32 %v2323, %v102
    %v2369 = vmul.f32 %v2323, %v103
    %v2370 = vmul.f32 %v2323, %v105
    %v2371 = vmul.f32 %v2323, %v106
    %v2372 = vmul.f32 %v2323, %v108
    %v2373 = vmul.f32 %v2323, %v109
    %v2374 = vmul.f32 %v2323, %v111
    %v2375 = vmul.f32 %v2323, %v112
    %v2376 = vmul.f32 %v2323, %v114
    %v2377 = vmul.f32 %v2323, %v115
    %v2378 = vmul.f32 %v2323, %v117
    %v2379 = vmul.f32 %v2323, %v118
    %v2380 = vmul.f32 %v2323, %v120
    %v2381 = vmul.f32 %v2323, %v121
    %v2382 = vmul.f32 %v2323, %v123
    %v2383 = vmul.f32 %v2323, %v124
    %v2384 = vmul.f32 %v2323, %v126
    %v2385 = vmul.f32 %v2323, %v127
    %v2386 = vmul.f32 %v2323, %v129
    %v2387 = vmul.f32 %v2323, %v130
    %v2388 = vadd.f32 %v2258, %v2324
    %v2389 = vadd.f32 %v2259, %v2325
    %v2390 = vadd.f32 %v2260, %v2326
    %v2391 = vadd.f32 %v2261, %v2327
    %v2392 = vadd.f32 %v2262, %v2328
    %v2393 = vadd.f32 %v2263, %v2329
    %v2394 = vadd.f32 %v2264, %v2330
    %v2395 = vadd.f32 %v2265, %v2331
    %v2396 = vadd.f32 %v2266, %v2332
    %v2397 = vadd.f32 %v2267, %v2333
    %v2398 = vadd.f32 %v2268, %v2334
    %v2399 = vadd.f32 %v2269, %v2335
    %v2400 = vadd.f32 %v2270, %v2336
    %v2401 = vadd.f32 %v2271, %v2337
    %v2402 = vadd.f32 %v2272, %v2338
    %v2403 = vadd.f32 %v2273, %v2339
    %v2404 = vadd.f32 %v2274, %v2340
    %v2405 = vadd.f32 %v2275, %v2341
    %v2406 = vadd.f32 %v2276, %v2342
    %v2407 = vadd.f32 %v2277, %v2343
    %v2408 = vadd.f32 %v2278, %v2344
    %v2409 = vadd.f32 %v2279, %v2345
    %v2410 = vadd.f32 %v2280, %v2346
    %v2411 = vadd.f32 %v2281, %v2347
    %v2412 = vadd.f32 %v2282, %v2348
    %v2413 = vadd.f32 %v2283, %v2349
    %v2414 = vadd.f32 %v2284, %v2350
    %v2415 = vadd.f32 %v2285, %v2351
    %v2416 = vadd.f32 %v2286, %v2352
    %v2417 = vadd.f32 %v2287, %v2353
    %v2418 = vadd.f32 %v2288, %v2354
    %v2419 = vadd.f32 %v2289, %v2355
    %v2420 = vadd.f32 %v2290, %v2356
    %v2421 = vadd.f32 %v2291, %v2357
    %v2422 = vadd.f32 %v2292, %v2358
    %v2423 = vadd.f32 %v2293, %v2359
    %v2424 = vadd.f32 %v2294, %v2360
    %v2425 = vadd.f32 %v2295, %v2361
    %v2426 = vadd.f32 %v2296, %v2362
    %v2427 = vadd.f32 %v2297, %v2363
    %v2428 = vadd.f32 %v2298, %v2364
    %v2429 = vadd.f32 %v2299, %v2365
    %v2430 = vadd.f32 %v2300, %v2366
    %v2431 = vadd.f32 %v2301, %v2367
    %v2432 = vadd.f32 %v2302, %v2368
    %v2433 = vadd.f32 %v2303, %v2369
    %v2434 = vadd.f32 %v2304, %v2370
    %v2435 = vadd.f32 %v2305, %v2371
    %v2436 = vadd.f32 %v2306, %v2372
    %v2437 = vadd.f32 %v2307, %v2373
    %v2438 = vadd.f32 %v2308, %v2374
    %v2439 = vadd.f32 %v2309, %v2375
    %v2440 = vadd.f32 %v2310, %v2376
    %v2441 = vadd.f32 %v2311, %v2377
    %v2442 = vadd.f32 %v2312, %v2378
    %v2443 = vadd.f32 %v2313, %v2379
    %v2444 = vadd.f32 %v2314, %v2380
    %v2445 = vadd.f32 %v2315, %v2381
    %v2446 = vadd.f32 %v2316, %v2382
    %v2447 = vadd.f32 %v2317, %v2383
    %v2448 = vadd.f32 %v2318, %v2384
    %v2449 = vadd.f32 %v2319, %v2385
    %v2450 = vadd.f32 %v2320, %v2386
    %v2451 = vadd.f32 %v2321, %v2387
    %s2452 = sld [smem:[#allocation2 + $0x101]]
    %v2453 = vstv %s2452
    %v2454 = vmul.f32 %v2453, %v30
    %v2455 = vmul.f32 %v2453, %v31
    %v2456 = vmul.f32 %v2453, %v32
    %v2457 = vmul.f32 %v2453, %v33
    %v2458 = vmul.f32 %v2453, %v34
    %v2459 = vmul.f32 %v2453, %v35
    %v2460 = vmul.f32 %v2453, %v36
    %v2461 = vmul.f32 %v2453, %v37
    %v2462 = vmul.f32 %v2453, %v38
    %v2463 = vmul.f32 %v2453, %v39
    %v2464 = vmul.f32 %v2453, %v40
    %v2465 = vmul.f32 %v2453, %v41
    %v2466 = vmul.f32 %v2453, %v42
    %v2467 = vmul.f32 %v2453, %v43
    %v2468 = vmul.f32 %v2453, %v44
    %v2469 = vmul.f32 %v2453, %v45
    %v2470 = vmul.f32 %v2453, %v46
    %v2471 = vmul.f32 %v2453, %v47
    %v2472 = vmul.f32 %v2453, %v48
    %v2473 = vmul.f32 %v2453, %v49
    %v2474 = vmul.f32 %v2453, %v50
    %v2475 = vmul.f32 %v2453, %v51
    %v2476 = vmul.f32 %v2453, %v52
    %v2477 = vmul.f32 %v2453, %v53
    %v2478 = vmul.f32 %v2453, %v54
    %v2479 = vmul.f32 %v2453, %v55
    %v2480 = vmul.f32 %v2453, %v56
    %v2481 = vmul.f32 %v2453, %v57
    %v2482 = vmul.f32 %v2453, %v58
    %v2483 = vmul.f32 %v2453, %v59
    %v2484 = vmul.f32 %v2453, %v60
    %v2485 = vmul.f32 %v2453, %v61
    %v2486 = vmul.f32 %v2453, %v62
    %v2487 = vmul.f32 %v2453, %v63
    %v2488 = vmul.f32 %v2453, %v64
    %v2489 = vmul.f32 %v2453, %v65
    %v2490 = vmul.f32 %v2453, %v66
    %v2491 = vmul.f32 %v2453, %v67
    %v2492 = vmul.f32 %v2453, %v68
    %v2493 = vmul.f32 %v2453, %v69
    %v2494 = vmul.f32 %v2453, %v70
    %v2495 = vmul.f32 %v2453, %v71
    %v2496 = vmul.f32 %v2453, %v72
    %v2497 = vmul.f32 %v2453, %v73
    %v2498 = vmul.f32 %v2453, %v74
    %v2499 = vmul.f32 %v2453, %v75
    %v2500 = vmul.f32 %v2453, %v76
    %v2501 = vmul.f32 %v2453, %v77
    %v2502 = vmul.f32 %v2453, %v84
    %v2503 = vmul.f32 %v2453, %v85
    %v2504 = vmul.f32 %v2453, %v86
    %v2505 = vmul.f32 %v2453, %v87
    %v2506 = vmul.f32 %v2453, %v88
    %v2507 = vmul.f32 %v2453, %v89
    %v2508 = vmul.f32 %v2453, %v90
    %v2509 = vmul.f32 %v2453, %v91
    %v2510 = vmul.f32 %v2453, %v92
    %v2511 = vmul.f32 %v2453, %v93
    %v2512 = vmul.f32 %v2453, %v94
    %v2513 = vmul.f32 %v2453, %v95
    %v2514 = vmul.f32 %v2453, %v96
    %v2515 = vmul.f32 %v2453, %v97
    %v2516 = vmul.f32 %v2453, %v98
    %v2517 = vmul.f32 %v2453, %v99
    %v2518 = vmul.f32 %v2453, %v100
    %v2519 = vmul.f32 %v2453, %v101
    %v2520 = vmul.f32 %v2453, %v102
    %v2521 = vmul.f32 %v2453, %v103
    %v2522 = vmul.f32 %v2453, %v104
    %v2523 = vmul.f32 %v2453, %v105
    %v2524 = vmul.f32 %v2453, %v106
    %v2525 = vmul.f32 %v2453, %v107
    %v2526 = vmul.f32 %v2453, %v108
    %v2527 = vmul.f32 %v2453, %v109
    %v2528 = vmul.f32 %v2453, %v110
    %v2529 = vmul.f32 %v2453, %v111
    %v2530 = vmul.f32 %v2453, %v112
    %v2531 = vmul.f32 %v2453, %v113
    %v2532 = vmul.f32 %v2453, %v114
    %v2533 = vmul.f32 %v2453, %v115
    %v2534 = vmul.f32 %v2453, %v116
    %v2535 = vmul.f32 %v2453, %v117
    %v2536 = vmul.f32 %v2453, %v118
    %v2537 = vmul.f32 %v2453, %v119
    %v2538 = vmul.f32 %v2453, %v120
    %v2539 = vmul.f32 %v2453, %v121
    %v2540 = vmul.f32 %v2453, %v122
    %v2541 = vmul.f32 %v2453, %v123
    %v2542 = vmul.f32 %v2453, %v124
    %v2543 = vmul.f32 %v2453, %v125
    %v2544 = vmul.f32 %v2453, %v126
    %v2545 = vmul.f32 %v2453, %v127
    %v2546 = vmul.f32 %v2453, %v128
    %v2547 = vmul.f32 %v2453, %v129
    %v2548 = vmul.f32 %v2453, %v130
    %v2549 = vmul.f32 %v2453, %v131
    %v2646 = vrot.slane %v2454, 1
    %v2647 = vrot.slane %v2455, 1
    %v2648 = vsel %vm456, %v2646, %v2647
    %v2649 = vrot.slane %v2456, 1
    %v2650 = vsel %vm456, %v2647, %v2649
    %v2651 = vrot.slane %v2457, 1
    %v2652 = vrot.slane %v2458, 1
    %v2653 = vsel %vm456, %v2651, %v2652
    %v2654 = vrot.slane %v2459, 1
    %v2655 = vsel %vm456, %v2652, %v2654
    %v2656 = vrot.slane %v2460, 1
    %v2657 = vrot.slane %v2461, 1
    %v2658 = vsel %vm456, %v2656, %v2657
    %v2659 = vrot.slane %v2462, 1
    %v2660 = vsel %vm456, %v2657, %v2659
    %v2661 = vrot.slane %v2463, 1
    %v2662 = vrot.slane %v2464, 1
    %v2663 = vsel %vm456, %v2661, %v2662
    %v2664 = vrot.slane %v2465, 1
    %v2665 = vsel %vm456, %v2662, %v2664
    %v2666 = vrot.slane %v2466, 1
    %v2667 = vrot.slane %v2467, 1
    %v2668 = vsel %vm456, %v2666, %v2667
    %v2669 = vrot.slane %v2468, 1
    %v2670 = vsel %vm456, %v2667, %v2669
    %v2671 = vrot.slane %v2469, 1
    %v2672 = vrot.slane %v2470, 1
    %v2673 = vsel %vm456, %v2671, %v2672
    %v2674 = vrot.slane %v2471, 1
    %v2675 = vsel %vm456, %v2672, %v2674
    %v2676 = vrot.slane %v2472, 1
    %v2677 = vrot.slane %v2473, 1
    %v2678 = vsel %vm456, %v2676, %v2677
    %v2679 = vrot.slane %v2474, 1
    %v2680 = vsel %vm456, %v2677, %v2679
    %v2681 = vrot.slane %v2475, 1
    %v2682 = vrot.slane %v2476, 1
    %v2683 = vsel %vm456, %v2681, %v2682
    %v2684 = vrot.slane %v2477, 1
    %v2685 = vsel %vm456, %v2682, %v2684
    %v2686 = vrot.slane %v2478, 1
    %v2687 = vrot.slane %v2479, 1
    %v2688 = vsel %vm456, %v2686, %v2687
    %v2689 = vrot.slane %v2480, 1
    %v2690 = vsel %vm456, %v2687, %v2689
    %v2691 = vrot.slane %v2481, 1
    %v2692 = vrot.slane %v2482, 1
    %v2693 = vsel %vm456, %v2691, %v2692
    %v2694 = vrot.slane %v2483, 1
    %v2695 = vsel %vm456, %v2692, %v2694
    %v2696 = vrot.slane %v2484, 1
    %v2697 = vrot.slane %v2485, 1
    %v2698 = vsel %vm456, %v2696, %v2697
    %v2699 = vrot.slane %v2486, 1
    %v2700 = vsel %vm456, %v2697, %v2699
    %v2701 = vrot.slane %v2487, 1
    %v2702 = vrot.slane %v2488, 1
    %v2703 = vsel %vm456, %v2701, %v2702
    %v2704 = vrot.slane %v2489, 1
    %v2705 = vsel %vm456, %v2702, %v2704
    %v2706 = vrot.slane %v2490, 1
    %v2707 = vrot.slane %v2491, 1
    %v2708 = vsel %vm456, %v2706, %v2707
    %v2709 = vrot.slane %v2492, 1
    %v2710 = vsel %vm456, %v2707, %v2709
    %v2711 = vrot.slane %v2493, 1
    %v2712 = vrot.slane %v2494, 1
    %v2713 = vsel %vm456, %v2711, %v2712
    %v2714 = vrot.slane %v2495, 1
    %v2715 = vsel %vm456, %v2712, %v2714
    %v2716 = vrot.slane %v2496, 1
    %v2717 = vrot.slane %v2497, 1
    %v2718 = vsel %vm456, %v2716, %v2717
    %v2719 = vrot.slane %v2498, 1
    %v2720 = vsel %vm456, %v2717, %v2719
    %v2721 = vrot.slane %v2499, 1
    %v2722 = vrot.slane %v2500, 1
    %v2723 = vsel %vm456, %v2721, %v2722
    %v2724 = vrot.slane %v2501, 1
    %v2725 = vsel %vm456, %v2722, %v2724
    %v2726 = vrot.slane %v2502, 1
    %v2727 = vrot.slane %v2503, 1
    %v2728 = vsel %vm456, %v2726, %v2727
    %v2729 = vrot.slane %v2504, 1
    %v2730 = vsel %vm456, %v2727, %v2729
    %v2731 = vrot.slane %v2505, 1
    %v2732 = vrot.slane %v2506, 1
    %v2733 = vsel %vm456, %v2731, %v2732
    %v2734 = vrot.slane %v2507, 1
    %v2735 = vsel %vm456, %v2732, %v2734
    %v2736 = vrot.slane %v2508, 1
    %v2737 = vrot.slane %v2509, 1
    %v2738 = vsel %vm456, %v2736, %v2737
    %v2739 = vrot.slane %v2510, 1
    %v2740 = vsel %vm456, %v2737, %v2739
    %v2741 = vrot.slane %v2511, 1
    %v2742 = vrot.slane %v2512, 1
    %v2743 = vsel %vm456, %v2741, %v2742
    %v2744 = vrot.slane %v2513, 1
    %v2745 = vsel %vm456, %v2742, %v2744
    %v2746 = vrot.slane %v2514, 1
    %v2747 = vrot.slane %v2515, 1
    %v2748 = vsel %vm456, %v2746, %v2747
    %v2749 = vrot.slane %v2516, 1
    %v2750 = vsel %vm456, %v2747, %v2749
    %v2751 = vrot.slane %v2517, 1
    %v2752 = vrot.slane %v2518, 1
    %v2753 = vsel %vm456, %v2751, %v2752
    %v2754 = vrot.slane %v2519, 1
    %v2755 = vsel %vm456, %v2752, %v2754
    %v2756 = vrot.slane %v2520, 1
    %v2757 = vrot.slane %v2521, 1
    %v2758 = vsel %vm456, %v2756, %v2757
    %v2759 = vrot.slane %v2522, 1
    %v2760 = vsel %vm456, %v2757, %v2759
    %v2761 = vrot.slane %v2523, 1
    %v2762 = vrot.slane %v2524, 1
    %v2763 = vsel %vm456, %v2761, %v2762
    %v2764 = vrot.slane %v2525, 1
    %v2765 = vsel %vm456, %v2762, %v2764
    %v2766 = vrot.slane %v2526, 1
    %v2767 = vrot.slane %v2527, 1
    %v2768 = vsel %vm456, %v2766, %v2767
    %v2769 = vrot.slane %v2528, 1
    %v2770 = vsel %vm456, %v2767, %v2769
    %v2771 = vrot.slane %v2529, 1
    %v2772 = vrot.slane %v2530, 1
    %v2773 = vsel %vm456, %v2771, %v2772
    %v2774 = vrot.slane %v2531, 1
    %v2775 = vsel %vm456, %v2772, %v2774
    %v2776 = vrot.slane %v2532, 1
    %v2777 = vrot.slane %v2533, 1
    %v2778 = vsel %vm456, %v2776, %v2777
    %v2779 = vrot.slane %v2534, 1
    %v2780 = vsel %vm456, %v2777, %v2779
    %v2781 = vrot.slane %v2535, 1
    %v2782 = vrot.slane %v2536, 1
    %v2783 = vsel %vm456, %v2781, %v2782
    %v2784 = vrot.slane %v2537, 1
    %v2785 = vsel %vm456, %v2782, %v2784
    %v2786 = vrot.slane %v2538, 1
    %v2787 = vrot.slane %v2539, 1
    %v2788 = vsel %vm456, %v2786, %v2787
    %v2789 = vrot.slane %v2540, 1
    %v2790 = vsel %vm456, %v2787, %v2789
    %v2791 = vrot.slane %v2541, 1
    %v2792 = vrot.slane %v2542, 1
    %v2793 = vsel %vm456, %v2791, %v2792
    %v2794 = vrot.slane %v2543, 1
    %v2795 = vsel %vm456, %v2792, %v2794
    %v2796 = vrot.slane %v2544, 1
    %v2797 = vrot.slane %v2545, 1
    %v2798 = vsel %vm456, %v2796, %v2797
    %v2799 = vrot.slane %v2546, 1
    %v2800 = vsel %vm456, %v2797, %v2799
    %v2801 = vrot.slane %v2547, 1
    %v2802 = vrot.slane %v2548, 1
    %v2803 = vsel %vm456, %v2801, %v2802
    %v2804 = vrot.slane %v2549, 1
    %v2805 = vsel %vm456, %v2802, %v2804
    %v2870 = vadd.f32 %v2388, %v2648
    %v2871 = vadd.f32 %v2389, %v2650
    %v2872 = vadd.f32 %v2390, %v2653
    %v2873 = vadd.f32 %v2391, %v2655
    %v2874 = vadd.f32 %v2392, %v2658
    %v2875 = vadd.f32 %v2393, %v2660
    %v2876 = vadd.f32 %v2394, %v2663
    %v2877 = vadd.f32 %v2395, %v2665
    %v2878 = vadd.f32 %v2396, %v2668
    %v2879 = vadd.f32 %v2397, %v2670
    %v2880 = vadd.f32 %v2398, %v2673
    %v2881 = vadd.f32 %v2399, %v2675
    %v2882 = vadd.f32 %v2400, %v2678
    %v2883 = vadd.f32 %v2401, %v2680
    %v2884 = vadd.f32 %v2402, %v2683
    %v2885 = vadd.f32 %v2403, %v2685
    %v2886 = vadd.f32 %v2404, %v2688
    %v2887 = vadd.f32 %v2405, %v2690
    %v2888 = vadd.f32 %v2406, %v2693
    %v2889 = vadd.f32 %v2407, %v2695
    %v2890 = vadd.f32 %v2408, %v2698
    %v2891 = vadd.f32 %v2409, %v2700
    %v2892 = vadd.f32 %v2410, %v2703
    %v2893 = vadd.f32 %v2411, %v2705
    %v2894 = vadd.f32 %v2412, %v2708
    %v2895 = vadd.f32 %v2413, %v2710
    %v2896 = vadd.f32 %v2414, %v2713
    %v2897 = vadd.f32 %v2415, %v2715
    %v2898 = vadd.f32 %v2416, %v2718
    %v2899 = vadd.f32 %v2417, %v2720
    %v2900 = vadd.f32 %v2418, %v2723
    %v2901 = vadd.f32 %v2419, %v2725
    %v2902 = vadd.f32 %v2420, %v2728
    %v2903 = vadd.f32 %v2421, %v2730
    %v2904 = vadd.f32 %v2422, %v2733
    %v2905 = vadd.f32 %v2423, %v2735
    %v2906 = vadd.f32 %v2424, %v2738
    %v2907 = vadd.f32 %v2425, %v2740
    %v2908 = vadd.f32 %v2426, %v2743
    %v2909 = vadd.f32 %v2427, %v2745
    %v2910 = vadd.f32 %v2428, %v2748
    %v2911 = vadd.f32 %v2429, %v2750
    %v2912 = vadd.f32 %v2430, %v2753
    %v2913 = vadd.f32 %v2431, %v2755
    %v2914 = vadd.f32 %v2432, %v2758
    %v2915 = vadd.f32 %v2433, %v2760
    %v2916 = vadd.f32 %v2434, %v2763
    %v2917 = vadd.f32 %v2435, %v2765
    %v2918 = vadd.f32 %v2436, %v2768
    %v2919 = vadd.f32 %v2437, %v2770
    %v2920 = vadd.f32 %v2438, %v2773
    %v2921 = vadd.f32 %v2439, %v2775
    %v2922 = vadd.f32 %v2440, %v2778
    %v2923 = vadd.f32 %v2441, %v2780
    %v2924 = vadd.f32 %v2442, %v2783
    %v2925 = vadd.f32 %v2443, %v2785
    %v2926 = vadd.f32 %v2444, %v2788
    %v2927 = vadd.f32 %v2445, %v2790
    %v2928 = vadd.f32 %v2446, %v2793
    %v2929 = vadd.f32 %v2447, %v2795
    %v2930 = vadd.f32 %v2448, %v2798
    %v2931 = vadd.f32 %v2449, %v2800
    %v2932 = vadd.f32 %v2450, %v2803
    %v2933 = vadd.f32 %v2451, %v2805
    %s2934 = sld [smem:[#allocation2 + $0x102]]
    %v2935 = vstv %s2934
    %v2936 = vmul.f32 %v2935, %v30
    %v2937 = vmul.f32 %v2935, %v31
    %v2938 = vmul.f32 %v2935, %v32
    %v2939 = vmul.f32 %v2935, %v33
    %v2940 = vmul.f32 %v2935, %v34
    %v2941 = vmul.f32 %v2935, %v35
    %v2942 = vmul.f32 %v2935, %v36
    %v2943 = vmul.f32 %v2935, %v37
    %v2944 = vmul.f32 %v2935, %v38
    %v2945 = vmul.f32 %v2935, %v39
    %v2946 = vmul.f32 %v2935, %v40
    %v2947 = vmul.f32 %v2935, %v41
    %v2948 = vmul.f32 %v2935, %v42
    %v2949 = vmul.f32 %v2935, %v43
    %v2950 = vmul.f32 %v2935, %v44
    %v2951 = vmul.f32 %v2935, %v45
    %v2952 = vmul.f32 %v2935, %v46
    %v2953 = vmul.f32 %v2935, %v47
    %v2954 = vmul.f32 %v2935, %v48
    %v2955 = vmul.f32 %v2935, %v49
    %v2956 = vmul.f32 %v2935, %v50
    %v2957 = vmul.f32 %v2935, %v51
    %v2958 = vmul.f32 %v2935, %v52
    %v2959 = vmul.f32 %v2935, %v53
    %v2960 = vmul.f32 %v2935, %v54
    %v2961 = vmul.f32 %v2935, %v55
    %v2962 = vmul.f32 %v2935, %v56
    %v2963 = vmul.f32 %v2935, %v57
    %v2964 = vmul.f32 %v2935, %v58
    %v2965 = vmul.f32 %v2935, %v59
    %v2966 = vmul.f32 %v2935, %v60
    %v2967 = vmul.f32 %v2935, %v61
    %v2968 = vmul.f32 %v2935, %v62
    %v2969 = vmul.f32 %v2935, %v63
    %v2970 = vmul.f32 %v2935, %v64
    %v2971 = vmul.f32 %v2935, %v65
    %v2972 = vmul.f32 %v2935, %v66
    %v2973 = vmul.f32 %v2935, %v67
    %v2974 = vmul.f32 %v2935, %v68
    %v2975 = vmul.f32 %v2935, %v69
    %v2976 = vmul.f32 %v2935, %v70
    %v2977 = vmul.f32 %v2935, %v71
    %v2978 = vmul.f32 %v2935, %v72
    %v2979 = vmul.f32 %v2935, %v73
    %v2980 = vmul.f32 %v2935, %v74
    %v2981 = vmul.f32 %v2935, %v75
    %v2982 = vmul.f32 %v2935, %v76
    %v2983 = vmul.f32 %v2935, %v77
    %v2984 = vmul.f32 %v2935, %v84
    %v2985 = vmul.f32 %v2935, %v85
    %v2986 = vmul.f32 %v2935, %v86
    %v2987 = vmul.f32 %v2935, %v87
    %v2988 = vmul.f32 %v2935, %v88
    %v2989 = vmul.f32 %v2935, %v89
    %v2990 = vmul.f32 %v2935, %v90
    %v2991 = vmul.f32 %v2935, %v91
    %v2992 = vmul.f32 %v2935, %v92
    %v2993 = vmul.f32 %v2935, %v93
    %v2994 = vmul.f32 %v2935, %v94
    %v2995 = vmul.f32 %v2935, %v95
    %v2996 = vmul.f32 %v2935, %v96
    %v2997 = vmul.f32 %v2935, %v97
    %v2998 = vmul.f32 %v2935, %v98
    %v2999 = vmul.f32 %v2935, %v99
    %v3000 = vmul.f32 %v2935, %v100
    %v3001 = vmul.f32 %v2935, %v101
    %v3002 = vmul.f32 %v2935, %v102
    %v3003 = vmul.f32 %v2935, %v103
    %v3004 = vmul.f32 %v2935, %v104
    %v3005 = vmul.f32 %v2935, %v105
    %v3006 = vmul.f32 %v2935, %v106
    %v3007 = vmul.f32 %v2935, %v107
    %v3008 = vmul.f32 %v2935, %v108
    %v3009 = vmul.f32 %v2935, %v109
    %v3010 = vmul.f32 %v2935, %v110
    %v3011 = vmul.f32 %v2935, %v111
    %v3012 = vmul.f32 %v2935, %v112
    %v3013 = vmul.f32 %v2935, %v113
    %v3014 = vmul.f32 %v2935, %v114
    %v3015 = vmul.f32 %v2935, %v115
    %v3016 = vmul.f32 %v2935, %v116
    %v3017 = vmul.f32 %v2935, %v117
    %v3018 = vmul.f32 %v2935, %v118
    %v3019 = vmul.f32 %v2935, %v119
    %v3020 = vmul.f32 %v2935, %v120
    %v3021 = vmul.f32 %v2935, %v121
    %v3022 = vmul.f32 %v2935, %v122
    %v3023 = vmul.f32 %v2935, %v123
    %v3024 = vmul.f32 %v2935, %v124
    %v3025 = vmul.f32 %v2935, %v125
    %v3026 = vmul.f32 %v2935, %v126
    %v3027 = vmul.f32 %v2935, %v127
    %v3028 = vmul.f32 %v2935, %v128
    %v3029 = vmul.f32 %v2935, %v129
    %v3030 = vmul.f32 %v2935, %v130
    %v3031 = vmul.f32 %v2935, %v131
    %v3128 = vrot.slane %v2936, 2
    %v3129 = vrot.slane %v2937, 2
    %v3130 = vsel %vm939, %v3128, %v3129
    %v3131 = vrot.slane %v2938, 2
    %v3132 = vsel %vm939, %v3129, %v3131
    %v3133 = vrot.slane %v2939, 2
    %v3134 = vrot.slane %v2940, 2
    %v3135 = vsel %vm939, %v3133, %v3134
    %v3136 = vrot.slane %v2941, 2
    %v3137 = vsel %vm939, %v3134, %v3136
    %v3138 = vrot.slane %v2942, 2
    %v3139 = vrot.slane %v2943, 2
    %v3140 = vsel %vm939, %v3138, %v3139
    %v3141 = vrot.slane %v2944, 2
    %v3142 = vsel %vm939, %v3139, %v3141
    %v3143 = vrot.slane %v2945, 2
    %v3144 = vrot.slane %v2946, 2
    %v3145 = vsel %vm939, %v3143, %v3144
    %v3146 = vrot.slane %v2947, 2
    %v3147 = vsel %vm939, %v3144, %v3146
    %v3148 = vrot.slane %v2948, 2
    %v3149 = vrot.slane %v2949, 2
    %v3150 = vsel %vm939, %v3148, %v3149
    %v3151 = vrot.slane %v2950, 2
    %v3152 = vsel %vm939, %v3149, %v3151
    %v3153 = vrot.slane %v2951, 2
    %v3154 = vrot.slane %v2952, 2
    %v3155 = vsel %vm939, %v3153, %v3154
    %v3156 = vrot.slane %v2953, 2
    %v3157 = vsel %vm939, %v3154, %v3156
    %v3158 = vrot.slane %v2954, 2
    %v3159 = vrot.slane %v2955, 2
    %v3160 = vsel %vm939, %v3158, %v3159
    %v3161 = vrot.slane %v2956, 2
    %v3162 = vsel %vm939, %v3159, %v3161
    %v3163 = vrot.slane %v2957, 2
    %v3164 = vrot.slane %v2958, 2
    %v3165 = vsel %vm939, %v3163, %v3164
    %v3166 = vrot.slane %v2959, 2
    %v3167 = vsel %vm939, %v3164, %v3166
    %v3168 = vrot.slane %v2960, 2
    %v3169 = vrot.slane %v2961, 2
    %v3170 = vsel %vm939, %v3168, %v3169
    %v3171 = vrot.slane %v2962, 2
    %v3172 = vsel %vm939, %v3169, %v3171
    %v3173 = vrot.slane %v2963, 2
    %v3174 = vrot.slane %v2964, 2
    %v3175 = vsel %vm939, %v3173, %v3174
    %v3176 = vrot.slane %v2965, 2
    %v3177 = vsel %vm939, %v3174, %v3176
    %v3178 = vrot.slane %v2966, 2
    %v3179 = vrot.slane %v2967, 2
    %v3180 = vsel %vm939, %v3178, %v3179
    %v3181 = vrot.slane %v2968, 2
    %v3182 = vsel %vm939, %v3179, %v3181
    %v3183 = vrot.slane %v2969, 2
    %v3184 = vrot.slane %v2970, 2
    %v3185 = vsel %vm939, %v3183, %v3184
    %v3186 = vrot.slane %v2971, 2
    %v3187 = vsel %vm939, %v3184, %v3186
    %v3188 = vrot.slane %v2972, 2
    %v3189 = vrot.slane %v2973, 2
    %v3190 = vsel %vm939, %v3188, %v3189
    %v3191 = vrot.slane %v2974, 2
    %v3192 = vsel %vm939, %v3189, %v3191
    %v3193 = vrot.slane %v2975, 2
    %v3194 = vrot.slane %v2976, 2
    %v3195 = vsel %vm939, %v3193, %v3194
    %v3196 = vrot.slane %v2977, 2
    %v3197 = vsel %vm939, %v3194, %v3196
    %v3198 = vrot.slane %v2978, 2
    %v3199 = vrot.slane %v2979, 2
    %v3200 = vsel %vm939, %v3198, %v3199
    %v3201 = vrot.slane %v2980, 2
    %v3202 = vsel %vm939, %v3199, %v3201
    %v3203 = vrot.slane %v2981, 2
    %v3204 = vrot.slane %v2982, 2
    %v3205 = vsel %vm939, %v3203, %v3204
    %v3206 = vrot.slane %v2983, 2
    %v3207 = vsel %vm939, %v3204, %v3206
    %v3208 = vrot.slane %v2984, 2
    %v3209 = vrot.slane %v2985, 2
    %v3210 = vsel %vm939, %v3208, %v3209
    %v3211 = vrot.slane %v2986, 2
    %v3212 = vsel %vm939, %v3209, %v3211
    %v3213 = vrot.slane %v2987, 2
    %v3214 = vrot.slane %v2988, 2
    %v3215 = vsel %vm939, %v3213, %v3214
    %v3216 = vrot.slane %v2989, 2
    %v3217 = vsel %vm939, %v3214, %v3216
    %v3218 = vrot.slane %v2990, 2
    %v3219 = vrot.slane %v2991, 2
    %v3220 = vsel %vm939, %v3218, %v3219
    %v3221 = vrot.slane %v2992, 2
    %v3222 = vsel %vm939, %v3219, %v3221
    %v3223 = vrot.slane %v2993, 2
    %v3224 = vrot.slane %v2994, 2
    %v3225 = vsel %vm939, %v3223, %v3224
    %v3226 = vrot.slane %v2995, 2
    %v3227 = vsel %vm939, %v3224, %v3226
    %v3228 = vrot.slane %v2996, 2
    %v3229 = vrot.slane %v2997, 2
    %v3230 = vsel %vm939, %v3228, %v3229
    %v3231 = vrot.slane %v2998, 2
    %v3232 = vsel %vm939, %v3229, %v3231
    %v3233 = vrot.slane %v2999, 2
    %v3234 = vrot.slane %v3000, 2
    %v3235 = vsel %vm939, %v3233, %v3234
    %v3236 = vrot.slane %v3001, 2
    %v3237 = vsel %vm939, %v3234, %v3236
    %v3238 = vrot.slane %v3002, 2
    %v3239 = vrot.slane %v3003, 2
    %v3240 = vsel %vm939, %v3238, %v3239
    %v3241 = vrot.slane %v3004, 2
    %v3242 = vsel %vm939, %v3239, %v3241
    %v3243 = vrot.slane %v3005, 2
    %v3244 = vrot.slane %v3006, 2
    %v3245 = vsel %vm939, %v3243, %v3244
    %v3246 = vrot.slane %v3007, 2
    %v3247 = vsel %vm939, %v3244, %v3246
    %v3248 = vrot.slane %v3008, 2
    %v3249 = vrot.slane %v3009, 2
    %v3250 = vsel %vm939, %v3248, %v3249
    %v3251 = vrot.slane %v3010, 2
    %v3252 = vsel %vm939, %v3249, %v3251
    %v3253 = vrot.slane %v3011, 2
    %v3254 = vrot.slane %v3012, 2
    %v3255 = vsel %vm939, %v3253, %v3254
    %v3256 = vrot.slane %v3013, 2
    %v3257 = vsel %vm939, %v3254, %v3256
    %v3258 = vrot.slane %v3014, 2
    %v3259 = vrot.slane %v3015, 2
    %v3260 = vsel %vm939, %v3258, %v3259
    %v3261 = vrot.slane %v3016, 2
    %v3262 = vsel %vm939, %v3259, %v3261
    %v3263 = vrot.slane %v3017, 2
    %v3264 = vrot.slane %v3018, 2
    %v3265 = vsel %vm939, %v3263, %v3264
    %v3266 = vrot.slane %v3019, 2
    %v3267 = vsel %vm939, %v3264, %v3266
    %v3268 = vrot.slane %v3020, 2
    %v3269 = vrot.slane %v3021, 2
    %v3270 = vsel %vm939, %v3268, %v3269
    %v3271 = vrot.slane %v3022, 2
    %v3272 = vsel %vm939, %v3269, %v3271
    %v3273 = vrot.slane %v3023, 2
    %v3274 = vrot.slane %v3024, 2
    %v3275 = vsel %vm939, %v3273, %v3274
    %v3276 = vrot.slane %v3025, 2
    %v3277 = vsel %vm939, %v3274, %v3276
    %v3278 = vrot.slane %v3026, 2
    %v3279 = vrot.slane %v3027, 2
    %v3280 = vsel %vm939, %v3278, %v3279
    %v3281 = vrot.slane %v3028, 2
    %v3282 = vsel %vm939, %v3279, %v3281
    %v3283 = vrot.slane %v3029, 2
    %v3284 = vrot.slane %v3030, 2
    %v3285 = vsel %vm939, %v3283, %v3284
    %v3286 = vrot.slane %v3031, 2
    %v3287 = vsel %vm939, %v3284, %v3286
    %v3352 = vadd.f32 %v2870, %v3130
    %v3353 = vadd.f32 %v2871, %v3132
    %v3354 = vadd.f32 %v2872, %v3135
    %v3355 = vadd.f32 %v2873, %v3137
    %v3356 = vadd.f32 %v2874, %v3140
    %v3357 = vadd.f32 %v2875, %v3142
    %v3358 = vadd.f32 %v2876, %v3145
    %v3359 = vadd.f32 %v2877, %v3147
    %v3360 = vadd.f32 %v2878, %v3150
    %v3361 = vadd.f32 %v2879, %v3152
    %v3362 = vadd.f32 %v2880, %v3155
    %v3363 = vadd.f32 %v2881, %v3157
    %v3364 = vadd.f32 %v2882, %v3160
    %v3365 = vadd.f32 %v2883, %v3162
    %v3366 = vadd.f32 %v2884, %v3165
    %v3367 = vadd.f32 %v2885, %v3167
    %v3368 = vadd.f32 %v2886, %v3170
    %v3369 = vadd.f32 %v2887, %v3172
    %v3370 = vadd.f32 %v2888, %v3175
    %v3371 = vadd.f32 %v2889, %v3177
    %v3372 = vadd.f32 %v2890, %v3180
    %v3373 = vadd.f32 %v2891, %v3182
    %v3374 = vadd.f32 %v2892, %v3185
    %v3375 = vadd.f32 %v2893, %v3187
    %v3376 = vadd.f32 %v2894, %v3190
    %v3377 = vadd.f32 %v2895, %v3192
    %v3378 = vadd.f32 %v2896, %v3195
    %v3379 = vadd.f32 %v2897, %v3197
    %v3380 = vadd.f32 %v2898, %v3200
    %v3381 = vadd.f32 %v2899, %v3202
    %v3382 = vadd.f32 %v2900, %v3205
    %v3383 = vadd.f32 %v2901, %v3207
    %v3384 = vadd.f32 %v2902, %v3210
    %v3385 = vadd.f32 %v2903, %v3212
    %v3386 = vadd.f32 %v2904, %v3215
    %v3387 = vadd.f32 %v2905, %v3217
    %v3388 = vadd.f32 %v2906, %v3220
    %v3389 = vadd.f32 %v2907, %v3222
    %v3390 = vadd.f32 %v2908, %v3225
    %v3391 = vadd.f32 %v2909, %v3227
    %v3392 = vadd.f32 %v2910, %v3230
    %v3393 = vadd.f32 %v2911, %v3232
    %v3394 = vadd.f32 %v2912, %v3235
    %v3395 = vadd.f32 %v2913, %v3237
    %v3396 = vadd.f32 %v2914, %v3240
    %v3397 = vadd.f32 %v2915, %v3242
    %v3398 = vadd.f32 %v2916, %v3245
    %v3399 = vadd.f32 %v2917, %v3247
    %v3400 = vadd.f32 %v2918, %v3250
    %v3401 = vadd.f32 %v2919, %v3252
    %v3402 = vadd.f32 %v2920, %v3255
    %v3403 = vadd.f32 %v2921, %v3257
    %v3404 = vadd.f32 %v2922, %v3260
    %v3405 = vadd.f32 %v2923, %v3262
    %v3406 = vadd.f32 %v2924, %v3265
    %v3407 = vadd.f32 %v2925, %v3267
    %v3408 = vadd.f32 %v2926, %v3270
    %v3409 = vadd.f32 %v2927, %v3272
    %v3410 = vadd.f32 %v2928, %v3275
    %v3411 = vadd.f32 %v2929, %v3277
    %v3412 = vadd.f32 %v2930, %v3280
    %v3413 = vadd.f32 %v2931, %v3282
    %v3414 = vadd.f32 %v2932, %v3285
    %v3415 = vadd.f32 %v2933, %v3287
    %vm3416 = vcmask 523264
    %3417 = vst.msk [vmem:[%s2] sm:$0xff] %vm3416, %v3352
    %3418 = vst.msk [vmem:[%s2 + $0x8] sm:$0xff] %vm3416, %v3353
    %3419 = vst.msk [vmem:[%s2 + $0x10] sm:$0xff] %vm3416, %v3354
    %3420 = vst.msk [vmem:[%s2 + $0x18] sm:$0xff] %vm3416, %v3355
    %3421 = vst.msk [vmem:[%s2 + $0x20] sm:$0xff] %vm3416, %v3356
    %3422 = vst.msk [vmem:[%s2 + $0x28] sm:$0xff] %vm3416, %v3357
    %3423 = vst.msk [vmem:[%s2 + $0x30] sm:$0xff] %vm3416, %v3358
    %3424 = vst.msk [vmem:[%s2 + $0x38] sm:$0xff] %vm3416, %v3359
    %3425 = vst.msk [vmem:[%s2 + $0x40] sm:$0xff] %vm3416, %v3360
    %3426 = vst.msk [vmem:[%s2 + $0x48] sm:$0xff] %vm3416, %v3361
    %3427 = vst.msk [vmem:[%s2 + $0x50] sm:$0xff] %vm3416, %v3362
    %3428 = vst.msk [vmem:[%s2 + $0x58] sm:$0xff] %vm3416, %v3363
    %3429 = vst.msk [vmem:[%s2 + $0x60] sm:$0xff] %vm3416, %v3364
    %3430 = vst.msk [vmem:[%s2 + $0x68] sm:$0xff] %vm3416, %v3365
    %3431 = vst.msk [vmem:[%s2 + $0x70] sm:$0xff] %vm3416, %v3366
    %3432 = vst.msk [vmem:[%s2 + $0x78] sm:$0xff] %vm3416, %v3367
    %3433 = vst.msk [vmem:[%s2 + $0x80] sm:$0xff] %vm3416, %v3368
    %3434 = vst.msk [vmem:[%s2 + $0x88] sm:$0xff] %vm3416, %v3369
    %3435 = vst.msk [vmem:[%s2 + $0x90] sm:$0xff] %vm3416, %v3370
    %3436 = vst.msk [vmem:[%s2 + $0x98] sm:$0xff] %vm3416, %v3371
    %3437 = vst.msk [vmem:[%s2 + $0xa0] sm:$0xff] %vm3416, %v3372
    %3438 = vst.msk [vmem:[%s2 + $0xa8] sm:$0xff] %vm3416, %v3373
    %3439 = vst.msk [vmem:[%s2 + $0xb0] sm:$0xff] %vm3416, %v3374
    %3440 = vst.msk [vmem:[%s2 + $0xb8] sm:$0xff] %vm3416, %v3375
    %3441 = vst.msk [vmem:[%s2 + $0xc0] sm:$0xff] %vm3416, %v3376
    %3442 = vst.msk [vmem:[%s2 + $0xc8] sm:$0xff] %vm3416, %v3377
    %3443 = vst.msk [vmem:[%s2 + $0xd0] sm:$0xff] %vm3416, %v3378
    %3444 = vst.msk [vmem:[%s2 + $0xd8] sm:$0xff] %vm3416, %v3379
    %3445 = vst.msk [vmem:[%s2 + $0xe0] sm:$0xff] %vm3416, %v3380
    %3446 = vst.msk [vmem:[%s2 + $0xe8] sm:$0xff] %vm3416, %v3381
    %3447 = vst.msk [vmem:[%s2 + $0xf0] sm:$0xff] %vm3416, %v3382
    %3448 = vst.msk [vmem:[%s2 + $0xf8] sm:$0xff] %vm3416, %v3383
    %3449 = vst.msk [vmem:[%s2 + $0x100] sm:$0xff] %vm3416, %v3384
    %3450 = vst.msk [vmem:[%s2 + $0x108] sm:$0xff] %vm3416, %v3385
    %3451 = vst.msk [vmem:[%s2 + $0x110] sm:$0xff] %vm3416, %v3386
    %3452 = vst.msk [vmem:[%s2 + $0x118] sm:$0xff] %vm3416, %v3387
    %3453 = vst.msk [vmem:[%s2 + $0x120] sm:$0xff] %vm3416, %v3388
    %3454 = vst.msk [vmem:[%s2 + $0x128] sm:$0xff] %vm3416, %v3389
    %3455 = vst.msk [vmem:[%s2 + $0x130] sm:$0xff] %vm3416, %v3390
    %3456 = vst.msk [vmem:[%s2 + $0x138] sm:$0xff] %vm3416, %v3391
    %3457 = vst.msk [vmem:[%s2 + $0x140] sm:$0xff] %vm3416, %v3392
    %3458 = vst.msk [vmem:[%s2 + $0x148] sm:$0xff] %vm3416, %v3393
    %3459 = vst.msk [vmem:[%s2 + $0x150] sm:$0xff] %vm3416, %v3394
    %3460 = vst.msk [vmem:[%s2 + $0x158] sm:$0xff] %vm3416, %v3395
    %3461 = vst.msk [vmem:[%s2 + $0x160] sm:$0xff] %vm3416, %v3396
    %3462 = vst.msk [vmem:[%s2 + $0x168] sm:$0xff] %vm3416, %v3397
    %3463 = vst.msk [vmem:[%s2 + $0x170] sm:$0xff] %vm3416, %v3398
    %3464 = vst.msk [vmem:[%s2 + $0x178] sm:$0xff] %vm3416, %v3399
    %3465 = vst.msk [vmem:[%s2 + $0x180] sm:$0xff] %vm3416, %v3400
    %3466 = vst.msk [vmem:[%s2 + $0x188] sm:$0xff] %vm3416, %v3401
    %3467 = vst.msk [vmem:[%s2 + $0x190] sm:$0xff] %vm3416, %v3402
    %3468 = vst.msk [vmem:[%s2 + $0x198] sm:$0xff] %vm3416, %v3403
    %3469 = vst.msk [vmem:[%s2 + $0x1a0] sm:$0xff] %vm3416, %v3404
    %3470 = vst.msk [vmem:[%s2 + $0x1a8] sm:$0xff] %vm3416, %v3405
    %3471 = vst.msk [vmem:[%s2 + $0x1b0] sm:$0xff] %vm3416, %v3406
    %3472 = vst.msk [vmem:[%s2 + $0x1b8] sm:$0xff] %vm3416, %v3407
    %3473 = vst.msk [vmem:[%s2 + $0x1c0] sm:$0xff] %vm3416, %v3408
    %3474 = vst.msk [vmem:[%s2 + $0x1c8] sm:$0xff] %vm3416, %v3409
    %3475 = vst.msk [vmem:[%s2 + $0x1d0] sm:$0xff] %vm3416, %v3410
    %3476 = vst.msk [vmem:[%s2 + $0x1d8] sm:$0xff] %vm3416, %v3411
    %3477 = vst.msk [vmem:[%s2 + $0x1e0] sm:$0xff] %vm3416, %v3412
    %3478 = vst.msk [vmem:[%s2 + $0x1e8] sm:$0xff] %vm3416, %v3413
    %3479 = vst.msk [vmem:[%s2 + $0x1f0] sm:$0xff] %vm3416, %v3414
    %3480 = vst.msk [vmem:[%s2 + $0x1f8] sm:$0xff] %vm3416, %v3415
    // Predicated region
    $region14: #{net_forward.20} parent=1 // pred_check
      _
    $region15: #{net_forward.20} parent=1 // pred_check_branch
      %3482 = sbr.rel (0) target = $region17
    $region16: #{net_forward.20} parent=1 // pred_region
      _
    $region17: #{net_forward.20} parent=1 // pred_fallthru
      _
    // Predicated region
    $region18: #{net_forward.20} parent=1 // pred_check
      _
    $region19: #{net_forward.20} parent=1 // pred_check_branch
      %3484 = sbr.rel (0) target = $region21
    $region20: #{net_forward.20} parent=1 // pred_region
      _
    $region21: #{net_forward.20} parent=1 // pred_fallthru
      _
    %3485 = vsyncpa [#allocation3], 1

// kernel: net_forward.21
$region0: #{net_forward.21}
  #allocation0 [shape = 'u32[]', space=smem, size = 0x4, offset = 0x4, fixed_abs, tag = 'smem constant byte address 0x4 - core index']
  #allocation1 [shape = 'u32[144,128]{1,0:T(1,128)}', space=vmem, size = 0x12000, scoped, tag = 'internal scratch']
  %s0 = inlined_call_operand.vmem [shape: bf16[512,64], index: 0, kind: input, shape index: {}]
  %s1 = inlined_call_operand.vmem [shape: bf16[64,128], index: 1, kind: input, shape index: {}]
  %s2 = inlined_call_operand.vmem [shape: f32[1,128], index: 2, kind: input, shape index: {}]
  %s3 = inlined_call_operand.vmem [shape: f32[1,128], index: 3, kind: input, shape index: {}]
  %s4 = inlined_call_operand.vmem [shape: bf16[128,16], index: 4, kind: input, shape index: {}]
  %s5 = inlined_call_operand.vmem [shape: f32[512,16], index: 5, kind: output, shape index: {}]
  %s6 = sld [smem:[#allocation0]]
  $region53: #{net_forward.21} parent=0
    _
  %s8 = ssub.s32 1, %s6
  %s9 = scalar_select 0, %s8, %s6
  loop: start=0, step=1, limit=4
  $region2: #{net_forward.21} parent=0 // loop_pre_header
    _
  $region3: #{net_forward.21} parent=0 // loop_header
    %s11 = sphi 0, %s15
    %p12 = scmp.ge.s32.totalorder %s11, 4
    %s21 = sphi 0, %s23
    %s24 = sphi 0, %s21
    %s25 = sphi 0, %s24
    %s41 = sphi 0, %s25
    %s45 = sphi 0, %s45
    %s47 = sphi 0, %s45
    %s48 = sphi 0, %s47
    %s62 = sphi 0, %s48
    %s66 = sphi 0, %s66
    %s68 = sphi 0, %s66
    %s69 = sphi 0, %s68
    %s83 = sphi 0, %s69
    %s87 = sphi 0, %s87
    %s89 = sphi 0, %s87
    %s90 = sphi 0, %s89
    %s104 = sphi 0, %s90
    %s108 = sphi 0, %s108
    %s110 = sphi 0, %s108
    %s111 = sphi 0, %s110
    %s125 = sphi 0, %s111
    %s131 = sphi 0, %s133
    %s134 = sphi 0, %s131
    %s135 = sphi 0, %s134
    %s151 = sphi 0, %s135
  $region4: #{net_forward.21} parent=0 // loop_header_branch
    %14 = sbr.rel (%p12) target = $region8
  $region5: #{net_forward.21} parent=0 // loop_body
    %s16 = ssub.s32 %s11, 1
    %s17 = ssub.s32 %s11, 2
    %s18 = sadd.s32 %s11, 1
    %s19 = ssub.s32 %s11, %s18
    %p20 = scmp.eq.s32.totalorder %s19, 0
    %s22 = sadd.s32 %s21, 1
    %s23 = scalar_select %p20, %s21, %s22
    %p26 = pneg %p20
    %p27 = scmp.eq.s32.totalorder %s11, 1
    %p28 = por %p26, %p27
    %p29 = scmp.ne.s32.totalorder %s21, %s24
    %p30 = scmp.eq.s32.totalorder %s11, 0
    %p31 = por %p29, %p30
    %p32 = scmp.ne.s32.totalorder %s21, %s24
    %p33 = scmp.eq.s32.totalorder %s16, 1
    %p34 = por %p32, %p33
    %p35 = scmp.ne.s32.totalorder %s24, %s25
    %p36 = scmp.eq.s32.totalorder %s16, 0
    %p37 = por %p35, %p36
    %p38 = scmp.ne.s32.totalorder %s24, %s25
    %p39 = scmp.eq.s32.totalorder %s17, 1
    %p40 = por %p38, %p39
    %p42 = scmp.ne.s32.totalorder %s25, %s41
    %p43 = scmp.eq.s32.totalorder %s17, 0
    %p44 = por %p42, %p43
    %s46 = sadd.s32 %s45, 1
    %p49 = scmp.eq.s32.totalorder %s11, 1
    %p50 = scmp.ne.s32.totalorder %s45, %s47
    %p51 = scmp.eq.s32.totalorder %s11, 0
    %p52 = por %p50, %p51
    %p53 = scmp.ne.s32.totalorder %s45, %s47
    %p54 = scmp.eq.s32.totalorder %s16, 1
    %p55 = por %p53, %p54
    %p56 = scmp.ne.s32.totalorder %s47, %s48
    %p57 = scmp.eq.s32.totalorder %s16, 0
    %p58 = por %p56, %p57
    %p59 = scmp.ne.s32.totalorder %s47, %s48
    %p60 = scmp.eq.s32.totalorder %s17, 1
    %p61 = por %p59, %p60
    %p63 = scmp.ne.s32.totalorder %s48, %s62
    %p64 = scmp.eq.s32.totalorder %s17, 0
    %p65 = por %p63, %p64
    %s67 = sadd.s32 %s66, 1
    %p70 = scmp.eq.s32.totalorder %s11, 1
    %p71 = scmp.ne.s32.totalorder %s66, %s68
    %p72 = scmp.eq.s32.totalorder %s11, 0
    %p73 = por %p71, %p72
    %p74 = scmp.ne.s32.totalorder %s66, %s68
    %p75 = scmp.eq.s32.totalorder %s16, 1
    %p76 = por %p74, %p75
    %p77 = scmp.ne.s32.totalorder %s68, %s69
    %p78 = scmp.eq.s32.totalorder %s16, 0
    %p79 = por %p77, %p78
    %p80 = scmp.ne.s32.totalorder %s68, %s69
    %p81 = scmp.eq.s32.totalorder %s17, 1
    %p82 = por %p80, %p81
    %p84 = scmp.ne.s32.totalorder %s69, %s83
    %p85 = scmp.eq.s32.totalorder %s17, 0
    %p86 = por %p84, %p85
    %s88 = sadd.s32 %s87, 1
    %p91 = scmp.eq.s32.totalorder %s11, 1
    %p92 = scmp.ne.s32.totalorder %s87, %s89
    %p93 = scmp.eq.s32.totalorder %s11, 0
    %p94 = por %p92, %p93
    %p95 = scmp.ne.s32.totalorder %s87, %s89
    %p96 = scmp.eq.s32.totalorder %s16, 1
    %p97 = por %p95, %p96
    %p98 = scmp.ne.s32.totalorder %s89, %s90
    %p99 = scmp.eq.s32.totalorder %s16, 0
    %p100 = por %p98, %p99
    %p101 = scmp.ne.s32.totalorder %s89, %s90
    %p102 = scmp.eq.s32.totalorder %s17, 1
    %p103 = por %p101, %p102
    %p105 = scmp.ne.s32.totalorder %s90, %s104
    %p106 = scmp.eq.s32.totalorder %s17, 0
    %p107 = por %p105, %p106
    %s109 = sadd.s32 %s108, 1
    %p112 = scmp.eq.s32.totalorder %s11, 1
    %p113 = scmp.ne.s32.totalorder %s108, %s110
    %p114 = scmp.eq.s32.totalorder %s11, 0
    %p115 = por %p113, %p114
    %p116 = scmp.ne.s32.totalorder %s108, %s110
    %p117 = scmp.eq.s32.totalorder %s16, 1
    %p118 = por %p116, %p117
    %p119 = scmp.ne.s32.totalorder %s110, %s111
    %p120 = scmp.eq.s32.totalorder %s16, 0
    %p121 = por %p119, %p120
    %p122 = scmp.ne.s32.totalorder %s110, %s111
    %p123 = scmp.eq.s32.totalorder %s17, 1
    %p124 = por %p122, %p123
    %p126 = scmp.ne.s32.totalorder %s111, %s125
    %p127 = scmp.eq.s32.totalorder %s17, 0
    %p128 = por %p126, %p127
    %s129 = ssub.s32 %s11, %s18
    %p130 = scmp.eq.s32.totalorder %s129, 0
    %s132 = sadd.s32 %s131, 1
    %s133 = scalar_select %p130, %s131, %s132
    %p136 = pneg %p130
    %p137 = scmp.eq.s32.totalorder %s11, 1
    %p138 = por %p136, %p137
    %p139 = scmp.ne.s32.totalorder %s131, %s134
    %p140 = scmp.eq.s32.totalorder %s11, 0
    %p141 = por %p139, %p140
    %p142 = scmp.ne.s32.totalorder %s131, %s134
    %p143 = scmp.eq.s32.totalorder %s16, 1
    %p144 = por %p142, %p143
    %p145 = scmp.ne.s32.totalorder %s134, %s135
    %p146 = scmp.eq.s32.totalorder %s16, 0
    %p147 = por %p145, %p146
    %p148 = scmp.ne.s32.totalorder %s134, %s135
    %p149 = scmp.eq.s32.totalorder %s17, 1
    %p150 = por %p148, %p149
    %p152 = scmp.ne.s32.totalorder %s135, %s151
    %p153 = scmp.eq.s32.totalorder %s17, 0
    %p154 = por %p152, %p153
    %p155 = scmp.le.s32.totalorder 1, %s11
    %p156 = scmp.lt.s32.totalorder %s11, 3
    %p157 = pnand %p155, %p156
    %p158 = pneg %p157
    // Predicated region
    $region9: #{net_forward.21} parent=5 // pred_check
      _
    $region10: #{net_forward.21} parent=5 // pred_check_branch
      %160 = sbr.rel (%p157) target = $region12
    $region11: #{net_forward.21} parent=5 // pred_region
      %s161 = ssub.s32 %s11, 1
      // Predicated region
      $region13: #{net_forward.21} parent=11 // pred_check
        %p162 = pneg %p58
      $region14: #{net_forward.21} parent=11 // pred_check_branch
        %164 = sbr.rel (%p162) target = $region16
      $region15: #{net_forward.21} parent=11 // pred_region
        _
      $region16: #{net_forward.21} parent=11 // pred_fallthru
        _
      // Predicated region
      $region17: #{net_forward.21} parent=11 // pred_check
        %p165 = pneg %p79
      $region18: #{net_forward.21} parent=11 // pred_check_branch
        %167 = sbr.rel (%p165) target = $region20
      $region19: #{net_forward.21} parent=11 // pred_region
        _
      $region20: #{net_forward.21} parent=11 // pred_fallthru
        _
      // Predicated region
      $region21: #{net_forward.21} parent=11 // pred_check
        %p168 = pneg %p100
      $region22: #{net_forward.21} parent=11 // pred_check_branch
        %170 = sbr.rel (%p168) target = $region24
      $region23: #{net_forward.21} parent=11 // pred_region
        _
      $region24: #{net_forward.21} parent=11 // pred_fallthru
        _
      // Predicated region
      $region25: #{net_forward.21} parent=11 // pred_check
        %p171 = pneg %p121
      $region26: #{net_forward.21} parent=11 // pred_check_branch
        %173 = sbr.rel (%p171) target = $region28
      $region27: #{net_forward.21} parent=11 // pred_region
        _
      $region28: #{net_forward.21} parent=11 // pred_fallthru
        _
    $region12: #{net_forward.21} parent=5 // pred_fallthru
      _
    %p174 = scmp.lt.s32.totalorder %s11, 2
    // Predicated region
    $region29: #{net_forward.21} parent=5 // pred_check
      %p175 = pneg %p174
    $region30: #{net_forward.21} parent=5 // pred_check_branch
      %177 = sbr.rel (%p175) target = $region32
    $region31: #{net_forward.21} parent=5 // pred_region
      // Predicated region
      $region33: #{net_forward.21} parent=31 // pred_check
        %p178 = pneg %p31
      $region34: #{net_forward.21} parent=31 // pred_check_branch
        %180 = sbr.rel (%p178) target = $region36
      $region35: #{net_forward.21} parent=31 // pred_region
        %s181 = smul.u32 32, %s11
        %p182 = scmp.lt.s32.totalorder %s181, 63
        %s183 = scalar_select %p182, %s181, 63
        %s184 = smul.addr %s183, 4
        %s185 = scalar_lea.vmem %s0, %s184
        %s186 = smul.u32 32, %s11
      $region36: #{net_forward.21} parent=31 // pred_fallthru
        _
    $region32: #{net_forward.21} parent=5 // pred_fallthru
      _
    %p187 = scmp.le.s32.totalorder 1, %s11
    %p188 = scmp.lt.s32.totalorder %s11, 3
    %p189 = pnand %p187, %p188
    %p190 = pneg %p189
    // Predicated region
    $region37: #{net_forward.21} parent=5 // pred_check
      _
    $region38: #{net_forward.21} parent=5 // pred_check_branch
      %192 = sbr.rel (%p189) target = $region40
    $region39: #{net_forward.21} parent=5 // pred_region
      %s193 = ssub.s32 %s11, 1
      %s194 = smul.u32 32, %s16
      %p195 = scmp.lt.s32.totalorder %s194, 63
      %s196 = scalar_select %p195, %s194, 63
      %s197 = smul.addr %s196, 4
      %s198 = scalar_lea.vmem %s0, %s197
      %p199 = pneg %p37
      %p200 = pneg %p34
      %p201 = pneg %p58
      %p202 = pneg %p55
      %p203 = pneg %p79
      %p204 = pneg %p76
      %p205 = pneg %p100
      %p206 = pneg %p97
      %p207 = pneg %p121
      %p208 = pneg %p118
      %p209 = pneg %p147
      %p210 = pneg %p144
      %s211 = smul.u32 32, %s16
      %p212 = scmp.lt.s32.totalorder %s211, 63
      %s213 = scalar_select %p212, %s211, 63
      %s214 = smul.addr %s213, 8
      %s215 = scalar_lea.vmem %s5, %s214
      %s216 = smul.u32 32, %s16
      %p217 = scmp.lt.s32.totalorder %s216, 63
      %s218 = scalar_select %p217, %s216, 63
      %s219 = smul.addr %s218, 4
      %s220 = scalar_lea.vmem %s0, %s219
      %s221 = smul.u32 32, %s16
      %s222 = smul.u32 32, %s16
      %p223 = scmp.lt.s32.totalorder %s222, 63
      %s224 = scalar_select %p223, %s222, 63
      %s225 = smul.addr %s224, 8
      %s226 = scalar_lea.vmem %s5, %s225
      %s227 = smul.u32 32, %s16
      %v229 = vld [vmem:[%s220] sm:$0xf]
      %v230 = vld [vmem:[%s220 + $0x4] sm:$0xf]
      %v231 = vld [vmem:[%s220 + $0x8] sm:$0xf]
      %v232 = vld [vmem:[%s220 + $0xc] sm:$0xf]
      %v233 = vld [vmem:[%s220 + $0x10] sm:$0xf]
      %v234 = vld [vmem:[%s220 + $0x14] sm:$0xf]
      %v235 = vld [vmem:[%s220 + $0x18] sm:$0xf]
      %v236 = vld [vmem:[%s220 + $0x1c] sm:$0xf]
      %v237 = vld [vmem:[%s220 + $0x20] sm:$0xf]
      %v238 = vld [vmem:[%s220 + $0x24] sm:$0xf]
      %v239 = vld [vmem:[%s220 + $0x28] sm:$0xf]
      %v240 = vld [vmem:[%s220 + $0x2c] sm:$0xf]
      %v241 = vld [vmem:[%s220 + $0x30] sm:$0xf]
      %v242 = vld [vmem:[%s220 + $0x34] sm:$0xf]
      %v243 = vld [vmem:[%s220 + $0x38] sm:$0xf]
      %v244 = vld [vmem:[%s220 + $0x3c] sm:$0xf]
      %v245 = vld [vmem:[%s220 + $0x40] sm:$0xf]
      %v246 = vld [vmem:[%s220 + $0x44] sm:$0xf]
      %v247 = vld [vmem:[%s220 + $0x48] sm:$0xf]
      %v248 = vld [vmem:[%s220 + $0x4c] sm:$0xf]
      %v249 = vld [vmem:[%s220 + $0x50] sm:$0xf]
      %v250 = vld [vmem:[%s220 + $0x54] sm:$0xf]
      %v251 = vld [vmem:[%s220 + $0x58] sm:$0xf]
      %v252 = vld [vmem:[%s220 + $0x5c] sm:$0xf]
      %v253 = vld [vmem:[%s220 + $0x60] sm:$0xf]
      %v254 = vld [vmem:[%s220 + $0x64] sm:$0xf]
      %v255 = vld [vmem:[%s220 + $0x68] sm:$0xf]
      %v256 = vld [vmem:[%s220 + $0x6c] sm:$0xf]
      %v257 = vld [vmem:[%s220 + $0x70] sm:$0xf]
      %v258 = vld [vmem:[%s220 + $0x74] sm:$0xf]
      %v259 = vld [vmem:[%s220 + $0x78] sm:$0xf]
      %v260 = vld [vmem:[%s220 + $0x7c] sm:$0xf]
      %v261 = vld [vmem:[%s1] sm:$0xf]
      %v262 = vld [vmem:[%s1 + $0x4] sm:$0xf]
      %v263 = vld [vmem:[%s1 + $0x8] sm:$0xf]
      %v264 = vld [vmem:[%s1 + $0xc] sm:$0xf]
      %v265 = vld [vmem:[%s1 + $0x10] sm:$0xf]
      %v266 = vld [vmem:[%s1 + $0x14] sm:$0xf]
      %v267 = vld [vmem:[%s1 + $0x18] sm:$0xf]
      %v268 = vld [vmem:[%s1 + $0x1c] sm:$0xf]
      %v301 = vunpack.c.l.b16 %v229
      %v302 = vunpack.c.l.b16 %v230
      %v303 = vunpack.c.l.b16 %v231
      %v304 = vunpack.c.l.b16 %v232
      %v305 = vunpack.c.l.b16 %v233
      %v306 = vunpack.c.l.b16 %v234
      %v307 = vunpack.c.l.b16 %v235
      %v308 = vunpack.c.l.b16 %v236
      %v309 = vunpack.c.l.b16 %v237
      %v310 = vunpack.c.l.b16 %v238
      %v311 = vunpack.c.l.b16 %v239
      %v312 = vunpack.c.l.b16 %v240
      %v313 = vunpack.c.l.b16 %v241
      %v314 = vunpack.c.l.b16 %v242
      %v315 = vunpack.c.l.b16 %v243
      %v316 = vunpack.c.l.b16 %v244
      %v317 = vunpack.c.l.b16 %v245
      %v318 = vunpack.c.l.b16 %v246
      %v319 = vunpack.c.l.b16 %v247
      %v320 = vunpack.c.l.b16 %v248
      %v321 = vunpack.c.l.b16 %v249
      %v322 = vunpack.c.l.b16 %v250
      %v323 = vunpack.c.l.b16 %v251
      %v324 = vunpack.c.l.b16 %v252
      %v325 = vunpack.c.l.b16 %v253
      %v326 = vunpack.c.l.b16 %v254
      %v327 = vunpack.c.l.b16 %v255
      %v328 = vunpack.c.l.b16 %v256
      %v329 = vunpack.c.l.b16 %v257
      %v330 = vunpack.c.l.b16 %v258
      %v331 = vunpack.c.l.b16 %v259
      %v332 = vunpack.c.l.b16 %v260
      %v333 = vpack.c.b16 %v302, %v301
      %v334 = vpack.c.b16 %v304, %v303
      %v335 = vpack.c.b16 %v306, %v305
      %v336 = vpack.c.b16 %v308, %v307
      %v337 = vpack.c.b16 %v310, %v309
      %v338 = vpack.c.b16 %v312, %v311
      %v339 = vpack.c.b16 %v314, %v313
      %v340 = vpack.c.b16 %v316, %v315
      %v341 = vpack.c.b16 %v318, %v317
      %v342 = vpack.c.b16 %v320, %v319
      %v343 = vpack.c.b16 %v322, %v321
      %v344 = vpack.c.b16 %v324, %v323
      %v345 = vpack.c.b16 %v326, %v325
      %v346 = vpack.c.b16 %v328, %v327
      %v347 = vpack.c.b16 %v330, %v329
      %v348 = vpack.c.b16 %v332, %v331
      %v357 = vunpack.c.l.b16 %v261
      %v358 = vunpack.c.l.b16 %v262
      %v359 = vunpack.c.l.b16 %v263
      %v360 = vunpack.c.l.b16 %v264
      %v361 = vunpack.c.l.b16 %v265
      %v362 = vunpack.c.l.b16 %v266
      %v363 = vunpack.c.l.b16 %v267
      %v364 = vunpack.c.l.b16 %v268
      %v365 = vpack.c.b16 %v358, %v357
      %v366 = vpack.c.b16 %v360, %v359
      %v367 = vpack.c.b16 %v362, %v361
      %v368 = vpack.c.b16 %v364, %v363
      %vm373 = vcmask 523264
      %v375 = vsel %vm373, %v333, 0
      %v378 = vsel %vm373, %v334, 0
      %v381 = vsel %vm373, %v335, 0
      %v384 = vsel %vm373, %v336, 0
      %v387 = vsel %vm373, %v337, 0
      %v390 = vsel %vm373, %v338, 0
      %v393 = vsel %vm373, %v339, 0
      %v396 = vsel %vm373, %v340, 0
      %v399 = vsel %vm373, %v341, 0
      %v402 = vsel %vm373, %v342, 0
      %v405 = vsel %vm373, %v343, 0
      %v408 = vsel %vm373, %v344, 0
      %v411 = vsel %vm373, %v345, 0
      %v414 = vsel %vm373, %v346, 0
      %v417 = vsel %vm373, %v347, 0
      %v420 = vsel %vm373, %v348, 0
      %422 = vmatprep.subr.bf16.mxu0 0
      %423 = vmatpush1.bf16.msra.mxu0 %v365
      %424 = vmatprep.subr.bf16.mxu0 0
      %425 = vmatpush1.bf16.msra.mxu0 %v366
      %426 = vmatprep.subr.bf16.mxu0 0
      %427 = vmatpush1.bf16.msra.mxu0 %v367
      %428 = vmatprep.subr.bf16.mxu0 0
      %429 = vmatpush1.bf16.msra.mxu0 %v368
      %430 = vmatprep.subr.bf16.mxu0 0
      %431 = vmatpush1.bf16.msra.mxu0 0
      %432 = vmatprep.subr.bf16.mxu0 0
      %433 = vmatpush1.bf16.msra.mxu0 0
      %434 = vmatprep.subr.bf16.mxu0 0
      %435 = vmatpush1.bf16.msra.mxu0 0
      %436 = vmatprep.subr.bf16.mxu0 0
      %437 = vmatpush1.bf16.msra.mxu0 0
      %438 = vmatprep.subr.bf16.mxu0 0
      %439 = vmatpush1.bf16.msra.mxu0 0
      %440 = vmatprep.subr.bf16.mxu0 0
      %441 = vmatpush1.bf16.msra.mxu0 0
      %442 = vmatprep.subr.bf16.mxu0 0
      %443 = vmatpush1.bf16.msra.mxu0 0
      %444 = vmatprep.subr.bf16.mxu0 0
      %445 = vmatpush1.bf16.msra.mxu0 0
      %446 = vmatprep.subr.bf16.mxu0 0
      %447 = vmatpush1.bf16.msra.mxu0 0
      %448 = vmatprep.subr.bf16.mxu0 0
      %449 = vmatpush1.bf16.msra.mxu0 0
      %450 = vmatprep.subr.bf16.mxu0 0
      %451 = vmatpush1.bf16.msra.mxu0 0
      %452 = vmatprep.subr.bf16.mxu0 0
      %453 = vmatpush1.bf16.msra.mxu0 0
      %454 = vmatprep.mubr.bf16.mxu0 0
      %455 = vmatmul.mubr.bf16.gmra.mrb[0].mxu0 %v375
      %v456 = vpop.f32.mrb[0].mxu0
      %v457 = vadd.f32 0.0, %v456
      %v458 = vpop.f32.mrb[0].mxu0
      %v459 = vpop.f32.mrb[0].mxu0
      %v460 = vadd.f32 0.0, %v459
      %v461 = vpop.f32.mrb[0].mxu0
      %462 = vmatprep.mubr.bf16.mxu0 0
      %463 = vmatmul.mubr.bf16.gmra.mrb[0].mxu0 %v378
      %v464 = vpop.f32.mrb[0].mxu0
      %v465 = vadd.f32 0.0, %v464
      %v466 = vpop.f32.mrb[0].mxu0
      %v467 = vpop.f32.mrb[0].mxu0
      %v468 = vadd.f32 0.0, %v467
      %v469 = vpop.f32.mrb[0].mxu0
      %470 = vmatprep.mubr.bf16.mxu0 0
      %471 = vmatmul.mubr.bf16.gmra.mrb[0].mxu0 %v381
      %v472 = vpop.f32.mrb[0].mxu0
      %v473 = vadd.f32 0.0, %v472
      %v474 = vpop.f32.mrb[0].mxu0
      %v475 = vpop.f32.mrb[0].mxu0
      %v476 = vadd.f32 0.0, %v475
      %v477 = vpop.f32.mrb[0].mxu0
      %478 = vmatprep.mubr.bf16.mxu0 0
      %479 = vmatmul.mubr.bf16.gmra.mrb[0].mxu0 %v384
      %v480 = vpop.f32.mrb[0].mxu0
      %v481 = vadd.f32 0.0, %v480
      %v482 = vpop.f32.mrb[0].mxu0
      %v483 = vpop.f32.mrb[0].mxu0
      %v484 = vadd.f32 0.0, %v483
      %v485 = vpop.f32.mrb[0].mxu0
      %486 = vmatprep.mubr.bf16.mxu0 0
      %487 = vmatmul.mubr.bf16.gmra.mrb[0].mxu0 %v387
      %v488 = vpop.f32.mrb[0].mxu0
      %v489 = vadd.f32 0.0, %v488
      %v490 = vpop.f32.mrb[0].mxu0
      %v491 = vpop.f32.mrb[0].mxu0
      %v492 = vadd.f32 0.0, %v491
      %v493 = vpop.f32.mrb[0].mxu0
      %494 = vmatprep.mubr.bf16.mxu0 0
      %495 = vmatmul.mubr.bf16.gmra.mrb[0].mxu0 %v390
      %v496 = vpop.f32.mrb[0].mxu0
      %v497 = vadd.f32 0.0, %v496
      %v498 = vpop.f32.mrb[0].mxu0
      %v499 = vpop.f32.mrb[0].mxu0
      %v500 = vadd.f32 0.0, %v499
      %v501 = vpop.f32.mrb[0].mxu0
      %502 = vmatprep.mubr.bf16.mxu0 0
      %503 = vmatmul.mubr.bf16.gmra.mrb[0].mxu0 %v393
      %v504 = vpop.f32.mrb[0].mxu0
      %v505 = vadd.f32 0.0, %v504
      %v506 = vpop.f32.mrb[0].mxu0
      %v507 = vpop.f32.mrb[0].mxu0
      %v508 = vadd.f32 0.0, %v507
      %v509 = vpop.f32.mrb[0].mxu0
      %510 = vmatprep.mubr.bf16.mxu0 0
      %511 = vmatmul.mubr.bf16.gmra.mrb[0].mxu0 %v396
      %v512 = vpop.f32.mrb[0].mxu0
      %v513 = vadd.f32 0.0, %v512
      %v514 = vpop.f32.mrb[0].mxu0
      %v515 = vpop.f32.mrb[0].mxu0
      %v516 = vadd.f32 0.0, %v515
      %v517 = vpop.f32.mrb[0].mxu0
      %518 = vmatprep.mubr.bf16.mxu0 0
      %519 = vmatmul.mubr.bf16.gmra.mrb[0].mxu0 %v399
      %v520 = vpop.f32.mrb[0].mxu0
      %v521 = vadd.f32 0.0, %v520
      %v522 = vpop.f32.mrb[0].mxu0
      %v523 = vpop.f32.mrb[0].mxu0
      %v524 = vadd.f32 0.0, %v523
      %v525 = vpop.f32.mrb[0].mxu0
      %526 = vmatprep.mubr.bf16.mxu0 0
      %527 = vmatmul.mubr.bf16.gmra.mrb[0].mxu0 %v402
      %v528 = vpop.f32.mrb[0].mxu0
      %v529 = vadd.f32 0.0, %v528
      %v530 = vpop.f32.mrb[0].mxu0
      %v531 = vpop.f32.mrb[0].mxu0
      %v532 = vadd.f32 0.0, %v531
      %v533 = vpop.f32.mrb[0].mxu0
      %534 = vmatprep.mubr.bf16.mxu0 0
      %535 = vmatmul.mubr.bf16.gmra.mrb[0].mxu0 %v405
      %v536 = vpop.f32.mrb[0].mxu0
      %v537 = vadd.f32 0.0, %v536
      %v538 = vpop.f32.mrb[0].mxu0
      %v539 = vpop.f32.mrb[0].mxu0
      %v540 = vadd.f32 0.0, %v539
      %v541 = vpop.f32.mrb[0].mxu0
      %542 = vmatprep.mubr.bf16.mxu0 0
      %543 = vmatmul.mubr.bf16.gmra.mrb[0].mxu0 %v408
      %v544 = vpop.f32.mrb[0].mxu0
      %v545 = vadd.f32 0.0, %v544
      %v546 = vpop.f32.mrb[0].mxu0
      %v547 = vpop.f32.mrb[0].mxu0
      %v548 = vadd.f32 0.0, %v547
      %v549 = vpop.f32.mrb[0].mxu0
      %550 = vmatprep.mubr.bf16.mxu0 0
      %551 = vmatmul.mubr.bf16.gmra.mrb[0].mxu0 %v411
      %v552 = vpop.f32.mrb[0].mxu0
      %v553 = vadd.f32 0.0, %v552
      %v554 = vpop.f32.mrb[0].mxu0
      %v555 = vpop.f32.mrb[0].mxu0
      %v556 = vadd.f32 0.0, %v555
      %v557 = vpop.f32.mrb[0].mxu0
      %558 = vmatprep.mubr.bf16.mxu0 0
      %559 = vmatmul.mubr.bf16.gmra.mrb[0].mxu0 %v414
      %v560 = vpop.f32.mrb[0].mxu0
      %v561 = vadd.f32 0.0, %v560
      %v562 = vpop.f32.mrb[0].mxu0
      %v563 = vpop.f32.mrb[0].mxu0
      %v564 = vadd.f32 0.0, %v563
      %v565 = vpop.f32.mrb[0].mxu0
      %566 = vmatprep.mubr.bf16.mxu0 0
      %567 = vmatmul.mubr.bf16.gmra.mrb[0].mxu0 %v417
      %v568 = vpop.f32.mrb[0].mxu0
      %v569 = vadd.f32 0.0, %v568
      %v570 = vpop.f32.mrb[0].mxu0
      %v571 = vpop.f32.mrb[0].mxu0
      %v572 = vadd.f32 0.0, %v571
      %v573 = vpop.f32.mrb[0].mxu0
      %574 = vmatprep.mubr.bf16.mxu0 0
      %575 = vmatmul.mubr.bf16.gmra.mrb[0].mxu0 %v420
      %v576 = vpop.f32.mrb[0].mxu0
      %v577 = vadd.f32 0.0, %v576
      %v578 = vpop.f32.mrb[0].mxu0
      %v579 = vpop.f32.mrb[0].mxu0
      %v580 = vadd.f32 0.0, %v579
      %v581 = vpop.f32.mrb[0].mxu0
      %582 = vdwg.mxu0
      %v583 = vmax.f32 %v457, 0.0
      %v584 = vmax.f32 %v460, 0.0
      %v585 = vmax.f32 %v465, 0.0
      %v586 = vmax.f32 %v468, 0.0
      %v587 = vmax.f32 %v473, 0.0
      %v588 = vmax.f32 %v476, 0.0
      %v589 = vmax.f32 %v481, 0.0
      %v590 = vmax.f32 %v484, 0.0
      %v591 = vmax.f32 %v489, 0.0
      %v592 = vmax.f32 %v492, 0.0
      %v593 = vmax.f32 %v497, 0.0
      %v594 = vmax.f32 %v500, 0.0
      %v595 = vmax.f32 %v505, 0.0
      %v596 = vmax.f32 %v508, 0.0
      %v597 = vmax.f32 %v513, 0.0
      %v598 = vmax.f32 %v516, 0.0
      %v599 = vmax.f32 %v521, 0.0
      %v600 = vmax.f32 %v524, 0.0
      %v601 = vmax.f32 %v529, 0.0
      %v602 = vmax.f32 %v532, 0.0
      %v603 = vmax.f32 %v537, 0.0
      %v604 = vmax.f32 %v540, 0.0
      %v605 = vmax.f32 %v545, 0.0
      %v606 = vmax.f32 %v548, 0.0
      %v607 = vmax.f32 %v553, 0.0
      %v608 = vmax.f32 %v556, 0.0
      %v609 = vmax.f32 %v561, 0.0
      %v610 = vmax.f32 %v564, 0.0
      %v611 = vmax.f32 %v569, 0.0
      %v612 = vmax.f32 %v572, 0.0
      %v613 = vmax.f32 %v577, 0.0
      %v614 = vmax.f32 %v580, 0.0
      %v615 = vld [vmem:[%s2] sm:$0x1]
      %v617 = vlaneseq
      %v618 = vshrl.u32 %v617, 7
      %v619 = vsub.s32 0, %v618
      %v620 = vrot.slane %v615, %v619
      %v622 = vmul.f32 %v583, %v620
      %v623 = vmul.f32 %v584, %v620
      %v624 = vmul.f32 %v585, %v620
      %v625 = vmul.f32 %v586, %v620
      %v626 = vmul.f32 %v587, %v620
      %v627 = vmul.f32 %v588, %v620
      %v628 = vmul.f32 %v589, %v620
      %v629 = vmul.f32 %v590, %v620
      %v630 = vmul.f32 %v591, %v620
      %v631 = vmul.f32 %v592, %v620
      %v632 = vmul.f32 %v593, %v620
      %v633 = vmul.f32 %v594, %v620
      %v634 = vmul.f32 %v595, %v620
      %v635 = vmul.f32 %v596, %v620
      %v636 = vmul.f32 %v597, %v620
      %v637 = vmul.f32 %v598, %v620
      %v638 = vmul.f32 %v599, %v620
      %v639 = vmul.f32 %v600, %v620
      %v640 = vmul.f32 %v601, %v620
      %v641 = vmul.f32 %v602, %v620
      %v642 = vmul.f32 %v603, %v620
      %v643 = vmul.f32 %v604, %v620
      %v644 = vmul.f32 %v605, %v620
      %v645 = vmul.f32 %v606, %v620
      %v646 = vmul.f32 %v607, %v620
      %v647 = vmul.f32 %v608, %v620
      %v648 = vmul.f32 %v609, %v620
      %v649 = vmul.f32 %v610, %v620
      %v650 = vmul.f32 %v611, %v620
      %v651 = vmul.f32 %v612, %v620
      %v652 = vmul.f32 %v613, %v620
      %v653 = vmul.f32 %v614, %v620
      %v654 = vld [vmem:[%s3] sm:$0x1]
      %v656 = vlaneseq
      %v657 = vshrl.u32 %v656, 7
      %v658 = vsub.s32 0, %v657
      %v659 = vrot.slane %v654, %v658
      %v661 = vadd.f32 %v622, %v659
      %v662 = vadd.f32 %v623, %v659
      %v663 = vadd.f32 %v624, %v659
      %v664 = vadd.f32 %v625, %v659
      %v665 = vadd.f32 %v626, %v659
      %v666 = vadd.f32 %v627, %v659
      %v667 = vadd.f32 %v628, %v659
      %v668 = vadd.f32 %v629, %v659
      %v669 = vadd.f32 %v630, %v659
      %v670 = vadd.f32 %v631, %v659
      %v671 = vadd.f32 %v632, %v659
      %v672 = vadd.f32 %v633, %v659
      %v673 = vadd.f32 %v634, %v659
      %v674 = vadd.f32 %v635, %v659
      %v675 = vadd.f32 %v636, %v659
      %v676 = vadd.f32 %v637, %v659
      %v677 = vadd.f32 %v638, %v659
      %v678 = vadd.f32 %v639, %v659
      %v679 = vadd.f32 %v640, %v659
      %v680 = vadd.f32 %v641, %v659
      %v681 = vadd.f32 %v642, %v659
      %v682 = vadd.f32 %v643, %v659
      %v683 = vadd.f32 %v644, %v659
      %v684 = vadd.f32 %v645, %v659
      %v685 = vadd.f32 %v646, %v659
      %v686 = vadd.f32 %v647, %v659
      %v687 = vadd.f32 %v648, %v659
      %v688 = vadd.f32 %v649, %v659
      %v689 = vadd.f32 %v650, %v659
      %v690 = vadd.f32 %v651, %v659
      %v691 = vadd.f32 %v652, %v659
      %v692 = vadd.f32 %v653, %v659
      %v693 = vpack.c.bf16 %v662, %v661
      %v694 = vpack.c.bf16 %v664, %v663
      %v695 = vpack.c.bf16 %v666, %v665
      %v696 = vpack.c.bf16 %v668, %v667
      %v697 = vpack.c.bf16 %v670, %v669
      %v698 = vpack.c.bf16 %v672, %v671
      %v699 = vpack.c.bf16 %v674, %v673
      %v700 = vpack.c.bf16 %v676, %v675
      %v701 = vpack.c.bf16 %v678, %v677
      %v702 = vpack.c.bf16 %v680, %v679
      %v703 = vpack.c.bf16 %v682, %v681
      %v704 = vpack.c.bf16 %v684, %v683
      %v705 = vpack.c.bf16 %v686, %v685
      %v706 = vpack.c.bf16 %v688, %v687
      %v707 = vpack.c.bf16 %v690, %v689
      %v708 = vpack.c.bf16 %v692, %v691
      %v709 = vld [vmem:[%s4] sm:$0xf]
      %v710 = vld [vmem:[%s4 + $0x4] sm:$0xf]
      %v711 = vld [vmem:[%s4 + $0x8] sm:$0xf]
      %v712 = vld [vmem:[%s4 + $0xc] sm:$0xf]
      %v713 = vld [vmem:[%s4 + $0x10] sm:$0xf]
      %v714 = vld [vmem:[%s4 + $0x14] sm:$0xf]
      %v715 = vld [vmem:[%s4 + $0x18] sm:$0xf]
      %v716 = vld [vmem:[%s4 + $0x1c] sm:$0xf]
      %v717 = vld [vmem:[%s4 + $0x20] sm:$0xf]
      %v718 = vld [vmem:[%s4 + $0x24] sm:$0xf]
      %v719 = vld [vmem:[%s4 + $0x28] sm:$0xf]
      %v720 = vld [vmem:[%s4 + $0x2c] sm:$0xf]
      %v721 = vld [vmem:[%s4 + $0x30] sm:$0xf]
      %v722 = vld [vmem:[%s4 + $0x34] sm:$0xf]
      %v723 = vld [vmem:[%s4 + $0x38] sm:$0xf]
      %v724 = vld [vmem:[%s4 + $0x3c] sm:$0xf]
      %v741 = vunpack.c.l.b16 %v709
      %v742 = vunpack.c.l.b16 %v710
      %v743 = vunpack.c.l.b16 %v711
      %v744 = vunpack.c.l.b16 %v712
      %v745 = vunpack.c.l.b16 %v713
      %v746 = vunpack.c.l.b16 %v714
      %v747 = vunpack.c.l.b16 %v715
      %v748 = vunpack.c.l.b16 %v716
      %v749 = vunpack.c.l.b16 %v717
      %v750 = vunpack.c.l.b16 %v718
      %v751 = vunpack.c.l.b16 %v719
      %v752 = vunpack.c.l.b16 %v720
      %v753 = vunpack.c.l.b16 %v721
      %v754 = vunpack.c.l.b16 %v722
      %v755 = vunpack.c.l.b16 %v723
      %v756 = vunpack.c.l.b16 %v724
      %v757 = vpack.c.b16 %v742, %v741
      %v758 = vpack.c.b16 %v744, %v743
      %v759 = vpack.c.b16 %v746, %v745
      %v760 = vpack.c.b16 %v748, %v747
      %v761 = vpack.c.b16 %v750, %v749
      %v762 = vpack.c.b16 %v752, %v751
      %v763 = vpack.c.b16 %v754, %v753
      %v764 = vpack.c.b16 %v756, %v755
      %773 = vmatprep.subr.bf16.mxu0 0
      %774 = vmatpush1.bf16.msra.mxu0 %v757
      %775 = vmatprep.subr.bf16.mxu0 0
      %776 = vmatpush1.bf16.msra.mxu0 %v758
      %777 = vmatprep.subr.bf16.mxu0 0
      %778 = vmatpush1.bf16.msra.mxu0 %v759
      %779 = vmatprep.subr.bf16.mxu0 0
      %780 = vmatpush1.bf16.msra.mxu0 %v760
      %781 = vmatprep.subr.bf16.mxu0 0
      %782 = vmatpush1.bf16.msra.mxu0 %v761
      %783 = vmatprep.subr.bf16.mxu0 0
      %784 = vmatpush1.bf16.msra.mxu0 %v762
      %785 = vmatprep.subr.bf16.mxu0 0
      %786 = vmatpush1.bf16.msra.mxu0 %v763
      %787 = vmatprep.subr.bf16.mxu0 0
      %788 = vmatpush1.bf16.msra.mxu0 %v764
      %789 = vmatprep.subr.bf16.mxu0 0
      %790 = vmatpush1.bf16.msra.mxu0 0
      %791 = vmatprep.subr.bf16.mxu0 0
      %792 = vmatpush1.bf16.msra.mxu0 0
      %793 = vmatprep.subr.bf16.mxu0 0
      %794 = vmatpush1.bf16.msra.mxu0 0
      %795 = vmatprep.subr.bf16.mxu0 0
      %796 = vmatpush1.bf16.msra.mxu0 0
      %797 = vmatprep.subr.bf16.mxu0 0
      %798 = vmatpush1.bf16.msra.mxu0 0
      %799 = vmatprep.subr.bf16.mxu0 0
      %800 = vmatpush1.bf16.msra.mxu0 0
      %801 = vmatprep.subr.bf16.mxu0 0
      %802 = vmatpush1.bf16.msra.mxu0 0
      %803 = vmatprep.subr.bf16.mxu0 0
      %804 = vmatpush1.bf16.msra.mxu0 0
      %805 = vmatprep.mubr.bf16.mxu0 0
      %806 = vmatmul.mubr.bf16.gmra.mrb[0].mxu0 %v693
      %v807 = vpop.f32.mrb[0].mxu0
      %v808 = vadd.f32 0.0, %v807
      %v809 = vpop.f32.mrb[0].mxu0
      %v810 = vpop.f32.mrb[0].mxu0
      %v811 = vadd.f32 0.0, %v810
      %v812 = vpop.f32.mrb[0].mxu0
      %813 = vmatprep.mubr.bf16.mxu0 0
      %814 = vmatmul.mubr.bf16.gmra.mrb[0].mxu0 %v694
      %v815 = vpop.f32.mrb[0].mxu0
      %v816 = vadd.f32 0.0, %v815
      %v817 = vpop.f32.mrb[0].mxu0
      %v818 = vpop.f32.mrb[0].mxu0
      %v819 = vadd.f32 0.0, %v818
      %v820 = vpop.f32.mrb[0].mxu0
      %821 = vmatprep.mubr.bf16.mxu0 0
      %822 = vmatmul.mubr.bf16.gmra.mrb[0].mxu0 %v695
      %v823 = vpop.f32.mrb[0].mxu0
      %v824 = vadd.f32 0.0, %v823
      %v825 = vpop.f32.mrb[0].mxu0
      %v826 = vpop.f32.mrb[0].mxu0
      %v827 = vadd.f32 0.0, %v826
      %v828 = vpop.f32.mrb[0].mxu0
      %829 = vmatprep.mubr.bf16.mxu0 0
      %830 = vmatmul.mubr.bf16.gmra.mrb[0].mxu0 %v696
      %v831 = vpop.f32.mrb[0].mxu0
      %v832 = vadd.f32 0.0, %v831
      %v833 = vpop.f32.mrb[0].mxu0
      %v834 = vpop.f32.mrb[0].mxu0
      %v835 = vadd.f32 0.0, %v834
      %v836 = vpop.f32.mrb[0].mxu0
      %837 = vmatprep.mubr.bf16.mxu0 0
      %838 = vmatmul.mubr.bf16.gmra.mrb[0].mxu0 %v697
      %v839 = vpop.f32.mrb[0].mxu0
      %v840 = vadd.f32 0.0, %v839
      %v841 = vpop.f32.mrb[0].mxu0
      %v842 = vpop.f32.mrb[0].mxu0
      %v843 = vadd.f32 0.0, %v842
      %v844 = vpop.f32.mrb[0].mxu0
      %845 = vmatprep.mubr.bf16.mxu0 0
      %846 = vmatmul.mubr.bf16.gmra.mrb[0].mxu0 %v698
      %v847 = vpop.f32.mrb[0].mxu0
      %v848 = vadd.f32 0.0, %v847
      %v849 = vpop.f32.mrb[0].mxu0
      %v850 = vpop.f32.mrb[0].mxu0
      %v851 = vadd.f32 0.0, %v850
      %v852 = vpop.f32.mrb[0].mxu0
      %853 = vmatprep.mubr.bf16.mxu0 0
      %854 = vmatmul.mubr.bf16.gmra.mrb[0].mxu0 %v699
      %v855 = vpop.f32.mrb[0].mxu0
      %v856 = vadd.f32 0.0, %v855
      %v857 = vpop.f32.mrb[0].mxu0
      %v858 = vpop.f32.mrb[0].mxu0
      %v859 = vadd.f32 0.0, %v858
      %v860 = vpop.f32.mrb[0].mxu0
      %861 = vmatprep.mubr.bf16.mxu0 0
      %862 = vmatmul.mubr.bf16.gmra.mrb[0].mxu0 %v700
      %v863 = vpop.f32.mrb[0].mxu0
      %v864 = vadd.f32 0.0, %v863
      %v865 = vpop.f32.mrb[0].mxu0
      %v866 = vpop.f32.mrb[0].mxu0
      %v867 = vadd.f32 0.0, %v866
      %v868 = vpop.f32.mrb[0].mxu0
      %869 = vmatprep.mubr.bf16.mxu0 0
      %870 = vmatmul.mubr.bf16.gmra.mrb[0].mxu0 %v701
      %v871 = vpop.f32.mrb[0].mxu0
      %v872 = vadd.f32 0.0, %v871
      %v873 = vpop.f32.mrb[0].mxu0
      %v874 = vpop.f32.mrb[0].mxu0
      %v875 = vadd.f32 0.0, %v874
      %v876 = vpop.f32.mrb[0].mxu0
      %877 = vmatprep.mubr.bf16.mxu0 0
      %878 = vmatmul.mubr.bf16.gmra.mrb[0].mxu0 %v702
      %v879 = vpop.f32.mrb[0].mxu0
      %v880 = vadd.f32 0.0, %v879
      %v881 = vpop.f32.mrb[0].mxu0
      %v882 = vpop.f32.mrb[0].mxu0
      %v883 = vadd.f32 0.0, %v882
      %v884 = vpop.f32.mrb[0].mxu0
      %885 = vmatprep.mubr.bf16.mxu0 0
      %886 = vmatmul.mubr.bf16.gmra.mrb[0].mxu0 %v703
      %v887 = vpop.f32.mrb[0].mxu0
      %v888 = vadd.f32 0.0, %v887
      %v889 = vpop.f32.mrb[0].mxu0
      %v890 = vpop.f32.mrb[0].mxu0
      %v891 = vadd.f32 0.0, %v890
      %v892 = vpop.f32.mrb[0].mxu0
      %893 = vmatprep.mubr.bf16.mxu0 0
      %894 = vmatmul.mubr.bf16.gmra.mrb[0].mxu0 %v704
      %v895 = vpop.f32.mrb[0].mxu0
      %v896 = vadd.f32 0.0, %v895
      %v897 = vpop.f32.mrb[0].mxu0
      %v898 = vpop.f32.mrb[0].mxu0
      %v899 = vadd.f32 0.0, %v898
      %v900 = vpop.f32.mrb[0].mxu0
      %901 = vmatprep.mubr.bf16.mxu0 0
      %902 = vmatmul.mubr.bf16.gmra.mrb[0].mxu0 %v705
      %v903 = vpop.f32.mrb[0].mxu0
      %v904 = vadd.f32 0.0, %v903
      %v905 = vpop.f32.mrb[0].mxu0
      %v906 = vpop.f32.mrb[0].mxu0
      %v907 = vadd.f32 0.0, %v906
      %v908 = vpop.f32.mrb[0].mxu0
      %909 = vmatprep.mubr.bf16.mxu0 0
      %910 = vmatmul.mubr.bf16.gmra.mrb[0].mxu0 %v706
      %v911 = vpop.f32.mrb[0].mxu0
      %v912 = vadd.f32 0.0, %v911
      %v913 = vpop.f32.mrb[0].mxu0
      %v914 = vpop.f32.mrb[0].mxu0
      %v915 = vadd.f32 0.0, %v914
      %v916 = vpop.f32.mrb[0].mxu0
      %917 = vmatprep.mubr.bf16.mxu0 0
      %918 = vmatmul.mubr.bf16.gmra.mrb[0].mxu0 %v707
      %v919 = vpop.f32.mrb[0].mxu0
      %v920 = vadd.f32 0.0, %v919
      %v921 = vpop.f32.mrb[0].mxu0
      %v922 = vpop.f32.mrb[0].mxu0
      %v923 = vadd.f32 0.0, %v922
      %v924 = vpop.f32.mrb[0].mxu0
      %925 = vmatprep.mubr.bf16.mxu0 0
      %926 = vmatmul.mubr.bf16.gmra.mrb[0].mxu0 %v708
      %v927 = vpop.f32.mrb[0].mxu0
      %v928 = vadd.f32 0.0, %v927
      %v929 = vpop.f32.mrb[0].mxu0
      %v930 = vpop.f32.mrb[0].mxu0
      %v931 = vadd.f32 0.0, %v930
      %v932 = vpop.f32.mrb[0].mxu0
      %933 = vdwg.mxu0
      %vm934 = vcmask 130048
      %935 = vst.msk [vmem:[%s226] sm:$0xff] %vm934, %v808
      %936 = vst.msk [vmem:[%s226 + $0x8] sm:$0xff] %vm934, %v811
      %937 = vst.msk [vmem:[%s226 + $0x10] sm:$0xff] %vm934, %v816
      %938 = vst.msk [vmem:[%s226 + $0x18] sm:$0xff] %vm934, %v819
      %939 = vst.msk [vmem:[%s226 + $0x20] sm:$0xff] %vm934, %v824
      %940 = vst.msk [vmem:[%s226 + $0x28] sm:$0xff] %vm934, %v827
      %941 = vst.msk [vmem:[%s226 + $0x30] sm:$0xff] %vm934, %v832
      %942 = vst.msk [vmem:[%s226 + $0x38] sm:$0xff] %vm934, %v835
      %943 = vst.msk [vmem:[%s226 + $0x40] sm:$0xff] %vm934, %v840
      %944 = vst.msk [vmem:[%s226 + $0x48] sm:$0xff] %vm934, %v843
      %945 = vst.msk [vmem:[%s226 + $0x50] sm:$0xff] %vm934, %v848
      %946 = vst.msk [vmem:[%s226 + $0x58] sm:$0xff] %vm934, %v851
      %947 = vst.msk [vmem:[%s226 + $0x60] sm:$0xff] %vm934, %v856
      %948 = vst.msk [vmem:[%s226 + $0x68] sm:$0xff] %vm934, %v859
      %949 = vst.msk [vmem:[%s226 + $0x70] sm:$0xff] %vm934, %v864
      %950 = vst.msk [vmem:[%s226 + $0x78] sm:$0xff] %vm934, %v867
      %951 = vst.msk [vmem:[%s226 + $0x80] sm:$0xff] %vm934, %v872
      %952 = vst.msk [vmem:[%s226 + $0x88] sm:$0xff] %vm934, %v875
      %953 = vst.msk [vmem:[%s226 + $0x90] sm:$0xff] %vm934, %v880
      %954 = vst.msk [vmem:[%s226 + $0x98] sm:$0xff] %vm934, %v883
      %955 = vst.msk [vmem:[%s226 + $0xa0] sm:$0xff] %vm934, %v888
      %956 = vst.msk [vmem:[%s226 + $0xa8] sm:$0xff] %vm934, %v891
      %957 = vst.msk [vmem:[%s226 + $0xb0] sm:$0xff] %vm934, %v896
      %958 = vst.msk [vmem:[%s226 + $0xb8] sm:$0xff] %vm934, %v899
      %959 = vst.msk [vmem:[%s226 + $0xc0] sm:$0xff] %vm934, %v904
      %960 = vst.msk [vmem:[%s226 + $0xc8] sm:$0xff] %vm934, %v907
      %961 = vst.msk [vmem:[%s226 + $0xd0] sm:$0xff] %vm934, %v912
      %962 = vst.msk [vmem:[%s226 + $0xd8] sm:$0xff] %vm934, %v915
      %963 = vst.msk [vmem:[%s226 + $0xe0] sm:$0xff] %vm934, %v920
      %964 = vst.msk [vmem:[%s226 + $0xe8] sm:$0xff] %vm934, %v923
      %965 = vst.msk [vmem:[%s226 + $0xf0] sm:$0xff] %vm934, %v928
      %966 = vst.msk [vmem:[%s226 + $0xf8] sm:$0xff] %vm934, %v931
      %s967 = smul.u32 32, %s16
      %p968 = scmp.lt.s32.totalorder %s967, 63
      %s969 = scalar_select %p968, %s967, 63
      %s970 = smul.addr %s969, 8
      %s971 = scalar_lea.vmem %s5, %s970
      // Predicated region
      $region41: #{net_forward.21} parent=39 // pred_check
        %p972 = pneg %p144
      $region42: #{net_forward.21} parent=39 // pred_check_branch
        %974 = sbr.rel (%p972) target = $region44
      $region43: #{net_forward.21} parent=39 // pred_region
        %s975 = smul.u32 32, %s16
      $region44: #{net_forward.21} parent=39 // pred_fallthru
        _
    $region40: #{net_forward.21} parent=5 // pred_fallthru
      _
    %p976 = scmp.le.s32.totalorder 2, %s11
    // Predicated region
    $region45: #{net_forward.21} parent=5 // pred_check
      %p977 = pneg %p976
    $region46: #{net_forward.21} parent=5 // pred_check_branch
      %979 = sbr.rel (%p977) target = $region48
    $region47: #{net_forward.21} parent=5 // pred_region
      %s980 = ssub.s32 %s11, 2
      // Predicated region
      $region49: #{net_forward.21} parent=47 // pred_check
        %p981 = pneg %p150
      $region50: #{net_forward.21} parent=47 // pred_check_branch
        %983 = sbr.rel (%p981) target = $region52
      $region51: #{net_forward.21} parent=47 // pred_region
        %s984 = smul.u32 32, %s17
        %p985 = scmp.lt.s32.totalorder %s984, 63
        %s986 = scalar_select %p985, %s984, 63
        %s987 = smul.addr %s986, 8
        %s988 = scalar_lea.vmem %s5, %s987
      $region52: #{net_forward.21} parent=47 // pred_fallthru
        _
    $region48: #{net_forward.21} parent=5 // pred_fallthru
      _
  $region6: #{net_forward.21} parent=0 // loop_footer
    %s15 = sadd.s32 1, %s11
  $region7: #{net_forward.21} parent=0 // loop_footer_branch
    %10 = sbr.rel target = $region3
  $region8: #{net_forward.21} parent=0 // loop_exit
    _

// kernel: net_forward.22
$region0: #{net_forward.22}
  #allocation0 [shape = 'u32[]', space=smem, size = 0x4, offset = 0x4, fixed_abs, tag = 'smem constant byte address 0x4 - core index']
  #allocation1 [shape = 'u32[144,128]{1,0:T(1,128)}', space=vmem, size = 0x12000, scoped, tag = 'internal scratch']
  %s0 = inlined_call_operand.vmem [shape: bf16[512,144], index: 0, kind: input, shape index: {}]
  %s1 = inlined_call_operand.vmem [shape: bf16[144,32], index: 1, kind: input, shape index: {}]
  %s2 = inlined_call_operand.vmem [shape: f32[1,32], index: 2, kind: input, shape index: {}]
  %s3 = inlined_call_operand.vmem [shape: f32[1,32], index: 3, kind: input, shape index: {}]
  %s4 = inlined_call_operand.vmem [shape: f32[512,32], index: 4, kind: output, shape index: {}]
  %s5 = sld [smem:[#allocation0]]
  $region49: #{net_forward.22} parent=0
    _
  %s7 = ssub.s32 1, %s5
  %s8 = scalar_select 0, %s7, %s5
  loop: start=0, step=1, limit=4
  $region2: #{net_forward.22} parent=0 // loop_pre_header
    _
  $region3: #{net_forward.22} parent=0 // loop_header
    %s10 = sphi 0, %s14
    %p11 = scmp.ge.s32.totalorder %s10, 4
    %s20 = sphi 0, %s22
    %s23 = sphi 0, %s20
    %s24 = sphi 0, %s23
    %s40 = sphi 0, %s24
    %s44 = sphi 0, %s44
    %s46 = sphi 0, %s44
    %s47 = sphi 0, %s46
    %s61 = sphi 0, %s47
    %s65 = sphi 0, %s65
    %s67 = sphi 0, %s65
    %s68 = sphi 0, %s67
    %s82 = sphi 0, %s68
    %s86 = sphi 0, %s86
    %s88 = sphi 0, %s86
    %s89 = sphi 0, %s88
    %s103 = sphi 0, %s89
    %s109 = sphi 0, %s111
    %s112 = sphi 0, %s109
    %s113 = sphi 0, %s112
    %s129 = sphi 0, %s113
  $region4: #{net_forward.22} parent=0 // loop_header_branch
    %13 = sbr.rel (%p11) target = $region8
  $region5: #{net_forward.22} parent=0 // loop_body
    %s15 = ssub.s32 %s10, 1
    %s16 = ssub.s32 %s10, 2
    %s17 = sadd.s32 %s10, 1
    %s18 = ssub.s32 %s10, %s17
    %p19 = scmp.eq.s32.totalorder %s18, 0
    %s21 = sadd.s32 %s20, 1
    %s22 = scalar_select %p19, %s20, %s21
    %p25 = pneg %p19
    %p26 = scmp.eq.s32.totalorder %s10, 1
    %p27 = por %p25, %p26
    %p28 = scmp.ne.s32.totalorder %s20, %s23
    %p29 = scmp.eq.s32.totalorder %s10, 0
    %p30 = por %p28, %p29
    %p31 = scmp.ne.s32.totalorder %s20, %s23
    %p32 = scmp.eq.s32.totalorder %s15, 1
    %p33 = por %p31, %p32
    %p34 = scmp.ne.s32.totalorder %s23, %s24
    %p35 = scmp.eq.s32.totalorder %s15, 0
    %p36 = por %p34, %p35
    %p37 = scmp.ne.s32.totalorder %s23, %s24
    %p38 = scmp.eq.s32.totalorder %s16, 1
    %p39 = por %p37, %p38
    %p41 = scmp.ne.s32.totalorder %s24, %s40
    %p42 = scmp.eq.s32.totalorder %s16, 0
    %p43 = por %p41, %p42
    %s45 = sadd.s32 %s44, 1
    %p48 = scmp.eq.s32.totalorder %s10, 1
    %p49 = scmp.ne.s32.totalorder %s44, %s46
    %p50 = scmp.eq.s32.totalorder %s10, 0
    %p51 = por %p49, %p50
    %p52 = scmp.ne.s32.totalorder %s44, %s46
    %p53 = scmp.eq.s32.totalorder %s15, 1
    %p54 = por %p52, %p53
    %p55 = scmp.ne.s32.totalorder %s46, %s47
    %p56 = scmp.eq.s32.totalorder %s15, 0
    %p57 = por %p55, %p56
    %p58 = scmp.ne.s32.totalorder %s46, %s47
    %p59 = scmp.eq.s32.totalorder %s16, 1
    %p60 = por %p58, %p59
    %p62 = scmp.ne.s32.totalorder %s47, %s61
    %p63 = scmp.eq.s32.totalorder %s16, 0
    %p64 = por %p62, %p63
    %s66 = sadd.s32 %s65, 1
    %p69 = scmp.eq.s32.totalorder %s10, 1
    %p70 = scmp.ne.s32.totalorder %s65, %s67
    %p71 = scmp.eq.s32.totalorder %s10, 0
    %p72 = por %p70, %p71
    %p73 = scmp.ne.s32.totalorder %s65, %s67
    %p74 = scmp.eq.s32.totalorder %s15, 1
    %p75 = por %p73, %p74
    %p76 = scmp.ne.s32.totalorder %s67, %s68
    %p77 = scmp.eq.s32.totalorder %s15, 0
    %p78 = por %p76, %p77
    %p79 = scmp.ne.s32.totalorder %s67, %s68
    %p80 = scmp.eq.s32.totalorder %s16, 1
    %p81 = por %p79, %p80
    %p83 = scmp.ne.s32.totalorder %s68, %s82
    %p84 = scmp.eq.s32.totalorder %s16, 0
    %p85 = por %p83, %p84
    %s87 = sadd.s32 %s86, 1
    %p90 = scmp.eq.s32.totalorder %s10, 1
    %p91 = scmp.ne.s32.totalorder %s86, %s88
    %p92 = scmp.eq.s32.totalorder %s10, 0
    %p93 = por %p91, %p92
    %p94 = scmp.ne.s32.totalorder %s86, %s88
    %p95 = scmp.eq.s32.totalorder %s15, 1
    %p96 = por %p94, %p95
    %p97 = scmp.ne.s32.totalorder %s88, %s89
    %p98 = scmp.eq.s32.totalorder %s15, 0
    %p99 = por %p97, %p98
    %p100 = scmp.ne.s32.totalorder %s88, %s89
    %p101 = scmp.eq.s32.totalorder %s16, 1
    %p102 = por %p100, %p101
    %p104 = scmp.ne.s32.totalorder %s89, %s103
    %p105 = scmp.eq.s32.totalorder %s16, 0
    %p106 = por %p104, %p105
    %s107 = ssub.s32 %s10, %s17
    %p108 = scmp.eq.s32.totalorder %s107, 0
    %s110 = sadd.s32 %s109, 1
    %s111 = scalar_select %p108, %s109, %s110
    %p114 = pneg %p108
    %p115 = scmp.eq.s32.totalorder %s10, 1
    %p116 = por %p114, %p115
    %p117 = scmp.ne.s32.totalorder %s109, %s112
    %p118 = scmp.eq.s32.totalorder %s10, 0
    %p119 = por %p117, %p118
    %p120 = scmp.ne.s32.totalorder %s109, %s112
    %p121 = scmp.eq.s32.totalorder %s15, 1
    %p122 = por %p120, %p121
    %p123 = scmp.ne.s32.totalorder %s112, %s113
    %p124 = scmp.eq.s32.totalorder %s15, 0
    %p125 = por %p123, %p124
    %p126 = scmp.ne.s32.totalorder %s112, %s113
    %p127 = scmp.eq.s32.totalorder %s16, 1
    %p128 = por %p126, %p127
    %p130 = scmp.ne.s32.totalorder %s113, %s129
    %p131 = scmp.eq.s32.totalorder %s16, 0
    %p132 = por %p130, %p131
    %p133 = scmp.le.s32.totalorder 1, %s10
    %p134 = scmp.lt.s32.totalorder %s10, 3
    %p135 = pnand %p133, %p134
    %p136 = pneg %p135
    // Predicated region
    $region9: #{net_forward.22} parent=5 // pred_check
      _
    $region10: #{net_forward.22} parent=5 // pred_check_branch
      %138 = sbr.rel (%p135) target = $region12
    $region11: #{net_forward.22} parent=5 // pred_region
      %s139 = ssub.s32 %s10, 1
      // Predicated region
      $region13: #{net_forward.22} parent=11 // pred_check
        %p140 = pneg %p57
      $region14: #{net_forward.22} parent=11 // pred_check_branch
        %142 = sbr.rel (%p140) target = $region16
      $region15: #{net_forward.22} parent=11 // pred_region
        _
      $region16: #{net_forward.22} parent=11 // pred_fallthru
        _
      // Predicated region
      $region17: #{net_forward.22} parent=11 // pred_check
        %p143 = pneg %p78
      $region18: #{net_forward.22} parent=11 // pred_check_branch
        %145 = sbr.rel (%p143) target = $region20
      $region19: #{net_forward.22} parent=11 // pred_region
        _
      $region20: #{net_forward.22} parent=11 // pred_fallthru
        _
      // Predicated region
      $region21: #{net_forward.22} parent=11 // pred_check
        %p146 = pneg %p99
      $region22: #{net_forward.22} parent=11 // pred_check_branch
        %148 = sbr.rel (%p146) target = $region24
      $region23: #{net_forward.22} parent=11 // pred_region
        _
      $region24: #{net_forward.22} parent=11 // pred_fallthru
        _
    $region12: #{net_forward.22} parent=5 // pred_fallthru
      _
    %p149 = scmp.lt.s32.totalorder %s10, 2
    // Predicated region
    $region25: #{net_forward.22} parent=5 // pred_check
      %p150 = pneg %p149
    $region26: #{net_forward.22} parent=5 // pred_check_branch
      %152 = sbr.rel (%p150) target = $region28
    $region27: #{net_forward.22} parent=5 // pred_region
      // Predicated region
      $region29: #{net_forward.22} parent=27 // pred_check
        %p153 = pneg %p30
      $region30: #{net_forward.22} parent=27 // pred_check_branch
        %155 = sbr.rel (%p153) target = $region32
      $region31: #{net_forward.22} parent=27 // pred_region
        %s156 = smul.u32 32, %s10
        %p157 = scmp.lt.s32.totalorder %s156, 63
        %s158 = scalar_select %p157, %s156, 63
        %s159 = smul.addr %s158, 2
        %s160 = smul.addr %s159, 4
        %s161 = scalar_lea.vmem %s0, %s160
        %s162 = smul.u32 32, %s10
      $region32: #{net_forward.22} parent=27 // pred_fallthru
        _
    $region28: #{net_forward.22} parent=5 // pred_fallthru
      _
    %p163 = scmp.le.s32.totalorder 1, %s10
    %p164 = scmp.lt.s32.totalorder %s10, 3
    %p165 = pnand %p163, %p164
    %p166 = pneg %p165
    // Predicated region
    $region33: #{net_forward.22} parent=5 // pred_check
      _
    $region34: #{net_forward.22} parent=5 // pred_check_branch
      %168 = sbr.rel (%p165) target = $region36
    $region35: #{net_forward.22} parent=5 // pred_region
      %s169 = ssub.s32 %s10, 1
      %s170 = smul.u32 32, %s15
      %p171 = scmp.lt.s32.totalorder %s170, 63
      %s172 = scalar_select %p171, %s170, 63
      %s173 = smul.addr %s172, 2
      %s174 = smul.addr %s173, 4
      %s175 = scalar_lea.vmem %s0, %s174
      %p176 = pneg %p36
      %p177 = pneg %p33
      %p178 = pneg %p57
      %p179 = pneg %p54
      %p180 = pneg %p78
      %p181 = pneg %p75
      %p182 = pneg %p99
      %p183 = pneg %p96
      %p184 = pneg %p125
      %p185 = pneg %p122
      %s186 = smul.u32 32, %s15
      %p187 = scmp.lt.s32.totalorder %s186, 63
      %s188 = scalar_select %p187, %s186, 63
      %s189 = smul.addr %s188, 8
      %s190 = scalar_lea.vmem %s4, %s189
      %s191 = smul.u32 32, %s15
      %p192 = scmp.lt.s32.totalorder %s191, 63
      %s193 = scalar_select %p192, %s191, 63
      %s194 = smul.addr %s193, 2
      %s195 = smul.addr %s194, 4
      %s196 = scalar_lea.vmem %s0, %s195
      %s197 = smul.u32 32, %s15
      %s198 = smul.u32 32, %s15
      %p199 = scmp.lt.s32.totalorder %s198, 63
      %s200 = scalar_select %p199, %s198, 63
      %s201 = smul.addr %s200, 8
      %s202 = scalar_lea.vmem %s4, %s201
      %s203 = smul.u32 32, %s15
      %v205 = vld [vmem:[%s196] sm:$0xff]
      %v206 = vld [vmem:[%s196 + $0x8] sm:$0xff]
      %v207 = vld [vmem:[%s196 + $0x10] sm:$0xff]
      %v208 = vld [vmem:[%s196 + $0x18] sm:$0xff]
      %v209 = vld [vmem:[%s196 + $0x20] sm:$0xff]
      %v210 = vld [vmem:[%s196 + $0x28] sm:$0xff]
      %v211 = vld [vmem:[%s196 + $0x30] sm:$0xff]
      %v212 = vld [vmem:[%s196 + $0x38] sm:$0xff]
      %v213 = vld [vmem:[%s196 + $0x40] sm:$0xff]
      %v214 = vld [vmem:[%s196 + $0x48] sm:$0xff]
      %v215 = vld [vmem:[%s196 + $0x50] sm:$0xff]
      %v216 = vld [vmem:[%s196 + $0x58] sm:$0xff]
      %v217 = vld [vmem:[%s196 + $0x60] sm:$0xff]
      %v218 = vld [vmem:[%s196 + $0x68] sm:$0xff]
      %v219 = vld [vmem:[%s196 + $0x70] sm:$0xff]
      %v220 = vld [vmem:[%s196 + $0x78] sm:$0xff]
      %v221 = vld [vmem:[%s196 + $0x80] sm:$0xff]
      %v222 = vld [vmem:[%s196 + $0x88] sm:$0xff]
      %v223 = vld [vmem:[%s196 + $0x90] sm:$0xff]
      %v224 = vld [vmem:[%s196 + $0x98] sm:$0xff]
      %v225 = vld [vmem:[%s196 + $0xa0] sm:$0xff]
      %v226 = vld [vmem:[%s196 + $0xa8] sm:$0xff]
      %v227 = vld [vmem:[%s196 + $0xb0] sm:$0xff]
      %v228 = vld [vmem:[%s196 + $0xb8] sm:$0xff]
      %v229 = vld [vmem:[%s196 + $0xc0] sm:$0xff]
      %v230 = vld [vmem:[%s196 + $0xc8] sm:$0xff]
      %v231 = vld [vmem:[%s196 + $0xd0] sm:$0xff]
      %v232 = vld [vmem:[%s196 + $0xd8] sm:$0xff]
      %v233 = vld [vmem:[%s196 + $0xe0] sm:$0xff]
      %v234 = vld [vmem:[%s196 + $0xe8] sm:$0xff]
      %v235 = vld [vmem:[%s196 + $0xf0] sm:$0xff]
      %v236 = vld [vmem:[%s196 + $0xf8] sm:$0xff]
      %v237 = vld [vmem:[%s1] sm:$0xf]
      %v238 = vld [vmem:[%s1 + $0x4] sm:$0xf]
      %v239 = vld [vmem:[%s1 + $0x8] sm:$0xf]
      %v240 = vld [vmem:[%s1 + $0xc] sm:$0xf]
      %v241 = vld [vmem:[%s1 + $0x10] sm:$0xf]
      %v242 = vld [vmem:[%s1 + $0x14] sm:$0xf]
      %v243 = vld [vmem:[%s1 + $0x18] sm:$0xf]
      %v244 = vld [vmem:[%s1 + $0x1c] sm:$0xf]
      %v245 = vld [vmem:[%s1 + $0x20] sm:$0xf]
      %v246 = vld [vmem:[%s1 + $0x24] sm:$0xf]
      %v247 = vld [vmem:[%s1 + $0x28] sm:$0xf]
      %v248 = vld [vmem:[%s1 + $0x2c] sm:$0xf]
      %v249 = vld [vmem:[%s1 + $0x30] sm:$0xf]
      %v250 = vld [vmem:[%s1 + $0x34] sm:$0xf]
      %v251 = vld [vmem:[%s1 + $0x38] sm:$0xf]
      %v252 = vld [vmem:[%s1 + $0x3c] sm:$0xf]
      %v253 = vld [vmem:[%s1 + $0x40] sm:$0xf]
      %v254 = vld [vmem:[%s1 + $0x44] sm:$0xf]
      %v287 = vunpack.c.l.b16 %v205
      %v288 = vunpack.c.h.b16 %v205
      %v289 = vunpack.c.l.b16 %v206
      %v290 = vunpack.c.h.b16 %v206
      %v291 = vunpack.c.l.b16 %v207
      %v292 = vunpack.c.h.b16 %v207
      %v293 = vunpack.c.l.b16 %v208
      %v294 = vunpack.c.h.b16 %v208
      %v295 = vunpack.c.l.b16 %v209
      %v296 = vunpack.c.h.b16 %v209
      %v297 = vunpack.c.l.b16 %v210
      %v298 = vunpack.c.h.b16 %v210
      %v299 = vunpack.c.l.b16 %v211
      %v300 = vunpack.c.h.b16 %v211
      %v301 = vunpack.c.l.b16 %v212
      %v302 = vunpack.c.h.b16 %v212
      %v303 = vunpack.c.l.b16 %v213
      %v304 = vunpack.c.h.b16 %v213
      %v305 = vunpack.c.l.b16 %v214
      %v306 = vunpack.c.h.b16 %v214
      %v307 = vunpack.c.l.b16 %v215
      %v308 = vunpack.c.h.b16 %v215
      %v309 = vunpack.c.l.b16 %v216
      %v310 = vunpack.c.h.b16 %v216
      %v311 = vunpack.c.l.b16 %v217
      %v312 = vunpack.c.h.b16 %v217
      %v313 = vunpack.c.l.b16 %v218
      %v314 = vunpack.c.h.b16 %v218
      %v315 = vunpack.c.l.b16 %v219
      %v316 = vunpack.c.h.b16 %v219
      %v317 = vunpack.c.l.b16 %v220
      %v318 = vunpack.c.h.b16 %v220
      %v319 = vunpack.c.l.b16 %v221
      %v320 = vunpack.c.h.b16 %v221
      %v321 = vunpack.c.l.b16 %v222
      %v322 = vunpack.c.h.b16 %v222
      %v323 = vunpack.c.l.b16 %v223
      %v324 = vunpack.c.h.b16 %v223
      %v325 = vunpack.c.l.b16 %v224
      %v326 = vunpack.c.h.b16 %v224
      %v327 = vunpack.c.l.b16 %v225
      %v328 = vunpack.c.h.b16 %v225
      %v329 = vunpack.c.l.b16 %v226
      %v330 = vunpack.c.h.b16 %v226
      %v331 = vunpack.c.l.b16 %v227
      %v332 = vunpack.c.h.b16 %v227
      %v333 = vunpack.c.l.b16 %v228
      %v334 = vunpack.c.h.b16 %v228
      %v335 = vunpack.c.l.b16 %v229
      %v336 = vunpack.c.h.b16 %v229
      %v337 = vunpack.c.l.b16 %v230
      %v338 = vunpack.c.h.b16 %v230
      %v339 = vunpack.c.l.b16 %v231
      %v340 = vunpack.c.h.b16 %v231
      %v341 = vunpack.c.l.b16 %v232
      %v342 = vunpack.c.h.b16 %v232
      %v343 = vunpack.c.l.b16 %v233
      %v344 = vunpack.c.h.b16 %v233
      %v345 = vunpack.c.l.b16 %v234
      %v346 = vunpack.c.h.b16 %v234
      %v347 = vunpack.c.l.b16 %v235
      %v348 = vunpack.c.h.b16 %v235
      %v349 = vunpack.c.l.b16 %v236
      %v350 = vunpack.c.h.b16 %v236
      %v351 = vpack.c.b16 %v289, %v287
      %v352 = vpack.c.b16 %v290, %v288
      %v353 = vpack.c.b16 %v293, %v291
      %v354 = vpack.c.b16 %v294, %v292
      %v355 = vpack.c.b16 %v297, %v295
      %v356 = vpack.c.b16 %v298, %v296
      %v357 = vpack.c.b16 %v301, %v299
      %v358 = vpack.c.b16 %v302, %v300
      %v359 = vpack.c.b16 %v305, %v303
      %v360 = vpack.c.b16 %v306, %v304
      %v361 = vpack.c.b16 %v309, %v307
      %v362 = vpack.c.b16 %v310, %v308
      %v363 = vpack.c.b16 %v313, %v311
      %v364 = vpack.c.b16 %v314, %v312
      %v365 = vpack.c.b16 %v317, %v315
      %v366 = vpack.c.b16 %v318, %v316
      %v367 = vpack.c.b16 %v321, %v319
      %v368 = vpack.c.b16 %v322, %v320
      %v369 = vpack.c.b16 %v325, %v323
      %v370 = vpack.c.b16 %v326, %v324
      %v371 = vpack.c.b16 %v329, %v327
      %v372 = vpack.c.b16 %v330, %v328
      %v373 = vpack.c.b16 %v333, %v331
      %v374 = vpack.c.b16 %v334, %v332
      %v375 = vpack.c.b16 %v337, %v335
      %v376 = vpack.c.b16 %v338, %v336
      %v377 = vpack.c.b16 %v341, %v339
      %v378 = vpack.c.b16 %v342, %v340
      %v379 = vpack.c.b16 %v345, %v343
      %v380 = vpack.c.b16 %v346, %v344
      %v381 = vpack.c.b16 %v349, %v347
      %v382 = vpack.c.b16 %v350, %v348
      %v417 = vunpack.c.l.b16 %v237
      %v418 = vunpack.c.l.b16 %v238
      %v419 = vunpack.c.l.b16 %v239
      %v420 = vunpack.c.l.b16 %v240
      %v421 = vunpack.c.l.b16 %v241
      %v422 = vunpack.c.l.b16 %v242
      %v423 = vunpack.c.l.b16 %v243
      %v424 = vunpack.c.l.b16 %v244
      %v425 = vunpack.c.l.b16 %v245
      %v426 = vunpack.c.l.b16 %v246
      %v427 = vunpack.c.l.b16 %v247
      %v428 = vunpack.c.l.b16 %v248
      %v429 = vunpack.c.l.b16 %v249
      %v430 = vunpack.c.l.b16 %v250
      %v431 = vunpack.c.l.b16 %v251
      %v432 = vunpack.c.l.b16 %v252
      %v433 = vunpack.c.l.b16 %v253
      %v434 = vunpack.c.l.b16 %v254
      %v435 = vpack.c.b16 %v418, %v417
      %v436 = vpack.c.b16 %v420, %v419
      %v437 = vpack.c.b16 %v422, %v421
      %v438 = vpack.c.b16 %v424, %v423
      %v439 = vpack.c.b16 %v426, %v425
      %v440 = vpack.c.b16 %v428, %v427
      %v441 = vpack.c.b16 %v430, %v429
      %v442 = vpack.c.b16 %v432, %v431
      %v443 = vpack.c.b16 %v434, %v433
      %vm453 = vcmask 130048
      %v455 = vsel %vm453, %v352, 0
      %v458 = vsel %vm453, %v354, 0
      %v461 = vsel %vm453, %v356, 0
      %v464 = vsel %vm453, %v358, 0
      %v467 = vsel %vm453, %v360, 0
      %v470 = vsel %vm453, %v362, 0
      %v473 = vsel %vm453, %v364, 0
      %v476 = vsel %vm453, %v366, 0
      %v479 = vsel %vm453, %v368, 0
      %v482 = vsel %vm453, %v370, 0
      %v485 = vsel %vm453, %v372, 0
      %v488 = vsel %vm453, %v374, 0
      %v491 = vsel %vm453, %v376, 0
      %v494 = vsel %vm453, %v378, 0
      %v497 = vsel %vm453, %v380, 0
      %v500 = vsel %vm453, %v382, 0
      %502 = vmatprep.subr.bf16.mxu0 0
      %503 = vmatpush1.bf16.msra.mxu0 %v435
      %504 = vmatprep.subr.bf16.mxu0 0
      %505 = vmatpush1.bf16.msra.mxu0 %v436
      %506 = vmatprep.subr.bf16.mxu0 0
      %507 = vmatpush1.bf16.msra.mxu0 %v437
      %508 = vmatprep.subr.bf16.mxu0 0
      %509 = vmatpush1.bf16.msra.mxu0 %v438
      %510 = vmatprep.subr.bf16.mxu0 0
      %511 = vmatpush1.bf16.msra.mxu0 %v439
      %512 = vmatprep.subr.bf16.mxu0 0
      %513 = vmatpush1.bf16.msra.mxu0 %v440
      %514 = vmatprep.subr.bf16.mxu0 0
      %515 = vmatpush1.bf16.msra.mxu0 %v441
      %516 = vmatprep.subr.bf16.mxu0 0
      %517 = vmatpush1.bf16.msra.mxu0 %v442
      %518 = vmatprep.subr.bf16.mxu0 0
      %519 = vmatpush1.bf16.msra.mxu0 %v443
      %520 = vmatprep.subr.bf16.mxu0 0
      %521 = vmatpush1.bf16.msra.mxu0 0
      %522 = vmatprep.subr.bf16.mxu0 0
      %523 = vmatpush1.bf16.msra.mxu0 0
      %524 = vmatprep.subr.bf16.mxu0 0
      %525 = vmatpush1.bf16.msra.mxu0 0
      %526 = vmatprep.subr.bf16.mxu0 0
      %527 = vmatpush1.bf16.msra.mxu0 0
      %528 = vmatprep.subr.bf16.mxu0 0
      %529 = vmatpush1.bf16.msra.mxu0 0
      %530 = vmatprep.subr.bf16.mxu0 0
      %531 = vmatpush1.bf16.msra.mxu0 0
      %532 = vmatprep.subr.bf16.mxu0 0
      %533 = vmatpush1.bf16.msra.mxu0 0
      %534 = vmatprep.mubr.bf16.mxu0 %v455
      %535 = vmatmul.mubr.bf16.gmra.mrb[0].mxu0 %v351
      %v536 = vpop.f32.mrb[0].mxu0
      %v537 = vadd.f32 0.0, %v536
      %v538 = vpop.f32.mrb[0].mxu0
      %v539 = vpop.f32.mrb[0].mxu0
      %v540 = vadd.f32 0.0, %v539
      %v541 = vpop.f32.mrb[0].mxu0
      %542 = vmatprep.mubr.bf16.mxu0 %v458
      %543 = vmatmul.mubr.bf16.gmra.mrb[0].mxu0 %v353
      %v544 = vpop.f32.mrb[0].mxu0
      %v545 = vadd.f32 0.0, %v544
      %v546 = vpop.f32.mrb[0].mxu0
      %v547 = vpop.f32.mrb[0].mxu0
      %v548 = vadd.f32 0.0, %v547
      %v549 = vpop.f32.mrb[0].mxu0
      %550 = vmatprep.mubr.bf16.mxu0 %v461
      %551 = vmatmul.mubr.bf16.gmra.mrb[0].mxu0 %v355
      %v552 = vpop.f32.mrb[0].mxu0
      %v553 = vadd.f32 0.0, %v552
      %v554 = vpop.f32.mrb[0].mxu0
      %v555 = vpop.f32.mrb[0].mxu0
      %v556 = vadd.f32 0.0, %v555
      %v557 = vpop.f32.mrb[0].mxu0
      %558 = vmatprep.mubr.bf16.mxu0 %v464
      %559 = vmatmul.mubr.bf16.gmra.mrb[0].mxu0 %v357
      %v560 = vpop.f32.mrb[0].mxu0
      %v561 = vadd.f32 0.0, %v560
      %v562 = vpop.f32.mrb[0].mxu0
      %v563 = vpop.f32.mrb[0].mxu0
      %v564 = vadd.f32 0.0, %v563
      %v565 = vpop.f32.mrb[0].mxu0
      %566 = vmatprep.mubr.bf16.mxu0 %v467
      %567 = vmatmul.mubr.bf16.gmra.mrb[0].mxu0 %v359
      %v568 = vpop.f32.mrb[0].mxu0
      %v569 = vadd.f32 0.0, %v568
      %v570 = vpop.f32.mrb[0].mxu0
      %v571 = vpop.f32.mrb[0].mxu0
      %v572 = vadd.f32 0.0, %v571
      %v573 = vpop.f32.mrb[0].mxu0
      %574 = vmatprep.mubr.bf16.mxu0 %v470
      %575 = vmatmul.mubr.bf16.gmra.mrb[0].mxu0 %v361
      %v576 = vpop.f32.mrb[0].mxu0
      %v577 = vadd.f32 0.0, %v576
      %v578 = vpop.f32.mrb[0].mxu0
      %v579 = vpop.f32.mrb[0].mxu0
      %v580 = vadd.f32 0.0, %v579
      %v581 = vpop.f32.mrb[0].mxu0
      %582 = vmatprep.mubr.bf16.mxu0 %v473
      %583 = vmatmul.mubr.bf16.gmra.mrb[0].mxu0 %v363
      %v584 = vpop.f32.mrb[0].mxu0
      %v585 = vadd.f32 0.0, %v584
      %v586 = vpop.f32.mrb[0].mxu0
      %v587 = vpop.f32.mrb[0].mxu0
      %v588 = vadd.f32 0.0, %v587
      %v589 = vpop.f32.mrb[0].mxu0
      %590 = vmatprep.mubr.bf16.mxu0 %v476
      %591 = vmatmul.mubr.bf16.gmra.mrb[0].mxu0 %v365
      %v592 = vpop.f32.mrb[0].mxu0
      %v593 = vadd.f32 0.0, %v592
      %v594 = vpop.f32.mrb[0].mxu0
      %v595 = vpop.f32.mrb[0].mxu0
      %v596 = vadd.f32 0.0, %v595
      %v597 = vpop.f32.mrb[0].mxu0
      %598 = vmatprep.mubr.bf16.mxu0 %v479
      %599 = vmatmul.mubr.bf16.gmra.mrb[0].mxu0 %v367
      %v600 = vpop.f32.mrb[0].mxu0
      %v601 = vadd.f32 0.0, %v600
      %v602 = vpop.f32.mrb[0].mxu0
      %v603 = vpop.f32.mrb[0].mxu0
      %v604 = vadd.f32 0.0, %v603
      %v605 = vpop.f32.mrb[0].mxu0
      %606 = vmatprep.mubr.bf16.mxu0 %v482
      %607 = vmatmul.mubr.bf16.gmra.mrb[0].mxu0 %v369
      %v608 = vpop.f32.mrb[0].mxu0
      %v609 = vadd.f32 0.0, %v608
      %v610 = vpop.f32.mrb[0].mxu0
      %v611 = vpop.f32.mrb[0].mxu0
      %v612 = vadd.f32 0.0, %v611
      %v613 = vpop.f32.mrb[0].mxu0
      %614 = vmatprep.mubr.bf16.mxu0 %v485
      %615 = vmatmul.mubr.bf16.gmra.mrb[0].mxu0 %v371
      %v616 = vpop.f32.mrb[0].mxu0
      %v617 = vadd.f32 0.0, %v616
      %v618 = vpop.f32.mrb[0].mxu0
      %v619 = vpop.f32.mrb[0].mxu0
      %v620 = vadd.f32 0.0, %v619
      %v621 = vpop.f32.mrb[0].mxu0
      %622 = vmatprep.mubr.bf16.mxu0 %v488
      %623 = vmatmul.mubr.bf16.gmra.mrb[0].mxu0 %v373
      %v624 = vpop.f32.mrb[0].mxu0
      %v625 = vadd.f32 0.0, %v624
      %v626 = vpop.f32.mrb[0].mxu0
      %v627 = vpop.f32.mrb[0].mxu0
      %v628 = vadd.f32 0.0, %v627
      %v629 = vpop.f32.mrb[0].mxu0
      %630 = vmatprep.mubr.bf16.mxu0 %v491
      %631 = vmatmul.mubr.bf16.gmra.mrb[0].mxu0 %v375
      %v632 = vpop.f32.mrb[0].mxu0
      %v633 = vadd.f32 0.0, %v632
      %v634 = vpop.f32.mrb[0].mxu0
      %v635 = vpop.f32.mrb[0].mxu0
      %v636 = vadd.f32 0.0, %v635
      %v637 = vpop.f32.mrb[0].mxu0
      %638 = vmatprep.mubr.bf16.mxu0 %v494
      %639 = vmatmul.mubr.bf16.gmra.mrb[0].mxu0 %v377
      %v640 = vpop.f32.mrb[0].mxu0
      %v641 = vadd.f32 0.0, %v640
      %v642 = vpop.f32.mrb[0].mxu0
      %v643 = vpop.f32.mrb[0].mxu0
      %v644 = vadd.f32 0.0, %v643
      %v645 = vpop.f32.mrb[0].mxu0
      %646 = vmatprep.mubr.bf16.mxu0 %v497
      %647 = vmatmul.mubr.bf16.gmra.mrb[0].mxu0 %v379
      %v648 = vpop.f32.mrb[0].mxu0
      %v649 = vadd.f32 0.0, %v648
      %v650 = vpop.f32.mrb[0].mxu0
      %v651 = vpop.f32.mrb[0].mxu0
      %v652 = vadd.f32 0.0, %v651
      %v653 = vpop.f32.mrb[0].mxu0
      %654 = vmatprep.mubr.bf16.mxu0 %v500
      %655 = vmatmul.mubr.bf16.gmra.mrb[0].mxu0 %v381
      %v656 = vpop.f32.mrb[0].mxu0
      %v657 = vadd.f32 0.0, %v656
      %v658 = vpop.f32.mrb[0].mxu0
      %v659 = vpop.f32.mrb[0].mxu0
      %v660 = vadd.f32 0.0, %v659
      %v661 = vpop.f32.mrb[0].mxu0
      %662 = vdwg.mxu0
      %v663 = vmax.f32 %v537, 0.0
      %v664 = vmax.f32 %v540, 0.0
      %v665 = vmax.f32 %v545, 0.0
      %v666 = vmax.f32 %v548, 0.0
      %v667 = vmax.f32 %v553, 0.0
      %v668 = vmax.f32 %v556, 0.0
      %v669 = vmax.f32 %v561, 0.0
      %v670 = vmax.f32 %v564, 0.0
      %v671 = vmax.f32 %v569, 0.0
      %v672 = vmax.f32 %v572, 0.0
      %v673 = vmax.f32 %v577, 0.0
      %v674 = vmax.f32 %v580, 0.0
      %v675 = vmax.f32 %v585, 0.0
      %v676 = vmax.f32 %v588, 0.0
      %v677 = vmax.f32 %v593, 0.0
      %v678 = vmax.f32 %v596, 0.0
      %v679 = vmax.f32 %v601, 0.0
      %v680 = vmax.f32 %v604, 0.0
      %v681 = vmax.f32 %v609, 0.0
      %v682 = vmax.f32 %v612, 0.0
      %v683 = vmax.f32 %v617, 0.0
      %v684 = vmax.f32 %v620, 0.0
      %v685 = vmax.f32 %v625, 0.0
      %v686 = vmax.f32 %v628, 0.0
      %v687 = vmax.f32 %v633, 0.0
      %v688 = vmax.f32 %v636, 0.0
      %v689 = vmax.f32 %v641, 0.0
      %v690 = vmax.f32 %v644, 0.0
      %v691 = vmax.f32 %v649, 0.0
      %v692 = vmax.f32 %v652, 0.0
      %v693 = vmax.f32 %v657, 0.0
      %v694 = vmax.f32 %v660, 0.0
      %v695 = vld [vmem:[%s2] sm:$0x1]
      %v697 = vlaneseq
      %v698 = vshrl.u32 %v697, 7
      %v699 = vsub.s32 0, %v698
      %v700 = vrot.slane %v695, %v699
      %v702 = vmul.f32 %v663, %v700
      %v703 = vmul.f32 %v664, %v700
      %v704 = vmul.f32 %v665, %v700
      %v705 = vmul.f32 %v666, %v700
      %v706 = vmul.f32 %v667, %v700
      %v707 = vmul.f32 %v668, %v700
      %v708 = vmul.f32 %v669, %v700
      %v709 = vmul.f32 %v670, %v700
      %v710 = vmul.f32 %v671, %v700
      %v711 = vmul.f32 %v672, %v700
      %v712 = vmul.f32 %v673, %v700
      %v713 = vmul.f32 %v674, %v700
      %v714 = vmul.f32 %v675, %v700
      %v715 = vmul.f32 %v676, %v700
      %v716 = vmul.f32 %v677, %v700
      %v717 = vmul.f32 %v678, %v700
      %v718 = vmul.f32 %v679, %v700
      %v719 = vmul.f32 %v680, %v700
      %v720 = vmul.f32 %v681, %v700
      %v721 = vmul.f32 %v682, %v700
      %v722 = vmul.f32 %v683, %v700
      %v723 = vmul.f32 %v684, %v700
      %v724 = vmul.f32 %v685, %v700
      %v725 = vmul.f32 %v686, %v700
      %v726 = vmul.f32 %v687, %v700
      %v727 = vmul.f32 %v688, %v700
      %v728 = vmul.f32 %v689, %v700
      %v729 = vmul.f32 %v690, %v700
      %v730 = vmul.f32 %v691, %v700
      %v731 = vmul.f32 %v692, %v700
      %v732 = vmul.f32 %v693, %v700
      %v733 = vmul.f32 %v694, %v700
      %v734 = vld [vmem:[%s3] sm:$0x1]
      %v736 = vlaneseq
      %v737 = vshrl.u32 %v736, 7
      %v738 = vsub.s32 0, %v737
      %v739 = vrot.slane %v734, %v738
      %v741 = vadd.f32 %v702, %v739
      %v742 = vadd.f32 %v703, %v739
      %v743 = vadd.f32 %v704, %v739
      %v744 = vadd.f32 %v705, %v739
      %v745 = vadd.f32 %v706, %v739
      %v746 = vadd.f32 %v707, %v739
      %v747 = vadd.f32 %v708, %v739
      %v748 = vadd.f32 %v709, %v739
      %v749 = vadd.f32 %v710, %v739
      %v750 = vadd.f32 %v711, %v739
      %v751 = vadd.f32 %v712, %v739
      %v752 = vadd.f32 %v713, %v739
      %v753 = vadd.f32 %v714, %v739
      %v754 = vadd.f32 %v715, %v739
      %v755 = vadd.f32 %v716, %v739
      %v756 = vadd.f32 %v717, %v739
      %v757 = vadd.f32 %v718, %v739
      %v758 = vadd.f32 %v719, %v739
      %v759 = vadd.f32 %v720, %v739
      %v760 = vadd.f32 %v721, %v739
      %v761 = vadd.f32 %v722, %v739
      %v762 = vadd.f32 %v723, %v739
      %v763 = vadd.f32 %v724, %v739
      %v764 = vadd.f32 %v725, %v739
      %v765 = vadd.f32 %v726, %v739
      %v766 = vadd.f32 %v727, %v739
      %v767 = vadd.f32 %v728, %v739
      %v768 = vadd.f32 %v729, %v739
      %v769 = vadd.f32 %v730, %v739
      %v770 = vadd.f32 %v731, %v739
      %v771 = vadd.f32 %v732, %v739
      %v772 = vadd.f32 %v733, %v739
      %vm773 = vcmask 261120
      %774 = vst.msk [vmem:[%s202] sm:$0xff] %vm773, %v741
      %775 = vst.msk [vmem:[%s202 + $0x8] sm:$0xff] %vm773, %v742
      %776 = vst.msk [vmem:[%s202 + $0x10] sm:$0xff] %vm773, %v743
      %777 = vst.msk [vmem:[%s202 + $0x18] sm:$0xff] %vm773, %v744
      %778 = vst.msk [vmem:[%s202 + $0x20] sm:$0xff] %vm773, %v745
      %779 = vst.msk [vmem:[%s202 + $0x28] sm:$0xff] %vm773, %v746
      %780 = vst.msk [vmem:[%s202 + $0x30] sm:$0xff] %vm773, %v747
      %781 = vst.msk [vmem:[%s202 + $0x38] sm:$0xff] %vm773, %v748
      %782 = vst.msk [vmem:[%s202 + $0x40] sm:$0xff] %vm773, %v749
      %783 = vst.msk [vmem:[%s202 + $0x48] sm:$0xff] %vm773, %v750
      %784 = vst.msk [vmem:[%s202 + $0x50] sm:$0xff] %vm773, %v751
      %785 = vst.msk [vmem:[%s202 + $0x58] sm:$0xff] %vm773, %v752
      %786 = vst.msk [vmem:[%s202 + $0x60] sm:$0xff] %vm773, %v753
      %787 = vst.msk [vmem:[%s202 + $0x68] sm:$0xff] %vm773, %v754
      %788 = vst.msk [vmem:[%s202 + $0x70] sm:$0xff] %vm773, %v755
      %789 = vst.msk [vmem:[%s202 + $0x78] sm:$0xff] %vm773, %v756
      %790 = vst.msk [vmem:[%s202 + $0x80] sm:$0xff] %vm773, %v757
      %791 = vst.msk [vmem:[%s202 + $0x88] sm:$0xff] %vm773, %v758
      %792 = vst.msk [vmem:[%s202 + $0x90] sm:$0xff] %vm773, %v759
      %793 = vst.msk [vmem:[%s202 + $0x98] sm:$0xff] %vm773, %v760
      %794 = vst.msk [vmem:[%s202 + $0xa0] sm:$0xff] %vm773, %v761
      %795 = vst.msk [vmem:[%s202 + $0xa8] sm:$0xff] %vm773, %v762
      %796 = vst.msk [vmem:[%s202 + $0xb0] sm:$0xff] %vm773, %v763
      %797 = vst.msk [vmem:[%s202 + $0xb8] sm:$0xff] %vm773, %v764
      %798 = vst.msk [vmem:[%s202 + $0xc0] sm:$0xff] %vm773, %v765
      %799 = vst.msk [vmem:[%s202 + $0xc8] sm:$0xff] %vm773, %v766
      %800 = vst.msk [vmem:[%s202 + $0xd0] sm:$0xff] %vm773, %v767
      %801 = vst.msk [vmem:[%s202 + $0xd8] sm:$0xff] %vm773, %v768
      %802 = vst.msk [vmem:[%s202 + $0xe0] sm:$0xff] %vm773, %v769
      %803 = vst.msk [vmem:[%s202 + $0xe8] sm:$0xff] %vm773, %v770
      %804 = vst.msk [vmem:[%s202 + $0xf0] sm:$0xff] %vm773, %v771
      %805 = vst.msk [vmem:[%s202 + $0xf8] sm:$0xff] %vm773, %v772
      %s806 = smul.u32 32, %s15
      %p807 = scmp.lt.s32.totalorder %s806, 63
      %s808 = scalar_select %p807, %s806, 63
      %s809 = smul.addr %s808, 8
      %s810 = scalar_lea.vmem %s4, %s809
      // Predicated region
      $region37: #{net_forward.22} parent=35 // pred_check
        %p811 = pneg %p122
      $region38: #{net_forward.22} parent=35 // pred_check_branch
        %813 = sbr.rel (%p811) target = $region40
      $region39: #{net_forward.22} parent=35 // pred_region
        %s814 = smul.u32 32, %s15
      $region40: #{net_forward.22} parent=35 // pred_fallthru
        _
    $region36: #{net_forward.22} parent=5 // pred_fallthru
      _
    %p815 = scmp.le.s32.totalorder 2, %s10
    // Predicated region
    $region41: #{net_forward.22} parent=5 // pred_check
      %p816 = pneg %p815
    $region42: #{net_forward.22} parent=5 // pred_check_branch
      %818 = sbr.rel (%p816) target = $region44
    $region43: #{net_forward.22} parent=5 // pred_region
      %s819 = ssub.s32 %s10, 2
      // Predicated region
      $region45: #{net_forward.22} parent=43 // pred_check
        %p820 = pneg %p128
      $region46: #{net_forward.22} parent=43 // pred_check_branch
        %822 = sbr.rel (%p820) target = $region48
      $region47: #{net_forward.22} parent=43 // pred_region
        %s823 = smul.u32 32, %s16
        %p824 = scmp.lt.s32.totalorder %s823, 63
        %s825 = scalar_select %p824, %s823, 63
        %s826 = smul.addr %s825, 8
        %s827 = scalar_lea.vmem %s4, %s826
      $region48: #{net_forward.22} parent=43 // pred_fallthru
        _
    $region44: #{net_forward.22} parent=5 // pred_fallthru
      _
  $region6: #{net_forward.22} parent=0 // loop_footer
    %s14 = sadd.s32 1, %s10
  $region7: #{net_forward.22} parent=0 // loop_footer_branch
    %9 = sbr.rel target = $region3
  $region8: #{net_forward.22} parent=0 // loop_exit
    _

// kernel: net_forward.31
$region0: #{net_forward.31}
  #allocation0 [shape = 'u32[]', space=smem, size = 0x4, offset = 0x4, fixed_abs, tag = 'smem constant byte address 0x4 - core index']
  #allocation1 [shape = 'u32[144,128]{1,0:T(1,128)}', space=vmem, size = 0x12000, scoped, tag = 'internal scratch']
  %s0 = inlined_call_operand.vmem [shape: bf16[392,288], index: 0, kind: input, shape index: {}]
  %s1 = inlined_call_operand.vmem [shape: bf16[288,64], index: 1, kind: input, shape index: {}]
  %s2 = inlined_call_operand.vmem [shape: f32[1,64], index: 2, kind: input, shape index: {}]
  %s3 = inlined_call_operand.vmem [shape: f32[1,64], index: 3, kind: input, shape index: {}]
  %s4 = inlined_call_operand.vmem [shape: f32[392,64], index: 4, kind: output, shape index: {}]
  %s5 = sld [smem:[#allocation0]]
  $region26: #{net_forward.31} parent=0
    _
  %s7 = ssub.s32 1, %s5
  %s8 = scalar_select 0, %s7, %s5
  // Predicated region
  $region2: #{net_forward.31} parent=0 // pred_check
    _
  $region3: #{net_forward.31} parent=0 // pred_check_branch
    %10 = sbr.rel (0) target = $region5
  $region4: #{net_forward.31} parent=0 // pred_region
    _
  $region5: #{net_forward.31} parent=0 // pred_fallthru
    _
  // Predicated region
  $region6: #{net_forward.31} parent=0 // pred_check
    _
  $region7: #{net_forward.31} parent=0 // pred_check_branch
    %12 = sbr.rel (0) target = $region9
  $region8: #{net_forward.31} parent=0 // pred_region
    _
  $region9: #{net_forward.31} parent=0 // pred_fallthru
    _
  // Predicated region
  $region10: #{net_forward.31} parent=0 // pred_check
    _
  $region11: #{net_forward.31} parent=0 // pred_check_branch
    %14 = sbr.rel (0) target = $region13
  $region12: #{net_forward.31} parent=0 // pred_region
    _
  $region13: #{net_forward.31} parent=0 // pred_fallthru
    _
  // Predicated region
  $region14: #{net_forward.31} parent=0 // pred_check
    _
  $region15: #{net_forward.31} parent=0 // pred_check_branch
    %16 = sbr.rel (0) target = $region17
  $region16: #{net_forward.31} parent=0 // pred_region
    _
  $region17: #{net_forward.31} parent=0 // pred_fallthru
    _
  %v18 = vld [vmem:[%s0] sm:$0xff]
  %v19 = vld [vmem:[%s0 + $0x8] sm:$0xf]
  %v20 = vld [vmem:[%s0 + $0xc] sm:$0xff]
  %v21 = vld [vmem:[%s0 + $0x14] sm:$0xf]
  %v22 = vld [vmem:[%s0 + $0x18] sm:$0xff]
  %v23 = vld [vmem:[%s0 + $0x20] sm:$0xf]
  %v24 = vld [vmem:[%s0 + $0x24] sm:$0xff]
  %v25 = vld [vmem:[%s0 + $0x2c] sm:$0xf]
  %v26 = vld [vmem:[%s0 + $0x30] sm:$0xff]
  %v27 = vld [vmem:[%s0 + $0x38] sm:$0xf]
  %v28 = vld [vmem:[%s0 + $0x3c] sm:$0xff]
  %v29 = vld [vmem:[%s0 + $0x44] sm:$0xf]
  %v30 = vld [vmem:[%s0 + $0x48] sm:$0xff]
  %v31 = vld [vmem:[%s0 + $0x50] sm:$0xf]
  %v32 = vld [vmem:[%s0 + $0x54] sm:$0xff]
  %v33 = vld [vmem:[%s0 + $0x5c] sm:$0xf]
  %v34 = vld [vmem:[%s0 + $0x60] sm:$0xff]
  %v35 = vld [vmem:[%s0 + $0x68] sm:$0xf]
  %v36 = vld [vmem:[%s0 + $0x6c] sm:$0xff]
  %v37 = vld [vmem:[%s0 + $0x74] sm:$0xf]
  %v38 = vld [vmem:[%s0 + $0x78] sm:$0xff]
  %v39 = vld [vmem:[%s0 + $0x80] sm:$0xf]
  %v40 = vld [vmem:[%s0 + $0x84] sm:$0xff]
  %v41 = vld [vmem:[%s0 + $0x8c] sm:$0xf]
  %v42 = vld [vmem:[%s0 + $0x90] sm:$0xff]
  %v43 = vld [vmem:[%s0 + $0x98] sm:$0xf]
  %v44 = vld [vmem:[%s0 + $0x9c] sm:$0xff]
  %v45 = vld [vmem:[%s0 + $0xa4] sm:$0xf]
  %v46 = vld [vmem:[%s0 + $0xa8] sm:$0xff]
  %v47 = vld [vmem:[%s0 + $0xb0] sm:$0xf]
  %v48 = vld [vmem:[%s0 + $0xb4] sm:$0xff]
  %v49 = vld [vmem:[%s0 + $0xbc] sm:$0xf]
  %v50 = vld [vmem:[%s0 + $0xc0] sm:$0xff]
  %v51 = vld [vmem:[%s0 + $0xc8] sm:$0xf]
  %v52 = vld [vmem:[%s0 + $0xcc] sm:$0xff]
  %v53 = vld [vmem:[%s0 + $0xd4] sm:$0xf]
  %v54 = vld [vmem:[%s0 + $0xd8] sm:$0xff]
  %v55 = vld [vmem:[%s0 + $0xe0] sm:$0xf]
  %v56 = vld [vmem:[%s0 + $0xe4] sm:$0xff]
  %v57 = vld [vmem:[%s0 + $0xec] sm:$0xf]
  %v58 = vld [vmem:[%s0 + $0xf0] sm:$0xff]
  %v59 = vld [vmem:[%s0 + $0xf8] sm:$0xf]
  %v60 = vld [vmem:[%s0 + $0xfc] sm:$0xff]
  %v61 = vld [vmem:[%s0 + $0x104] sm:$0xf]
  %v62 = vld [vmem:[%s0 + $0x108] sm:$0xff]
  %v63 = vld [vmem:[%s0 + $0x110] sm:$0xf]
  %v64 = vld [vmem:[%s0 + $0x114] sm:$0xff]
  %v65 = vld [vmem:[%s0 + $0x11c] sm:$0xf]
  %v66 = vld [vmem:[%s0 + $0x120] sm:$0xff]
  %v67 = vld [vmem:[%s0 + $0x128] sm:$0xf]
  %v68 = vld [vmem:[%s0 + $0x12c] sm:$0xff]
  %v69 = vld [vmem:[%s0 + $0x134] sm:$0xf]
  %v70 = vld [vmem:[%s0 + $0x138] sm:$0xff]
  %v71 = vld [vmem:[%s0 + $0x140] sm:$0xf]
  %v72 = vld [vmem:[%s0 + $0x144] sm:$0xff]
  %v73 = vld [vmem:[%s0 + $0x14c] sm:$0xf]
  %v74 = vld [vmem:[%s0 + $0x150] sm:$0xff]
  %v75 = vld [vmem:[%s0 + $0x158] sm:$0xf]
  %v76 = vld [vmem:[%s0 + $0x15c] sm:$0xff]
  %v77 = vld [vmem:[%s0 + $0x164] sm:$0xf]
  %v78 = vld [vmem:[%s0 + $0x168] sm:$0xff]
  %v79 = vld [vmem:[%s0 + $0x170] sm:$0xf]
  %v80 = vld [vmem:[%s0 + $0x174] sm:$0xff]
  %v81 = vld [vmem:[%s0 + $0x17c] sm:$0xf]
  %v82 = vld [vmem:[%s0 + $0x180] sm:$0xff]
  %v83 = vld [vmem:[%s0 + $0x188] sm:$0xf]
  %v84 = vld [vmem:[%s0 + $0x18c] sm:$0xff]
  %v85 = vld [vmem:[%s0 + $0x194] sm:$0xf]
  %v86 = vld [vmem:[%s0 + $0x198] sm:$0xff]
  %v87 = vld [vmem:[%s0 + $0x1a0] sm:$0xf]
  %v88 = vld [vmem:[%s0 + $0x1a4] sm:$0xff]
  %v89 = vld [vmem:[%s0 + $0x1ac] sm:$0xf]
  %v90 = vld [vmem:[%s0 + $0x1b0] sm:$0xff]
  %v91 = vld [vmem:[%s0 + $0x1b8] sm:$0xf]
  %v92 = vld [vmem:[%s0 + $0x1bc] sm:$0xff]
  %v93 = vld [vmem:[%s0 + $0x1c4] sm:$0xf]
  %v94 = vld [vmem:[%s0 + $0x1c8] sm:$0xff]
  %v95 = vld [vmem:[%s0 + $0x1d0] sm:$0xf]
  %v96 = vld [vmem:[%s0 + $0x1d4] sm:$0xff]
  %v97 = vld [vmem:[%s0 + $0x1dc] sm:$0xf]
  %v98 = vld [vmem:[%s0 + $0x1e0] sm:$0xff]
  %v99 = vld [vmem:[%s0 + $0x1e8] sm:$0xf]
  %v100 = vld [vmem:[%s0 + $0x1ec] sm:$0xff]
  %v101 = vld [vmem:[%s0 + $0x1f4] sm:$0xf]
  %v102 = vld [vmem:[%s0 + $0x1f8] sm:$0xff]
  %v103 = vld [vmem:[%s0 + $0x200] sm:$0xf]
  %v104 = vld [vmem:[%s0 + $0x204] sm:$0xff]
  %v105 = vld [vmem:[%s0 + $0x20c] sm:$0xf]
  %v106 = vld [vmem:[%s0 + $0x210] sm:$0xff]
  %v107 = vld [vmem:[%s0 + $0x218] sm:$0xf]
  %v108 = vld [vmem:[%s0 + $0x21c] sm:$0xff]
  %v109 = vld [vmem:[%s0 + $0x224] sm:$0xf]
  %v110 = vld [vmem:[%s0 + $0x228] sm:$0xff]
  %v111 = vld [vmem:[%s0 + $0x230] sm:$0xf]
  %v112 = vld [vmem:[%s0 + $0x234] sm:$0xff]
  %v113 = vld [vmem:[%s0 + $0x23c] sm:$0xf]
  %v114 = vld [vmem:[%s0 + $0x240] sm:$0xff]
  %v115 = vld [vmem:[%s0 + $0x248] sm:$0xf]
  %v116 = vld [vmem:[%s1] sm:$0xf]
  %v117 = vld [vmem:[%s1 + $0x4] sm:$0xf]
  %v118 = vld [vmem:[%s1 + $0x8] sm:$0xf]
  %v119 = vld [vmem:[%s1 + $0xc] sm:$0xf]
  %v120 = vld [vmem:[%s1 + $0x10] sm:$0xf]
  %v121 = vld [vmem:[%s1 + $0x14] sm:$0xf]
  %v122 = vld [vmem:[%s1 + $0x18] sm:$0xf]
  %v123 = vld [vmem:[%s1 + $0x1c] sm:$0xf]
  %v124 = vld [vmem:[%s1 + $0x20] sm:$0xf]
  %v125 = vld [vmem:[%s1 + $0x24] sm:$0xf]
  %v126 = vld [vmem:[%s1 + $0x28] sm:$0xf]
  %v127 = vld [vmem:[%s1 + $0x2c] sm:$0xf]
  %v128 = vld [vmem:[%s1 + $0x30] sm:$0xf]
  %v129 = vld [vmem:[%s1 + $0x34] sm:$0xf]
  %v130 = vld [vmem:[%s1 + $0x38] sm:$0xf]
  %v131 = vld [vmem:[%s1 + $0x3c] sm:$0xf]
  %v132 = vld [vmem:[%s1 + $0x40] sm:$0xf]
  %v133 = vld [vmem:[%s1 + $0x44] sm:$0xf]
  %v134 = vld [vmem:[%s1 + $0x48] sm:$0xf]
  %v135 = vld [vmem:[%s1 + $0x4c] sm:$0xf]
  %v136 = vld [vmem:[%s1 + $0x50] sm:$0xf]
  %v137 = vld [vmem:[%s1 + $0x54] sm:$0xf]
  %v138 = vld [vmem:[%s1 + $0x58] sm:$0xf]
  %v139 = vld [vmem:[%s1 + $0x5c] sm:$0xf]
  %v140 = vld [vmem:[%s1 + $0x60] sm:$0xf]
  %v141 = vld [vmem:[%s1 + $0x64] sm:$0xf]
  %v142 = vld [vmem:[%s1 + $0x68] sm:$0xf]
  %v143 = vld [vmem:[%s1 + $0x6c] sm:$0xf]
  %v144 = vld [vmem:[%s1 + $0x70] sm:$0xf]
  %v145 = vld [vmem:[%s1 + $0x74] sm:$0xf]
  %v146 = vld [vmem:[%s1 + $0x78] sm:$0xf]
  %v147 = vld [vmem:[%s1 + $0x7c] sm:$0xf]
  %v148 = vld [vmem:[%s1 + $0x80] sm:$0xf]
  %v149 = vld [vmem:[%s1 + $0x84] sm:$0xf]
  %v150 = vld [vmem:[%s1 + $0x88] sm:$0xf]
  %v151 = vld [vmem:[%s1 + $0x8c] sm:$0xf]
  %v250 = vunpack.c.l.b16 %v18
  %v251 = vunpack.c.h.b16 %v18
  %v252 = vunpack.c.l.b16 %v19
  %v253 = vunpack.c.l.b16 %v20
  %v254 = vunpack.c.h.b16 %v20
  %v255 = vunpack.c.l.b16 %v21
  %v256 = vunpack.c.l.b16 %v22
  %v257 = vunpack.c.h.b16 %v22
  %v258 = vunpack.c.l.b16 %v23
  %v259 = vunpack.c.l.b16 %v24
  %v260 = vunpack.c.h.b16 %v24
  %v261 = vunpack.c.l.b16 %v25
  %v262 = vunpack.c.l.b16 %v26
  %v263 = vunpack.c.h.b16 %v26
  %v264 = vunpack.c.l.b16 %v27
  %v265 = vunpack.c.l.b16 %v28
  %v266 = vunpack.c.h.b16 %v28
  %v267 = vunpack.c.l.b16 %v29
  %v268 = vunpack.c.l.b16 %v30
  %v269 = vunpack.c.h.b16 %v30
  %v270 = vunpack.c.l.b16 %v31
  %v271 = vunpack.c.l.b16 %v32
  %v272 = vunpack.c.h.b16 %v32
  %v273 = vunpack.c.l.b16 %v33
  %v274 = vunpack.c.l.b16 %v34
  %v275 = vunpack.c.h.b16 %v34
  %v276 = vunpack.c.l.b16 %v35
  %v277 = vunpack.c.l.b16 %v36
  %v278 = vunpack.c.h.b16 %v36
  %v279 = vunpack.c.l.b16 %v37
  %v280 = vunpack.c.l.b16 %v38
  %v281 = vunpack.c.h.b16 %v38
  %v282 = vunpack.c.l.b16 %v39
  %v283 = vunpack.c.l.b16 %v40
  %v284 = vunpack.c.h.b16 %v40
  %v285 = vunpack.c.l.b16 %v41
  %v286 = vunpack.c.l.b16 %v42
  %v287 = vunpack.c.h.b16 %v42
  %v288 = vunpack.c.l.b16 %v43
  %v289 = vunpack.c.l.b16 %v44
  %v290 = vunpack.c.h.b16 %v44
  %v291 = vunpack.c.l.b16 %v45
  %v292 = vunpack.c.l.b16 %v46
  %v293 = vunpack.c.h.b16 %v46
  %v294 = vunpack.c.l.b16 %v47
  %v295 = vunpack.c.l.b16 %v48
  %v296 = vunpack.c.h.b16 %v48
  %v297 = vunpack.c.l.b16 %v49
  %v298 = vunpack.c.l.b16 %v50
  %v299 = vunpack.c.h.b16 %v50
  %v300 = vunpack.c.l.b16 %v51
  %v301 = vunpack.c.l.b16 %v52
  %v302 = vunpack.c.h.b16 %v52
  %v303 = vunpack.c.l.b16 %v53
  %v304 = vunpack.c.l.b16 %v54
  %v305 = vunpack.c.h.b16 %v54
  %v306 = vunpack.c.l.b16 %v55
  %v307 = vunpack.c.l.b16 %v56
  %v308 = vunpack.c.h.b16 %v56
  %v309 = vunpack.c.l.b16 %v57
  %v310 = vunpack.c.l.b16 %v58
  %v311 = vunpack.c.h.b16 %v58
  %v312 = vunpack.c.l.b16 %v59
  %v313 = vunpack.c.l.b16 %v60
  %v314 = vunpack.c.h.b16 %v60
  %v315 = vunpack.c.l.b16 %v61
  %v316 = vunpack.c.l.b16 %v62
  %v317 = vunpack.c.h.b16 %v62
  %v318 = vunpack.c.l.b16 %v63
  %v319 = vunpack.c.l.b16 %v64
  %v320 = vunpack.c.h.b16 %v64
  %v321 = vunpack.c.l.b16 %v65
  %v322 = vunpack.c.l.b16 %v66
  %v323 = vunpack.c.h.b16 %v66
  %v324 = vunpack.c.l.b16 %v67
  %v325 = vunpack.c.l.b16 %v68
  %v326 = vunpack.c.h.b16 %v68
  %v327 = vunpack.c.l.b16 %v69
  %v328 = vunpack.c.l.b16 %v70
  %v329 = vunpack.c.h.b16 %v70
  %v330 = vunpack.c.l.b16 %v71
  %v331 = vunpack.c.l.b16 %v72
  %v332 = vunpack.c.h.b16 %v72
  %v333 = vunpack.c.l.b16 %v73
  %v334 = vunpack.c.l.b16 %v74
  %v335 = vunpack.c.h.b16 %v74
  %v336 = vunpack.c.l.b16 %v75
  %v337 = vunpack.c.l.b16 %v76
  %v338 = vunpack.c.h.b16 %v76
  %v339 = vunpack.c.l.b16 %v77
  %v340 = vunpack.c.l.b16 %v78
  %v341 = vunpack.c.h.b16 %v78
  %v342 = vunpack.c.l.b16 %v79
  %v343 = vunpack.c.l.b16 %v80
  %v344 = vunpack.c.h.b16 %v80
  %v345 = vunpack.c.l.b16 %v81
  %v346 = vunpack.c.l.b16 %v82
  %v347 = vunpack.c.h.b16 %v82
  %v348 = vunpack.c.l.b16 %v83
  %v349 = vunpack.c.l.b16 %v84
  %v350 = vunpack.c.h.b16 %v84
  %v351 = vunpack.c.l.b16 %v85
  %v352 = vunpack.c.l.b16 %v86
  %v353 = vunpack.c.h.b16 %v86
  %v354 = vunpack.c.l.b16 %v87
  %v355 = vunpack.c.l.b16 %v88
  %v356 = vunpack.c.h.b16 %v88
  %v357 = vunpack.c.l.b16 %v89
  %v358 = vunpack.c.l.b16 %v90
  %v359 = vunpack.c.h.b16 %v90
  %v360 = vunpack.c.l.b16 %v91
  %v361 = vunpack.c.l.b16 %v92
  %v362 = vunpack.c.h.b16 %v92
  %v363 = vunpack.c.l.b16 %v93
  %v364 = vunpack.c.l.b16 %v94
  %v365 = vunpack.c.h.b16 %v94
  %v366 = vunpack.c.l.b16 %v95
  %v367 = vunpack.c.l.b16 %v96
  %v368 = vunpack.c.h.b16 %v96
  %v369 = vunpack.c.l.b16 %v97
  %v370 = vunpack.c.l.b16 %v98
  %v371 = vunpack.c.h.b16 %v98
  %v372 = vunpack.c.l.b16 %v99
  %v373 = vunpack.c.l.b16 %v100
  %v374 = vunpack.c.h.b16 %v100
  %v375 = vunpack.c.l.b16 %v101
  %v376 = vunpack.c.l.b16 %v102
  %v377 = vunpack.c.h.b16 %v102
  %v378 = vunpack.c.l.b16 %v103
  %v379 = vunpack.c.l.b16 %v104
  %v380 = vunpack.c.h.b16 %v104
  %v381 = vunpack.c.l.b16 %v105
  %v382 = vunpack.c.l.b16 %v106
  %v383 = vunpack.c.h.b16 %v106
  %v384 = vunpack.c.l.b16 %v107
  %v385 = vunpack.c.l.b16 %v108
  %v386 = vunpack.c.h.b16 %v108
  %v387 = vunpack.c.l.b16 %v109
  %v388 = vunpack.c.l.b16 %v110
  %v389 = vunpack.c.h.b16 %v110
  %v390 = vunpack.c.l.b16 %v111
  %v391 = vunpack.c.l.b16 %v112
  %v392 = vunpack.c.h.b16 %v112
  %v393 = vunpack.c.l.b16 %v113
  %v394 = vunpack.c.l.b16 %v114
  %v395 = vunpack.c.h.b16 %v114
  %v396 = vunpack.c.l.b16 %v115
  %v397 = vpack.c.b16 %v253, %v250
  %v398 = vpack.c.b16 %v254, %v251
  %v399 = vpack.c.b16 %v255, %v252
  %v400 = vpack.c.b16 %v259, %v256
  %v401 = vpack.c.b16 %v260, %v257
  %v402 = vpack.c.b16 %v261, %v258
  %v403 = vpack.c.b16 %v265, %v262
  %v404 = vpack.c.b16 %v266, %v263
  %v405 = vpack.c.b16 %v267, %v264
  %v406 = vpack.c.b16 %v271, %v268
  %v407 = vpack.c.b16 %v272, %v269
  %v408 = vpack.c.b16 %v273, %v270
  %v409 = vpack.c.b16 %v277, %v274
  %v410 = vpack.c.b16 %v278, %v275
  %v411 = vpack.c.b16 %v279, %v276
  %v412 = vpack.c.b16 %v283, %v280
  %v413 = vpack.c.b16 %v284, %v281
  %v414 = vpack.c.b16 %v285, %v282
  %v415 = vpack.c.b16 %v289, %v286
  %v416 = vpack.c.b16 %v290, %v287
  %v417 = vpack.c.b16 %v291, %v288
  %v418 = vpack.c.b16 %v295, %v292
  %v419 = vpack.c.b16 %v296, %v293
  %v420 = vpack.c.b16 %v297, %v294
  %v421 = vpack.c.b16 %v301, %v298
  %v422 = vpack.c.b16 %v302, %v299
  %v423 = vpack.c.b16 %v303, %v300
  %v424 = vpack.c.b16 %v307, %v304
  %v425 = vpack.c.b16 %v308, %v305
  %v426 = vpack.c.b16 %v309, %v306
  %v427 = vpack.c.b16 %v313, %v310
  %v428 = vpack.c.b16 %v314, %v311
  %v429 = vpack.c.b16 %v315, %v312
  %v430 = vpack.c.b16 %v319, %v316
  %v431 = vpack.c.b16 %v320, %v317
  %v432 = vpack.c.b16 %v321, %v318
  %v433 = vpack.c.b16 %v325, %v322
  %v434 = vpack.c.b16 %v326, %v323
  %v435 = vpack.c.b16 %v327, %v324
  %v436 = vpack.c.b16 %v331, %v328
  %v437 = vpack.c.b16 %v332, %v329
  %v438 = vpack.c.b16 %v333, %v330
  %v439 = vpack.c.b16 %v337, %v334
  %v440 = vpack.c.b16 %v338, %v335
  %v441 = vpack.c.b16 %v339, %v336
  %v442 = vpack.c.b16 %v343, %v340
  %v443 = vpack.c.b16 %v344, %v341
  %v444 = vpack.c.b16 %v345, %v342
  %v445 = vpack.c.b16 %v349, %v346
  %v446 = vpack.c.b16 %v350, %v347
  %v447 = vpack.c.b16 %v351, %v348
  %v448 = vpack.c.b16 %v355, %v352
  %v449 = vpack.c.b16 %v356, %v353
  %v450 = vpack.c.b16 %v357, %v354
  %v451 = vpack.c.b16 %v361, %v358
  %v452 = vpack.c.b16 %v362, %v359
  %v453 = vpack.c.b16 %v363, %v360
  %v454 = vpack.c.b16 %v367, %v364
  %v455 = vpack.c.b16 %v368, %v365
  %v456 = vpack.c.b16 %v369, %v366
  %v457 = vpack.c.b16 %v373, %v370
  %v458 = vpack.c.b16 %v374, %v371
  %v459 = vpack.c.b16 %v375, %v372
  %v460 = vpack.c.b16 %v379, %v376
  %v461 = vpack.c.b16 %v380, %v377
  %v462 = vpack.c.b16 %v381, %v378
  %v463 = vpack.c.b16 %v385, %v382
  %v464 = vpack.c.b16 %v386, %v383
  %v465 = vpack.c.b16 %v387, %v384
  %v466 = vpack.c.b16 %v391, %v388
  %v467 = vpack.c.b16 %v392, %v389
  %v468 = vpack.c.b16 %v393, %v390
  %v469 = vpack.c.b16 %v394, %v394
  %v470 = vpack.c.b16 %v395, %v395
  %v471 = vpack.c.b16 %v396, %v396
  %v558 = vunpack.c.l.b16 %v116
  %v559 = vunpack.c.l.b16 %v117
  %v560 = vunpack.c.l.b16 %v118
  %v561 = vunpack.c.l.b16 %v119
  %v562 = vunpack.c.l.b16 %v120
  %v563 = vunpack.c.l.b16 %v121
  %v564 = vunpack.c.l.b16 %v122
  %v565 = vunpack.c.l.b16 %v123
  %v566 = vunpack.c.l.b16 %v124
  %v567 = vunpack.c.l.b16 %v125
  %v568 = vunpack.c.l.b16 %v126
  %v569 = vunpack.c.l.b16 %v127
  %v570 = vunpack.c.l.b16 %v128
  %v571 = vunpack.c.l.b16 %v129
  %v572 = vunpack.c.l.b16 %v130
  %v573 = vunpack.c.l.b16 %v131
  %v574 = vunpack.c.l.b16 %v132
  %v575 = vunpack.c.l.b16 %v133
  %v576 = vunpack.c.l.b16 %v134
  %v577 = vunpack.c.l.b16 %v135
  %v578 = vunpack.c.l.b16 %v136
  %v579 = vunpack.c.l.b16 %v137
  %v580 = vunpack.c.l.b16 %v138
  %v581 = vunpack.c.l.b16 %v139
  %v582 = vunpack.c.l.b16 %v140
  %v583 = vunpack.c.l.b16 %v141
  %v584 = vunpack.c.l.b16 %v142
  %v585 = vunpack.c.l.b16 %v143
  %v586 = vunpack.c.l.b16 %v144
  %v587 = vunpack.c.l.b16 %v145
  %v588 = vunpack.c.l.b16 %v146
  %v589 = vunpack.c.l.b16 %v147
  %v590 = vunpack.c.l.b16 %v148
  %v591 = vunpack.c.l.b16 %v149
  %v592 = vunpack.c.l.b16 %v150
  %v593 = vunpack.c.l.b16 %v151
  %v594 = vpack.c.b16 %v559, %v558
  %v595 = vpack.c.b16 %v561, %v560
  %v596 = vpack.c.b16 %v563, %v562
  %v597 = vpack.c.b16 %v565, %v564
  %v598 = vpack.c.b16 %v567, %v566
  %v599 = vpack.c.b16 %v569, %v568
  %v600 = vpack.c.b16 %v571, %v570
  %v601 = vpack.c.b16 %v573, %v572
  %v602 = vpack.c.b16 %v575, %v574
  %v603 = vpack.c.b16 %v577, %v576
  %v604 = vpack.c.b16 %v579, %v578
  %v605 = vpack.c.b16 %v581, %v580
  %v606 = vpack.c.b16 %v583, %v582
  %v607 = vpack.c.b16 %v585, %v584
  %v608 = vpack.c.b16 %v587, %v586
  %v609 = vpack.c.b16 %v589, %v588
  %v610 = vpack.c.b16 %v591, %v590
  %v611 = vpack.c.b16 %v593, %v592
  %vm630 = vcmask 261120
  %v632 = vsel %vm630, %v399, 0
  %v635 = vsel %vm630, %v402, 0
  %v638 = vsel %vm630, %v405, 0
  %v641 = vsel %vm630, %v408, 0
  %v644 = vsel %vm630, %v411, 0
  %v647 = vsel %vm630, %v414, 0
  %v650 = vsel %vm630, %v417, 0
  %v653 = vsel %vm630, %v420, 0
  %v656 = vsel %vm630, %v423, 0
  %v659 = vsel %vm630, %v426, 0
  %v662 = vsel %vm630, %v429, 0
  %v665 = vsel %vm630, %v432, 0
  %v668 = vsel %vm630, %v435, 0
  %v671 = vsel %vm630, %v438, 0
  %v674 = vsel %vm630, %v441, 0
  %v677 = vsel %vm630, %v444, 0
  %v680 = vsel %vm630, %v447, 0
  %v683 = vsel %vm630, %v450, 0
  %v686 = vsel %vm630, %v453, 0
  %v689 = vsel %vm630, %v456, 0
  %v692 = vsel %vm630, %v459, 0
  %v695 = vsel %vm630, %v462, 0
  %v698 = vsel %vm630, %v465, 0
  %v701 = vsel %vm630, %v468, 0
  %v704 = vsel %vm630, %v471, 0
  %706 = vmatprep.subr.bf16.mxu0 0
  %707 = vmatpush1.bf16.msra.mxu0 %v594
  %708 = vmatprep.subr.bf16.mxu0 0
  %709 = vmatpush1.bf16.msra.mxu0 %v595
  %710 = vmatprep.subr.bf16.mxu0 0
  %711 = vmatpush1.bf16.msra.mxu0 %v596
  %712 = vmatprep.subr.bf16.mxu0 0
  %713 = vmatpush1.bf16.msra.mxu0 %v597
  %714 = vmatprep.subr.bf16.mxu0 0
  %715 = vmatpush1.bf16.msra.mxu0 %v598
  %716 = vmatprep.subr.bf16.mxu0 0
  %717 = vmatpush1.bf16.msra.mxu0 %v599
  %718 = vmatprep.subr.bf16.mxu0 0
  %719 = vmatpush1.bf16.msra.mxu0 %v600
  %720 = vmatprep.subr.bf16.mxu0 0
  %721 = vmatpush1.bf16.msra.mxu0 %v601
  %722 = vmatprep.subr.bf16.mxu0 0
  %723 = vmatpush1.bf16.msra.mxu0 %v602
  %724 = vmatprep.subr.bf16.mxu0 0
  %725 = vmatpush1.bf16.msra.mxu0 %v603
  %726 = vmatprep.subr.bf16.mxu0 0
  %727 = vmatpush1.bf16.msra.mxu0 %v604
  %728 = vmatprep.subr.bf16.mxu0 0
  %729 = vmatpush1.bf16.msra.mxu0 %v605
  %730 = vmatprep.subr.bf16.mxu0 0
  %731 = vmatpush1.bf16.msra.mxu0 %v606
  %732 = vmatprep.subr.bf16.mxu0 0
  %733 = vmatpush1.bf16.msra.mxu0 %v607
  %734 = vmatprep.subr.bf16.mxu0 0
  %735 = vmatpush1.bf16.msra.mxu0 %v608
  %736 = vmatprep.subr.bf16.mxu0 0
  %737 = vmatpush1.bf16.msra.mxu0 %v609
  %738 = vmatprep.mubr.bf16.mxu0 %v398
  %739 = vmatmul.mubr.bf16.gmra.mrb[0].mxu0 %v397
  %v740 = vpop.f32.mrb[0].mxu0
  %v741 = vadd.f32 0.0, %v740
  %v742 = vpop.f32.mrb[0].mxu0
  %v743 = vpop.f32.mrb[0].mxu0
  %v744 = vadd.f32 0.0, %v743
  %v745 = vpop.f32.mrb[0].mxu0
  %746 = vmatprep.mubr.bf16.mxu0 %v401
  %747 = vmatmul.mubr.bf16.gmra.mrb[0].mxu0 %v400
  %v748 = vpop.f32.mrb[0].mxu0
  %v749 = vadd.f32 0.0, %v748
  %v750 = vpop.f32.mrb[0].mxu0
  %v751 = vpop.f32.mrb[0].mxu0
  %v752 = vadd.f32 0.0, %v751
  %v753 = vpop.f32.mrb[0].mxu0
  %754 = vmatprep.mubr.bf16.mxu0 %v404
  %755 = vmatmul.mubr.bf16.gmra.mrb[0].mxu0 %v403
  %v756 = vpop.f32.mrb[0].mxu0
  %v757 = vadd.f32 0.0, %v756
  %v758 = vpop.f32.mrb[0].mxu0
  %v759 = vpop.f32.mrb[0].mxu0
  %v760 = vadd.f32 0.0, %v759
  %v761 = vpop.f32.mrb[0].mxu0
  %762 = vmatprep.mubr.bf16.mxu0 %v407
  %763 = vmatmul.mubr.bf16.gmra.mrb[0].mxu0 %v406
  %v764 = vpop.f32.mrb[0].mxu0
  %v765 = vadd.f32 0.0, %v764
  %v766 = vpop.f32.mrb[0].mxu0
  %v767 = vpop.f32.mrb[0].mxu0
  %v768 = vadd.f32 0.0, %v767
  %v769 = vpop.f32.mrb[0].mxu0
  %770 = vmatprep.mubr.bf16.mxu0 %v410
  %771 = vmatmul.mubr.bf16.gmra.mrb[0].mxu0 %v409
  %v772 = vpop.f32.mrb[0].mxu0
  %v773 = vadd.f32 0.0, %v772
  %v774 = vpop.f32.mrb[0].mxu0
  %v775 = vpop.f32.mrb[0].mxu0
  %v776 = vadd.f32 0.0, %v775
  %v777 = vpop.f32.mrb[0].mxu0
  %778 = vmatprep.mubr.bf16.mxu0 %v413
  %779 = vmatmul.mubr.bf16.gmra.mrb[0].mxu0 %v412
  %v780 = vpop.f32.mrb[0].mxu0
  %v781 = vadd.f32 0.0, %v780
  %v782 = vpop.f32.mrb[0].mxu0
  %v783 = vpop.f32.mrb[0].mxu0
  %v784 = vadd.f32 0.0, %v783
  %v785 = vpop.f32.mrb[0].mxu0
  %786 = vmatprep.mubr.bf16.mxu0 %v416
  %787 = vmatmul.mubr.bf16.gmra.mrb[0].mxu0 %v415
  %v788 = vpop.f32.mrb[0].mxu0
  %v789 = vadd.f32 0.0, %v788
  %v790 = vpop.f32.mrb[0].mxu0
  %v791 = vpop.f32.mrb[0].mxu0
  %v792 = vadd.f32 0.0, %v791
  %v793 = vpop.f32.mrb[0].mxu0
  %794 = vmatprep.mubr.bf16.mxu0 %v419
  %795 = vmatmul.mubr.bf16.gmra.mrb[0].mxu0 %v418
  %v796 = vpop.f32.mrb[0].mxu0
  %v797 = vadd.f32 0.0, %v796
  %v798 = vpop.f32.mrb[0].mxu0
  %v799 = vpop.f32.mrb[0].mxu0
  %v800 = vadd.f32 0.0, %v799
  %v801 = vpop.f32.mrb[0].mxu0
  %802 = vmatprep.mubr.bf16.mxu0 %v422
  %803 = vmatmul.mubr.bf16.gmra.mrb[0].mxu0 %v421
  %v804 = vpop.f32.mrb[0].mxu0
  %v805 = vadd.f32 0.0, %v804
  %v806 = vpop.f32.mrb[0].mxu0
  %v807 = vpop.f32.mrb[0].mxu0
  %v808 = vadd.f32 0.0, %v807
  %v809 = vpop.f32.mrb[0].mxu0
  %810 = vmatprep.mubr.bf16.mxu0 %v425
  %811 = vmatmul.mubr.bf16.gmra.mrb[0].mxu0 %v424
  %v812 = vpop.f32.mrb[0].mxu0
  %v813 = vadd.f32 0.0, %v812
  %v814 = vpop.f32.mrb[0].mxu0
  %v815 = vpop.f32.mrb[0].mxu0
  %v816 = vadd.f32 0.0, %v815
  %v817 = vpop.f32.mrb[0].mxu0
  %818 = vmatprep.mubr.bf16.mxu0 %v428
  %819 = vmatmul.mubr.bf16.gmra.mrb[0].mxu0 %v427
  %v820 = vpop.f32.mrb[0].mxu0
  %v821 = vadd.f32 0.0, %v820
  %v822 = vpop.f32.mrb[0].mxu0
  %v823 = vpop.f32.mrb[0].mxu0
  %v824 = vadd.f32 0.0, %v823
  %v825 = vpop.f32.mrb[0].mxu0
  %826 = vmatprep.mubr.bf16.mxu0 %v431
  %827 = vmatmul.mubr.bf16.gmra.mrb[0].mxu0 %v430
  %v828 = vpop.f32.mrb[0].mxu0
  %v829 = vadd.f32 0.0, %v828
  %v830 = vpop.f32.mrb[0].mxu0
  %v831 = vpop.f32.mrb[0].mxu0
  %v832 = vadd.f32 0.0, %v831
  %v833 = vpop.f32.mrb[0].mxu0
  %834 = vmatprep.mubr.bf16.mxu0 %v434
  %835 = vmatmul.mubr.bf16.gmra.mrb[0].mxu0 %v433
  %v836 = vpop.f32.mrb[0].mxu0
  %v837 = vadd.f32 0.0, %v836
  %v838 = vpop.f32.mrb[0].mxu0
  %v839 = vpop.f32.mrb[0].mxu0
  %v840 = vadd.f32 0.0, %v839
  %v841 = vpop.f32.mrb[0].mxu0
  %842 = vmatprep.mubr.bf16.mxu0 %v437
  %843 = vmatmul.mubr.bf16.gmra.mrb[0].mxu0 %v436
  %v844 = vpop.f32.mrb[0].mxu0
  %v845 = vadd.f32 0.0, %v844
  %v846 = vpop.f32.mrb[0].mxu0
  %v847 = vpop.f32.mrb[0].mxu0
  %v848 = vadd.f32 0.0, %v847
  %v849 = vpop.f32.mrb[0].mxu0
  %850 = vmatprep.mubr.bf16.mxu0 %v440
  %851 = vmatmul.mubr.bf16.gmra.mrb[0].mxu0 %v439
  %v852 = vpop.f32.mrb[0].mxu0
  %v853 = vadd.f32 0.0, %v852
  %v854 = vpop.f32.mrb[0].mxu0
  %v855 = vpop.f32.mrb[0].mxu0
  %v856 = vadd.f32 0.0, %v855
  %v857 = vpop.f32.mrb[0].mxu0
  %858 = vmatprep.mubr.bf16.mxu0 %v443
  %859 = vmatmul.mubr.bf16.gmra.mrb[0].mxu0 %v442
  %v860 = vpop.f32.mrb[0].mxu0
  %v861 = vadd.f32 0.0, %v860
  %v862 = vpop.f32.mrb[0].mxu0
  %v863 = vpop.f32.mrb[0].mxu0
  %v864 = vadd.f32 0.0, %v863
  %v865 = vpop.f32.mrb[0].mxu0
  %866 = vmatprep.mubr.bf16.mxu0 %v446
  %867 = vmatmul.mubr.bf16.gmra.mrb[0].mxu0 %v445
  %v868 = vpop.f32.mrb[0].mxu0
  %v869 = vadd.f32 0.0, %v868
  %v870 = vpop.f32.mrb[0].mxu0
  %v871 = vpop.f32.mrb[0].mxu0
  %v872 = vadd.f32 0.0, %v871
  %v873 = vpop.f32.mrb[0].mxu0
  %874 = vmatprep.mubr.bf16.mxu0 %v449
  %875 = vmatmul.mubr.bf16.gmra.mrb[0].mxu0 %v448
  %v876 = vpop.f32.mrb[0].mxu0
  %v877 = vadd.f32 0.0, %v876
  %v878 = vpop.f32.mrb[0].mxu0
  %v879 = vpop.f32.mrb[0].mxu0
  %v880 = vadd.f32 0.0, %v879
  %v881 = vpop.f32.mrb[0].mxu0
  %882 = vmatprep.mubr.bf16.mxu0 %v452
  %883 = vmatmul.mubr.bf16.gmra.mrb[0].mxu0 %v451
  %v884 = vpop.f32.mrb[0].mxu0
  %v885 = vadd.f32 0.0, %v884
  %v886 = vpop.f32.mrb[0].mxu0
  %v887 = vpop.f32.mrb[0].mxu0
  %v888 = vadd.f32 0.0, %v887
  %v889 = vpop.f32.mrb[0].mxu0
  %890 = vmatprep.mubr.bf16.mxu0 %v455
  %891 = vmatmul.mubr.bf16.gmra.mrb[0].mxu0 %v454
  %v892 = vpop.f32.mrb[0].mxu0
  %v893 = vadd.f32 0.0, %v892
  %v894 = vpop.f32.mrb[0].mxu0
  %v895 = vpop.f32.mrb[0].mxu0
  %v896 = vadd.f32 0.0, %v895
  %v897 = vpop.f32.mrb[0].mxu0
  %898 = vmatprep.mubr.bf16.mxu0 %v458
  %899 = vmatmul.mubr.bf16.gmra.mrb[0].mxu0 %v457
  %v900 = vpop.f32.mrb[0].mxu0
  %v901 = vadd.f32 0.0, %v900
  %v902 = vpop.f32.mrb[0].mxu0
  %v903 = vpop.f32.mrb[0].mxu0
  %v904 = vadd.f32 0.0, %v903
  %v905 = vpop.f32.mrb[0].mxu0
  %906 = vmatprep.mubr.bf16.mxu0 %v461
  %907 = vmatmul.mubr.bf16.gmra.mrb[0].mxu0 %v460
  %v908 = vpop.f32.mrb[0].mxu0
  %v909 = vadd.f32 0.0, %v908
  %v910 = vpop.f32.mrb[0].mxu0
  %v911 = vpop.f32.mrb[0].mxu0
  %v912 = vadd.f32 0.0, %v911
  %v913 = vpop.f32.mrb[0].mxu0
  %914 = vmatprep.mubr.bf16.mxu0 %v464
  %915 = vmatmul.mubr.bf16.gmra.mrb[0].mxu0 %v463
  %v916 = vpop.f32.mrb[0].mxu0
  %v917 = vadd.f32 0.0, %v916
  %v918 = vpop.f32.mrb[0].mxu0
  %v919 = vpop.f32.mrb[0].mxu0
  %v920 = vadd.f32 0.0, %v919
  %v921 = vpop.f32.mrb[0].mxu0
  %922 = vmatprep.mubr.bf16.mxu0 %v467
  %923 = vmatmul.mubr.bf16.gmra.mrb[0].mxu0 %v466
  %v924 = vpop.f32.mrb[0].mxu0
  %v925 = vadd.f32 0.0, %v924
  %v926 = vpop.f32.mrb[0].mxu0
  %v927 = vpop.f32.mrb[0].mxu0
  %v928 = vadd.f32 0.0, %v927
  %v929 = vpop.f32.mrb[0].mxu0
  %930 = vmatprep.mubr.bf16.mxu0 %v470
  %931 = vmatmul.mubr.bf16.gmra.mrb[0].mxu0 %v469
  %v932 = vpop.f32.mrb[0].mxu0
  %v933 = vadd.f32 0.0, %v932
  %v934 = vpop.f32.mrb[0].mxu0
  %v935 = vpop.f32.mrb[0].mxu0
  %v936 = vpop.f32.mrb[0].mxu0
  %937 = vdwg.mxu0
  %938 = vmatprep.subr.bf16.mxu0 0
  %939 = vmatpush1.bf16.msra.mxu0 %v610
  %940 = vmatprep.subr.bf16.mxu0 0
  %941 = vmatpush1.bf16.msra.mxu0 %v611
  %942 = vmatprep.subr.bf16.mxu0 0
  %943 = vmatpush1.bf16.msra.mxu0 0
  %944 = vmatprep.subr.bf16.mxu0 0
  %945 = vmatpush1.bf16.msra.mxu0 0
  %946 = vmatprep.subr.bf16.mxu0 0
  %947 = vmatpush1.bf16.msra.mxu0 0
  %948 = vmatprep.subr.bf16.mxu0 0
  %949 = vmatpush1.bf16.msra.mxu0 0
  %950 = vmatprep.subr.bf16.mxu0 0
  %951 = vmatpush1.bf16.msra.mxu0 0
  %952 = vmatprep.subr.bf16.mxu0 0
  %953 = vmatpush1.bf16.msra.mxu0 0
  %954 = vmatprep.subr.bf16.mxu0 0
  %955 = vmatpush1.bf16.msra.mxu0 0
  %956 = vmatprep.subr.bf16.mxu0 0
  %957 = vmatpush1.bf16.msra.mxu0 0
  %958 = vmatprep.subr.bf16.mxu0 0
  %959 = vmatpush1.bf16.msra.mxu0 0
  %960 = vmatprep.subr.bf16.mxu0 0
  %961 = vmatpush1.bf16.msra.mxu0 0
  %962 = vmatprep.subr.bf16.mxu0 0
  %963 = vmatpush1.bf16.msra.mxu0 0
  %964 = vmatprep.subr.bf16.mxu0 0
  %965 = vmatpush1.bf16.msra.mxu0 0
  %966 = vmatprep.subr.bf16.mxu0 0
  %967 = vmatpush1.bf16.msra.mxu0 0
  %968 = vmatprep.subr.bf16.mxu0 0
  %969 = vmatpush1.bf16.msra.mxu0 0
  %970 = vmatprep.mubr.bf16.mxu0 0
  %971 = vmatmul.mubr.bf16.gmra.mrb[0].mxu0 %v632
  %v972 = vpop.f32.mrb[0].mxu0
  %v973 = vadd.f32 %v741, %v972
  %v974 = vpop.f32.mrb[0].mxu0
  %v975 = vpop.f32.mrb[0].mxu0
  %v976 = vadd.f32 %v744, %v975
  %v977 = vpop.f32.mrb[0].mxu0
  %978 = vmatprep.mubr.bf16.mxu0 0
  %979 = vmatmul.mubr.bf16.gmra.mrb[0].mxu0 %v635
  %v980 = vpop.f32.mrb[0].mxu0
  %v981 = vadd.f32 %v749, %v980
  %v982 = vpop.f32.mrb[0].mxu0
  %v983 = vpop.f32.mrb[0].mxu0
  %v984 = vadd.f32 %v752, %v983
  %v985 = vpop.f32.mrb[0].mxu0
  %986 = vmatprep.mubr.bf16.mxu0 0
  %987 = vmatmul.mubr.bf16.gmra.mrb[0].mxu0 %v638
  %v988 = vpop.f32.mrb[0].mxu0
  %v989 = vadd.f32 %v757, %v988
  %v990 = vpop.f32.mrb[0].mxu0
  %v991 = vpop.f32.mrb[0].mxu0
  %v992 = vadd.f32 %v760, %v991
  %v993 = vpop.f32.mrb[0].mxu0
  %994 = vmatprep.mubr.bf16.mxu0 0
  %995 = vmatmul.mubr.bf16.gmra.mrb[0].mxu0 %v641
  %v996 = vpop.f32.mrb[0].mxu0
  %v997 = vadd.f32 %v765, %v996
  %v998 = vpop.f32.mrb[0].mxu0
  %v999 = vpop.f32.mrb[0].mxu0
  %v1000 = vadd.f32 %v768, %v999
  %v1001 = vpop.f32.mrb[0].mxu0
  %1002 = vmatprep.mubr.bf16.mxu0 0
  %1003 = vmatmul.mubr.bf16.gmra.mrb[0].mxu0 %v644
  %v1004 = vpop.f32.mrb[0].mxu0
  %v1005 = vadd.f32 %v773, %v1004
  %v1006 = vpop.f32.mrb[0].mxu0
  %v1007 = vpop.f32.mrb[0].mxu0
  %v1008 = vadd.f32 %v776, %v1007
  %v1009 = vpop.f32.mrb[0].mxu0
  %1010 = vmatprep.mubr.bf16.mxu0 0
  %1011 = vmatmul.mubr.bf16.gmra.mrb[0].mxu0 %v647
  %v1012 = vpop.f32.mrb[0].mxu0
  %v1013 = vadd.f32 %v781, %v1012
  %v1014 = vpop.f32.mrb[0].mxu0
  %v1015 = vpop.f32.mrb[0].mxu0
  %v1016 = vadd.f32 %v784, %v1015
  %v1017 = vpop.f32.mrb[0].mxu0
  %1018 = vmatprep.mubr.bf16.mxu0 0
  %1019 = vmatmul.mubr.bf16.gmra.mrb[0].mxu0 %v650
  %v1020 = vpop.f32.mrb[0].mxu0
  %v1021 = vadd.f32 %v789, %v1020
  %v1022 = vpop.f32.mrb[0].mxu0
  %v1023 = vpop.f32.mrb[0].mxu0
  %v1024 = vadd.f32 %v792, %v1023
  %v1025 = vpop.f32.mrb[0].mxu0
  %1026 = vmatprep.mubr.bf16.mxu0 0
  %1027 = vmatmul.mubr.bf16.gmra.mrb[0].mxu0 %v653
  %v1028 = vpop.f32.mrb[0].mxu0
  %v1029 = vadd.f32 %v797, %v1028
  %v1030 = vpop.f32.mrb[0].mxu0
  %v1031 = vpop.f32.mrb[0].mxu0
  %v1032 = vadd.f32 %v800, %v1031
  %v1033 = vpop.f32.mrb[0].mxu0
  %1034 = vmatprep.mubr.bf16.mxu0 0
  %1035 = vmatmul.mubr.bf16.gmra.mrb[0].mxu0 %v656
  %v1036 = vpop.f32.mrb[0].mxu0
  %v1037 = vadd.f32 %v805, %v1036
  %v1038 = vpop.f32.mrb[0].mxu0
  %v1039 = vpop.f32.mrb[0].mxu0
  %v1040 = vadd.f32 %v808, %v1039
  %v1041 = vpop.f32.mrb[0].mxu0
  %1042 = vmatprep.mubr.bf16.mxu0 0
  %1043 = vmatmul.mubr.bf16.gmra.mrb[0].mxu0 %v659
  %v1044 = vpop.f32.mrb[0].mxu0
  %v1045 = vadd.f32 %v813, %v1044
  %v1046 = vpop.f32.mrb[0].mxu0
  %v1047 = vpop.f32.mrb[0].mxu0
  %v1048 = vadd.f32 %v816, %v1047
  %v1049 = vpop.f32.mrb[0].mxu0
  %1050 = vmatprep.mubr.bf16.mxu0 0
  %1051 = vmatmul.mubr.bf16.gmra.mrb[0].mxu0 %v662
  %v1052 = vpop.f32.mrb[0].mxu0
  %v1053 = vadd.f32 %v821, %v1052
  %v1054 = vpop.f32.mrb[0].mxu0
  %v1055 = vpop.f32.mrb[0].mxu0
  %v1056 = vadd.f32 %v824, %v1055
  %v1057 = vpop.f32.mrb[0].mxu0
  %1058 = vmatprep.mubr.bf16.mxu0 0
  %1059 = vmatmul.mubr.bf16.gmra.mrb[0].mxu0 %v665
  %v1060 = vpop.f32.mrb[0].mxu0
  %v1061 = vadd.f32 %v829, %v1060
  %v1062 = vpop.f32.mrb[0].mxu0
  %v1063 = vpop.f32.mrb[0].mxu0
  %v1064 = vadd.f32 %v832, %v1063
  %v1065 = vpop.f32.mrb[0].mxu0
  %1066 = vmatprep.mubr.bf16.mxu0 0
  %1067 = vmatmul.mubr.bf16.gmra.mrb[0].mxu0 %v668
  %v1068 = vpop.f32.mrb[0].mxu0
  %v1069 = vadd.f32 %v837, %v1068
  %v1070 = vpop.f32.mrb[0].mxu0
  %v1071 = vpop.f32.mrb[0].mxu0
  %v1072 = vadd.f32 %v840, %v1071
  %v1073 = vpop.f32.mrb[0].mxu0
  %1074 = vmatprep.mubr.bf16.mxu0 0
  %1075 = vmatmul.mubr.bf16.gmra.mrb[0].mxu0 %v671
  %v1076 = vpop.f32.mrb[0].mxu0
  %v1077 = vadd.f32 %v845, %v1076
  %v1078 = vpop.f32.mrb[0].mxu0
  %v1079 = vpop.f32.mrb[0].mxu0
  %v1080 = vadd.f32 %v848, %v1079
  %v1081 = vpop.f32.mrb[0].mxu0
  %1082 = vmatprep.mubr.bf16.mxu0 0
  %1083 = vmatmul.mubr.bf16.gmra.mrb[0].mxu0 %v674
  %v1084 = vpop.f32.mrb[0].mxu0
  %v1085 = vadd.f32 %v853, %v1084
  %v1086 = vpop.f32.mrb[0].mxu0
  %v1087 = vpop.f32.mrb[0].mxu0
  %v1088 = vadd.f32 %v856, %v1087
  %v1089 = vpop.f32.mrb[0].mxu0
  %1090 = vmatprep.mubr.bf16.mxu0 0
  %1091 = vmatmul.mubr.bf16.gmra.mrb[0].mxu0 %v677
  %v1092 = vpop.f32.mrb[0].mxu0
  %v1093 = vadd.f32 %v861, %v1092
  %v1094 = vpop.f32.mrb[0].mxu0
  %v1095 = vpop.f32.mrb[0].mxu0
  %v1096 = vadd.f32 %v864, %v1095
  %v1097 = vpop.f32.mrb[0].mxu0
  %1098 = vmatprep.mubr.bf16.mxu0 0
  %1099 = vmatmul.mubr.bf16.gmra.mrb[0].mxu0 %v680
  %v1100 = vpop.f32.mrb[0].mxu0
  %v1101 = vadd.f32 %v869, %v1100
  %v1102 = vpop.f32.mrb[0].mxu0
  %v1103 = vpop.f32.mrb[0].mxu0
  %v1104 = vadd.f32 %v872, %v1103
  %v1105 = vpop.f32.mrb[0].mxu0
  %1106 = vmatprep.mubr.bf16.mxu0 0
  %1107 = vmatmul.mubr.bf16.gmra.mrb[0].mxu0 %v683
  %v1108 = vpop.f32.mrb[0].mxu0
  %v1109 = vadd.f32 %v877, %v1108
  %v1110 = vpop.f32.mrb[0].mxu0
  %v1111 = vpop.f32.mrb[0].mxu0
  %v1112 = vadd.f32 %v880, %v1111
  %v1113 = vpop.f32.mrb[0].mxu0
  %1114 = vmatprep.mubr.bf16.mxu0 0
  %1115 = vmatmul.mubr.bf16.gmra.mrb[0].mxu0 %v686
  %v1116 = vpop.f32.mrb[0].mxu0
  %v1117 = vadd.f32 %v885, %v1116
  %v1118 = vpop.f32.mrb[0].mxu0
  %v1119 = vpop.f32.mrb[0].mxu0
  %v1120 = vadd.f32 %v888, %v1119
  %v1121 = vpop.f32.mrb[0].mxu0
  %1122 = vmatprep.mubr.bf16.mxu0 0
  %1123 = vmatmul.mubr.bf16.gmra.mrb[0].mxu0 %v689
  %v1124 = vpop.f32.mrb[0].mxu0
  %v1125 = vadd.f32 %v893, %v1124
  %v1126 = vpop.f32.mrb[0].mxu0
  %v1127 = vpop.f32.mrb[0].mxu0
  %v1128 = vadd.f32 %v896, %v1127
  %v1129 = vpop.f32.mrb[0].mxu0
  %1130 = vmatprep.mubr.bf16.mxu0 0
  %1131 = vmatmul.mubr.bf16.gmra.mrb[0].mxu0 %v692
  %v1132 = vpop.f32.mrb[0].mxu0
  %v1133 = vadd.f32 %v901, %v1132
  %v1134 = vpop.f32.mrb[0].mxu0
  %v1135 = vpop.f32.mrb[0].mxu0
  %v1136 = vadd.f32 %v904, %v1135
  %v1137 = vpop.f32.mrb[0].mxu0
  %1138 = vmatprep.mubr.bf16.mxu0 0
  %1139 = vmatmul.mubr.bf16.gmra.mrb[0].mxu0 %v695
  %v1140 = vpop.f32.mrb[0].mxu0
  %v1141 = vadd.f32 %v909, %v1140
  %v1142 = vpop.f32.mrb[0].mxu0
  %v1143 = vpop.f32.mrb[0].mxu0
  %v1144 = vadd.f32 %v912, %v1143
  %v1145 = vpop.f32.mrb[0].mxu0
  %1146 = vmatprep.mubr.bf16.mxu0 0
  %1147 = vmatmul.mubr.bf16.gmra.mrb[0].mxu0 %v698
  %v1148 = vpop.f32.mrb[0].mxu0
  %v1149 = vadd.f32 %v917, %v1148
  %v1150 = vpop.f32.mrb[0].mxu0
  %v1151 = vpop.f32.mrb[0].mxu0
  %v1152 = vadd.f32 %v920, %v1151
  %v1153 = vpop.f32.mrb[0].mxu0
  %1154 = vmatprep.mubr.bf16.mxu0 0
  %1155 = vmatmul.mubr.bf16.gmra.mrb[0].mxu0 %v701
  %v1156 = vpop.f32.mrb[0].mxu0
  %v1157 = vadd.f32 %v925, %v1156
  %v1158 = vpop.f32.mrb[0].mxu0
  %v1159 = vpop.f32.mrb[0].mxu0
  %v1160 = vadd.f32 %v928, %v1159
  %v1161 = vpop.f32.mrb[0].mxu0
  %1162 = vmatprep.mubr.bf16.mxu0 0
  %1163 = vmatmul.mubr.bf16.gmra.mrb[0].mxu0 %v704
  %v1164 = vpop.f32.mrb[0].mxu0
  %v1165 = vadd.f32 %v933, %v1164
  %v1166 = vpop.f32.mrb[0].mxu0
  %v1167 = vpop.f32.mrb[0].mxu0
  %v1168 = vpop.f32.mrb[0].mxu0
  %1169 = vdwg.mxu0
  %v1170 = vmax.f32 %v973, 0.0
  %v1171 = vmax.f32 %v976, 0.0
  %v1172 = vmax.f32 %v981, 0.0
  %v1173 = vmax.f32 %v984, 0.0
  %v1174 = vmax.f32 %v989, 0.0
  %v1175 = vmax.f32 %v992, 0.0
  %v1176 = vmax.f32 %v997, 0.0
  %v1177 = vmax.f32 %v1000, 0.0
  %v1178 = vmax.f32 %v1005, 0.0
  %v1179 = vmax.f32 %v1008, 0.0
  %v1180 = vmax.f32 %v1013, 0.0
  %v1181 = vmax.f32 %v1016, 0.0
  %v1182 = vmax.f32 %v1021, 0.0
  %v1183 = vmax.f32 %v1024, 0.0
  %v1184 = vmax.f32 %v1029, 0.0
  %v1185 = vmax.f32 %v1032, 0.0
  %v1186 = vmax.f32 %v1037, 0.0
  %v1187 = vmax.f32 %v1040, 0.0
  %v1188 = vmax.f32 %v1045, 0.0
  %v1189 = vmax.f32 %v1048, 0.0
  %v1190 = vmax.f32 %v1053, 0.0
  %v1191 = vmax.f32 %v1056, 0.0
  %v1192 = vmax.f32 %v1061, 0.0
  %v1193 = vmax.f32 %v1064, 0.0
  %v1194 = vmax.f32 %v1069, 0.0
  %v1195 = vmax.f32 %v1072, 0.0
  %v1196 = vmax.f32 %v1077, 0.0
  %v1197 = vmax.f32 %v1080, 0.0
  %v1198 = vmax.f32 %v1085, 0.0
  %v1199 = vmax.f32 %v1088, 0.0
  %v1200 = vmax.f32 %v1093, 0.0
  %v1201 = vmax.f32 %v1096, 0.0
  %v1202 = vmax.f32 %v1101, 0.0
  %v1203 = vmax.f32 %v1104, 0.0
  %v1204 = vmax.f32 %v1109, 0.0
  %v1205 = vmax.f32 %v1112, 0.0
  %v1206 = vmax.f32 %v1117, 0.0
  %v1207 = vmax.f32 %v1120, 0.0
  %v1208 = vmax.f32 %v1125, 0.0
  %v1209 = vmax.f32 %v1128, 0.0
  %v1210 = vmax.f32 %v1133, 0.0
  %v1211 = vmax.f32 %v1136, 0.0
  %v1212 = vmax.f32 %v1141, 0.0
  %v1213 = vmax.f32 %v1144, 0.0
  %v1214 = vmax.f32 %v1149, 0.0
  %v1215 = vmax.f32 %v1152, 0.0
  %v1216 = vmax.f32 %v1157, 0.0
  %v1217 = vmax.f32 %v1160, 0.0
  %v1218 = vmax.f32 %v1165, 0.0
  %v1219 = vld [vmem:[%s2] sm:$0x1]
  %v1221 = vlaneseq
  %v1222 = vshrl.u32 %v1221, 7
  %v1223 = vsub.s32 0, %v1222
  %v1224 = vrot.slane %v1219, %v1223
  %v1226 = vmul.f32 %v1170, %v1224
  %v1227 = vmul.f32 %v1171, %v1224
  %v1228 = vmul.f32 %v1172, %v1224
  %v1229 = vmul.f32 %v1173, %v1224
  %v1230 = vmul.f32 %v1174, %v1224
  %v1231 = vmul.f32 %v1175, %v1224
  %v1232 = vmul.f32 %v1176, %v1224
  %v1233 = vmul.f32 %v1177, %v1224
  %v1234 = vmul.f32 %v1178, %v1224
  %v1235 = vmul.f32 %v1179, %v1224
  %v1236 = vmul.f32 %v1180, %v1224
  %v1237 = vmul.f32 %v1181, %v1224
  %v1238 = vmul.f32 %v1182, %v1224
  %v1239 = vmul.f32 %v1183, %v1224
  %v1240 = vmul.f32 %v1184, %v1224
  %v1241 = vmul.f32 %v1185, %v1224
  %v1242 = vmul.f32 %v1186, %v1224
  %v1243 = vmul.f32 %v1187, %v1224
  %v1244 = vmul.f32 %v1188, %v1224
  %v1245 = vmul.f32 %v1189, %v1224
  %v1246 = vmul.f32 %v1190, %v1224
  %v1247 = vmul.f32 %v1191, %v1224
  %v1248 = vmul.f32 %v1192, %v1224
  %v1249 = vmul.f32 %v1193, %v1224
  %v1250 = vmul.f32 %v1194, %v1224
  %v1251 = vmul.f32 %v1195, %v1224
  %v1252 = vmul.f32 %v1196, %v1224
  %v1253 = vmul.f32 %v1197, %v1224
  %v1254 = vmul.f32 %v1198, %v1224
  %v1255 = vmul.f32 %v1199, %v1224
  %v1256 = vmul.f32 %v1200, %v1224
  %v1257 = vmul.f32 %v1201, %v1224
  %v1258 = vmul.f32 %v1202, %v1224
  %v1259 = vmul.f32 %v1203, %v1224
  %v1260 = vmul.f32 %v1204, %v1224
  %v1261 = vmul.f32 %v1205, %v1224
  %v1262 = vmul.f32 %v1206, %v1224
  %v1263 = vmul.f32 %v1207, %v1224
  %v1264 = vmul.f32 %v1208, %v1224
  %v1265 = vmul.f32 %v1209, %v1224
  %v1266 = vmul.f32 %v1210, %v1224
  %v1267 = vmul.f32 %v1211, %v1224
  %v1268 = vmul.f32 %v1212, %v1224
  %v1269 = vmul.f32 %v1213, %v1224
  %v1270 = vmul.f32 %v1214, %v1224
  %v1271 = vmul.f32 %v1215, %v1224
  %v1272 = vmul.f32 %v1216, %v1224
  %v1273 = vmul.f32 %v1217, %v1224
  %v1274 = vmul.f32 %v1218, %v1224
  %v1275 = vld [vmem:[%s3] sm:$0x1]
  %v1277 = vlaneseq
  %v1278 = vshrl.u32 %v1277, 7
  %v1279 = vsub.s32 0, %v1278
  %v1280 = vrot.slane %v1275, %v1279
  %v1282 = vadd.f32 %v1226, %v1280
  %v1283 = vadd.f32 %v1227, %v1280
  %v1284 = vadd.f32 %v1228, %v1280
  %v1285 = vadd.f32 %v1229, %v1280
  %v1286 = vadd.f32 %v1230, %v1280
  %v1287 = vadd.f32 %v1231, %v1280
  %v1288 = vadd.f32 %v1232, %v1280
  %v1289 = vadd.f32 %v1233, %v1280
  %v1290 = vadd.f32 %v1234, %v1280
  %v1291 = vadd.f32 %v1235, %v1280
  %v1292 = vadd.f32 %v1236, %v1280
  %v1293 = vadd.f32 %v1237, %v1280
  %v1294 = vadd.f32 %v1238, %v1280
  %v1295 = vadd.f32 %v1239, %v1280
  %v1296 = vadd.f32 %v1240, %v1280
  %v1297 = vadd.f32 %v1241, %v1280
  %v1298 = vadd.f32 %v1242, %v1280
  %v1299 = vadd.f32 %v1243, %v1280
  %v1300 = vadd.f32 %v1244, %v1280
  %v1301 = vadd.f32 %v1245, %v1280
  %v1302 = vadd.f32 %v1246, %v1280
  %v1303 = vadd.f32 %v1247, %v1280
  %v1304 = vadd.f32 %v1248, %v1280
  %v1305 = vadd.f32 %v1249, %v1280
  %v1306 = vadd.f32 %v1250, %v1280
  %v1307 = vadd.f32 %v1251, %v1280
  %v1308 = vadd.f32 %v1252, %v1280
  %v1309 = vadd.f32 %v1253, %v1280
  %v1310 = vadd.f32 %v1254, %v1280
  %v1311 = vadd.f32 %v1255, %v1280
  %v1312 = vadd.f32 %v1256, %v1280
  %v1313 = vadd.f32 %v1257, %v1280
  %v1314 = vadd.f32 %v1258, %v1280
  %v1315 = vadd.f32 %v1259, %v1280
  %v1316 = vadd.f32 %v1260, %v1280
  %v1317 = vadd.f32 %v1261, %v1280
  %v1318 = vadd.f32 %v1262, %v1280
  %v1319 = vadd.f32 %v1263, %v1280
  %v1320 = vadd.f32 %v1264, %v1280
  %v1321 = vadd.f32 %v1265, %v1280
  %v1322 = vadd.f32 %v1266, %v1280
  %v1323 = vadd.f32 %v1267, %v1280
  %v1324 = vadd.f32 %v1268, %v1280
  %v1325 = vadd.f32 %v1269, %v1280
  %v1326 = vadd.f32 %v1270, %v1280
  %v1327 = vadd.f32 %v1271, %v1280
  %v1328 = vadd.f32 %v1272, %v1280
  %v1329 = vadd.f32 %v1273, %v1280
  %v1330 = vadd.f32 %v1274, %v1280
  %vm1331 = vcmask 523264
  %1332 = vst.msk [vmem:[%s4] sm:$0xff] %vm1331, %v1282
  %1333 = vst.msk [vmem:[%s4 + $0x8] sm:$0xff] %vm1331, %v1283
  %1334 = vst.msk [vmem:[%s4 + $0x10] sm:$0xff] %vm1331, %v1284
  %1335 = vst.msk [vmem:[%s4 + $0x18] sm:$0xff] %vm1331, %v1285
  %1336 = vst.msk [vmem:[%s4 + $0x20] sm:$0xff] %vm1331, %v1286
  %1337 = vst.msk [vmem:[%s4 + $0x28] sm:$0xff] %vm1331, %v1287
  %1338 = vst.msk [vmem:[%s4 + $0x30] sm:$0xff] %vm1331, %v1288
  %1339 = vst.msk [vmem:[%s4 + $0x38] sm:$0xff] %vm1331, %v1289
  %1340 = vst.msk [vmem:[%s4 + $0x40] sm:$0xff] %vm1331, %v1290
  %1341 = vst.msk [vmem:[%s4 + $0x48] sm:$0xff] %vm1331, %v1291
  %1342 = vst.msk [vmem:[%s4 + $0x50] sm:$0xff] %vm1331, %v1292
  %1343 = vst.msk [vmem:[%s4 + $0x58] sm:$0xff] %vm1331, %v1293
  %1344 = vst.msk [vmem:[%s4 + $0x60] sm:$0xff] %vm1331, %v1294
  %1345 = vst.msk [vmem:[%s4 + $0x68] sm:$0xff] %vm1331, %v1295
  %1346 = vst.msk [vmem:[%s4 + $0x70] sm:$0xff] %vm1331, %v1296
  %1347 = vst.msk [vmem:[%s4 + $0x78] sm:$0xff] %vm1331, %v1297
  %1348 = vst.msk [vmem:[%s4 + $0x80] sm:$0xff] %vm1331, %v1298
  %1349 = vst.msk [vmem:[%s4 + $0x88] sm:$0xff] %vm1331, %v1299
  %1350 = vst.msk [vmem:[%s4 + $0x90] sm:$0xff] %vm1331, %v1300
  %1351 = vst.msk [vmem:[%s4 + $0x98] sm:$0xff] %vm1331, %v1301
  %1352 = vst.msk [vmem:[%s4 + $0xa0] sm:$0xff] %vm1331, %v1302
  %1353 = vst.msk [vmem:[%s4 + $0xa8] sm:$0xff] %vm1331, %v1303
  %1354 = vst.msk [vmem:[%s4 + $0xb0] sm:$0xff] %vm1331, %v1304
  %1355 = vst.msk [vmem:[%s4 + $0xb8] sm:$0xff] %vm1331, %v1305
  %1356 = vst.msk [vmem:[%s4 + $0xc0] sm:$0xff] %vm1331, %v1306
  %1357 = vst.msk [vmem:[%s4 + $0xc8] sm:$0xff] %vm1331, %v1307
  %1358 = vst.msk [vmem:[%s4 + $0xd0] sm:$0xff] %vm1331, %v1308
  %1359 = vst.msk [vmem:[%s4 + $0xd8] sm:$0xff] %vm1331, %v1309
  %1360 = vst.msk [vmem:[%s4 + $0xe0] sm:$0xff] %vm1331, %v1310
  %1361 = vst.msk [vmem:[%s4 + $0xe8] sm:$0xff] %vm1331, %v1311
  %1362 = vst.msk [vmem:[%s4 + $0xf0] sm:$0xff] %vm1331, %v1312
  %1363 = vst.msk [vmem:[%s4 + $0xf8] sm:$0xff] %vm1331, %v1313
  %1364 = vst.msk [vmem:[%s4 + $0x100] sm:$0xff] %vm1331, %v1314
  %1365 = vst.msk [vmem:[%s4 + $0x108] sm:$0xff] %vm1331, %v1315
  %1366 = vst.msk [vmem:[%s4 + $0x110] sm:$0xff] %vm1331, %v1316
  %1367 = vst.msk [vmem:[%s4 + $0x118] sm:$0xff] %vm1331, %v1317
  %1368 = vst.msk [vmem:[%s4 + $0x120] sm:$0xff] %vm1331, %v1318
  %1369 = vst.msk [vmem:[%s4 + $0x128] sm:$0xff] %vm1331, %v1319
  %1370 = vst.msk [vmem:[%s4 + $0x130] sm:$0xff] %vm1331, %v1320
  %1371 = vst.msk [vmem:[%s4 + $0x138] sm:$0xff] %vm1331, %v1321
  %1372 = vst.msk [vmem:[%s4 + $0x140] sm:$0xff] %vm1331, %v1322
  %1373 = vst.msk [vmem:[%s4 + $0x148] sm:$0xff] %vm1331, %v1323
  %1374 = vst.msk [vmem:[%s4 + $0x150] sm:$0xff] %vm1331, %v1324
  %1375 = vst.msk [vmem:[%s4 + $0x158] sm:$0xff] %vm1331, %v1325
  %1376 = vst.msk [vmem:[%s4 + $0x160] sm:$0xff] %vm1331, %v1326
  %1377 = vst.msk [vmem:[%s4 + $0x168] sm:$0xff] %vm1331, %v1327
  %1378 = vst.msk [vmem:[%s4 + $0x170] sm:$0xff] %vm1331, %v1328
  %1379 = vst.msk [vmem:[%s4 + $0x178] sm:$0xff] %vm1331, %v1329
  %1380 = vst.msk [vmem:[%s4 + $0x180] sm:$0xff] %vm1331, %v1330
  // Predicated region
  $region18: #{net_forward.31} parent=0 // pred_check
    _
  $region19: #{net_forward.31} parent=0 // pred_check_branch
    %1382 = sbr.rel (0) target = $region21
  $region20: #{net_forward.31} parent=0 // pred_region
    _
  $region21: #{net_forward.31} parent=0 // pred_fallthru
    _
  // Predicated region
  $region22: #{net_forward.31} parent=0 // pred_check
    _
  $region23: #{net_forward.31} parent=0 // pred_check_branch
    %1384 = sbr.rel (0) target = $region25
  $region24: #{net_forward.31} parent=0 // pred_region
    _
  $region25: #{net_forward.31} parent=0 // pred_fallthru
    _

// kernel: net_forward.32
$region0: #{net_forward.32}
  #allocation0 [shape = 'u32[]', space=smem, size = 0x4, offset = 0x4, fixed_abs, tag = 'smem constant byte address 0x4 - core index']
  #allocation1 [shape = 'u32[144,128]{1,0:T(1,128)}', space=vmem, size = 0x12000, scoped, tag = 'internal scratch']
  %s0 = inlined_call_operand.vmem [shape: f32[3,3], index: 0, kind: input, shape index: {}]
  %s1 = inlined_call_operand.vmem [shape: f32[2,16,16,64], index: 1, kind: input, shape index: {}]
  %s2 = inlined_call_operand.vmem [shape: f32[2,14,14,64], index: 2, kind: output, shape index: {}]
  %s3 = sld [smem:[#allocation0]]
  $region22: #{net_forward.32} parent=0
    _
  %s5 = ssub.s32 1, %s3
  %s6 = scalar_select 0, %s5, %s3
  $region1: #{net_forward.32} parent=0
    #allocation2 [shape = 'u8[2048]{0}', space=smem, size = 0x800, scoped, tag = 'input window, operand 0, single buffered']
    #allocation3 [shape = 's32[1]{0}', space=sflag, size = 0x4, scoped, tag = 'scoped memory for net_forward.32']
    %7 = vsyncpa [#allocation3], 0
    // Predicated region
    $region2: #{net_forward.32} parent=1 // pred_check
      _
    $region3: #{net_forward.32} parent=1 // pred_check_branch
      %9 = sbr.rel (0) target = $region5
    $region4: #{net_forward.32} parent=1 // pred_region
      %s11 = ssub.s32 64, 64
      %12 = vsyncadd [#allocation3], %s11
      %s14 = sshll.u32 %s0, 4
      %s15 = int_to_ptr.vmem [resolvable:$true] %s14
      %17 = dma.vmem_to_smem %s15, 64, [#allocation2], [#allocation3]
    $region5: #{net_forward.32} parent=1 // pred_fallthru
      _
    // Predicated region
    $region6: #{net_forward.32} parent=1 // pred_check
      _
    $region7: #{net_forward.32} parent=1 // pred_check_branch
      %19 = sbr.rel (0) target = $region9
    $region8: #{net_forward.32} parent=1 // pred_region
      _
    $region9: #{net_forward.32} parent=1 // pred_fallthru
      _
    // Predicated region
    $region10: #{net_forward.32} parent=1 // pred_check
      _
    $region11: #{net_forward.32} parent=1 // pred_check_branch
      %21 = sbr.rel (0) target = $region13
    $region12: #{net_forward.32} parent=1 // pred_region
      %22 = dma.done [#allocation3], 64
    $region13: #{net_forward.32} parent=1 // pred_fallthru
      _
    %23 = sfence
    %v24 = vld [vmem:[%s1] sm:$0xff]
    %v25 = vld [vmem:[%s1 + $0x8] sm:$0xff]
    %v26 = vld [vmem:[%s1 + $0x10] sm:$0xff]
    %v27 = vld [vmem:[%s1 + $0x18] sm:$0xff]
    %v28 = vld [vmem:[%s1 + $0x20] sm:$0xff]
    %v29 = vld [vmem:[%s1 + $0x28] sm:$0xff]
    %v30 = vld [vmem:[%s1 + $0x30] sm:$0xff]
    %v31 = vld [vmem:[%s1 + $0x38] sm:$0xff]
    %v32 = vld [vmem:[%s1 + $0x40] sm:$0xff]
    %v33 = vld [vmem:[%s1 + $0x48] sm:$0xff]
    %v34 = vld [vmem:[%s1 + $0x50] sm:$0xff]
    %v35 = vld [vmem:[%s1 + $0x58] sm:$0xff]
    %v36 = vld [vmem:[%s1 + $0x60] sm:$0xff]
    %v37 = vld [vmem:[%s1 + $0x68] sm:$0xff]
    %v38 = vld [vmem:[%s1 + $0x70] sm:$0xff]
    %v39 = vld [vmem:[%s1 + $0x78] sm:$0xff]
    %v40 = vld [vmem:[%s1 + $0x80] sm:$0xff]
    %v41 = vld [vmem:[%s1 + $0x88] sm:$0xff]
    %v42 = vld [vmem:[%s1 + $0x90] sm:$0xff]
    %v43 = vld [vmem:[%s1 + $0x98] sm:$0xff]
    %v44 = vld [vmem:[%s1 + $0xa0] sm:$0xff]
    %v45 = vld [vmem:[%s1 + $0xa8] sm:$0xff]
    %v46 = vld [vmem:[%s1 + $0xb0] sm:$0xff]
    %v47 = vld [vmem:[%s1 + $0xb8] sm:$0xff]
    %v48 = vld [vmem:[%s1 + $0xc0] sm:$0xff]
    %v49 = vld [vmem:[%s1 + $0xc8] sm:$0xff]
    %v50 = vld [vmem:[%s1 + $0xd0] sm:$0xff]
    %v51 = vld [vmem:[%s1 + $0xd8] sm:$0xff]
    %v52 = vld [vmem:[%s1 + $0xe0] sm:$0xff]
    %v53 = vld [vmem:[%s1 + $0xe8] sm:$0xff]
    %v54 = vld [vmem:[%s1 + $0xf0] sm:$0xff]
    %v55 = vld [vmem:[%s1 + $0xf8] sm:$0xff]
    %v56 = vld [vmem:[%s1 + $0x100] sm:$0xff]
    %v57 = vld [vmem:[%s1 + $0x108] sm:$0xff]
    %v58 = vld [vmem:[%s1 + $0x110] sm:$0xff]
    %v59 = vld [vmem:[%s1 + $0x118] sm:$0xff]
    %v60 = vld [vmem:[%s1 + $0x120] sm:$0xff]
    %v61 = vld [vmem:[%s1 + $0x128] sm:$0xff]
    %v62 = vld [vmem:[%s1 + $0x130] sm:$0xff]
    %v63 = vld [vmem:[%s1 + $0x138] sm:$0xff]
    %v64 = vld [vmem:[%s1 + $0x140] sm:$0xff]
    %v65 = vld [vmem:[%s1 + $0x148] sm:$0xff]
    %v66 = vld [vmem:[%s1 + $0x150] sm:$0xff]
    %v67 = vld [vmem:[%s1 + $0x158] sm:$0xff]
    %v68 = vld [vmem:[%s1 + $0x160] sm:$0xff]
    %v69 = vld [vmem:[%s1 + $0x168] sm:$0xff]
    %v70 = vld [vmem:[%s1 + $0x170] sm:$0xff]
    %v71 = vld [vmem:[%s1 + $0x178] sm:$0xff]
    %v72 = vld [vmem:[%s1 + $0x180] sm:$0xff]
    %v73 = vld [vmem:[%s1 + $0x188] sm:$0xff]
    %v74 = vld [vmem:[%s1 + $0x190] sm:$0xff]
    %v75 = vld [vmem:[%s1 + $0x198] sm:$0xff]
    %v76 = vld [vmem:[%s1 + $0x1a0] sm:$0xff]
    %v77 = vld [vmem:[%s1 + $0x1a8] sm:$0xff]
    %v78 = vld [vmem:[%s1 + $0x1b0] sm:$0xff]
    %v79 = vld [vmem:[%s1 + $0x1b8] sm:$0xff]
    %v80 = vld [vmem:[%s1 + $0x1c0] sm:$0xff]
    %v81 = vld [vmem:[%s1 + $0x1c8] sm:$0xff]
    %v82 = vld [vmem:[%s1 + $0x1d0] sm:$0xff]
    %v83 = vld [vmem:[%s1 + $0x1d8] sm:$0xff]
    %v84 = vld [vmem:[%s1 + $0x1e0] sm:$0xff]
    %v85 = vld [vmem:[%s1 + $0x1e8] sm:$0xff]
    %v86 = vld [vmem:[%s1 + $0x1f0] sm:$0xff]
    %v87 = vld [vmem:[%s1 + $0x1f8] sm:$0xff]
    %s88 = sld [smem:[#allocation2]]
    %v89 = vstv %s88
    %v90 = vmul.f32 %v89, %v24
    %v91 = vmul.f32 %v89, %v25
    %v92 = vmul.f32 %v89, %v26
    %v93 = vmul.f32 %v89, %v27
    %v94 = vmul.f32 %v89, %v28
    %v95 = vmul.f32 %v89, %v29
    %v96 = vmul.f32 %v89, %v30
    %v97 = vmul.f32 %v89, %v31
    %v98 = vmul.f32 %v89, %v32
    %v99 = vmul.f32 %v89, %v33
    %v100 = vmul.f32 %v89, %v34
    %v101 = vmul.f32 %v89, %v35
    %v102 = vmul.f32 %v89, %v36
    %v103 = vmul.f32 %v89, %v37
    %v104 = vmul.f32 %v89, %v38
    %v105 = vmul.f32 %v89, %v39
    %v106 = vmul.f32 %v89, %v40
    %v107 = vmul.f32 %v89, %v41
    %v108 = vmul.f32 %v89, %v42
    %v109 = vmul.f32 %v89, %v43
    %v110 = vmul.f32 %v89, %v44
    %v111 = vmul.f32 %v89, %v45
    %v112 = vmul.f32 %v89, %v46
    %v113 = vmul.f32 %v89, %v47
    %v114 = vmul.f32 %v89, %v48
    %v115 = vmul.f32 %v89, %v49
    %v116 = vmul.f32 %v89, %v50
    %v117 = vmul.f32 %v89, %v51
    %v118 = vmul.f32 %v89, %v56
    %v119 = vmul.f32 %v89, %v57
    %v120 = vmul.f32 %v89, %v58
    %v121 = vmul.f32 %v89, %v59
    %v122 = vmul.f32 %v89, %v60
    %v123 = vmul.f32 %v89, %v61
    %v124 = vmul.f32 %v89, %v62
    %v125 = vmul.f32 %v89, %v63
    %v126 = vmul.f32 %v89, %v64
    %v127 = vmul.f32 %v89, %v65
    %v128 = vmul.f32 %v89, %v66
    %v129 = vmul.f32 %v89, %v67
    %v130 = vmul.f32 %v89, %v68
    %v131 = vmul.f32 %v89, %v69
    %v132 = vmul.f32 %v89, %v70
    %v133 = vmul.f32 %v89, %v71
    %v134 = vmul.f32 %v89, %v72
    %v135 = vmul.f32 %v89, %v73
    %v136 = vmul.f32 %v89, %v74
    %v137 = vmul.f32 %v89, %v75
    %v138 = vmul.f32 %v89, %v76
    %v139 = vmul.f32 %v89, %v77
    %v140 = vmul.f32 %v89, %v78
    %v141 = vmul.f32 %v89, %v79
    %v142 = vmul.f32 %v89, %v80
    %v143 = vmul.f32 %v89, %v81
    %v144 = vmul.f32 %v89, %v82
    %v145 = vmul.f32 %v89, %v83
    %v146 = vadd.f32 %v90, 0.0
    %v147 = vadd.f32 %v91, 0.0
    %v148 = vadd.f32 %v92, 0.0
    %v149 = vadd.f32 %v93, 0.0
    %v150 = vadd.f32 %v94, 0.0
    %v151 = vadd.f32 %v95, 0.0
    %v152 = vadd.f32 %v96, 0.0
    %v153 = vadd.f32 %v97, 0.0
    %v154 = vadd.f32 %v98, 0.0
    %v155 = vadd.f32 %v99, 0.0
    %v156 = vadd.f32 %v100, 0.0
    %v157 = vadd.f32 %v101, 0.0
    %v158 = vadd.f32 %v102, 0.0
    %v159 = vadd.f32 %v103, 0.0
    %v160 = vadd.f32 %v104, 0.0
    %v161 = vadd.f32 %v105, 0.0
    %v162 = vadd.f32 %v106, 0.0
    %v163 = vadd.f32 %v107, 0.0
    %v164 = vadd.f32 %v108, 0.0
    %v165 = vadd.f32 %v109, 0.0
    %v166 = vadd.f32 %v110, 0.0
    %v167 = vadd.f32 %v111, 0.0
    %v168 = vadd.f32 %v112, 0.0
    %v169 = vadd.f32 %v113, 0.0
    %v170 = vadd.f32 %v114, 0.0
    %v171 = vadd.f32 %v115, 0.0
    %v172 = vadd.f32 %v116, 0.0
    %v173 = vadd.f32 %v117, 0.0
    %v174 = vadd.f32 %v118, 0.0
    %v175 = vadd.f32 %v119, 0.0
    %v176 = vadd.f32 %v120, 0.0
    %v177 = vadd.f32 %v121, 0.0
    %v178 = vadd.f32 %v122, 0.0
    %v179 = vadd.f32 %v123, 0.0
    %v180 = vadd.f32 %v124, 0.0
    %v181 = vadd.f32 %v125, 0.0
    %v182 = vadd.f32 %v126, 0.0
    %v183 = vadd.f32 %v127, 0.0
    %v184 = vadd.f32 %v128, 0.0
    %v185 = vadd.f32 %v129, 0.0
    %v186 = vadd.f32 %v130, 0.0
    %v187 = vadd.f32 %v131, 0.0
    %v188 = vadd.f32 %v132, 0.0
    %v189 = vadd.f32 %v133, 0.0
    %v190 = vadd.f32 %v134, 0.0
    %v191 = vadd.f32 %v135, 0.0
    %v192 = vadd.f32 %v136, 0.0
    %v193 = vadd.f32 %v137, 0.0
    %v194 = vadd.f32 %v138, 0.0
    %v195 = vadd.f32 %v139, 0.0
    %v196 = vadd.f32 %v140, 0.0
    %v197 = vadd.f32 %v141, 0.0
    %v198 = vadd.f32 %v142, 0.0
    %v199 = vadd.f32 %v143, 0.0
    %v200 = vadd.f32 %v144, 0.0
    %v201 = vadd.f32 %v145, 0.0
    %s202 = sld [smem:[#allocation2 + $0x1]]
    %v203 = vstv %s202
    %v204 = vmul.f32 %v203, %v24
    %v205 = vmul.f32 %v203, %v25
    %v206 = vmul.f32 %v203, %v26
    %v207 = vmul.f32 %v203, %v27
    %v208 = vmul.f32 %v203, %v28
    %v209 = vmul.f32 %v203, %v29
    %v210 = vmul.f32 %v203, %v30
    %v211 = vmul.f32 %v203, %v31
    %v212 = vmul.f32 %v203, %v32
    %v213 = vmul.f32 %v203, %v33
    %v214 = vmul.f32 %v203, %v34
    %v215 = vmul.f32 %v203, %v35
    %v216 = vmul.f32 %v203, %v36
    %v217 = vmul.f32 %v203, %v37
    %v218 = vmul.f32 %v203, %v38
    %v219 = vmul.f32 %v203, %v39
    %v220 = vmul.f32 %v203, %v40
    %v221 = vmul.f32 %v203, %v41
    %v222 = vmul.f32 %v203, %v42
    %v223 = vmul.f32 %v203, %v43
    %v224 = vmul.f32 %v203, %v44
    %v225 = vmul.f32 %v203, %v45
    %v226 = vmul.f32 %v203, %v46
    %v227 = vmul.f32 %v203, %v47
    %v228 = vmul.f32 %v203, %v48
    %v229 = vmul.f32 %v203, %v49
    %v230 = vmul.f32 %v203, %v50
    %v231 = vmul.f32 %v203, %v51
    %v232 = vmul.f32 %v203, %v56
    %v233 = vmul.f32 %v203, %v57
    %v234 = vmul.f32 %v203, %v58
    %v235 = vmul.f32 %v203, %v59
    %v236 = vmul.f32 %v203, %v60
    %v237 = vmul.f32 %v203, %v61
    %v238 = vmul.f32 %v203, %v62
    %v239 = vmul.f32 %v203, %v63
    %v240 = vmul.f32 %v203, %v64
    %v241 = vmul.f32 %v203, %v65
    %v242 = vmul.f32 %v203, %v66
    %v243 = vmul.f32 %v203, %v67
    %v244 = vmul.f32 %v203, %v68
    %v245 = vmul.f32 %v203, %v69
    %v246 = vmul.f32 %v203, %v70
    %v247 = vmul.f32 %v203, %v71
    %v248 = vmul.f32 %v203, %v72
    %v249 = vmul.f32 %v203, %v73
    %v250 = vmul.f32 %v203, %v74
    %v251 = vmul.f32 %v203, %v75
    %v252 = vmul.f32 %v203, %v76
    %v253 = vmul.f32 %v203, %v77
    %v254 = vmul.f32 %v203, %v78
    %v255 = vmul.f32 %v203, %v79
    %v256 = vmul.f32 %v203, %v80
    %v257 = vmul.f32 %v203, %v81
    %v258 = vmul.f32 %v203, %v82
    %v259 = vmul.f32 %v203, %v83
    %vm316 = vcmask 1046528
    %v317 = vrot.slane %v204, 1
    %v318 = vrot.slane %v205, 1
    %v319 = vsel %vm316, %v317, %v318
    %v320 = vrot.slane %v206, 1
    %v321 = vrot.slane %v207, 1
    %v322 = vsel %vm316, %v320, %v321
    %v323 = vrot.slane %v208, 1
    %v324 = vrot.slane %v209, 1
    %v325 = vsel %vm316, %v323, %v324
    %v326 = vrot.slane %v210, 1
    %v327 = vrot.slane %v211, 1
    %v328 = vsel %vm316, %v326, %v327
    %v329 = vrot.slane %v212, 1
    %v330 = vrot.slane %v213, 1
    %v331 = vsel %vm316, %v329, %v330
    %v332 = vrot.slane %v214, 1
    %v333 = vrot.slane %v215, 1
    %v334 = vsel %vm316, %v332, %v333
    %v335 = vrot.slane %v216, 1
    %v336 = vrot.slane %v217, 1
    %v337 = vsel %vm316, %v335, %v336
    %v338 = vrot.slane %v218, 1
    %v339 = vrot.slane %v219, 1
    %v340 = vsel %vm316, %v338, %v339
    %v341 = vrot.slane %v220, 1
    %v342 = vrot.slane %v221, 1
    %v343 = vsel %vm316, %v341, %v342
    %v344 = vrot.slane %v222, 1
    %v345 = vrot.slane %v223, 1
    %v346 = vsel %vm316, %v344, %v345
    %v347 = vrot.slane %v224, 1
    %v348 = vrot.slane %v225, 1
    %v349 = vsel %vm316, %v347, %v348
    %v350 = vrot.slane %v226, 1
    %v351 = vrot.slane %v227, 1
    %v352 = vsel %vm316, %v350, %v351
    %v353 = vrot.slane %v228, 1
    %v354 = vrot.slane %v229, 1
    %v355 = vsel %vm316, %v353, %v354
    %v356 = vrot.slane %v230, 1
    %v357 = vrot.slane %v231, 1
    %v358 = vsel %vm316, %v356, %v357
    %v359 = vrot.slane %v232, 1
    %v360 = vrot.slane %v233, 1
    %v361 = vsel %vm316, %v359, %v360
    %v362 = vrot.slane %v234, 1
    %v363 = vrot.slane %v235, 1
    %v364 = vsel %vm316, %v362, %v363
    %v365 = vrot.slane %v236, 1
    %v366 = vrot.slane %v237, 1
    %v367 = vsel %vm316, %v365, %v366
    %v368 = vrot.slane %v238, 1
    %v369 = vrot.slane %v239, 1
    %v370 = vsel %vm316, %v368, %v369
    %v371 = vrot.slane %v240, 1
    %v372 = vrot.slane %v241, 1
    %v373 = vsel %vm316, %v371, %v372
    %v374 = vrot.slane %v242, 1
    %v375 = vrot.slane %v243, 1
    %v376 = vsel %vm316, %v374, %v375
    %v377 = vrot.slane %v244, 1
    %v378 = vrot.slane %v245, 1
    %v379 = vsel %vm316, %v377, %v378
    %v380 = vrot.slane %v246, 1
    %v381 = vrot.slane %v247, 1
    %v382 = vsel %vm316, %v380, %v381
    %v383 = vrot.slane %v248, 1
    %v384 = vrot.slane %v249, 1
    %v385 = vsel %vm316, %v383, %v384
    %v386 = vrot.slane %v250, 1
    %v387 = vrot.slane %v251, 1
    %v388 = vsel %vm316, %v386, %v387
    %v389 = vrot.slane %v252, 1
    %v390 = vrot.slane %v253, 1
    %v391 = vsel %vm316, %v389, %v390
    %v392 = vrot.slane %v254, 1
    %v393 = vrot.slane %v255, 1
    %v394 = vsel %vm316, %v392, %v393
    %v395 = vrot.slane %v256, 1
    %v396 = vrot.slane %v257, 1
    %v397 = vsel %vm316, %v395, %v396
    %v398 = vrot.slane %v258, 1
    %v399 = vrot.slane %v259, 1
    %v400 = vsel %vm316, %v398, %v399
    %v457 = vadd.f32 %v146, %v319
    %v458 = vadd.f32 %v147, %v318
    %v459 = vadd.f32 %v148, %v322
    %v460 = vadd.f32 %v149, %v321
    %v461 = vadd.f32 %v150, %v325
    %v462 = vadd.f32 %v151, %v324
    %v463 = vadd.f32 %v152, %v328
    %v464 = vadd.f32 %v153, %v327
    %v465 = vadd.f32 %v154, %v331
    %v466 = vadd.f32 %v155, %v330
    %v467 = vadd.f32 %v156, %v334
    %v468 = vadd.f32 %v157, %v333
    %v469 = vadd.f32 %v158, %v337
    %v470 = vadd.f32 %v159, %v336
    %v471 = vadd.f32 %v160, %v340
    %v472 = vadd.f32 %v161, %v339
    %v473 = vadd.f32 %v162, %v343
    %v474 = vadd.f32 %v163, %v342
    %v475 = vadd.f32 %v164, %v346
    %v476 = vadd.f32 %v165, %v345
    %v477 = vadd.f32 %v166, %v349
    %v478 = vadd.f32 %v167, %v348
    %v479 = vadd.f32 %v168, %v352
    %v480 = vadd.f32 %v169, %v351
    %v481 = vadd.f32 %v170, %v355
    %v482 = vadd.f32 %v171, %v354
    %v483 = vadd.f32 %v172, %v358
    %v484 = vadd.f32 %v173, %v357
    %v485 = vadd.f32 %v174, %v361
    %v486 = vadd.f32 %v175, %v360
    %v487 = vadd.f32 %v176, %v364
    %v488 = vadd.f32 %v177, %v363
    %v489 = vadd.f32 %v178, %v367
    %v490 = vadd.f32 %v179, %v366
    %v491 = vadd.f32 %v180, %v370
    %v492 = vadd.f32 %v181, %v369
    %v493 = vadd.f32 %v182, %v373
    %v494 = vadd.f32 %v183, %v372
    %v495 = vadd.f32 %v184, %v376
    %v496 = vadd.f32 %v185, %v375
    %v497 = vadd.f32 %v186, %v379
    %v498 = vadd.f32 %v187, %v378
    %v499 = vadd.f32 %v188, %v382
    %v500 = vadd.f32 %v189, %v381
    %v501 = vadd.f32 %v190, %v385
    %v502 = vadd.f32 %v191, %v384
    %v503 = vadd.f32 %v192, %v388
    %v504 = vadd.f32 %v193, %v387
    %v505 = vadd.f32 %v194, %v391
    %v506 = vadd.f32 %v195, %v390
    %v507 = vadd.f32 %v196, %v394
    %v508 = vadd.f32 %v197, %v393
    %v509 = vadd.f32 %v198, %v397
    %v510 = vadd.f32 %v199, %v396
    %v511 = vadd.f32 %v200, %v400
    %v512 = vadd.f32 %v201, %v399
    %s513 = sld [smem:[#allocation2 + $0x2]]
    %v514 = vstv %s513
    %v515 = vmul.f32 %v514, %v24
    %v516 = vmul.f32 %v514, %v25
    %v517 = vmul.f32 %v514, %v26
    %v518 = vmul.f32 %v514, %v27
    %v519 = vmul.f32 %v514, %v28
    %v520 = vmul.f32 %v514, %v29
    %v521 = vmul.f32 %v514, %v30
    %v522 = vmul.f32 %v514, %v31
    %v523 = vmul.f32 %v514, %v32
    %v524 = vmul.f32 %v514, %v33
    %v525 = vmul.f32 %v514, %v34
    %v526 = vmul.f32 %v514, %v35
    %v527 = vmul.f32 %v514, %v36
    %v528 = vmul.f32 %v514, %v37
    %v529 = vmul.f32 %v514, %v38
    %v530 = vmul.f32 %v514, %v39
    %v531 = vmul.f32 %v514, %v40
    %v532 = vmul.f32 %v514, %v41
    %v533 = vmul.f32 %v514, %v42
    %v534 = vmul.f32 %v514, %v43
    %v535 = vmul.f32 %v514, %v44
    %v536 = vmul.f32 %v514, %v45
    %v537 = vmul.f32 %v514, %v46
    %v538 = vmul.f32 %v514, %v47
    %v539 = vmul.f32 %v514, %v48
    %v540 = vmul.f32 %v514, %v49
    %v541 = vmul.f32 %v514, %v50
    %v542 = vmul.f32 %v514, %v51
    %v543 = vmul.f32 %v514, %v56
    %v544 = vmul.f32 %v514, %v57
    %v545 = vmul.f32 %v514, %v58
    %v546 = vmul.f32 %v514, %v59
    %v547 = vmul.f32 %v514, %v60
    %v548 = vmul.f32 %v514, %v61
    %v549 = vmul.f32 %v514, %v62
    %v550 = vmul.f32 %v514, %v63
    %v551 = vmul.f32 %v514, %v64
    %v552 = vmul.f32 %v514, %v65
    %v553 = vmul.f32 %v514, %v66
    %v554 = vmul.f32 %v514, %v67
    %v555 = vmul.f32 %v514, %v68
    %v556 = vmul.f32 %v514, %v69
    %v557 = vmul.f32 %v514, %v70
    %v558 = vmul.f32 %v514, %v71
    %v559 = vmul.f32 %v514, %v72
    %v560 = vmul.f32 %v514, %v73
    %v561 = vmul.f32 %v514, %v74
    %v562 = vmul.f32 %v514, %v75
    %v563 = vmul.f32 %v514, %v76
    %v564 = vmul.f32 %v514, %v77
    %v565 = vmul.f32 %v514, %v78
    %v566 = vmul.f32 %v514, %v79
    %v567 = vmul.f32 %v514, %v80
    %v568 = vmul.f32 %v514, %v81
    %v569 = vmul.f32 %v514, %v82
    %v570 = vmul.f32 %v514, %v83
    %vm627 = vcmask 1045504
    %v628 = vrot.slane %v515, 2
    %v629 = vrot.slane %v516, 2
    %v630 = vsel %vm627, %v628, %v629
    %v631 = vrot.slane %v517, 2
    %v632 = vrot.slane %v518, 2
    %v633 = vsel %vm627, %v631, %v632
    %v634 = vrot.slane %v519, 2
    %v635 = vrot.slane %v520, 2
    %v636 = vsel %vm627, %v634, %v635
    %v637 = vrot.slane %v521, 2
    %v638 = vrot.slane %v522, 2
    %v639 = vsel %vm627, %v637, %v638
    %v640 = vrot.slane %v523, 2
    %v641 = vrot.slane %v524, 2
    %v642 = vsel %vm627, %v640, %v641
    %v643 = vrot.slane %v525, 2
    %v644 = vrot.slane %v526, 2
    %v645 = vsel %vm627, %v643, %v644
    %v646 = vrot.slane %v527, 2
    %v647 = vrot.slane %v528, 2
    %v648 = vsel %vm627, %v646, %v647
    %v649 = vrot.slane %v529, 2
    %v650 = vrot.slane %v530, 2
    %v651 = vsel %vm627, %v649, %v650
    %v652 = vrot.slane %v531, 2
    %v653 = vrot.slane %v532, 2
    %v654 = vsel %vm627, %v652, %v653
    %v655 = vrot.slane %v533, 2
    %v656 = vrot.slane %v534, 2
    %v657 = vsel %vm627, %v655, %v656
    %v658 = vrot.slane %v535, 2
    %v659 = vrot.slane %v536, 2
    %v660 = vsel %vm627, %v658, %v659
    %v661 = vrot.slane %v537, 2
    %v662 = vrot.slane %v538, 2
    %v663 = vsel %vm627, %v661, %v662
    %v664 = vrot.slane %v539, 2
    %v665 = vrot.slane %v540, 2
    %v666 = vsel %vm627, %v664, %v665
    %v667 = vrot.slane %v541, 2
    %v668 = vrot.slane %v542, 2
    %v669 = vsel %vm627, %v667, %v668
    %v670 = vrot.slane %v543, 2
    %v671 = vrot.slane %v544, 2
    %v672 = vsel %vm627, %v670, %v671
    %v673 = vrot.slane %v545, 2
    %v674 = vrot.slane %v546, 2
    %v675 = vsel %vm627, %v673, %v674
    %v676 = vrot.slane %v547, 2
    %v677 = vrot.slane %v548, 2
    %v678 = vsel %vm627, %v676, %v677
    %v679 = vrot.slane %v549, 2
    %v680 = vrot.slane %v550, 2
    %v681 = vsel %vm627, %v679, %v680
    %v682 = vrot.slane %v551, 2
    %v683 = vrot.slane %v552, 2
    %v684 = vsel %vm627, %v682, %v683
    %v685 = vrot.slane %v553, 2
    %v686 = vrot.slane %v554, 2
    %v687 = vsel %vm627, %v685, %v686
    %v688 = vrot.slane %v555, 2
    %v689 = vrot.slane %v556, 2
    %v690 = vsel %vm627, %v688, %v689
    %v691 = vrot.slane %v557, 2
    %v692 = vrot.slane %v558, 2
    %v693 = vsel %vm627, %v691, %v692
    %v694 = vrot.slane %v559, 2
    %v695 = vrot.slane %v560, 2
    %v696 = vsel %vm627, %v694, %v695
    %v697 = vrot.slane %v561, 2
    %v698 = vrot.slane %v562, 2
    %v699 = vsel %vm627, %v697, %v698
    %v700 = vrot.slane %v563, 2
    %v701 = vrot.slane %v564, 2
    %v702 = vsel %vm627, %v700, %v701
    %v703 = vrot.slane %v565, 2
    %v704 = vrot.slane %v566, 2
    %v705 = vsel %vm627, %v703, %v704
    %v706 = vrot.slane %v567, 2
    %v707 = vrot.slane %v568, 2
    %v708 = vsel %vm627, %v706, %v707
    %v709 = vrot.slane %v569, 2
    %v710 = vrot.slane %v570, 2
    %v711 = vsel %vm627, %v709, %v710
    %v768 = vadd.f32 %v457, %v630
    %v769 = vadd.f32 %v458, %v629
    %v770 = vadd.f32 %v459, %v633
    %v771 = vadd.f32 %v460, %v632
    %v772 = vadd.f32 %v461, %v636
    %v773 = vadd.f32 %v462, %v635
    %v774 = vadd.f32 %v463, %v639
    %v775 = vadd.f32 %v464, %v638
    %v776 = vadd.f32 %v465, %v642
    %v777 = vadd.f32 %v466, %v641
    %v778 = vadd.f32 %v467, %v645
    %v779 = vadd.f32 %v468, %v644
    %v780 = vadd.f32 %v469, %v648
    %v781 = vadd.f32 %v470, %v647
    %v782 = vadd.f32 %v471, %v651
    %v783 = vadd.f32 %v472, %v650
    %v784 = vadd.f32 %v473, %v654
    %v785 = vadd.f32 %v474, %v653
    %v786 = vadd.f32 %v475, %v657
    %v787 = vadd.f32 %v476, %v656
    %v788 = vadd.f32 %v477, %v660
    %v789 = vadd.f32 %v478, %v659
    %v790 = vadd.f32 %v479, %v663
    %v791 = vadd.f32 %v480, %v662
    %v792 = vadd.f32 %v481, %v666
    %v793 = vadd.f32 %v482, %v665
    %v794 = vadd.f32 %v483, %v669
    %v795 = vadd.f32 %v484, %v668
    %v796 = vadd.f32 %v485, %v672
    %v797 = vadd.f32 %v486, %v671
    %v798 = vadd.f32 %v487, %v675
    %v799 = vadd.f32 %v488, %v674
    %v800 = vadd.f32 %v489, %v678
    %v801 = vadd.f32 %v490, %v677
    %v802 = vadd.f32 %v491, %v681
    %v803 = vadd.f32 %v492, %v680
    %v804 = vadd.f32 %v493, %v684
    %v805 = vadd.f32 %v494, %v683
    %v806 = vadd.f32 %v495, %v687
    %v807 = vadd.f32 %v496, %v686
    %v808 = vadd.f32 %v497, %v690
    %v809 = vadd.f32 %v498, %v689
    %v810 = vadd.f32 %v499, %v693
    %v811 = vadd.f32 %v500, %v692
    %v812 = vadd.f32 %v501, %v696
    %v813 = vadd.f32 %v502, %v695
    %v814 = vadd.f32 %v503, %v699
    %v815 = vadd.f32 %v504, %v698
    %v816 = vadd.f32 %v505, %v702
    %v817 = vadd.f32 %v506, %v701
    %v818 = vadd.f32 %v507, %v705
    %v819 = vadd.f32 %v508, %v704
    %v820 = vadd.f32 %v509, %v708
    %v821 = vadd.f32 %v510, %v707
    %v822 = vadd.f32 %v511, %v711
    %v823 = vadd.f32 %v512, %v710
    %s824 = sld [smem:[#allocation2 + $0x80]]
    %v825 = vstv %s824
    %v826 = vmul.f32 %v825, %v26
    %v827 = vmul.f32 %v825, %v27
    %v828 = vmul.f32 %v825, %v28
    %v829 = vmul.f32 %v825, %v29
    %v830 = vmul.f32 %v825, %v30
    %v831 = vmul.f32 %v825, %v31
    %v832 = vmul.f32 %v825, %v32
    %v833 = vmul.f32 %v825, %v33
    %v834 = vmul.f32 %v825, %v34
    %v835 = vmul.f32 %v825, %v35
    %v836 = vmul.f32 %v825, %v36
    %v837 = vmul.f32 %v825, %v37
    %v838 = vmul.f32 %v825, %v38
    %v839 = vmul.f32 %v825, %v39
    %v840 = vmul.f32 %v825, %v40
    %v841 = vmul.f32 %v825, %v41
    %v842 = vmul.f32 %v825, %v42
    %v843 = vmul.f32 %v825, %v43
    %v844 = vmul.f32 %v825, %v44
    %v845 = vmul.f32 %v825, %v45
    %v846 = vmul.f32 %v825, %v46
    %v847 = vmul.f32 %v825, %v47
    %v848 = vmul.f32 %v825, %v48
    %v849 = vmul.f32 %v825, %v49
    %v850 = vmul.f32 %v825, %v50
    %v851 = vmul.f32 %v825, %v51
    %v852 = vmul.f32 %v825, %v52
    %v853 = vmul.f32 %v825, %v53
    %v854 = vmul.f32 %v825, %v58
    %v855 = vmul.f32 %v825, %v59
    %v856 = vmul.f32 %v825, %v60
    %v857 = vmul.f32 %v825, %v61
    %v858 = vmul.f32 %v825, %v62
    %v859 = vmul.f32 %v825, %v63
    %v860 = vmul.f32 %v825, %v64
    %v861 = vmul.f32 %v825, %v65
    %v862 = vmul.f32 %v825, %v66
    %v863 = vmul.f32 %v825, %v67
    %v864 = vmul.f32 %v825, %v68
    %v865 = vmul.f32 %v825, %v69
    %v866 = vmul.f32 %v825, %v70
    %v867 = vmul.f32 %v825, %v71
    %v868 = vmul.f32 %v825, %v72
    %v869 = vmul.f32 %v825, %v73
    %v870 = vmul.f32 %v825, %v74
    %v871 = vmul.f32 %v825, %v75
    %v872 = vmul.f32 %v825, %v76
    %v873 = vmul.f32 %v825, %v77
    %v874 = vmul.f32 %v825, %v78
    %v875 = vmul.f32 %v825, %v79
    %v876 = vmul.f32 %v825, %v80
    %v877 = vmul.f32 %v825, %v81
    %v878 = vmul.f32 %v825, %v82
    %v879 = vmul.f32 %v825, %v83
    %v880 = vmul.f32 %v825, %v84
    %v881 = vmul.f32 %v825, %v85
    %v882 = vadd.f32 %v768, %v826
    %v883 = vadd.f32 %v769, %v827
    %v884 = vadd.f32 %v770, %v828
    %v885 = vadd.f32 %v771, %v829
    %v886 = vadd.f32 %v772, %v830
    %v887 = vadd.f32 %v773, %v831
    %v888 = vadd.f32 %v774, %v832
    %v889 = vadd.f32 %v775, %v833
    %v890 = vadd.f32 %v776, %v834
    %v891 = vadd.f32 %v777, %v835
    %v892 = vadd.f32 %v778, %v836
    %v893 = vadd.f32 %v779, %v837
    %v894 = vadd.f32 %v780, %v838
    %v895 = vadd.f32 %v781, %v839
    %v896 = vadd.f32 %v782, %v840
    %v897 = vadd.f32 %v783, %v841
    %v898 = vadd.f32 %v784, %v842
    %v899 = vadd.f32 %v785, %v843
    %v900 = vadd.f32 %v786, %v844
    %v901 = vadd.f32 %v787, %v845
    %v902 = vadd.f32 %v788, %v846
    %v903 = vadd.f32 %v789, %v847
    %v904 = vadd.f32 %v790, %v848
    %v905 = vadd.f32 %v791, %v849
    %v906 = vadd.f32 %v792, %v850
    %v907 = vadd.f32 %v793, %v851
    %v908 = vadd.f32 %v794, %v852
    %v909 = vadd.f32 %v795, %v853
    %v910 = vadd.f32 %v796, %v854
    %v911 = vadd.f32 %v797, %v855
    %v912 = vadd.f32 %v798, %v856
    %v913 = vadd.f32 %v799, %v857
    %v914 = vadd.f32 %v800, %v858
    %v915 = vadd.f32 %v801, %v859
    %v916 = vadd.f32 %v802, %v860
    %v917 = vadd.f32 %v803, %v861
    %v918 = vadd.f32 %v804, %v862
    %v919 = vadd.f32 %v805, %v863
    %v920 = vadd.f32 %v806, %v864
    %v921 = vadd.f32 %v807, %v865
    %v922 = vadd.f32 %v808, %v866
    %v923 = vadd.f32 %v809, %v867
    %v924 = vadd.f32 %v810, %v868
    %v925 = vadd.f32 %v811, %v869
    %v926 = vadd.f32 %v812, %v870
    %v927 = vadd.f32 %v813, %v871
    %v928 = vadd.f32 %v814, %v872
    %v929 = vadd.f32 %v815, %v873
    %v930 = vadd.f32 %v816, %v874
    %v931 = vadd.f32 %v817, %v875
    %v932 = vadd.f32 %v818, %v876
    %v933 = vadd.f32 %v819, %v877
    %v934 = vadd.f32 %v820, %v878
    %v935 = vadd.f32 %v821, %v879
    %v936 = vadd.f32 %v822, %v880
    %v937 = vadd.f32 %v823, %v881
    %s938 = sld [smem:[#allocation2 + $0x81]]
    %v939 = vstv %s938
    %v940 = vmul.f32 %v939, %v26
    %v941 = vmul.f32 %v939, %v27
    %v942 = vmul.f32 %v939, %v28
    %v943 = vmul.f32 %v939, %v29
    %v944 = vmul.f32 %v939, %v30
    %v945 = vmul.f32 %v939, %v31
    %v946 = vmul.f32 %v939, %v32
    %v947 = vmul.f32 %v939, %v33
    %v948 = vmul.f32 %v939, %v34
    %v949 = vmul.f32 %v939, %v35
    %v950 = vmul.f32 %v939, %v36
    %v951 = vmul.f32 %v939, %v37
    %v952 = vmul.f32 %v939, %v38
    %v953 = vmul.f32 %v939, %v39
    %v954 = vmul.f32 %v939, %v40
    %v955 = vmul.f32 %v939, %v41
    %v956 = vmul.f32 %v939, %v42
    %v957 = vmul.f32 %v939, %v43
    %v958 = vmul.f32 %v939, %v44
    %v959 = vmul.f32 %v939, %v45
    %v960 = vmul.f32 %v939, %v46
    %v961 = vmul.f32 %v939, %v47
    %v962 = vmul.f32 %v939, %v48
    %v963 = vmul.f32 %v939, %v49
    %v964 = vmul.f32 %v939, %v50
    %v965 = vmul.f32 %v939, %v51
    %v966 = vmul.f32 %v939, %v52
    %v967 = vmul.f32 %v939, %v53
    %v968 = vmul.f32 %v939, %v58
    %v969 = vmul.f32 %v939, %v59
    %v970 = vmul.f32 %v939, %v60
    %v971 = vmul.f32 %v939, %v61
    %v972 = vmul.f32 %v939, %v62
    %v973 = vmul.f32 %v939, %v63
    %v974 = vmul.f32 %v939, %v64
    %v975 = vmul.f32 %v939, %v65
    %v976 = vmul.f32 %v939, %v66
    %v977 = vmul.f32 %v939, %v67
    %v978 = vmul.f32 %v939, %v68
    %v979 = vmul.f32 %v939, %v69
    %v980 = vmul.f32 %v939, %v70
    %v981 = vmul.f32 %v939, %v71
    %v982 = vmul.f32 %v939, %v72
    %v983 = vmul.f32 %v939, %v73
    %v984 = vmul.f32 %v939, %v74
    %v985 = vmul.f32 %v939, %v75
    %v986 = vmul.f32 %v939, %v76
    %v987 = vmul.f32 %v939, %v77
    %v988 = vmul.f32 %v939, %v78
    %v989 = vmul.f32 %v939, %v79
    %v990 = vmul.f32 %v939, %v80
    %v991 = vmul.f32 %v939, %v81
    %v992 = vmul.f32 %v939, %v82
    %v993 = vmul.f32 %v939, %v83
    %v994 = vmul.f32 %v939, %v84
    %v995 = vmul.f32 %v939, %v85
    %v1052 = vrot.slane %v940, 1
    %v1053 = vrot.slane %v941, 1
    %v1054 = vsel %vm316, %v1052, %v1053
    %v1055 = vrot.slane %v942, 1
    %v1056 = vrot.slane %v943, 1
    %v1057 = vsel %vm316, %v1055, %v1056
    %v1058 = vrot.slane %v944, 1
    %v1059 = vrot.slane %v945, 1
    %v1060 = vsel %vm316, %v1058, %v1059
    %v1061 = vrot.slane %v946, 1
    %v1062 = vrot.slane %v947, 1
    %v1063 = vsel %vm316, %v1061, %v1062
    %v1064 = vrot.slane %v948, 1
    %v1065 = vrot.slane %v949, 1
    %v1066 = vsel %vm316, %v1064, %v1065
    %v1067 = vrot.slane %v950, 1
    %v1068 = vrot.slane %v951, 1
    %v1069 = vsel %vm316, %v1067, %v1068
    %v1070 = vrot.slane %v952, 1
    %v1071 = vrot.slane %v953, 1
    %v1072 = vsel %vm316, %v1070, %v1071
    %v1073 = vrot.slane %v954, 1
    %v1074 = vrot.slane %v955, 1
    %v1075 = vsel %vm316, %v1073, %v1074
    %v1076 = vrot.slane %v956, 1
    %v1077 = vrot.slane %v957, 1
    %v1078 = vsel %vm316, %v1076, %v1077
    %v1079 = vrot.slane %v958, 1
    %v1080 = vrot.slane %v959, 1
    %v1081 = vsel %vm316, %v1079, %v1080
    %v1082 = vrot.slane %v960, 1
    %v1083 = vrot.slane %v961, 1
    %v1084 = vsel %vm316, %v1082, %v1083
    %v1085 = vrot.slane %v962, 1
    %v1086 = vrot.slane %v963, 1
    %v1087 = vsel %vm316, %v1085, %v1086
    %v1088 = vrot.slane %v964, 1
    %v1089 = vrot.slane %v965, 1
    %v1090 = vsel %vm316, %v1088, %v1089
    %v1091 = vrot.slane %v966, 1
    %v1092 = vrot.slane %v967, 1
    %v1093 = vsel %vm316, %v1091, %v1092
    %v1094 = vrot.slane %v968, 1
    %v1095 = vrot.slane %v969, 1
    %v1096 = vsel %vm316, %v1094, %v1095
    %v1097 = vrot.slane %v970, 1
    %v1098 = vrot.slane %v971, 1
    %v1099 = vsel %vm316, %v1097, %v1098
    %v1100 = vrot.slane %v972, 1
    %v1101 = vrot.slane %v973, 1
    %v1102 = vsel %vm316, %v1100, %v1101
    %v1103 = vrot.slane %v974, 1
    %v1104 = vrot.slane %v975, 1
    %v1105 = vsel %vm316, %v1103, %v1104
    %v1106 = vrot.slane %v976, 1
    %v1107 = vrot.slane %v977, 1
    %v1108 = vsel %vm316, %v1106, %v1107
    %v1109 = vrot.slane %v978, 1
    %v1110 = vrot.slane %v979, 1
    %v1111 = vsel %vm316, %v1109, %v1110
    %v1112 = vrot.slane %v980, 1
    %v1113 = vrot.slane %v981, 1
    %v1114 = vsel %vm316, %v1112, %v1113
    %v1115 = vrot.slane %v982, 1
    %v1116 = vrot.slane %v983, 1
    %v1117 = vsel %vm316, %v1115, %v1116
    %v1118 = vrot.slane %v984, 1
    %v1119 = vrot.slane %v985, 1
    %v1120 = vsel %vm316, %v1118, %v1119
    %v1121 = vrot.slane %v986, 1
    %v1122 = vrot.slane %v987, 1
    %v1123 = vsel %vm316, %v1121, %v1122
    %v1124 = vrot.slane %v988, 1
    %v1125 = vrot.slane %v989, 1
    %v1126 = vsel %vm316, %v1124, %v1125
    %v1127 = vrot.slane %v990, 1
    %v1128 = vrot.slane %v991, 1
    %v1129 = vsel %vm316, %v1127, %v1128
    %v1130 = vrot.slane %v992, 1
    %v1131 = vrot.slane %v993, 1
    %v1132 = vsel %vm316, %v1130, %v1131
    %v1133 = vrot.slane %v994, 1
    %v1134 = vrot.slane %v995, 1
    %v1135 = vsel %vm316, %v1133, %v1134
    %v1192 = vadd.f32 %v882, %v1054
    %v1193 = vadd.f32 %v883, %v1053
    %v1194 = vadd.f32 %v884, %v1057
    %v1195 = vadd.f32 %v885, %v1056
    %v1196 = vadd.f32 %v886, %v1060
    %v1197 = vadd.f32 %v887, %v1059
    %v1198 = vadd.f32 %v888, %v1063
    %v1199 = vadd.f32 %v889, %v1062
    %v1200 = vadd.f32 %v890, %v1066
    %v1201 = vadd.f32 %v891, %v1065
    %v1202 = vadd.f32 %v892, %v1069
    %v1203 = vadd.f32 %v893, %v1068
    %v1204 = vadd.f32 %v894, %v1072
    %v1205 = vadd.f32 %v895, %v1071
    %v1206 = vadd.f32 %v896, %v1075
    %v1207 = vadd.f32 %v897, %v1074
    %v1208 = vadd.f32 %v898, %v1078
    %v1209 = vadd.f32 %v899, %v1077
    %v1210 = vadd.f32 %v900, %v1081
    %v1211 = vadd.f32 %v901, %v1080
    %v1212 = vadd.f32 %v902, %v1084
    %v1213 = vadd.f32 %v903, %v1083
    %v1214 = vadd.f32 %v904, %v1087
    %v1215 = vadd.f32 %v905, %v1086
    %v1216 = vadd.f32 %v906, %v1090
    %v1217 = vadd.f32 %v907, %v1089
    %v1218 = vadd.f32 %v908, %v1093
    %v1219 = vadd.f32 %v909, %v1092
    %v1220 = vadd.f32 %v910, %v1096
    %v1221 = vadd.f32 %v911, %v1095
    %v1222 = vadd.f32 %v912, %v1099
    %v1223 = vadd.f32 %v913, %v1098
    %v1224 = vadd.f32 %v914, %v1102
    %v1225 = vadd.f32 %v915, %v1101
    %v1226 = vadd.f32 %v916, %v1105
    %v1227 = vadd.f32 %v917, %v1104
    %v1228 = vadd.f32 %v918, %v1108
    %v1229 = vadd.f32 %v919, %v1107
    %v1230 = vadd.f32 %v920, %v1111
    %v1231 = vadd.f32 %v921, %v1110
    %v1232 = vadd.f32 %v922, %v1114
    %v1233 = vadd.f32 %v923, %v1113
    %v1234 = vadd.f32 %v924, %v1117
    %v1235 = vadd.f32 %v925, %v1116
    %v1236 = vadd.f32 %v926, %v1120
    %v1237 = vadd.f32 %v927, %v1119
    %v1238 = vadd.f32 %v928, %v1123
    %v1239 = vadd.f32 %v929, %v1122
    %v1240 = vadd.f32 %v930, %v1126
    %v1241 = vadd.f32 %v931, %v1125
    %v1242 = vadd.f32 %v932, %v1129
    %v1243 = vadd.f32 %v933, %v1128
    %v1244 = vadd.f32 %v934, %v1132
    %v1245 = vadd.f32 %v935, %v1131
    %v1246 = vadd.f32 %v936, %v1135
    %v1247 = vadd.f32 %v937, %v1134
    %s1248 = sld [smem:[#allocation2 + $0x82]]
    %v1249 = vstv %s1248
    %v1250 = vmul.f32 %v1249, %v26
    %v1251 = vmul.f32 %v1249, %v27
    %v1252 = vmul.f32 %v1249, %v28
    %v1253 = vmul.f32 %v1249, %v29
    %v1254 = vmul.f32 %v1249, %v30
    %v1255 = vmul.f32 %v1249, %v31
    %v1256 = vmul.f32 %v1249, %v32
    %v1257 = vmul.f32 %v1249, %v33
    %v1258 = vmul.f32 %v1249, %v34
    %v1259 = vmul.f32 %v1249, %v35
    %v1260 = vmul.f32 %v1249, %v36
    %v1261 = vmul.f32 %v1249, %v37
    %v1262 = vmul.f32 %v1249, %v38
    %v1263 = vmul.f32 %v1249, %v39
    %v1264 = vmul.f32 %v1249, %v40
    %v1265 = vmul.f32 %v1249, %v41
    %v1266 = vmul.f32 %v1249, %v42
    %v1267 = vmul.f32 %v1249, %v43
    %v1268 = vmul.f32 %v1249, %v44
    %v1269 = vmul.f32 %v1249, %v45
    %v1270 = vmul.f32 %v1249, %v46
    %v1271 = vmul.f32 %v1249, %v47
    %v1272 = vmul.f32 %v1249, %v48
    %v1273 = vmul.f32 %v1249, %v49
    %v1274 = vmul.f32 %v1249, %v50
    %v1275 = vmul.f32 %v1249, %v51
    %v1276 = vmul.f32 %v1249, %v52
    %v1277 = vmul.f32 %v1249, %v53
    %v1278 = vmul.f32 %v1249, %v58
    %v1279 = vmul.f32 %v1249, %v59
    %v1280 = vmul.f32 %v1249, %v60
    %v1281 = vmul.f32 %v1249, %v61
    %v1282 = vmul.f32 %v1249, %v62
    %v1283 = vmul.f32 %v1249, %v63
    %v1284 = vmul.f32 %v1249, %v64
    %v1285 = vmul.f32 %v1249, %v65
    %v1286 = vmul.f32 %v1249, %v66
    %v1287 = vmul.f32 %v1249, %v67
    %v1288 = vmul.f32 %v1249, %v68
    %v1289 = vmul.f32 %v1249, %v69
    %v1290 = vmul.f32 %v1249, %v70
    %v1291 = vmul.f32 %v1249, %v71
    %v1292 = vmul.f32 %v1249, %v72
    %v1293 = vmul.f32 %v1249, %v73
    %v1294 = vmul.f32 %v1249, %v74
    %v1295 = vmul.f32 %v1249, %v75
    %v1296 = vmul.f32 %v1249, %v76
    %v1297 = vmul.f32 %v1249, %v77
    %v1298 = vmul.f32 %v1249, %v78
    %v1299 = vmul.f32 %v1249, %v79
    %v1300 = vmul.f32 %v1249, %v80
    %v1301 = vmul.f32 %v1249, %v81
    %v1302 = vmul.f32 %v1249, %v82
    %v1303 = vmul.f32 %v1249, %v83
    %v1304 = vmul.f32 %v1249, %v84
    %v1305 = vmul.f32 %v1249, %v85
    %v1362 = vrot.slane %v1250, 2
    %v1363 = vrot.slane %v1251, 2
    %v1364 = vsel %vm627, %v1362, %v1363
    %v1365 = vrot.slane %v1252, 2
    %v1366 = vrot.slane %v1253, 2
    %v1367 = vsel %vm627, %v1365, %v1366
    %v1368 = vrot.slane %v1254, 2
    %v1369 = vrot.slane %v1255, 2
    %v1370 = vsel %vm627, %v1368, %v1369
    %v1371 = vrot.slane %v1256, 2
    %v1372 = vrot.slane %v1257, 2
    %v1373 = vsel %vm627, %v1371, %v1372
    %v1374 = vrot.slane %v1258, 2
    %v1375 = vrot.slane %v1259, 2
    %v1376 = vsel %vm627, %v1374, %v1375
    %v1377 = vrot.slane %v1260, 2
    %v1378 = vrot.slane %v1261, 2
    %v1379 = vsel %vm627, %v1377, %v1378
    %v1380 = vrot.slane %v1262, 2
    %v1381 = vrot.slane %v1263, 2
    %v1382 = vsel %vm627, %v1380, %v1381
    %v1383 = vrot.slane %v1264, 2
    %v1384 = vrot.slane %v1265, 2
    %v1385 = vsel %vm627, %v1383, %v1384
    %v1386 = vrot.slane %v1266, 2
    %v1387 = vrot.slane %v1267, 2
    %v1388 = vsel %vm627, %v1386, %v1387
    %v1389 = vrot.slane %v1268, 2
    %v1390 = vrot.slane %v1269, 2
    %v1391 = vsel %vm627, %v1389, %v1390
    %v1392 = vrot.slane %v1270, 2
    %v1393 = vrot.slane %v1271, 2
    %v1394 = vsel %vm627, %v1392, %v1393
    %v1395 = vrot.slane %v1272, 2
    %v1396 = vrot.slane %v1273, 2
    %v1397 = vsel %vm627, %v1395, %v1396
    %v1398 = vrot.slane %v1274, 2
    %v1399 = vrot.slane %v1275, 2
    %v1400 = vsel %vm627, %v1398, %v1399
    %v1401 = vrot.slane %v1276, 2
    %v1402 = vrot.slane %v1277, 2
    %v1403 = vsel %vm627, %v1401, %v1402
    %v1404 = vrot.slane %v1278, 2
    %v1405 = vrot.slane %v1279, 2
    %v1406 = vsel %vm627, %v1404, %v1405
    %v1407 = vrot.slane %v1280, 2
    %v1408 = vrot.slane %v1281, 2
    %v1409 = vsel %vm627, %v1407, %v1408
    %v1410 = vrot.slane %v1282, 2
    %v1411 = vrot.slane %v1283, 2
    %v1412 = vsel %vm627, %v1410, %v1411
    %v1413 = vrot.slane %v1284, 2
    %v1414 = vrot.slane %v1285, 2
    %v1415 = vsel %vm627, %v1413, %v1414
    %v1416 = vrot.slane %v1286, 2
    %v1417 = vrot.slane %v1287, 2
    %v1418 = vsel %vm627, %v1416, %v1417
    %v1419 = vrot.slane %v1288, 2
    %v1420 = vrot.slane %v1289, 2
    %v1421 = vsel %vm627, %v1419, %v1420
    %v1422 = vrot.slane %v1290, 2
    %v1423 = vrot.slane %v1291, 2
    %v1424 = vsel %vm627, %v1422, %v1423
    %v1425 = vrot.slane %v1292, 2
    %v1426 = vrot.slane %v1293, 2
    %v1427 = vsel %vm627, %v1425, %v1426
    %v1428 = vrot.slane %v1294, 2
    %v1429 = vrot.slane %v1295, 2
    %v1430 = vsel %vm627, %v1428, %v1429
    %v1431 = vrot.slane %v1296, 2
    %v1432 = vrot.slane %v1297, 2
    %v1433 = vsel %vm627, %v1431, %v1432
    %v1434 = vrot.slane %v1298, 2
    %v1435 = vrot.slane %v1299, 2
    %v1436 = vsel %vm627, %v1434, %v1435
    %v1437 = vrot.slane %v1300, 2
    %v1438 = vrot.slane %v1301, 2
    %v1439 = vsel %vm627, %v1437, %v1438
    %v1440 = vrot.slane %v1302, 2
    %v1441 = vrot.slane %v1303, 2
    %v1442 = vsel %vm627, %v1440, %v1441
    %v1443 = vrot.slane %v1304, 2
    %v1444 = vrot.slane %v1305, 2
    %v1445 = vsel %vm627, %v1443, %v1444
    %v1502 = vadd.f32 %v1192, %v1364
    %v1503 = vadd.f32 %v1193, %v1363
    %v1504 = vadd.f32 %v1194, %v1367
    %v1505 = vadd.f32 %v1195, %v1366
    %v1506 = vadd.f32 %v1196, %v1370
    %v1507 = vadd.f32 %v1197, %v1369
    %v1508 = vadd.f32 %v1198, %v1373
    %v1509 = vadd.f32 %v1199, %v1372
    %v1510 = vadd.f32 %v1200, %v1376
    %v1511 = vadd.f32 %v1201, %v1375
    %v1512 = vadd.f32 %v1202, %v1379
    %v1513 = vadd.f32 %v1203, %v1378
    %v1514 = vadd.f32 %v1204, %v1382
    %v1515 = vadd.f32 %v1205, %v1381
    %v1516 = vadd.f32 %v1206, %v1385
    %v1517 = vadd.f32 %v1207, %v1384
    %v1518 = vadd.f32 %v1208, %v1388
    %v1519 = vadd.f32 %v1209, %v1387
    %v1520 = vadd.f32 %v1210, %v1391
    %v1521 = vadd.f32 %v1211, %v1390
    %v1522 = vadd.f32 %v1212, %v1394
    %v1523 = vadd.f32 %v1213, %v1393
    %v1524 = vadd.f32 %v1214, %v1397
    %v1525 = vadd.f32 %v1215, %v1396
    %v1526 = vadd.f32 %v1216, %v1400
    %v1527 = vadd.f32 %v1217, %v1399
    %v1528 = vadd.f32 %v1218, %v1403
    %v1529 = vadd.f32 %v1219, %v1402
    %v1530 = vadd.f32 %v1220, %v1406
    %v1531 = vadd.f32 %v1221, %v1405
    %v1532 = vadd.f32 %v1222, %v1409
    %v1533 = vadd.f32 %v1223, %v1408
    %v1534 = vadd.f32 %v1224, %v1412
    %v1535 = vadd.f32 %v1225, %v1411
    %v1536 = vadd.f32 %v1226, %v1415
    %v1537 = vadd.f32 %v1227, %v1414
    %v1538 = vadd.f32 %v1228, %v1418
    %v1539 = vadd.f32 %v1229, %v1417
    %v1540 = vadd.f32 %v1230, %v1421
    %v1541 = vadd.f32 %v1231, %v1420
    %v1542 = vadd.f32 %v1232, %v1424
    %v1543 = vadd.f32 %v1233, %v1423
    %v1544 = vadd.f32 %v1234, %v1427
    %v1545 = vadd.f32 %v1235, %v1426
    %v1546 = vadd.f32 %v1236, %v1430
    %v1547 = vadd.f32 %v1237, %v1429
    %v1548 = vadd.f32 %v1238, %v1433
    %v1549 = vadd.f32 %v1239, %v1432
    %v1550 = vadd.f32 %v1240, %v1436
    %v1551 = vadd.f32 %v1241, %v1435
    %v1552 = vadd.f32 %v1242, %v1439
    %v1553 = vadd.f32 %v1243, %v1438
    %v1554 = vadd.f32 %v1244, %v1442
    %v1555 = vadd.f32 %v1245, %v1441
    %v1556 = vadd.f32 %v1246, %v1445
    %v1557 = vadd.f32 %v1247, %v1444
    %s1558 = sld [smem:[#allocation2 + $0x100]]
    %v1559 = vstv %s1558
    %v1560 = vmul.f32 %v1559, %v28
    %v1561 = vmul.f32 %v1559, %v29
    %v1562 = vmul.f32 %v1559, %v30
    %v1563 = vmul.f32 %v1559, %v31
    %v1564 = vmul.f32 %v1559, %v32
    %v1565 = vmul.f32 %v1559, %v33
    %v1566 = vmul.f32 %v1559, %v34
    %v1567 = vmul.f32 %v1559, %v35
    %v1568 = vmul.f32 %v1559, %v36
    %v1569 = vmul.f32 %v1559, %v37
    %v1570 = vmul.f32 %v1559, %v38
    %v1571 = vmul.f32 %v1559, %v39
    %v1572 = vmul.f32 %v1559, %v40
    %v1573 = vmul.f32 %v1559, %v41
    %v1574 = vmul.f32 %v1559, %v42
    %v1575 = vmul.f32 %v1559, %v43
    %v1576 = vmul.f32 %v1559, %v44
    %v1577 = vmul.f32 %v1559, %v45
    %v1578 = vmul.f32 %v1559, %v46
    %v1579 = vmul.f32 %v1559, %v47
    %v1580 = vmul.f32 %v1559, %v48
    %v1581 = vmul.f32 %v1559, %v49
    %v1582 = vmul.f32 %v1559, %v50
    %v1583 = vmul.f32 %v1559, %v51
    %v1584 = vmul.f32 %v1559, %v52
    %v1585 = vmul.f32 %v1559, %v53
    %v1586 = vmul.f32 %v1559, %v54
    %v1587 = vmul.f32 %v1559, %v55
    %v1588 = vmul.f32 %v1559, %v60
    %v1589 = vmul.f32 %v1559, %v61
    %v1590 = vmul.f32 %v1559, %v62
    %v1591 = vmul.f32 %v1559, %v63
    %v1592 = vmul.f32 %v1559, %v64
    %v1593 = vmul.f32 %v1559, %v65
    %v1594 = vmul.f32 %v1559, %v66
    %v1595 = vmul.f32 %v1559, %v67
    %v1596 = vmul.f32 %v1559, %v68
    %v1597 = vmul.f32 %v1559, %v69
    %v1598 = vmul.f32 %v1559, %v70
    %v1599 = vmul.f32 %v1559, %v71
    %v1600 = vmul.f32 %v1559, %v72
    %v1601 = vmul.f32 %v1559, %v73
    %v1602 = vmul.f32 %v1559, %v74
    %v1603 = vmul.f32 %v1559, %v75
    %v1604 = vmul.f32 %v1559, %v76
    %v1605 = vmul.f32 %v1559, %v77
    %v1606 = vmul.f32 %v1559, %v78
    %v1607 = vmul.f32 %v1559, %v79
    %v1608 = vmul.f32 %v1559, %v80
    %v1609 = vmul.f32 %v1559, %v81
    %v1610 = vmul.f32 %v1559, %v82
    %v1611 = vmul.f32 %v1559, %v83
    %v1612 = vmul.f32 %v1559, %v84
    %v1613 = vmul.f32 %v1559, %v85
    %v1614 = vmul.f32 %v1559, %v86
    %v1615 = vmul.f32 %v1559, %v87
    %v1616 = vadd.f32 %v1502, %v1560
    %v1617 = vadd.f32 %v1503, %v1561
    %v1618 = vadd.f32 %v1504, %v1562
    %v1619 = vadd.f32 %v1505, %v1563
    %v1620 = vadd.f32 %v1506, %v1564
    %v1621 = vadd.f32 %v1507, %v1565
    %v1622 = vadd.f32 %v1508, %v1566
    %v1623 = vadd.f32 %v1509, %v1567
    %v1624 = vadd.f32 %v1510, %v1568
    %v1625 = vadd.f32 %v1511, %v1569
    %v1626 = vadd.f32 %v1512, %v1570
    %v1627 = vadd.f32 %v1513, %v1571
    %v1628 = vadd.f32 %v1514, %v1572
    %v1629 = vadd.f32 %v1515, %v1573
    %v1630 = vadd.f32 %v1516, %v1574
    %v1631 = vadd.f32 %v1517, %v1575
    %v1632 = vadd.f32 %v1518, %v1576
    %v1633 = vadd.f32 %v1519, %v1577
    %v1634 = vadd.f32 %v1520, %v1578
    %v1635 = vadd.f32 %v1521, %v1579
    %v1636 = vadd.f32 %v1522, %v1580
    %v1637 = vadd.f32 %v1523, %v1581
    %v1638 = vadd.f32 %v1524, %v1582
    %v1639 = vadd.f32 %v1525, %v1583
    %v1640 = vadd.f32 %v1526, %v1584
    %v1641 = vadd.f32 %v1527, %v1585
    %v1642 = vadd.f32 %v1528, %v1586
    %v1643 = vadd.f32 %v1529, %v1587
    %v1644 = vadd.f32 %v1530, %v1588
    %v1645 = vadd.f32 %v1531, %v1589
    %v1646 = vadd.f32 %v1532, %v1590
    %v1647 = vadd.f32 %v1533, %v1591
    %v1648 = vadd.f32 %v1534, %v1592
    %v1649 = vadd.f32 %v1535, %v1593
    %v1650 = vadd.f32 %v1536, %v1594
    %v1651 = vadd.f32 %v1537, %v1595
    %v1652 = vadd.f32 %v1538, %v1596
    %v1653 = vadd.f32 %v1539, %v1597
    %v1654 = vadd.f32 %v1540, %v1598
    %v1655 = vadd.f32 %v1541, %v1599
    %v1656 = vadd.f32 %v1542, %v1600
    %v1657 = vadd.f32 %v1543, %v1601
    %v1658 = vadd.f32 %v1544, %v1602
    %v1659 = vadd.f32 %v1545, %v1603
    %v1660 = vadd.f32 %v1546, %v1604
    %v1661 = vadd.f32 %v1547, %v1605
    %v1662 = vadd.f32 %v1548, %v1606
    %v1663 = vadd.f32 %v1549, %v1607
    %v1664 = vadd.f32 %v1550, %v1608
    %v1665 = vadd.f32 %v1551, %v1609
    %v1666 = vadd.f32 %v1552, %v1610
    %v1667 = vadd.f32 %v1553, %v1611
    %v1668 = vadd.f32 %v1554, %v1612
    %v1669 = vadd.f32 %v1555, %v1613
    %v1670 = vadd.f32 %v1556, %v1614
    %v1671 = vadd.f32 %v1557, %v1615
    %s1672 = sld [smem:[#allocation2 + $0x101]]
    %v1673 = vstv %s1672
    %v1674 = vmul.f32 %v1673, %v28
    %v1675 = vmul.f32 %v1673, %v29
    %v1676 = vmul.f32 %v1673, %v30
    %v1677 = vmul.f32 %v1673, %v31
    %v1678 = vmul.f32 %v1673, %v32
    %v1679 = vmul.f32 %v1673, %v33
    %v1680 = vmul.f32 %v1673, %v34
    %v1681 = vmul.f32 %v1673, %v35
    %v1682 = vmul.f32 %v1673, %v36
    %v1683 = vmul.f32 %v1673, %v37
    %v1684 = vmul.f32 %v1673, %v38
    %v1685 = vmul.f32 %v1673, %v39
    %v1686 = vmul.f32 %v1673, %v40
    %v1687 = vmul.f32 %v1673, %v41
    %v1688 = vmul.f32 %v1673, %v42
    %v1689 = vmul.f32 %v1673, %v43
    %v1690 = vmul.f32 %v1673, %v44
    %v1691 = vmul.f32 %v1673, %v45
    %v1692 = vmul.f32 %v1673, %v46
    %v1693 = vmul.f32 %v1673, %v47
    %v1694 = vmul.f32 %v1673, %v48
    %v1695 = vmul.f32 %v1673, %v49
    %v1696 = vmul.f32 %v1673, %v50
    %v1697 = vmul.f32 %v1673, %v51
    %v1698 = vmul.f32 %v1673, %v52
    %v1699 = vmul.f32 %v1673, %v53
    %v1700 = vmul.f32 %v1673, %v54
    %v1701 = vmul.f32 %v1673, %v55
    %v1702 = vmul.f32 %v1673, %v60
    %v1703 = vmul.f32 %v1673, %v61
    %v1704 = vmul.f32 %v1673, %v62
    %v1705 = vmul.f32 %v1673, %v63
    %v1706 = vmul.f32 %v1673, %v64
    %v1707 = vmul.f32 %v1673, %v65
    %v1708 = vmul.f32 %v1673, %v66
    %v1709 = vmul.f32 %v1673, %v67
    %v1710 = vmul.f32 %v1673, %v68
    %v1711 = vmul.f32 %v1673, %v69
    %v1712 = vmul.f32 %v1673, %v70
    %v1713 = vmul.f32 %v1673, %v71
    %v1714 = vmul.f32 %v1673, %v72
    %v1715 = vmul.f32 %v1673, %v73
    %v1716 = vmul.f32 %v1673, %v74
    %v1717 = vmul.f32 %v1673, %v75
    %v1718 = vmul.f32 %v1673, %v76
    %v1719 = vmul.f32 %v1673, %v77
    %v1720 = vmul.f32 %v1673, %v78
    %v1721 = vmul.f32 %v1673, %v79
    %v1722 = vmul.f32 %v1673, %v80
    %v1723 = vmul.f32 %v1673, %v81
    %v1724 = vmul.f32 %v1673, %v82
    %v1725 = vmul.f32 %v1673, %v83
    %v1726 = vmul.f32 %v1673, %v84
    %v1727 = vmul.f32 %v1673, %v85
    %v1728 = vmul.f32 %v1673, %v86
    %v1729 = vmul.f32 %v1673, %v87
    %v1786 = vrot.slane %v1674, 1
    %v1787 = vrot.slane %v1675, 1
    %v1788 = vsel %vm316, %v1786, %v1787
    %v1789 = vrot.slane %v1676, 1
    %v1790 = vrot.slane %v1677, 1
    %v1791 = vsel %vm316, %v1789, %v1790
    %v1792 = vrot.slane %v1678, 1
    %v1793 = vrot.slane %v1679, 1
    %v1794 = vsel %vm316, %v1792, %v1793
    %v1795 = vrot.slane %v1680, 1
    %v1796 = vrot.slane %v1681, 1
    %v1797 = vsel %vm316, %v1795, %v1796
    %v1798 = vrot.slane %v1682, 1
    %v1799 = vrot.slane %v1683, 1
    %v1800 = vsel %vm316, %v1798, %v1799
    %v1801 = vrot.slane %v1684, 1
    %v1802 = vrot.slane %v1685, 1
    %v1803 = vsel %vm316, %v1801, %v1802
    %v1804 = vrot.slane %v1686, 1
    %v1805 = vrot.slane %v1687, 1
    %v1806 = vsel %vm316, %v1804, %v1805
    %v1807 = vrot.slane %v1688, 1
    %v1808 = vrot.slane %v1689, 1
    %v1809 = vsel %vm316, %v1807, %v1808
    %v1810 = vrot.slane %v1690, 1
    %v1811 = vrot.slane %v1691, 1
    %v1812 = vsel %vm316, %v1810, %v1811
    %v1813 = vrot.slane %v1692, 1
    %v1814 = vrot.slane %v1693, 1
    %v1815 = vsel %vm316, %v1813, %v1814
    %v1816 = vrot.slane %v1694, 1
    %v1817 = vrot.slane %v1695, 1
    %v1818 = vsel %vm316, %v1816, %v1817
    %v1819 = vrot.slane %v1696, 1
    %v1820 = vrot.slane %v1697, 1
    %v1821 = vsel %vm316, %v1819, %v1820
    %v1822 = vrot.slane %v1698, 1
    %v1823 = vrot.slane %v1699, 1
    %v1824 = vsel %vm316, %v1822, %v1823
    %v1825 = vrot.slane %v1700, 1
    %v1826 = vrot.slane %v1701, 1
    %v1827 = vsel %vm316, %v1825, %v1826
    %v1828 = vrot.slane %v1702, 1
    %v1829 = vrot.slane %v1703, 1
    %v1830 = vsel %vm316, %v1828, %v1829
    %v1831 = vrot.slane %v1704, 1
    %v1832 = vrot.slane %v1705, 1
    %v1833 = vsel %vm316, %v1831, %v1832
    %v1834 = vrot.slane %v1706, 1
    %v1835 = vrot.slane %v1707, 1
    %v1836 = vsel %vm316, %v1834, %v1835
    %v1837 = vrot.slane %v1708, 1
    %v1838 = vrot.slane %v1709, 1
    %v1839 = vsel %vm316, %v1837, %v1838
    %v1840 = vrot.slane %v1710, 1
    %v1841 = vrot.slane %v1711, 1
    %v1842 = vsel %vm316, %v1840, %v1841
    %v1843 = vrot.slane %v1712, 1
    %v1844 = vrot.slane %v1713, 1
    %v1845 = vsel %vm316, %v1843, %v1844
    %v1846 = vrot.slane %v1714, 1
    %v1847 = vrot.slane %v1715, 1
    %v1848 = vsel %vm316, %v1846, %v1847
    %v1849 = vrot.slane %v1716, 1
    %v1850 = vrot.slane %v1717, 1
    %v1851 = vsel %vm316, %v1849, %v1850
    %v1852 = vrot.slane %v1718, 1
    %v1853 = vrot.slane %v1719, 1
    %v1854 = vsel %vm316, %v1852, %v1853
    %v1855 = vrot.slane %v1720, 1
    %v1856 = vrot.slane %v1721, 1
    %v1857 = vsel %vm316, %v1855, %v1856
    %v1858 = vrot.slane %v1722, 1
    %v1859 = vrot.slane %v1723, 1
    %v1860 = vsel %vm316, %v1858, %v1859
    %v1861 = vrot.slane %v1724, 1
    %v1862 = vrot.slane %v1725, 1
    %v1863 = vsel %vm316, %v1861, %v1862
    %v1864 = vrot.slane %v1726, 1
    %v1865 = vrot.slane %v1727, 1
    %v1866 = vsel %vm316, %v1864, %v1865
    %v1867 = vrot.slane %v1728, 1
    %v1868 = vrot.slane %v1729, 1
    %v1869 = vsel %vm316, %v1867, %v1868
    %v1926 = vadd.f32 %v1616, %v1788
    %v1927 = vadd.f32 %v1617, %v1787
    %v1928 = vadd.f32 %v1618, %v1791
    %v1929 = vadd.f32 %v1619, %v1790
    %v1930 = vadd.f32 %v1620, %v1794
    %v1931 = vadd.f32 %v1621, %v1793
    %v1932 = vadd.f32 %v1622, %v1797
    %v1933 = vadd.f32 %v1623, %v1796
    %v1934 = vadd.f32 %v1624, %v1800
    %v1935 = vadd.f32 %v1625, %v1799
    %v1936 = vadd.f32 %v1626, %v1803
    %v1937 = vadd.f32 %v1627, %v1802
    %v1938 = vadd.f32 %v1628, %v1806
    %v1939 = vadd.f32 %v1629, %v1805
    %v1940 = vadd.f32 %v1630, %v1809
    %v1941 = vadd.f32 %v1631, %v1808
    %v1942 = vadd.f32 %v1632, %v1812
    %v1943 = vadd.f32 %v1633, %v1811
    %v1944 = vadd.f32 %v1634, %v1815
    %v1945 = vadd.f32 %v1635, %v1814
    %v1946 = vadd.f32 %v1636, %v1818
    %v1947 = vadd.f32 %v1637, %v1817
    %v1948 = vadd.f32 %v1638, %v1821
    %v1949 = vadd.f32 %v1639, %v1820
    %v1950 = vadd.f32 %v1640, %v1824
    %v1951 = vadd.f32 %v1641, %v1823
    %v1952 = vadd.f32 %v1642, %v1827
    %v1953 = vadd.f32 %v1643, %v1826
    %v1954 = vadd.f32 %v1644, %v1830
    %v1955 = vadd.f32 %v1645, %v1829
    %v1956 = vadd.f32 %v1646, %v1833
    %v1957 = vadd.f32 %v1647, %v1832
    %v1958 = vadd.f32 %v1648, %v1836
    %v1959 = vadd.f32 %v1649, %v1835
    %v1960 = vadd.f32 %v1650, %v1839
    %v1961 = vadd.f32 %v1651, %v1838
    %v1962 = vadd.f32 %v1652, %v1842
    %v1963 = vadd.f32 %v1653, %v1841
    %v1964 = vadd.f32 %v1654, %v1845
    %v1965 = vadd.f32 %v1655, %v1844
    %v1966 = vadd.f32 %v1656, %v1848
    %v1967 = vadd.f32 %v1657, %v1847
    %v1968 = vadd.f32 %v1658, %v1851
    %v1969 = vadd.f32 %v1659, %v1850
    %v1970 = vadd.f32 %v1660, %v1854
    %v1971 = vadd.f32 %v1661, %v1853
    %v1972 = vadd.f32 %v1662, %v1857
    %v1973 = vadd.f32 %v1663, %v1856
    %v1974 = vadd.f32 %v1664, %v1860
    %v1975 = vadd.f32 %v1665, %v1859
    %v1976 = vadd.f32 %v1666, %v1863
    %v1977 = vadd.f32 %v1667, %v1862
    %v1978 = vadd.f32 %v1668, %v1866
    %v1979 = vadd.f32 %v1669, %v1865
    %v1980 = vadd.f32 %v1670, %v1869
    %v1981 = vadd.f32 %v1671, %v1868
    %s1982 = sld [smem:[#allocation2 + $0x102]]
    %v1983 = vstv %s1982
    %v1984 = vmul.f32 %v1983, %v28
    %v1985 = vmul.f32 %v1983, %v29
    %v1986 = vmul.f32 %v1983, %v30
    %v1987 = vmul.f32 %v1983, %v31
    %v1988 = vmul.f32 %v1983, %v32
    %v1989 = vmul.f32 %v1983, %v33
    %v1990 = vmul.f32 %v1983, %v34
    %v1991 = vmul.f32 %v1983, %v35
    %v1992 = vmul.f32 %v1983, %v36
    %v1993 = vmul.f32 %v1983, %v37
    %v1994 = vmul.f32 %v1983, %v38
    %v1995 = vmul.f32 %v1983, %v39
    %v1996 = vmul.f32 %v1983, %v40
    %v1997 = vmul.f32 %v1983, %v41
    %v1998 = vmul.f32 %v1983, %v42
    %v1999 = vmul.f32 %v1983, %v43
    %v2000 = vmul.f32 %v1983, %v44
    %v2001 = vmul.f32 %v1983, %v45
    %v2002 = vmul.f32 %v1983, %v46
    %v2003 = vmul.f32 %v1983, %v47
    %v2004 = vmul.f32 %v1983, %v48
    %v2005 = vmul.f32 %v1983, %v49
    %v2006 = vmul.f32 %v1983, %v50
    %v2007 = vmul.f32 %v1983, %v51
    %v2008 = vmul.f32 %v1983, %v52
    %v2009 = vmul.f32 %v1983, %v53
    %v2010 = vmul.f32 %v1983, %v54
    %v2011 = vmul.f32 %v1983, %v55
    %v2012 = vmul.f32 %v1983, %v60
    %v2013 = vmul.f32 %v1983, %v61
    %v2014 = vmul.f32 %v1983, %v62
    %v2015 = vmul.f32 %v1983, %v63
    %v2016 = vmul.f32 %v1983, %v64
    %v2017 = vmul.f32 %v1983, %v65
    %v2018 = vmul.f32 %v1983, %v66
    %v2019 = vmul.f32 %v1983, %v67
    %v2020 = vmul.f32 %v1983, %v68
    %v2021 = vmul.f32 %v1983, %v69
    %v2022 = vmul.f32 %v1983, %v70
    %v2023 = vmul.f32 %v1983, %v71
    %v2024 = vmul.f32 %v1983, %v72
    %v2025 = vmul.f32 %v1983, %v73
    %v2026 = vmul.f32 %v1983, %v74
    %v2027 = vmul.f32 %v1983, %v75
    %v2028 = vmul.f32 %v1983, %v76
    %v2029 = vmul.f32 %v1983, %v77
    %v2030 = vmul.f32 %v1983, %v78
    %v2031 = vmul.f32 %v1983, %v79
    %v2032 = vmul.f32 %v1983, %v80
    %v2033 = vmul.f32 %v1983, %v81
    %v2034 = vmul.f32 %v1983, %v82
    %v2035 = vmul.f32 %v1983, %v83
    %v2036 = vmul.f32 %v1983, %v84
    %v2037 = vmul.f32 %v1983, %v85
    %v2038 = vmul.f32 %v1983, %v86
    %v2039 = vmul.f32 %v1983, %v87
    %v2096 = vrot.slane %v1984, 2
    %v2097 = vrot.slane %v1985, 2
    %v2098 = vsel %vm627, %v2096, %v2097
    %v2099 = vrot.slane %v1986, 2
    %v2100 = vrot.slane %v1987, 2
    %v2101 = vsel %vm627, %v2099, %v2100
    %v2102 = vrot.slane %v1988, 2
    %v2103 = vrot.slane %v1989, 2
    %v2104 = vsel %vm627, %v2102, %v2103
    %v2105 = vrot.slane %v1990, 2
    %v2106 = vrot.slane %v1991, 2
    %v2107 = vsel %vm627, %v2105, %v2106
    %v2108 = vrot.slane %v1992, 2
    %v2109 = vrot.slane %v1993, 2
    %v2110 = vsel %vm627, %v2108, %v2109
    %v2111 = vrot.slane %v1994, 2
    %v2112 = vrot.slane %v1995, 2
    %v2113 = vsel %vm627, %v2111, %v2112
    %v2114 = vrot.slane %v1996, 2
    %v2115 = vrot.slane %v1997, 2
    %v2116 = vsel %vm627, %v2114, %v2115
    %v2117 = vrot.slane %v1998, 2
    %v2118 = vrot.slane %v1999, 2
    %v2119 = vsel %vm627, %v2117, %v2118
    %v2120 = vrot.slane %v2000, 2
    %v2121 = vrot.slane %v2001, 2
    %v2122 = vsel %vm627, %v2120, %v2121
    %v2123 = vrot.slane %v2002, 2
    %v2124 = vrot.slane %v2003, 2
    %v2125 = vsel %vm627, %v2123, %v2124
    %v2126 = vrot.slane %v2004, 2
    %v2127 = vrot.slane %v2005, 2
    %v2128 = vsel %vm627, %v2126, %v2127
    %v2129 = vrot.slane %v2006, 2
    %v2130 = vrot.slane %v2007, 2
    %v2131 = vsel %vm627, %v2129, %v2130
    %v2132 = vrot.slane %v2008, 2
    %v2133 = vrot.slane %v2009, 2
    %v2134 = vsel %vm627, %v2132, %v2133
    %v2135 = vrot.slane %v2010, 2
    %v2136 = vrot.slane %v2011, 2
    %v2137 = vsel %vm627, %v2135, %v2136
    %v2138 = vrot.slane %v2012, 2
    %v2139 = vrot.slane %v2013, 2
    %v2140 = vsel %vm627, %v2138, %v2139
    %v2141 = vrot.slane %v2014, 2
    %v2142 = vrot.slane %v2015, 2
    %v2143 = vsel %vm627, %v2141, %v2142
    %v2144 = vrot.slane %v2016, 2
    %v2145 = vrot.slane %v2017, 2
    %v2146 = vsel %vm627, %v2144, %v2145
    %v2147 = vrot.slane %v2018, 2
    %v2148 = vrot.slane %v2019, 2
    %v2149 = vsel %vm627, %v2147, %v2148
    %v2150 = vrot.slane %v2020, 2
    %v2151 = vrot.slane %v2021, 2
    %v2152 = vsel %vm627, %v2150, %v2151
    %v2153 = vrot.slane %v2022, 2
    %v2154 = vrot.slane %v2023, 2
    %v2155 = vsel %vm627, %v2153, %v2154
    %v2156 = vrot.slane %v2024, 2
    %v2157 = vrot.slane %v2025, 2
    %v2158 = vsel %vm627, %v2156, %v2157
    %v2159 = vrot.slane %v2026, 2
    %v2160 = vrot.slane %v2027, 2
    %v2161 = vsel %vm627, %v2159, %v2160
    %v2162 = vrot.slane %v2028, 2
    %v2163 = vrot.slane %v2029, 2
    %v2164 = vsel %vm627, %v2162, %v2163
    %v2165 = vrot.slane %v2030, 2
    %v2166 = vrot.slane %v2031, 2
    %v2167 = vsel %vm627, %v2165, %v2166
    %v2168 = vrot.slane %v2032, 2
    %v2169 = vrot.slane %v2033, 2
    %v2170 = vsel %vm627, %v2168, %v2169
    %v2171 = vrot.slane %v2034, 2
    %v2172 = vrot.slane %v2035, 2
    %v2173 = vsel %vm627, %v2171, %v2172
    %v2174 = vrot.slane %v2036, 2
    %v2175 = vrot.slane %v2037, 2
    %v2176 = vsel %vm627, %v2174, %v2175
    %v2177 = vrot.slane %v2038, 2
    %v2178 = vrot.slane %v2039, 2
    %v2179 = vsel %vm627, %v2177, %v2178
    %v2236 = vadd.f32 %v1926, %v2098
    %v2237 = vadd.f32 %v1927, %v2097
    %v2238 = vadd.f32 %v1928, %v2101
    %v2239 = vadd.f32 %v1929, %v2100
    %v2240 = vadd.f32 %v1930, %v2104
    %v2241 = vadd.f32 %v1931, %v2103
    %v2242 = vadd.f32 %v1932, %v2107
    %v2243 = vadd.f32 %v1933, %v2106
    %v2244 = vadd.f32 %v1934, %v2110
    %v2245 = vadd.f32 %v1935, %v2109
    %v2246 = vadd.f32 %v1936, %v2113
    %v2247 = vadd.f32 %v1937, %v2112
    %v2248 = vadd.f32 %v1938, %v2116
    %v2249 = vadd.f32 %v1939, %v2115
    %v2250 = vadd.f32 %v1940, %v2119
    %v2251 = vadd.f32 %v1941, %v2118
    %v2252 = vadd.f32 %v1942, %v2122
    %v2253 = vadd.f32 %v1943, %v2121
    %v2254 = vadd.f32 %v1944, %v2125
    %v2255 = vadd.f32 %v1945, %v2124
    %v2256 = vadd.f32 %v1946, %v2128
    %v2257 = vadd.f32 %v1947, %v2127
    %v2258 = vadd.f32 %v1948, %v2131
    %v2259 = vadd.f32 %v1949, %v2130
    %v2260 = vadd.f32 %v1950, %v2134
    %v2261 = vadd.f32 %v1951, %v2133
    %v2262 = vadd.f32 %v1952, %v2137
    %v2263 = vadd.f32 %v1953, %v2136
    %v2264 = vadd.f32 %v1954, %v2140
    %v2265 = vadd.f32 %v1955, %v2139
    %v2266 = vadd.f32 %v1956, %v2143
    %v2267 = vadd.f32 %v1957, %v2142
    %v2268 = vadd.f32 %v1958, %v2146
    %v2269 = vadd.f32 %v1959, %v2145
    %v2270 = vadd.f32 %v1960, %v2149
    %v2271 = vadd.f32 %v1961, %v2148
    %v2272 = vadd.f32 %v1962, %v2152
    %v2273 = vadd.f32 %v1963, %v2151
    %v2274 = vadd.f32 %v1964, %v2155
    %v2275 = vadd.f32 %v1965, %v2154
    %v2276 = vadd.f32 %v1966, %v2158
    %v2277 = vadd.f32 %v1967, %v2157
    %v2278 = vadd.f32 %v1968, %v2161
    %v2279 = vadd.f32 %v1969, %v2160
    %v2280 = vadd.f32 %v1970, %v2164
    %v2281 = vadd.f32 %v1971, %v2163
    %v2282 = vadd.f32 %v1972, %v2167
    %v2283 = vadd.f32 %v1973, %v2166
    %v2284 = vadd.f32 %v1974, %v2170
    %v2285 = vadd.f32 %v1975, %v2169
    %v2286 = vadd.f32 %v1976, %v2173
    %v2287 = vadd.f32 %v1977, %v2172
    %v2288 = vadd.f32 %v1978, %v2176
    %v2289 = vadd.f32 %v1979, %v2175
    %v2290 = vadd.f32 %v1980, %v2179
    %v2291 = vadd.f32 %v1981, %v2178
    %vm2292 = vcmask 523264
    %2293 = vst.msk [vmem:[%s2] sm:$0xff] %vm2292, %v2236
    %vm2294 = vcmask 521216
    %2295 = vst.msk [vmem:[%s2 + $0x8] sm:$0x3f] %vm2294, %v2237
    %2296 = vst.msk [vmem:[%s2 + $0x10] sm:$0xff] %vm2292, %v2238
    %2297 = vst.msk [vmem:[%s2 + $0x18] sm:$0x3f] %vm2294, %v2239
    %2298 = vst.msk [vmem:[%s2 + $0x20] sm:$0xff] %vm2292, %v2240
    %2299 = vst.msk [vmem:[%s2 + $0x28] sm:$0x3f] %vm2294, %v2241
    %2300 = vst.msk [vmem:[%s2 + $0x30] sm:$0xff] %vm2292, %v2242
    %2301 = vst.msk [vmem:[%s2 + $0x38] sm:$0x3f] %vm2294, %v2243
    %2302 = vst.msk [vmem:[%s2 + $0x40] sm:$0xff] %vm2292, %v2244
    %2303 = vst.msk [vmem:[%s2 + $0x48] sm:$0x3f] %vm2294, %v2245
    %2304 = vst.msk [vmem:[%s2 + $0x50] sm:$0xff] %vm2292, %v2246
    %2305 = vst.msk [vmem:[%s2 + $0x58] sm:$0x3f] %vm2294, %v2247
    %2306 = vst.msk [vmem:[%s2 + $0x60] sm:$0xff] %vm2292, %v2248
    %2307 = vst.msk [vmem:[%s2 + $0x68] sm:$0x3f] %vm2294, %v2249
    %2308 = vst.msk [vmem:[%s2 + $0x70] sm:$0xff] %vm2292, %v2250
    %2309 = vst.msk [vmem:[%s2 + $0x78] sm:$0x3f] %vm2294, %v2251
    %2310 = vst.msk [vmem:[%s2 + $0x80] sm:$0xff] %vm2292, %v2252
    %2311 = vst.msk [vmem:[%s2 + $0x88] sm:$0x3f] %vm2294, %v2253
    %2312 = vst.msk [vmem:[%s2 + $0x90] sm:$0xff] %vm2292, %v2254
    %2313 = vst.msk [vmem:[%s2 + $0x98] sm:$0x3f] %vm2294, %v2255
    %2314 = vst.msk [vmem:[%s2 + $0xa0] sm:$0xff] %vm2292, %v2256
    %2315 = vst.msk [vmem:[%s2 + $0xa8] sm:$0x3f] %vm2294, %v2257
    %2316 = vst.msk [vmem:[%s2 + $0xb0] sm:$0xff] %vm2292, %v2258
    %2317 = vst.msk [vmem:[%s2 + $0xb8] sm:$0x3f] %vm2294, %v2259
    %2318 = vst.msk [vmem:[%s2 + $0xc0] sm:$0xff] %vm2292, %v2260
    %2319 = vst.msk [vmem:[%s2 + $0xc8] sm:$0x3f] %vm2294, %v2261
    %2320 = vst.msk [vmem:[%s2 + $0xd0] sm:$0xff] %vm2292, %v2262
    %2321 = vst.msk [vmem:[%s2 + $0xd8] sm:$0x3f] %vm2294, %v2263
    %2322 = vst.msk [vmem:[%s2 + $0xe0] sm:$0xff] %vm2292, %v2264
    %2323 = vst.msk [vmem:[%s2 + $0xe8] sm:$0x3f] %vm2294, %v2265
    %2324 = vst.msk [vmem:[%s2 + $0xf0] sm:$0xff] %vm2292, %v2266
    %2325 = vst.msk [vmem:[%s2 + $0xf8] sm:$0x3f] %vm2294, %v2267
    %2326 = vst.msk [vmem:[%s2 + $0x100] sm:$0xff] %vm2292, %v2268
    %2327 = vst.msk [vmem:[%s2 + $0x108] sm:$0x3f] %vm2294, %v2269
    %2328 = vst.msk [vmem:[%s2 + $0x110] sm:$0xff] %vm2292, %v2270
    %2329 = vst.msk [vmem:[%s2 + $0x118] sm:$0x3f] %vm2294, %v2271
    %2330 = vst.msk [vmem:[%s2 + $0x120] sm:$0xff] %vm2292, %v2272
    %2331 = vst.msk [vmem:[%s2 + $0x128] sm:$0x3f] %vm2294, %v2273
    %2332 = vst.msk [vmem:[%s2 + $0x130] sm:$0xff] %vm2292, %v2274
    %2333 = vst.msk [vmem:[%s2 + $0x138] sm:$0x3f] %vm2294, %v2275
    %2334 = vst.msk [vmem:[%s2 + $0x140] sm:$0xff] %vm2292, %v2276
    %2335 = vst.msk [vmem:[%s2 + $0x148] sm:$0x3f] %vm2294, %v2277
    %2336 = vst.msk [vmem:[%s2 + $0x150] sm:$0xff] %vm2292, %v2278
    %2337 = vst.msk [vmem:[%s2 + $0x158] sm:$0x3f] %vm2294, %v2279
    %2338 = vst.msk [vmem:[%s2 + $0x160] sm:$0xff] %vm2292, %v2280
    %2339 = vst.msk [vmem:[%s2 + $0x168] sm:$0x3f] %vm2294, %v2281
    %2340 = vst.msk [vmem:[%s2 + $0x170] sm:$0xff] %vm2292, %v2282
    %2341 = vst.msk [vmem:[%s2 + $0x178] sm:$0x3f] %vm2294, %v2283
    %2342 = vst.msk [vmem:[%s2 + $0x180] sm:$0xff] %vm2292, %v2284
    %2343 = vst.msk [vmem:[%s2 + $0x188] sm:$0x3f] %vm2294, %v2285
    %2344 = vst.msk [vmem:[%s2 + $0x190] sm:$0xff] %vm2292, %v2286
    %2345 = vst.msk [vmem:[%s2 + $0x198] sm:$0x3f] %vm2294, %v2287
    %2346 = vst.msk [vmem:[%s2 + $0x1a0] sm:$0xff] %vm2292, %v2288
    %2347 = vst.msk [vmem:[%s2 + $0x1a8] sm:$0x3f] %vm2294, %v2289
    %2348 = vst.msk [vmem:[%s2 + $0x1b0] sm:$0xff] %vm2292, %v2290
    %2349 = vst.msk [vmem:[%s2 + $0x1b8] sm:$0x3f] %vm2294, %v2291
    // Predicated region
    $region14: #{net_forward.32} parent=1 // pred_check
      _
    $region15: #{net_forward.32} parent=1 // pred_check_branch
      %2351 = sbr.rel (0) target = $region17
    $region16: #{net_forward.32} parent=1 // pred_region
      _
    $region17: #{net_forward.32} parent=1 // pred_fallthru
      _
    // Predicated region
    $region18: #{net_forward.32} parent=1 // pred_check
      _
    $region19: #{net_forward.32} parent=1 // pred_check_branch
      %2353 = sbr.rel (0) target = $region21
    $region20: #{net_forward.32} parent=1 // pred_region
      _
    $region21: #{net_forward.32} parent=1 // pred_fallthru
      _
    %2354 = vsyncpa [#allocation3], 1

// kernel: net_forward.33
$region0: #{net_forward.33}
  #allocation0 [shape = 'u32[]', space=smem, size = 0x4, offset = 0x4, fixed_abs, tag = 'smem constant byte address 0x4 - core index']
  #allocation1 [shape = 'u32[144,128]{1,0:T(1,128)}', space=vmem, size = 0x12000, scoped, tag = 'internal scratch']
  %s0 = inlined_call_operand.vmem [shape: bf16[392,64], index: 0, kind: input, shape index: {}]
  %s1 = inlined_call_operand.vmem [shape: bf16[64,128], index: 1, kind: input, shape index: {}]
  %s2 = inlined_call_operand.vmem [shape: f32[1,128], index: 2, kind: input, shape index: {}]
  %s3 = inlined_call_operand.vmem [shape: f32[1,128], index: 3, kind: input, shape index: {}]
  %s4 = inlined_call_operand.vmem [shape: f32[392,128], index: 4, kind: output, shape index: {}]
  %s5 = sld [smem:[#allocation0]]
  $region26: #{net_forward.33} parent=0
    _
  %s7 = ssub.s32 1, %s5
  %s8 = scalar_select 0, %s7, %s5
  // Predicated region
  $region2: #{net_forward.33} parent=0 // pred_check
    _
  $region3: #{net_forward.33} parent=0 // pred_check_branch
    %10 = sbr.rel (0) target = $region5
  $region4: #{net_forward.33} parent=0 // pred_region
    _
  $region5: #{net_forward.33} parent=0 // pred_fallthru
    _
  // Predicated region
  $region6: #{net_forward.33} parent=0 // pred_check
    _
  $region7: #{net_forward.33} parent=0 // pred_check_branch
    %12 = sbr.rel (0) target = $region9
  $region8: #{net_forward.33} parent=0 // pred_region
    _
  $region9: #{net_forward.33} parent=0 // pred_fallthru
    _
  // Predicated region
  $region10: #{net_forward.33} parent=0 // pred_check
    _
  $region11: #{net_forward.33} parent=0 // pred_check_branch
    %14 = sbr.rel (0) target = $region13
  $region12: #{net_forward.33} parent=0 // pred_region
    _
  $region13: #{net_forward.33} parent=0 // pred_fallthru
    _
  // Predicated region
  $region14: #{net_forward.33} parent=0 // pred_check
    _
  $region15: #{net_forward.33} parent=0 // pred_check_branch
    %16 = sbr.rel (0) target = $region17
  $region16: #{net_forward.33} parent=0 // pred_region
    _
  $region17: #{net_forward.33} parent=0 // pred_fallthru
    _
  %v18 = vld [vmem:[%s0] sm:$0xf]
  %v19 = vld [vmem:[%s0 + $0x4] sm:$0xf]
  %v20 = vld [vmem:[%s0 + $0x8] sm:$0xf]
  %v21 = vld [vmem:[%s0 + $0xc] sm:$0xf]
  %v22 = vld [vmem:[%s0 + $0x10] sm:$0xf]
  %v23 = vld [vmem:[%s0 + $0x14] sm:$0xf]
  %v24 = vld [vmem:[%s0 + $0x18] sm:$0xf]
  %v25 = vld [vmem:[%s0 + $0x1c] sm:$0xf]
  %v26 = vld [vmem:[%s0 + $0x20] sm:$0xf]
  %v27 = vld [vmem:[%s0 + $0x24] sm:$0xf]
  %v28 = vld [vmem:[%s0 + $0x28] sm:$0xf]
  %v29 = vld [vmem:[%s0 + $0x2c] sm:$0xf]
  %v30 = vld [vmem:[%s0 + $0x30] sm:$0xf]
  %v31 = vld [vmem:[%s0 + $0x34] sm:$0xf]
  %v32 = vld [vmem:[%s0 + $0x38] sm:$0xf]
  %v33 = vld [vmem:[%s0 + $0x3c] sm:$0xf]
  %v34 = vld [vmem:[%s0 + $0x40] sm:$0xf]
  %v35 = vld [vmem:[%s0 + $0x44] sm:$0xf]
  %v36 = vld [vmem:[%s0 + $0x48] sm:$0xf]
  %v37 = vld [vmem:[%s0 + $0x4c] sm:$0xf]
  %v38 = vld [vmem:[%s0 + $0x50] sm:$0xf]
  %v39 = vld [vmem:[%s0 + $0x54] sm:$0xf]
  %v40 = vld [vmem:[%s0 + $0x58] sm:$0xf]
  %v41 = vld [vmem:[%s0 + $0x5c] sm:$0xf]
  %v42 = vld [vmem:[%s0 + $0x60] sm:$0xf]
  %v43 = vld [vmem:[%s0 + $0x64] sm:$0xf]
  %v44 = vld [vmem:[%s0 + $0x68] sm:$0xf]
  %v45 = vld [vmem:[%s0 + $0x6c] sm:$0xf]
  %v46 = vld [vmem:[%s0 + $0x70] sm:$0xf]
  %v47 = vld [vmem:[%s0 + $0x74] sm:$0xf]
  %v48 = vld [vmem:[%s0 + $0x78] sm:$0xf]
  %v49 = vld [vmem:[%s0 + $0x7c] sm:$0xf]
  %v50 = vld [vmem:[%s0 + $0x80] sm:$0xf]
  %v51 = vld [vmem:[%s0 + $0x84] sm:$0xf]
  %v52 = vld [vmem:[%s0 + $0x88] sm:$0xf]
  %v53 = vld [vmem:[%s0 + $0x8c] sm:$0xf]
  %v54 = vld [vmem:[%s0 + $0x90] sm:$0xf]
  %v55 = vld [vmem:[%s0 + $0x94] sm:$0xf]
  %v56 = vld [vmem:[%s0 + $0x98] sm:$0xf]
  %v57 = vld [vmem:[%s0 + $0x9c] sm:$0xf]
  %v58 = vld [vmem:[%s0 + $0xa0] sm:$0xf]
  %v59 = vld [vmem:[%s0 + $0xa4] sm:$0xf]
  %v60 = vld [vmem:[%s0 + $0xa8] sm:$0xf]
  %v61 = vld [vmem:[%s0 + $0xac] sm:$0xf]
  %v62 = vld [vmem:[%s0 + $0xb0] sm:$0xf]
  %v63 = vld [vmem:[%s0 + $0xb4] sm:$0xf]
  %v64 = vld [vmem:[%s0 + $0xb8] sm:$0xf]
  %v65 = vld [vmem:[%s0 + $0xbc] sm:$0xf]
  %v66 = vld [vmem:[%s0 + $0xc0] sm:$0xf]
  %v67 = vld [vmem:[%s1] sm:$0xf]
  %v68 = vld [vmem:[%s1 + $0x4] sm:$0xf]
  %v69 = vld [vmem:[%s1 + $0x8] sm:$0xf]
  %v70 = vld [vmem:[%s1 + $0xc] sm:$0xf]
  %v71 = vld [vmem:[%s1 + $0x10] sm:$0xf]
  %v72 = vld [vmem:[%s1 + $0x14] sm:$0xf]
  %v73 = vld [vmem:[%s1 + $0x18] sm:$0xf]
  %v74 = vld [vmem:[%s1 + $0x1c] sm:$0xf]
  %v124 = vunpack.c.l.b16 %v18
  %v125 = vunpack.c.l.b16 %v19
  %v126 = vunpack.c.l.b16 %v20
  %v127 = vunpack.c.l.b16 %v21
  %v128 = vunpack.c.l.b16 %v22
  %v129 = vunpack.c.l.b16 %v23
  %v130 = vunpack.c.l.b16 %v24
  %v131 = vunpack.c.l.b16 %v25
  %v132 = vunpack.c.l.b16 %v26
  %v133 = vunpack.c.l.b16 %v27
  %v134 = vunpack.c.l.b16 %v28
  %v135 = vunpack.c.l.b16 %v29
  %v136 = vunpack.c.l.b16 %v30
  %v137 = vunpack.c.l.b16 %v31
  %v138 = vunpack.c.l.b16 %v32
  %v139 = vunpack.c.l.b16 %v33
  %v140 = vunpack.c.l.b16 %v34
  %v141 = vunpack.c.l.b16 %v35
  %v142 = vunpack.c.l.b16 %v36
  %v143 = vunpack.c.l.b16 %v37
  %v144 = vunpack.c.l.b16 %v38
  %v145 = vunpack.c.l.b16 %v39
  %v146 = vunpack.c.l.b16 %v40
  %v147 = vunpack.c.l.b16 %v41
  %v148 = vunpack.c.l.b16 %v42
  %v149 = vunpack.c.l.b16 %v43
  %v150 = vunpack.c.l.b16 %v44
  %v151 = vunpack.c.l.b16 %v45
  %v152 = vunpack.c.l.b16 %v46
  %v153 = vunpack.c.l.b16 %v47
  %v154 = vunpack.c.l.b16 %v48
  %v155 = vunpack.c.l.b16 %v49
  %v156 = vunpack.c.l.b16 %v50
  %v157 = vunpack.c.l.b16 %v51
  %v158 = vunpack.c.l.b16 %v52
  %v159 = vunpack.c.l.b16 %v53
  %v160 = vunpack.c.l.b16 %v54
  %v161 = vunpack.c.l.b16 %v55
  %v162 = vunpack.c.l.b16 %v56
  %v163 = vunpack.c.l.b16 %v57
  %v164 = vunpack.c.l.b16 %v58
  %v165 = vunpack.c.l.b16 %v59
  %v166 = vunpack.c.l.b16 %v60
  %v167 = vunpack.c.l.b16 %v61
  %v168 = vunpack.c.l.b16 %v62
  %v169 = vunpack.c.l.b16 %v63
  %v170 = vunpack.c.l.b16 %v64
  %v171 = vunpack.c.l.b16 %v65
  %v172 = vunpack.c.l.b16 %v66
  %v173 = vpack.c.b16 %v125, %v124
  %v174 = vpack.c.b16 %v127, %v126
  %v175 = vpack.c.b16 %v129, %v128
  %v176 = vpack.c.b16 %v131, %v130
  %v177 = vpack.c.b16 %v133, %v132
  %v178 = vpack.c.b16 %v135, %v134
  %v179 = vpack.c.b16 %v137, %v136
  %v180 = vpack.c.b16 %v139, %v138
  %v181 = vpack.c.b16 %v141, %v140
  %v182 = vpack.c.b16 %v143, %v142
  %v183 = vpack.c.b16 %v145, %v144
  %v184 = vpack.c.b16 %v147, %v146
  %v185 = vpack.c.b16 %v149, %v148
  %v186 = vpack.c.b16 %v151, %v150
  %v187 = vpack.c.b16 %v153, %v152
  %v188 = vpack.c.b16 %v155, %v154
  %v189 = vpack.c.b16 %v157, %v156
  %v190 = vpack.c.b16 %v159, %v158
  %v191 = vpack.c.b16 %v161, %v160
  %v192 = vpack.c.b16 %v163, %v162
  %v193 = vpack.c.b16 %v165, %v164
  %v194 = vpack.c.b16 %v167, %v166
  %v195 = vpack.c.b16 %v169, %v168
  %v196 = vpack.c.b16 %v171, %v170
  %v197 = vpack.c.b16 %v172, %v172
  %v206 = vunpack.c.l.b16 %v67
  %v207 = vunpack.c.l.b16 %v68
  %v208 = vunpack.c.l.b16 %v69
  %v209 = vunpack.c.l.b16 %v70
  %v210 = vunpack.c.l.b16 %v71
  %v211 = vunpack.c.l.b16 %v72
  %v212 = vunpack.c.l.b16 %v73
  %v213 = vunpack.c.l.b16 %v74
  %v214 = vpack.c.b16 %v207, %v206
  %v215 = vpack.c.b16 %v209, %v208
  %v216 = vpack.c.b16 %v211, %v210
  %v217 = vpack.c.b16 %v213, %v212
  %vm222 = vcmask 523264
  %v224 = vsel %vm222, %v173, 0
  %v227 = vsel %vm222, %v174, 0
  %v230 = vsel %vm222, %v175, 0
  %v233 = vsel %vm222, %v176, 0
  %v236 = vsel %vm222, %v177, 0
  %v239 = vsel %vm222, %v178, 0
  %v242 = vsel %vm222, %v179, 0
  %v245 = vsel %vm222, %v180, 0
  %v248 = vsel %vm222, %v181, 0
  %v251 = vsel %vm222, %v182, 0
  %v254 = vsel %vm222, %v183, 0
  %v257 = vsel %vm222, %v184, 0
  %v260 = vsel %vm222, %v185, 0
  %v263 = vsel %vm222, %v186, 0
  %v266 = vsel %vm222, %v187, 0
  %v269 = vsel %vm222, %v188, 0
  %v272 = vsel %vm222, %v189, 0
  %v275 = vsel %vm222, %v190, 0
  %v278 = vsel %vm222, %v191, 0
  %v281 = vsel %vm222, %v192, 0
  %v284 = vsel %vm222, %v193, 0
  %v287 = vsel %vm222, %v194, 0
  %v290 = vsel %vm222, %v195, 0
  %v293 = vsel %vm222, %v196, 0
  %v296 = vsel %vm222, %v197, 0
  %298 = vmatprep.subr.bf16.mxu0 0
  %299 = vmatpush1.bf16.msra.mxu0 %v214
  %300 = vmatprep.subr.bf16.mxu0 0
  %301 = vmatpush1.bf16.msra.mxu0 %v215
  %302 = vmatprep.subr.bf16.mxu0 0
  %303 = vmatpush1.bf16.msra.mxu0 %v216
  %304 = vmatprep.subr.bf16.mxu0 0
  %305 = vmatpush1.bf16.msra.mxu0 %v217
  %306 = vmatprep.subr.bf16.mxu0 0
  %307 = vmatpush1.bf16.msra.mxu0 0
  %308 = vmatprep.subr.bf16.mxu0 0
  %309 = vmatpush1.bf16.msra.mxu0 0
  %310 = vmatprep.subr.bf16.mxu0 0
  %311 = vmatpush1.bf16.msra.mxu0 0
  %312 = vmatprep.subr.bf16.mxu0 0
  %313 = vmatpush1.bf16.msra.mxu0 0
  %314 = vmatprep.subr.bf16.mxu0 0
  %315 = vmatpush1.bf16.msra.mxu0 0
  %316 = vmatprep.subr.bf16.mxu0 0
  %317 = vmatpush1.bf16.msra.mxu0 0
  %318 = vmatprep.subr.bf16.mxu0 0
  %319 = vmatpush1.bf16.msra.mxu0 0
  %320 = vmatprep.subr.bf16.mxu0 0
  %321 = vmatpush1.bf16.msra.mxu0 0
  %322 = vmatprep.subr.bf16.mxu0 0
  %323 = vmatpush1.bf16.msra.mxu0 0
  %324 = vmatprep.subr.bf16.mxu0 0
  %325 = vmatpush1.bf16.msra.mxu0 0
  %326 = vmatprep.subr.bf16.mxu0 0
  %327 = vmatpush1.bf16.msra.mxu0 0
  %328 = vmatprep.subr.bf16.mxu0 0
  %329 = vmatpush1.bf16.msra.mxu0 0
  %330 = vmatprep.mubr.bf16.mxu0 0
  %331 = vmatmul.mubr.bf16.gmra.mrb[0].mxu0 %v224
  %v332 = vpop.f32.mrb[0].mxu0
  %v333 = vadd.f32 0.0, %v332
  %v334 = vpop.f32.mrb[0].mxu0
  %v335 = vpop.f32.mrb[0].mxu0
  %v336 = vadd.f32 0.0, %v335
  %v337 = vpop.f32.mrb[0].mxu0
  %338 = vmatprep.mubr.bf16.mxu0 0
  %339 = vmatmul.mubr.bf16.gmra.mrb[0].mxu0 %v227
  %v340 = vpop.f32.mrb[0].mxu0
  %v341 = vadd.f32 0.0, %v340
  %v342 = vpop.f32.mrb[0].mxu0
  %v343 = vpop.f32.mrb[0].mxu0
  %v344 = vadd.f32 0.0, %v343
  %v345 = vpop.f32.mrb[0].mxu0
  %346 = vmatprep.mubr.bf16.mxu0 0
  %347 = vmatmul.mubr.bf16.gmra.mrb[0].mxu0 %v230
  %v348 = vpop.f32.mrb[0].mxu0
  %v349 = vadd.f32 0.0, %v348
  %v350 = vpop.f32.mrb[0].mxu0
  %v351 = vpop.f32.mrb[0].mxu0
  %v352 = vadd.f32 0.0, %v351
  %v353 = vpop.f32.mrb[0].mxu0
  %354 = vmatprep.mubr.bf16.mxu0 0
  %355 = vmatmul.mubr.bf16.gmra.mrb[0].mxu0 %v233
  %v356 = vpop.f32.mrb[0].mxu0
  %v357 = vadd.f32 0.0, %v356
  %v358 = vpop.f32.mrb[0].mxu0
  %v359 = vpop.f32.mrb[0].mxu0
  %v360 = vadd.f32 0.0, %v359
  %v361 = vpop.f32.mrb[0].mxu0
  %362 = vmatprep.mubr.bf16.mxu0 0
  %363 = vmatmul.mubr.bf16.gmra.mrb[0].mxu0 %v236
  %v364 = vpop.f32.mrb[0].mxu0
  %v365 = vadd.f32 0.0, %v364
  %v366 = vpop.f32.mrb[0].mxu0
  %v367 = vpop.f32.mrb[0].mxu0
  %v368 = vadd.f32 0.0, %v367
  %v369 = vpop.f32.mrb[0].mxu0
  %370 = vmatprep.mubr.bf16.mxu0 0
  %371 = vmatmul.mubr.bf16.gmra.mrb[0].mxu0 %v239
  %v372 = vpop.f32.mrb[0].mxu0
  %v373 = vadd.f32 0.0, %v372
  %v374 = vpop.f32.mrb[0].mxu0
  %v375 = vpop.f32.mrb[0].mxu0
  %v376 = vadd.f32 0.0, %v375
  %v377 = vpop.f32.mrb[0].mxu0
  %378 = vmatprep.mubr.bf16.mxu0 0
  %379 = vmatmul.mubr.bf16.gmra.mrb[0].mxu0 %v242
  %v380 = vpop.f32.mrb[0].mxu0
  %v381 = vadd.f32 0.0, %v380
  %v382 = vpop.f32.mrb[0].mxu0
  %v383 = vpop.f32.mrb[0].mxu0
  %v384 = vadd.f32 0.0, %v383
  %v385 = vpop.f32.mrb[0].mxu0
  %386 = vmatprep.mubr.bf16.mxu0 0
  %387 = vmatmul.mubr.bf16.gmra.mrb[0].mxu0 %v245
  %v388 = vpop.f32.mrb[0].mxu0
  %v389 = vadd.f32 0.0, %v388
  %v390 = vpop.f32.mrb[0].mxu0
  %v391 = vpop.f32.mrb[0].mxu0
  %v392 = vadd.f32 0.0, %v391
  %v393 = vpop.f32.mrb[0].mxu0
  %394 = vmatprep.mubr.bf16.mxu0 0
  %395 = vmatmul.mubr.bf16.gmra.mrb[0].mxu0 %v248
  %v396 = vpop.f32.mrb[0].mxu0
  %v397 = vadd.f32 0.0, %v396
  %v398 = vpop.f32.mrb[0].mxu0
  %v399 = vpop.f32.mrb[0].mxu0
  %v400 = vadd.f32 0.0, %v399
  %v401 = vpop.f32.mrb[0].mxu0
  %402 = vmatprep.mubr.bf16.mxu0 0
  %403 = vmatmul.mubr.bf16.gmra.mrb[0].mxu0 %v251
  %v404 = vpop.f32.mrb[0].mxu0
  %v405 = vadd.f32 0.0, %v404
  %v406 = vpop.f32.mrb[0].mxu0
  %v407 = vpop.f32.mrb[0].mxu0
  %v408 = vadd.f32 0.0, %v407
  %v409 = vpop.f32.mrb[0].mxu0
  %410 = vmatprep.mubr.bf16.mxu0 0
  %411 = vmatmul.mubr.bf16.gmra.mrb[0].mxu0 %v254
  %v412 = vpop.f32.mrb[0].mxu0
  %v413 = vadd.f32 0.0, %v412
  %v414 = vpop.f32.mrb[0].mxu0
  %v415 = vpop.f32.mrb[0].mxu0
  %v416 = vadd.f32 0.0, %v415
  %v417 = vpop.f32.mrb[0].mxu0
  %418 = vmatprep.mubr.bf16.mxu0 0
  %419 = vmatmul.mubr.bf16.gmra.mrb[0].mxu0 %v257
  %v420 = vpop.f32.mrb[0].mxu0
  %v421 = vadd.f32 0.0, %v420
  %v422 = vpop.f32.mrb[0].mxu0
  %v423 = vpop.f32.mrb[0].mxu0
  %v424 = vadd.f32 0.0, %v423
  %v425 = vpop.f32.mrb[0].mxu0
  %426 = vmatprep.mubr.bf16.mxu0 0
  %427 = vmatmul.mubr.bf16.gmra.mrb[0].mxu0 %v260
  %v428 = vpop.f32.mrb[0].mxu0
  %v429 = vadd.f32 0.0, %v428
  %v430 = vpop.f32.mrb[0].mxu0
  %v431 = vpop.f32.mrb[0].mxu0
  %v432 = vadd.f32 0.0, %v431
  %v433 = vpop.f32.mrb[0].mxu0
  %434 = vmatprep.mubr.bf16.mxu0 0
  %435 = vmatmul.mubr.bf16.gmra.mrb[0].mxu0 %v263
  %v436 = vpop.f32.mrb[0].mxu0
  %v437 = vadd.f32 0.0, %v436
  %v438 = vpop.f32.mrb[0].mxu0
  %v439 = vpop.f32.mrb[0].mxu0
  %v440 = vadd.f32 0.0, %v439
  %v441 = vpop.f32.mrb[0].mxu0
  %442 = vmatprep.mubr.bf16.mxu0 0
  %443 = vmatmul.mubr.bf16.gmra.mrb[0].mxu0 %v266
  %v444 = vpop.f32.mrb[0].mxu0
  %v445 = vadd.f32 0.0, %v444
  %v446 = vpop.f32.mrb[0].mxu0
  %v447 = vpop.f32.mrb[0].mxu0
  %v448 = vadd.f32 0.0, %v447
  %v449 = vpop.f32.mrb[0].mxu0
  %450 = vmatprep.mubr.bf16.mxu0 0
  %451 = vmatmul.mubr.bf16.gmra.mrb[0].mxu0 %v269
  %v452 = vpop.f32.mrb[0].mxu0
  %v453 = vadd.f32 0.0, %v452
  %v454 = vpop.f32.mrb[0].mxu0
  %v455 = vpop.f32.mrb[0].mxu0
  %v456 = vadd.f32 0.0, %v455
  %v457 = vpop.f32.mrb[0].mxu0
  %458 = vmatprep.mubr.bf16.mxu0 0
  %459 = vmatmul.mubr.bf16.gmra.mrb[0].mxu0 %v272
  %v460 = vpop.f32.mrb[0].mxu0
  %v461 = vadd.f32 0.0, %v460
  %v462 = vpop.f32.mrb[0].mxu0
  %v463 = vpop.f32.mrb[0].mxu0
  %v464 = vadd.f32 0.0, %v463
  %v465 = vpop.f32.mrb[0].mxu0
  %466 = vmatprep.mubr.bf16.mxu0 0
  %467 = vmatmul.mubr.bf16.gmra.mrb[0].mxu0 %v275
  %v468 = vpop.f32.mrb[0].mxu0
  %v469 = vadd.f32 0.0, %v468
  %v470 = vpop.f32.mrb[0].mxu0
  %v471 = vpop.f32.mrb[0].mxu0
  %v472 = vadd.f32 0.0, %v471
  %v473 = vpop.f32.mrb[0].mxu0
  %474 = vmatprep.mubr.bf16.mxu0 0
  %475 = vmatmul.mubr.bf16.gmra.mrb[0].mxu0 %v278
  %v476 = vpop.f32.mrb[0].mxu0
  %v477 = vadd.f32 0.0, %v476
  %v478 = vpop.f32.mrb[0].mxu0
  %v479 = vpop.f32.mrb[0].mxu0
  %v480 = vadd.f32 0.0, %v479
  %v481 = vpop.f32.mrb[0].mxu0
  %482 = vmatprep.mubr.bf16.mxu0 0
  %483 = vmatmul.mubr.bf16.gmra.mrb[0].mxu0 %v281
  %v484 = vpop.f32.mrb[0].mxu0
  %v485 = vadd.f32 0.0, %v484
  %v486 = vpop.f32.mrb[0].mxu0
  %v487 = vpop.f32.mrb[0].mxu0
  %v488 = vadd.f32 0.0, %v487
  %v489 = vpop.f32.mrb[0].mxu0
  %490 = vmatprep.mubr.bf16.mxu0 0
  %491 = vmatmul.mubr.bf16.gmra.mrb[0].mxu0 %v284
  %v492 = vpop.f32.mrb[0].mxu0
  %v493 = vadd.f32 0.0, %v492
  %v494 = vpop.f32.mrb[0].mxu0
  %v495 = vpop.f32.mrb[0].mxu0
  %v496 = vadd.f32 0.0, %v495
  %v497 = vpop.f32.mrb[0].mxu0
  %498 = vmatprep.mubr.bf16.mxu0 0
  %499 = vmatmul.mubr.bf16.gmra.mrb[0].mxu0 %v287
  %v500 = vpop.f32.mrb[0].mxu0
  %v501 = vadd.f32 0.0, %v500
  %v502 = vpop.f32.mrb[0].mxu0
  %v503 = vpop.f32.mrb[0].mxu0
  %v504 = vadd.f32 0.0, %v503
  %v505 = vpop.f32.mrb[0].mxu0
  %506 = vmatprep.mubr.bf16.mxu0 0
  %507 = vmatmul.mubr.bf16.gmra.mrb[0].mxu0 %v290
  %v508 = vpop.f32.mrb[0].mxu0
  %v509 = vadd.f32 0.0, %v508
  %v510 = vpop.f32.mrb[0].mxu0
  %v511 = vpop.f32.mrb[0].mxu0
  %v512 = vadd.f32 0.0, %v511
  %v513 = vpop.f32.mrb[0].mxu0
  %514 = vmatprep.mubr.bf16.mxu0 0
  %515 = vmatmul.mubr.bf16.gmra.mrb[0].mxu0 %v293
  %v516 = vpop.f32.mrb[0].mxu0
  %v517 = vadd.f32 0.0, %v516
  %v518 = vpop.f32.mrb[0].mxu0
  %v519 = vpop.f32.mrb[0].mxu0
  %v520 = vadd.f32 0.0, %v519
  %v521 = vpop.f32.mrb[0].mxu0
  %522 = vmatprep.mubr.bf16.mxu0 0
  %523 = vmatmul.mubr.bf16.gmra.mrb[0].mxu0 %v296
  %v524 = vpop.f32.mrb[0].mxu0
  %v525 = vadd.f32 0.0, %v524
  %v526 = vpop.f32.mrb[0].mxu0
  %v527 = vpop.f32.mrb[0].mxu0
  %v528 = vpop.f32.mrb[0].mxu0
  %529 = vdwg.mxu0
  %v530 = vmax.f32 %v333, 0.0
  %v531 = vmax.f32 %v336, 0.0
  %v532 = vmax.f32 %v341, 0.0
  %v533 = vmax.f32 %v344, 0.0
  %v534 = vmax.f32 %v349, 0.0
  %v535 = vmax.f32 %v352, 0.0
  %v536 = vmax.f32 %v357, 0.0
  %v537 = vmax.f32 %v360, 0.0
  %v538 = vmax.f32 %v365, 0.0
  %v539 = vmax.f32 %v368, 0.0
  %v540 = vmax.f32 %v373, 0.0
  %v541 = vmax.f32 %v376, 0.0
  %v542 = vmax.f32 %v381, 0.0
  %v543 = vmax.f32 %v384, 0.0
  %v544 = vmax.f32 %v389, 0.0
  %v545 = vmax.f32 %v392, 0.0
  %v546 = vmax.f32 %v397, 0.0
  %v547 = vmax.f32 %v400, 0.0
  %v548 = vmax.f32 %v405, 0.0
  %v549 = vmax.f32 %v408, 0.0
  %v550 = vmax.f32 %v413, 0.0
  %v551 = vmax.f32 %v416, 0.0
  %v552 = vmax.f32 %v421, 0.0
  %v553 = vmax.f32 %v424, 0.0
  %v554 = vmax.f32 %v429, 0.0
  %v555 = vmax.f32 %v432, 0.0
  %v556 = vmax.f32 %v437, 0.0
  %v557 = vmax.f32 %v440, 0.0
  %v558 = vmax.f32 %v445, 0.0
  %v559 = vmax.f32 %v448, 0.0
  %v560 = vmax.f32 %v453, 0.0
  %v561 = vmax.f32 %v456, 0.0
  %v562 = vmax.f32 %v461, 0.0
  %v563 = vmax.f32 %v464, 0.0
  %v564 = vmax.f32 %v469, 0.0
  %v565 = vmax.f32 %v472, 0.0
  %v566 = vmax.f32 %v477, 0.0
  %v567 = vmax.f32 %v480, 0.0
  %v568 = vmax.f32 %v485, 0.0
  %v569 = vmax.f32 %v488, 0.0
  %v570 = vmax.f32 %v493, 0.0
  %v571 = vmax.f32 %v496, 0.0
  %v572 = vmax.f32 %v501, 0.0
  %v573 = vmax.f32 %v504, 0.0
  %v574 = vmax.f32 %v509, 0.0
  %v575 = vmax.f32 %v512, 0.0
  %v576 = vmax.f32 %v517, 0.0
  %v577 = vmax.f32 %v520, 0.0
  %v578 = vmax.f32 %v525, 0.0
  %v579 = vld [vmem:[%s2] sm:$0x1]
  %v581 = vlaneseq
  %v582 = vshrl.u32 %v581, 7
  %v583 = vsub.s32 0, %v582
  %v584 = vrot.slane %v579, %v583
  %v586 = vmul.f32 %v530, %v584
  %v587 = vmul.f32 %v531, %v584
  %v588 = vmul.f32 %v532, %v584
  %v589 = vmul.f32 %v533, %v584
  %v590 = vmul.f32 %v534, %v584
  %v591 = vmul.f32 %v535, %v584
  %v592 = vmul.f32 %v536, %v584
  %v593 = vmul.f32 %v537, %v584
  %v594 = vmul.f32 %v538, %v584
  %v595 = vmul.f32 %v539, %v584
  %v596 = vmul.f32 %v540, %v584
  %v597 = vmul.f32 %v541, %v584
  %v598 = vmul.f32 %v542, %v584
  %v599 = vmul.f32 %v543, %v584
  %v600 = vmul.f32 %v544, %v584
  %v601 = vmul.f32 %v545, %v584
  %v602 = vmul.f32 %v546, %v584
  %v603 = vmul.f32 %v547, %v584
  %v604 = vmul.f32 %v548, %v584
  %v605 = vmul.f32 %v549, %v584
  %v606 = vmul.f32 %v550, %v584
  %v607 = vmul.f32 %v551, %v584
  %v608 = vmul.f32 %v552, %v584
  %v609 = vmul.f32 %v553, %v584
  %v610 = vmul.f32 %v554, %v584
  %v611 = vmul.f32 %v555, %v584
  %v612 = vmul.f32 %v556, %v584
  %v613 = vmul.f32 %v557, %v584
  %v614 = vmul.f32 %v558, %v584
  %v615 = vmul.f32 %v559, %v584
  %v616 = vmul.f32 %v560, %v584
  %v617 = vmul.f32 %v561, %v584
  %v618 = vmul.f32 %v562, %v584
  %v619 = vmul.f32 %v563, %v584
  %v620 = vmul.f32 %v564, %v584
  %v621 = vmul.f32 %v565, %v584
  %v622 = vmul.f32 %v566, %v584
  %v623 = vmul.f32 %v567, %v584
  %v624 = vmul.f32 %v568, %v584
  %v625 = vmul.f32 %v569, %v584
  %v626 = vmul.f32 %v570, %v584
  %v627 = vmul.f32 %v571, %v584
  %v628 = vmul.f32 %v572, %v584
  %v629 = vmul.f32 %v573, %v584
  %v630 = vmul.f32 %v574, %v584
  %v631 = vmul.f32 %v575, %v584
  %v632 = vmul.f32 %v576, %v584
  %v633 = vmul.f32 %v577, %v584
  %v634 = vmul.f32 %v578, %v584
  %v635 = vld [vmem:[%s3] sm:$0x1]
  %v637 = vlaneseq
  %v638 = vshrl.u32 %v637, 7
  %v639 = vsub.s32 0, %v638
  %v640 = vrot.slane %v635, %v639
  %v642 = vadd.f32 %v586, %v640
  %v643 = vadd.f32 %v587, %v640
  %v644 = vadd.f32 %v588, %v640
  %v645 = vadd.f32 %v589, %v640
  %v646 = vadd.f32 %v590, %v640
  %v647 = vadd.f32 %v591, %v640
  %v648 = vadd.f32 %v592, %v640
  %v649 = vadd.f32 %v593, %v640
  %v650 = vadd.f32 %v594, %v640
  %v651 = vadd.f32 %v595, %v640
  %v652 = vadd.f32 %v596, %v640
  %v653 = vadd.f32 %v597, %v640
  %v654 = vadd.f32 %v598, %v640
  %v655 = vadd.f32 %v599, %v640
  %v656 = vadd.f32 %v600, %v640
  %v657 = vadd.f32 %v601, %v640
  %v658 = vadd.f32 %v602, %v640
  %v659 = vadd.f32 %v603, %v640
  %v660 = vadd.f32 %v604, %v640
  %v661 = vadd.f32 %v605, %v640
  %v662 = vadd.f32 %v606, %v640
  %v663 = vadd.f32 %v607, %v640
  %v664 = vadd.f32 %v608, %v640
  %v665 = vadd.f32 %v609, %v640
  %v666 = vadd.f32 %v610, %v640
  %v667 = vadd.f32 %v611, %v640
  %v668 = vadd.f32 %v612, %v640
  %v669 = vadd.f32 %v613, %v640
  %v670 = vadd.f32 %v614, %v640
  %v671 = vadd.f32 %v615, %v640
  %v672 = vadd.f32 %v616, %v640
  %v673 = vadd.f32 %v617, %v640
  %v674 = vadd.f32 %v618, %v640
  %v675 = vadd.f32 %v619, %v640
  %v676 = vadd.f32 %v620, %v640
  %v677 = vadd.f32 %v621, %v640
  %v678 = vadd.f32 %v622, %v640
  %v679 = vadd.f32 %v623, %v640
  %v680 = vadd.f32 %v624, %v640
  %v681 = vadd.f32 %v625, %v640
  %v682 = vadd.f32 %v626, %v640
  %v683 = vadd.f32 %v627, %v640
  %v684 = vadd.f32 %v628, %v640
  %v685 = vadd.f32 %v629, %v640
  %v686 = vadd.f32 %v630, %v640
  %v687 = vadd.f32 %v631, %v640
  %v688 = vadd.f32 %v632, %v640
  %v689 = vadd.f32 %v633, %v640
  %v690 = vadd.f32 %v634, %v640
  %691 = vst [vmem:[%s4] sm:$0xff] %v642
  %692 = vst [vmem:[%s4 + $0x8] sm:$0xff] %v643
  %693 = vst [vmem:[%s4 + $0x10] sm:$0xff] %v644
  %694 = vst [vmem:[%s4 + $0x18] sm:$0xff] %v645
  %695 = vst [vmem:[%s4 + $0x20] sm:$0xff] %v646
  %696 = vst [vmem:[%s4 + $0x28] sm:$0xff] %v647
  %697 = vst [vmem:[%s4 + $0x30] sm:$0xff] %v648
  %698 = vst [vmem:[%s4 + $0x38] sm:$0xff] %v649
  %699 = vst [vmem:[%s4 + $0x40] sm:$0xff] %v650
  %700 = vst [vmem:[%s4 + $0x48] sm:$0xff] %v651
  %701 = vst [vmem:[%s4 + $0x50] sm:$0xff] %v652
  %702 = vst [vmem:[%s4 + $0x58] sm:$0xff] %v653
  %703 = vst [vmem:[%s4 + $0x60] sm:$0xff] %v654
  %704 = vst [vmem:[%s4 + $0x68] sm:$0xff] %v655
  %705 = vst [vmem:[%s4 + $0x70] sm:$0xff] %v656
  %706 = vst [vmem:[%s4 + $0x78] sm:$0xff] %v657
  %707 = vst [vmem:[%s4 + $0x80] sm:$0xff] %v658
  %708 = vst [vmem:[%s4 + $0x88] sm:$0xff] %v659
  %709 = vst [vmem:[%s4 + $0x90] sm:$0xff] %v660
  %710 = vst [vmem:[%s4 + $0x98] sm:$0xff] %v661
  %711 = vst [vmem:[%s4 + $0xa0] sm:$0xff] %v662
  %712 = vst [vmem:[%s4 + $0xa8] sm:$0xff] %v663
  %713 = vst [vmem:[%s4 + $0xb0] sm:$0xff] %v664
  %714 = vst [vmem:[%s4 + $0xb8] sm:$0xff] %v665
  %715 = vst [vmem:[%s4 + $0xc0] sm:$0xff] %v666
  %716 = vst [vmem:[%s4 + $0xc8] sm:$0xff] %v667
  %717 = vst [vmem:[%s4 + $0xd0] sm:$0xff] %v668
  %718 = vst [vmem:[%s4 + $0xd8] sm:$0xff] %v669
  %719 = vst [vmem:[%s4 + $0xe0] sm:$0xff] %v670
  %720 = vst [vmem:[%s4 + $0xe8] sm:$0xff] %v671
  %721 = vst [vmem:[%s4 + $0xf0] sm:$0xff] %v672
  %722 = vst [vmem:[%s4 + $0xf8] sm:$0xff] %v673
  %723 = vst [vmem:[%s4 + $0x100] sm:$0xff] %v674
  %724 = vst [vmem:[%s4 + $0x108] sm:$0xff] %v675
  %725 = vst [vmem:[%s4 + $0x110] sm:$0xff] %v676
  %726 = vst [vmem:[%s4 + $0x118] sm:$0xff] %v677
  %727 = vst [vmem:[%s4 + $0x120] sm:$0xff] %v678
  %728 = vst [vmem:[%s4 + $0x128] sm:$0xff] %v679
  %729 = vst [vmem:[%s4 + $0x130] sm:$0xff] %v680
  %730 = vst [vmem:[%s4 + $0x138] sm:$0xff] %v681
  %731 = vst [vmem:[%s4 + $0x140] sm:$0xff] %v682
  %732 = vst [vmem:[%s4 + $0x148] sm:$0xff] %v683
  %733 = vst [vmem:[%s4 + $0x150] sm:$0xff] %v684
  %734 = vst [vmem:[%s4 + $0x158] sm:$0xff] %v685
  %735 = vst [vmem:[%s4 + $0x160] sm:$0xff] %v686
  %736 = vst [vmem:[%s4 + $0x168] sm:$0xff] %v687
  %737 = vst [vmem:[%s4 + $0x170] sm:$0xff] %v688
  %738 = vst [vmem:[%s4 + $0x178] sm:$0xff] %v689
  %739 = vst [vmem:[%s4 + $0x180] sm:$0xff] %v690
  // Predicated region
  $region18: #{net_forward.33} parent=0 // pred_check
    _
  $region19: #{net_forward.33} parent=0 // pred_check_branch
    %741 = sbr.rel (0) target = $region21
  $region20: #{net_forward.33} parent=0 // pred_region
    _
  $region21: #{net_forward.33} parent=0 // pred_fallthru
    _
  // Predicated region
  $region22: #{net_forward.33} parent=0 // pred_check
    _
  $region23: #{net_forward.33} parent=0 // pred_check_branch
    %743 = sbr.rel (0) target = $region25
  $region24: #{net_forward.33} parent=0 // pred_region
    _
  $region25: #{net_forward.33} parent=0 // pred_fallthru
    _

</llo_original>
